<compile_context>
chip_gen: v6e
topology: v6e:2x2x1
jax: 0.10.0
libtpu: 0.0.40
codegen_flags: <defaults>
</compile_context>

<pallas_src>
import functools

import jax
import jax.numpy as jnp
import numpy as np
from jax.experimental import pallas as pl
from jax.experimental.pallas import tpu as pltpu

N_DEGREE = 4
KERNEL_SIZE = 7
DOWNSAMPLE_DEGS = (2, 3)
IMAGE_SIZE = 28
PAD7 = KERNEL_SIZE // 2                       # 3
WP = IMAGE_SIZE + 2 * PAD7                    # 34 = zero-padded image extent
OUT_HW = IMAGE_SIZE // 2 ** len(DOWNSAMPLE_DEGS)   # 7


# -----------------------------------------------------------------------------
# Pallas kernels
# -----------------------------------------------------------------------------
def _ccp_feature_kernel(w0_ref, b0_ref, xp_ref, band_ref,
                        ph1_ref, ph2_ref, pw1_ref, pw2_ref,
                        o_ref, zp_ref):
    """Fused preconv -> degree convs -> polynomial FMAs -> 2x2 avg pools.

    Per grid step (T images, everything stays in VMEM):
      w0_ref : (C, 9) f32 SMEM      3x3 preconv weights (row = ky*3+kx)
      b0_ref : (C,)  f32 SMEM       preconv bias
      xp_ref : (T, 30, 30) f32      input images, zero-padded by 1 (preconv pad)
      band   : (7, C*34, 4*C*28)    banded 7x7 conv weights, one slab per ky
      ph1/pw1, ph2/pw2 : constant 2x2 average-pool matrices (28->14, 14->7)
      o_ref  : (T*8, C*7) f32       pooled features; row t*8+7 is zero padding
      zp_ref : (T*34 + 8, C*34)     VMEM scratch: zero-padded preconv output in
                                    stacked-rows x channel-concat-columns layout
    """
    T = xp_ref.shape[0]
    C = band_ref.shape[1] // WP
    RA = T * WP                    # matmul rows: 28 valid + 6 unused per image
    DCW = C * IMAGE_SIZE           # conv-output columns per degree (co*28 + w)

    # Zero the scratch: its border columns/rows ARE the 7x7 conv zero padding.
    zp_ref[...] = jnp.zeros(zp_ref.shape, zp_ref.dtype)

    # ---- preconv: Conv2d(1, C, 3, stride=1, padding=1, bias=True) ----------
    xp = xp_ref[...]                                        # (T, 30, 30)
    for c in range(C):
        acc = jnp.zeros((T, IMAGE_SIZE, IMAGE_SIZE), jnp.float32)
        for ky in range(3):
            for kx in range(3):
                acc = acc + w0_ref[c, ky * 3 + kx] * xp[:, ky:ky + IMAGE_SIZE,
                                                        kx:kx + IMAGE_SIZE]
        acc = acc + b0_ref[c]
        for t in range(T):
            zp_ref[t * WP + PAD7:t * WP + PAD7 + IMAGE_SIZE,
                   c * WP + PAD7:c * WP + PAD7 + IMAGE_SIZE] = acc[t]

    # ---- degree convolutions 1..4 (7x7, padding=3, no bias) -----------------
    # conv_d output slab: rows = t*34 + h, cols = co*28 + w.  Rows with h >= 28
    # read across image boundaries / the zero tail and are never consumed (the
    # pooling matrices only reference h < 28).
    def degree(d):
        out = jnp.zeros((RA, DCW), jnp.float32)
        for ky in range(KERNEL_SIZE):
            lhs = zp_ref[ky:ky + RA, :]                          # (RA, C*34)
            rhs = band_ref[ky, :, d * DCW:(d + 1) * DCW]         # (C*34, C*28)
            out = out + jnp.dot(lhs, rhs, preferred_element_type=jnp.float32)
        return out

    ph1 = ph1_ref[...]
    ph2 = ph2_ref[...]
    pw1 = pw1_ref[...]
    pw2 = pw2_ref[...]

    def pool(a, ph, pw):           # 2x2 average pool == two small 2-D matmuls
        return jnp.dot(jnp.dot(ph, a, preferred_element_type=jnp.float32), pw,
                       preferred_element_type=jnp.float32)

    out = degree(0)                                   # degree 1         (28x28)
    out = degree(1) * out + out                       # degree 2         (28x28)
    out = pool(out, ph1, pw1)                         # downsample    -> (14x14)
    out = pool(degree(2), ph1, pw1) * out + out       # degree 3         (14x14)
    out = pool(out, ph2, pw2)                         # downsample    ->  (7x7)
    t4 = pool(pool(degree(3), ph1, pw1), ph2, pw2)    # degree-4 temp, pooled 2x
    o_ref[...] = t4 * out + out                       # degree 4          (7x7)


def _linear_kernel(x_ref, w_ref, b_ref, o_ref):
    # x_ref: (RB, total) f32, w_ref: (total, 10), b_ref: (1, 10)
    o_ref[...] = (jnp.dot(x_ref[...], w_ref[...],
                          preferred_element_type=jnp.float32) + b_ref[...])


# -----------------------------------------------------------------------------
# Wrapper glue (one-time weight preprocessing + tiny layout ops only)
# -----------------------------------------------------------------------------
def _image_tile(batch):
    """Batch-independent image tile (4 images/step; halves for tiny batches)."""
    t = 4
    while t > 1 and batch % t:
        t //= 2
    return t


def _row_tile(batch):
    """Row tile for the final Linear; must be 8-aligned or the whole batch."""
    t = 256
    while t >= 8 and batch % t:
        t //= 2
    return t if (t >= 8 and batch % t == 0) else batch


def _build_band(wdeg):
    """PyTorch-layout degree weights (deg, Cout, Cin, 7, 7) ->
    banded matrices (7, Cin*34, deg*Cout*28) so that a 7x7 conv becomes
    7 matmuls over the stacked-rows / channel-concat z layout."""
    n_deg, c_out, c_in, ks, _ = wdeg.shape
    # shift[kx, wp, w] = 1 iff wp == w + kx
    shift = (jnp.arange(WP)[None, :, None] ==
             (jnp.arange(IMAGE_SIZE)[None, None, :] +
              jnp.arange(ks)[:, None, None])).astype(jnp.float32)
    band = jnp.einsum('doiyx,xpw->yipdow', wdeg.astype(jnp.float32), shift)
    return band.reshape(ks, c_in * WP, n_deg * c_out * IMAGE_SIZE)


def _pool_matrices(T, C):
    f32 = jnp.float32
    # rows: 28 -> 14 inside each stride-34 image row block
    r = jnp.arange(T * 14)
    c = jnp.arange(T * WP)
    src = (r // 14) * WP + (r % 14) * 2
    ph1 = (((c[None, :] == src[:, None]) |
            (c[None, :] == src[:, None] + 1)) * 0.5).astype(f32)
    # rows: 14 -> 7, emitting 8 rows per image (row 7 stays zero = padding)
    r = jnp.arange(T * 8)
    c = jnp.arange(T * 14)
    a = r % 8
    src = (r // 8) * 14 + a * 2
    hit = (c[None, :] == src[:, None]) | (c[None, :] == src[:, None] + 1)
    ph2 = jnp.where((a < 7)[:, None] & hit, 0.5, 0.0).astype(f32)
    # cols: 28 -> 14 and 14 -> 7 inside each per-channel column block
    r = jnp.arange(C * IMAGE_SIZE)
    c = jnp.arange(C * 14)
    src = (c // 14) * IMAGE_SIZE + (c % 14) * 2
    pw1 = (((r[:, None] == src[None, :]) |
            (r[:, None] == src[None, :] + 1)) * 0.5).astype(f32)
    r = jnp.arange(C * 14)
    c = jnp.arange(C * 7)
    src = (c // 7) * 14 + (c % 7) * 2
    pw2 = (((r[:, None] == src[None, :]) |
            (r[:, None] == src[None, :] + 1)) * 0.5).astype(f32)
    return ph1, ph2, pw1, pw2


def init_params(n_channels, key):
    """Parameters in native PyTorch layouts."""
    C = n_channels
    total = OUT_HW * OUT_HW * C
    ks = jax.random.split(key, 4 + N_DEGREE)
    p = {
        "w0": 0.2 * jax.random.normal(ks[0], (C, 1, 3, 3), jnp.float32),
        "b0": 0.1 * jax.random.normal(ks[1], (C,), jnp.float32),
        "wc": 0.05 * jax.random.normal(ks[2], (10, total), jnp.float32),
        "bc": 0.05 * jax.random.normal(ks[3], (10,), jnp.float32),
    }
    for i in range(1, N_DEGREE + 1):
        p[f"w{i}"] = 0.05 * jax.random.normal(
            ks[3 + i], (C, C, KERNEL_SIZE, KERNEL_SIZE), jnp.float32)
    return p


# -----------------------------------------------------------------------------
# CCP forward: 2 pallas_calls (fused feature kernel + final Linear)
# -----------------------------------------------------------------------------
@functools.partial(jax.jit, static_argnames=("n_channels",))
def ccp_forward(x_nchw, params, n_channels):
    C = n_channels
    B = x_nchw.shape[0]
    T = _image_tile(B)
    total = OUT_HW * OUT_HW * C

    # TODO(synk): the 1-pixel input pad and the one-time weight preprocessing
    # below stay as XLA glue; all per-pixel hot-path work runs inside Pallas.
    xp = jnp.pad(x_nchw[:, 0].astype(jnp.float32), ((0, 0), (1, 1), (1, 1)))

    wdeg = jnp.stack([params[f"w{i}"] for i in range(1, N_DEGREE + 1)])
    band = _build_band(wdeg)                               # (7, C*34, 4*C*28)
    ph1, ph2, pw1, pw2 = _pool_matrices(T, C)
    w0 = params["w0"].reshape(C, 9).astype(jnp.float32)
    b0 = params["b0"].astype(jnp.float32)

    smem = pl.BlockSpec(memory_space=pltpu.MemorySpace.SMEM)
    feats8 = pl.pallas_call(
        _ccp_feature_kernel,
        out_shape=jax.ShapeDtypeStruct((B * 8, C * OUT_HW), jnp.float32),
        grid=(B // T,),
        in_specs=[
            smem,                                                    # w0
            smem,                                                    # b0
            pl.BlockSpec((T, 30, 30), lambda i: (i, 0, 0)),          # x padded
            pl.BlockSpec(band.shape, lambda i: (0, 0, 0)),           # band
            pl.BlockSpec(ph1.shape, lambda i: (0, 0)),               # ph1
            pl.BlockSpec(ph2.shape, lambda i: (0, 0)),               # ph2
            pl.BlockSpec(pw1.shape, lambda i: (0, 0)),               # pw1
            pl.BlockSpec(pw2.shape, lambda i: (0, 0)),               # pw2
        ],
        out_specs=pl.BlockSpec((T * 8, C * OUT_HW), lambda i: (i, 0)),
        scratch_shapes=[pltpu.VMEM((T * WP + 8, C * WP), jnp.float32)],
        compiler_params=pltpu.CompilerParams(
            dimension_semantics=("parallel",)),
    )(w0, b0, xp, band, ph1, ph2, pw1, pw2)                # (B*8, C*7)

    # Tiny relayout (B*total floats) into PyTorch's NCHW flatten order c*49+h*7+w.
    feats = feats8.reshape(B, 8, C, OUT_HW)[:, :OUT_HW]
    feats = jnp.transpose(feats, (0, 2, 1, 3)).reshape(B, total)

    RB = _row_tile(B)
    out = pl.pallas_call(
        _linear_kernel,
        out_shape=jax.ShapeDtypeStruct((B, 10), jnp.float32),
        grid=(B // RB,),
        in_specs=[
            pl.BlockSpec((RB, total), lambda i: (i, 0)),
            pl.BlockSpec((total, 10), lambda i: (0, 0)),
            pl.BlockSpec((1, 10), lambda i: (0, 0)),
        ],
        out_specs=pl.BlockSpec((RB, 10), lambda i: (i, 0)),
        compiler_params=pltpu.CompilerParams(
            dimension_semantics=("parallel",)),
    )(feats, params["wc"].T.astype(jnp.float32),
      params["bc"].reshape(1, 10).astype(jnp.float32))
    return out


# -----------------------------------------------------------------------------
# Pure-JAX reference (mirror of the PyTorch forward) for self-checking
# -----------------------------------------------------------------------------
def _ccp_reference(x, params):
    dn = ("NCHW", "OIHW", "NCHW")
    z = jax.lax.conv_general_dilated(
        x, params["w0"], (1, 1), [(1, 1), (1, 1)], dimension_numbers=dn)
    z = z + params["b0"][None, :, None, None]

    def conv7(w):
        return jax.lax.conv_general_dilated(
            z, w, (1, 1), [(PAD7, PAD7), (PAD7, PAD7)], dimension_numbers=dn)

    def pool(a):
        b, c, h, w = a.shape
        return a.reshape(b, c, h // 2, 2, w // 2, 2).mean(axis=(3, 5))

    out = conv7(params["w1"])
    out = conv7(params["w2"]) * out + out
    out = pool(out)
    out = pool(conv7(params["w3"])) * out + out
    out = pool(out)
    out = pool(pool(conv7(params["w4"]))) * out + out
    out = out.reshape(x.shape[0], -1)
    return out @ params["wc"].T + params["bc"]


if __name__ == "__main__":
    n_channels = 4
    batch = 2
    key = jax.random.PRNGKey(0)
    k_x, k_p = jax.random.split(key)
    params = init_params(n_channels, k_p)
    # Input shape dictated by the module: grayscale 28x28 images (NCHW).
    x = jax.random.normal(k_x, (batch, 1, IMAGE_SIZE, IMAGE_SIZE), jnp.float32)

    y = ccp_forward(x, params, n_channels)
    y = jax.block_until_ready(y)
    assert y.shape == (batch, 10), y.shape
    assert bool(jnp.all(jnp.isfinite(y)))

    # Correctness vs. a pure-JAX reference of the PyTorch module (loose
    # tolerance only to allow for TPU f32 matmul pass differences).
    y_ref = _ccp_reference(x, params)
    np.testing.assert_allclose(np.asarray(y), np.asarray(y_ref),
                               rtol=5e-2, atol=5e-2)
    print("KERNEL_OK")
</pallas_src>

<mosaic_0001>
module attributes {stable_mosaic.version = 11 : i64} {
  func.func @_ccp_feature_kernel(%arg0: i32, %arg1: memref<4x9xf32, #tpu.memory_space<smem>>, %arg2: memref<4xf32, #tpu.memory_space<smem>>, %arg3: memref<2x30x30xf32, #tpu.memory_space<vmem>>, %arg4: memref<7x136x448xf32, #tpu.memory_space<vmem>>, %arg5: memref<28x68xf32, #tpu.memory_space<vmem>>, %arg6: memref<16x28xf32, #tpu.memory_space<vmem>>, %arg7: memref<112x56xf32, #tpu.memory_space<vmem>>, %arg8: memref<56x28xf32, #tpu.memory_space<vmem>>, %arg9: memref<16x28xf32, #tpu.memory_space<vmem>>, %arg10: memref<76x136xf32, #tpu.memory_space<vmem>>) attributes {dimension_semantics = [#tpu.dimension_semantics<parallel>], iteration_bounds = array<i64: 1>, scalar_prefetch = 0 : i64, scratch_operands = 1 : i64, tpu.core_type = #tpu.core_type<tc>, window_params = [{transform_indices = @transform_0, window_bounds = array<i64: 4, 9>}, {transform_indices = @transform_1, window_bounds = array<i64: 4>}, {transform_indices = @transform_2, window_bounds = array<i64: 2, 30, 30>}, {pipeline_mode = #tpu.pipeline_mode<synchronous>, transform_indices = @transform_3, window_bounds = array<i64: 7, 136, 448>}, {pipeline_mode = #tpu.pipeline_mode<synchronous>, transform_indices = @transform_4, window_bounds = array<i64: 28, 68>}, {pipeline_mode = #tpu.pipeline_mode<synchronous>, transform_indices = @transform_5, window_bounds = array<i64: 16, 28>}, {pipeline_mode = #tpu.pipeline_mode<synchronous>, transform_indices = @transform_6, window_bounds = array<i64: 112, 56>}, {pipeline_mode = #tpu.pipeline_mode<synchronous>, transform_indices = @transform_7, window_bounds = array<i64: 56, 28>}, {transform_indices = @transform_8, window_bounds = array<i64: 16, 28>}]} {
    %cst = arith.constant 0.000000e+00 : f32
    %0 = vector.broadcast %cst : f32 to vector<76x136xf32>
    %c0 = arith.constant 0 : index
    %c0_0 = arith.constant 0 : index
    %1 = vector.load %arg10[%c0, %c0_0] : memref<76x136xf32, #tpu.memory_space<vmem>>, vector<76x136xf32>
    tpu.vector_store %arg10[%c0, %c0_0], %0 {strides = array<i32>} : memref<76x136xf32, #tpu.memory_space<vmem>>, vector<76x136xf32>,
    %c0_1 = arith.constant 0 : index
    %c0_2 = arith.constant 0 : index
    %c0_3 = arith.constant 0 : index
    %2 = vector.load %arg3[%c0_1, %c0_2, %c0_3] : memref<2x30x30xf32, #tpu.memory_space<vmem>>, vector<2x30x30xf32>
    %cst_4 = arith.constant 0.000000e+00 : f32
    %3 = vector.broadcast %cst_4 : f32 to vector<2x28x28xf32>
    %c0_5 = arith.constant 0 : index
    %c0_6 = arith.constant 0 : index
    %4 = memref.load %arg1[%c0_5, %c0_6] : memref<4x9xf32, #tpu.memory_space<smem>>
    %5 = vector.extract_strided_slice %2 {offsets = [0, 0, 0], sizes = [2, 28, 28], strides = [1, 1, 1]} : vector<2x30x30xf32> to vector<2x28x28xf32>
    %6 = vector.broadcast %4 : f32 to vector<2x28x28xf32>
    %7 = arith.mulf %6, %5 : vector<2x28x28xf32>
    %8 = arith.addf %3, %7 : vector<2x28x28xf32>
    %c0_7 = arith.constant 0 : index
    %c1 = arith.constant 1 : index
    %9 = memref.load %arg1[%c0_7, %c1] : memref<4x9xf32, #tpu.memory_space<smem>>
    %10 = vector.extract_strided_slice %2 {offsets = [0, 0, 1], sizes = [2, 28, 28], strides = [1, 1, 1]} : vector<2x30x30xf32> to vector<2x28x28xf32>
    %11 = vector.broadcast %9 : f32 to vector<2x28x28xf32>
    %12 = arith.mulf %11, %10 : vector<2x28x28xf32>
    %13 = arith.addf %8, %12 : vector<2x28x28xf32>
    %c0_8 = arith.constant 0 : index
    %c2 = arith.constant 2 : index
    %14 = memref.load %arg1[%c0_8, %c2] : memref<4x9xf32, #tpu.memory_space<smem>>
    %15 = vector.extract_strided_slice %2 {offsets = [0, 0, 2], sizes = [2, 28, 28], strides = [1, 1, 1]} : vector<2x30x30xf32> to vector<2x28x28xf32>
    %16 = vector.broadcast %14 : f32 to vector<2x28x28xf32>
    %17 = arith.mulf %16, %15 : vector<2x28x28xf32>
    %18 = arith.addf %13, %17 : vector<2x28x28xf32>
    %c0_9 = arith.constant 0 : index
    %c3 = arith.constant 3 : index
    %19 = memref.load %arg1[%c0_9, %c3] : memref<4x9xf32, #tpu.memory_space<smem>>
    %20 = vector.extract_strided_slice %2 {offsets = [0, 1, 0], sizes = [2, 28, 28], strides = [1, 1, 1]} : vector<2x30x30xf32> to vector<2x28x28xf32>
    %21 = vector.broadcast %19 : f32 to vector<2x28x28xf32>
    %22 = arith.mulf %21, %20 : vector<2x28x28xf32>
    %23 = arith.addf %18, %22 : vector<2x28x28xf32>
    %c0_10 = arith.constant 0 : index
    %c4 = arith.constant 4 : index
    %24 = memref.load %arg1[%c0_10, %c4] : memref<4x9xf32, #tpu.memory_space<smem>>
    %25 = vector.extract_strided_slice %2 {offsets = [0, 1, 1], sizes = [2, 28, 28], strides = [1, 1, 1]} : vector<2x30x30xf32> to vector<2x28x28xf32>
    %26 = vector.broadcast %24 : f32 to vector<2x28x28xf32>
    %27 = arith.mulf %26, %25 : vector<2x28x28xf32>
    %28 = arith.addf %23, %27 : vector<2x28x28xf32>
    %c0_11 = arith.constant 0 : index
    %c5 = arith.constant 5 : index
    %29 = memref.load %arg1[%c0_11, %c5] : memref<4x9xf32, #tpu.memory_space<smem>>
    %30 = vector.extract_strided_slice %2 {offsets = [0, 1, 2], sizes = [2, 28, 28], strides = [1, 1, 1]} : vector<2x30x30xf32> to vector<2x28x28xf32>
    %31 = vector.broadcast %29 : f32 to vector<2x28x28xf32>
    %32 = arith.mulf %31, %30 : vector<2x28x28xf32>
    %33 = arith.addf %28, %32 : vector<2x28x28xf32>
    %c0_12 = arith.constant 0 : index
    %c6 = arith.constant 6 : index
    %34 = memref.load %arg1[%c0_12, %c6] : memref<4x9xf32, #tpu.memory_space<smem>>
    %35 = vector.extract_strided_slice %2 {offsets = [0, 2, 0], sizes = [2, 28, 28], strides = [1, 1, 1]} : vector<2x30x30xf32> to vector<2x28x28xf32>
    %36 = vector.broadcast %34 : f32 to vector<2x28x28xf32>
    %37 = arith.mulf %36, %35 : vector<2x28x28xf32>
    %38 = arith.addf %33, %37 : vector<2x28x28xf32>
    %c0_13 = arith.constant 0 : index
    %c7 = arith.constant 7 : index
    %39 = memref.load %arg1[%c0_13, %c7] : memref<4x9xf32, #tpu.memory_space<smem>>
    %40 = vector.extract_strided_slice %2 {offsets = [0, 2, 1], sizes = [2, 28, 28], strides = [1, 1, 1]} : vector<2x30x30xf32> to vector<2x28x28xf32>
    %41 = vector.broadcast %39 : f32 to vector<2x28x28xf32>
    %42 = arith.mulf %41, %40 : vector<2x28x28xf32>
    %43 = arith.addf %38, %42 : vector<2x28x28xf32>
    %c0_14 = arith.constant 0 : index
    %c8 = arith.constant 8 : index
    %44 = memref.load %arg1[%c0_14, %c8] : memref<4x9xf32, #tpu.memory_space<smem>>
    %45 = vector.extract_strided_slice %2 {offsets = [0, 2, 2], sizes = [2, 28, 28], strides = [1, 1, 1]} : vector<2x30x30xf32> to vector<2x28x28xf32>
    %46 = vector.broadcast %44 : f32 to vector<2x28x28xf32>
    %47 = arith.mulf %46, %45 : vector<2x28x28xf32>
    %48 = arith.addf %43, %47 : vector<2x28x28xf32>
    %c0_15 = arith.constant 0 : index
    %49 = memref.load %arg2[%c0_15] : memref<4xf32, #tpu.memory_space<smem>>
    %50 = vector.broadcast %49 : f32 to vector<2x28x28xf32>
    %51 = arith.addf %48, %50 : vector<2x28x28xf32>
    %52 = vector.extract_strided_slice %51 {offsets = [0, 0, 0], sizes = [1, 28, 28], strides = [1, 1, 1]} : vector<2x28x28xf32> to vector<1x28x28xf32>
    %53 = vector.shape_cast %52 : vector<1x28x28xf32> to vector<28x28xf32>
    %c3_16 = arith.constant 3 : index
    %c3_17 = arith.constant 3 : index
    %54 = vector.load %arg10[%c3_16, %c3_17] : memref<76x136xf32, #tpu.memory_space<vmem>>, vector<28x28xf32>
    tpu.vector_store %arg10[%c3_16, %c3_17], %53 {strides = array<i32>} : memref<76x136xf32, #tpu.memory_space<vmem>>, vector<28x28xf32>,
    %55 = vector.extract_strided_slice %51 {offsets = [1, 0, 0], sizes = [1, 28, 28], strides = [1, 1, 1]} : vector<2x28x28xf32> to vector<1x28x28xf32>
    %56 = vector.shape_cast %55 : vector<1x28x28xf32> to vector<28x28xf32>
    %c37 = arith.constant 37 : index
    %c3_18 = arith.constant 3 : index
    %57 = vector.load %arg10[%c37, %c3_18] : memref<76x136xf32, #tpu.memory_space<vmem>>, vector<28x28xf32>
    tpu.vector_store %arg10[%c37, %c3_18], %56 {strides = array<i32>} : memref<76x136xf32, #tpu.memory_space<vmem>>, vector<28x28xf32>,
    %cst_19 = arith.constant 0.000000e+00 : f32
    %58 = vector.broadcast %cst_19 : f32 to vector<2x28x28xf32>
    %c1_20 = arith.constant 1 : index
    %c0_21 = arith.constant 0 : index
    %59 = memref.load %arg1[%c1_20, %c0_21] : memref<4x9xf32, #tpu.memory_space<smem>>
    %60 = vector.extract_strided_slice %2 {offsets = [0, 0, 0], sizes = [2, 28, 28], strides = [1, 1, 1]} : vector<2x30x30xf32> to vector<2x28x28xf32>
    %61 = vector.broadcast %59 : f32 to vector<2x28x28xf32>
    %62 = arith.mulf %61, %60 : vector<2x28x28xf32>
    %63 = arith.addf %58, %62 : vector<2x28x28xf32>
    %c1_22 = arith.constant 1 : index
    %c1_23 = arith.constant 1 : index
    %64 = memref.load %arg1[%c1_22, %c1_23] : memref<4x9xf32, #tpu.memory_space<smem>>
    %65 = vector.extract_strided_slice %2 {offsets = [0, 0, 1], sizes = [2, 28, 28], strides = [1, 1, 1]} : vector<2x30x30xf32> to vector<2x28x28xf32>
    %66 = vector.broadcast %64 : f32 to vector<2x28x28xf32>
    %67 = arith.mulf %66, %65 : vector<2x28x28xf32>
    %68 = arith.addf %63, %67 : vector<2x28x28xf32>
    %c1_24 = arith.constant 1 : index
    %c2_25 = arith.constant 2 : index
    %69 = memref.load %arg1[%c1_24, %c2_25] : memref<4x9xf32, #tpu.memory_space<smem>>
    %70 = vector.extract_strided_slice %2 {offsets = [0, 0, 2], sizes = [2, 28, 28], strides = [1, 1, 1]} : vector<2x30x30xf32> to vector<2x28x28xf32>
    %71 = vector.broadcast %69 : f32 to vector<2x28x28xf32>
    %72 = arith.mulf %71, %70 : vector<2x28x28xf32>
    %73 = arith.addf %68, %72 : vector<2x28x28xf32>
    %c1_26 = arith.constant 1 : index
    %c3_27 = arith.constant 3 : index
    %74 = memref.load %arg1[%c1_26, %c3_27] : memref<4x9xf32, #tpu.memory_space<smem>>
    %75 = vector.extract_strided_slice %2 {offsets = [0, 1, 0], sizes = [2, 28, 28], strides = [1, 1, 1]} : vector<2x30x30xf32> to vector<2x28x28xf32>
    %76 = vector.broadcast %74 : f32 to vector<2x28x28xf32>
    %77 = arith.mulf %76, %75 : vector<2x28x28xf32>
    %78 = arith.addf %73, %77 : vector<2x28x28xf32>
    %c1_28 = arith.constant 1 : index
    %c4_29 = arith.constant 4 : index
    %79 = memref.load %arg1[%c1_28, %c4_29] : memref<4x9xf32, #tpu.memory_space<smem>>
    %80 = vector.extract_strided_slice %2 {offsets = [0, 1, 1], sizes = [2, 28, 28], strides = [1, 1, 1]} : vector<2x30x30xf32> to vector<2x28x28xf32>
    %81 = vector.broadcast %79 : f32 to vector<2x28x28xf32>
    %82 = arith.mulf %81, %80 : vector<2x28x28xf32>
    %83 = arith.addf %78, %82 : vector<2x28x28xf32>
    %c1_30 = arith.constant 1 : index
    %c5_31 = arith.constant 5 : index
    %84 = memref.load %arg1[%c1_30, %c5_31] : memref<4x9xf32, #tpu.memory_space<smem>>
    %85 = vector.extract_strided_slice %2 {offsets = [0, 1, 2], sizes = [2, 28, 28], strides = [1, 1, 1]} : vector<2x30x30xf32> to vector<2x28x28xf32>
    %86 = vector.broadcast %84 : f32 to vector<2x28x28xf32>
    %87 = arith.mulf %86, %85 : vector<2x28x28xf32>
    %88 = arith.addf %83, %87 : vector<2x28x28xf32>
    %c1_32 = arith.constant 1 : index
    %c6_33 = arith.constant 6 : index
    %89 = memref.load %arg1[%c1_32, %c6_33] : memref<4x9xf32, #tpu.memory_space<smem>>
    %90 = vector.extract_strided_slice %2 {offsets = [0, 2, 0], sizes = [2, 28, 28], strides = [1, 1, 1]} : vector<2x30x30xf32> to vector<2x28x28xf32>
    %91 = vector.broadcast %89 : f32 to vector<2x28x28xf32>
    %92 = arith.mulf %91, %90 : vector<2x28x28xf32>
    %93 = arith.addf %88, %92 : vector<2x28x28xf32>
    %c1_34 = arith.constant 1 : index
    %c7_35 = arith.constant 7 : index
    %94 = memref.load %arg1[%c1_34, %c7_35] : memref<4x9xf32, #tpu.memory_space<smem>>
    %95 = vector.extract_strided_slice %2 {offsets = [0, 2, 1], sizes = [2, 28, 28], strides = [1, 1, 1]} : vector<2x30x30xf32> to vector<2x28x28xf32>
    %96 = vector.broadcast %94 : f32 to vector<2x28x28xf32>
    %97 = arith.mulf %96, %95 : vector<2x28x28xf32>
    %98 = arith.addf %93, %97 : vector<2x28x28xf32>
    %c1_36 = arith.constant 1 : index
    %c8_37 = arith.constant 8 : index
    %99 = memref.load %arg1[%c1_36, %c8_37] : memref<4x9xf32, #tpu.memory_space<smem>>
    %100 = vector.extract_strided_slice %2 {offsets = [0, 2, 2], sizes = [2, 28, 28], strides = [1, 1, 1]} : vector<2x30x30xf32> to vector<2x28x28xf32>
    %101 = vector.broadcast %99 : f32 to vector<2x28x28xf32>
    %102 = arith.mulf %101, %100 : vector<2x28x28xf32>
    %103 = arith.addf %98, %102 : vector<2x28x28xf32>
    %c1_38 = arith.constant 1 : index
    %104 = memref.load %arg2[%c1_38] : memref<4xf32, #tpu.memory_space<smem>>
    %105 = vector.broadcast %104 : f32 to vector<2x28x28xf32>
    %106 = arith.addf %103, %105 : vector<2x28x28xf32>
    %107 = vector.extract_strided_slice %106 {offsets = [0, 0, 0], sizes = [1, 28, 28], strides = [1, 1, 1]} : vector<2x28x28xf32> to vector<1x28x28xf32>
    %108 = vector.shape_cast %107 : vector<1x28x28xf32> to vector<28x28xf32>
    %c3_39 = arith.constant 3 : index
    %c37_40 = arith.constant 37 : index
    %109 = vector.load %arg10[%c3_39, %c37_40] : memref<76x136xf32, #tpu.memory_space<vmem>>, vector<28x28xf32>
    tpu.vector_store %arg10[%c3_39, %c37_40], %108 {strides = array<i32>} : memref<76x136xf32, #tpu.memory_space<vmem>>, vector<28x28xf32>,
    %110 = vector.extract_strided_slice %106 {offsets = [1, 0, 0], sizes = [1, 28, 28], strides = [1, 1, 1]} : vector<2x28x28xf32> to vector<1x28x28xf32>
    %111 = vector.shape_cast %110 : vector<1x28x28xf32> to vector<28x28xf32>
    %c37_41 = arith.constant 37 : index
    %c37_42 = arith.constant 37 : index
    %112 = vector.load %arg10[%c37_41, %c37_42] : memref<76x136xf32, #tpu.memory_space<vmem>>, vector<28x28xf32>
    tpu.vector_store %arg10[%c37_41, %c37_42], %111 {strides = array<i32>} : memref<76x136xf32, #tpu.memory_space<vmem>>, vector<28x28xf32>,
    %cst_43 = arith.constant 0.000000e+00 : f32
    %113 = vector.broadcast %cst_43 : f32 to vector<2x28x28xf32>
    %c2_44 = arith.constant 2 : index
    %c0_45 = arith.constant 0 : index
    %114 = memref.load %arg1[%c2_44, %c0_45] : memref<4x9xf32, #tpu.memory_space<smem>>
    %115 = vector.extract_strided_slice %2 {offsets = [0, 0, 0], sizes = [2, 28, 28], strides = [1, 1, 1]} : vector<2x30x30xf32> to vector<2x28x28xf32>
    %116 = vector.broadcast %114 : f32 to vector<2x28x28xf32>
    %117 = arith.mulf %116, %115 : vector<2x28x28xf32>
    %118 = arith.addf %113, %117 : vector<2x28x28xf32>
    %c2_46 = arith.constant 2 : index
    %c1_47 = arith.constant 1 : index
    %119 = memref.load %arg1[%c2_46, %c1_47] : memref<4x9xf32, #tpu.memory_space<smem>>
    %120 = vector.extract_strided_slice %2 {offsets = [0, 0, 1], sizes = [2, 28, 28], strides = [1, 1, 1]} : vector<2x30x30xf32> to vector<2x28x28xf32>
    %121 = vector.broadcast %119 : f32 to vector<2x28x28xf32>
    %122 = arith.mulf %121, %120 : vector<2x28x28xf32>
    %123 = arith.addf %118, %122 : vector<2x28x28xf32>
    %c2_48 = arith.constant 2 : index
    %c2_49 = arith.constant 2 : index
    %124 = memref.load %arg1[%c2_48, %c2_49] : memref<4x9xf32, #tpu.memory_space<smem>>
    %125 = vector.extract_strided_slice %2 {offsets = [0, 0, 2], sizes = [2, 28, 28], strides = [1, 1, 1]} : vector<2x30x30xf32> to vector<2x28x28xf32>
    %126 = vector.broadcast %124 : f32 to vector<2x28x28xf32>
    %127 = arith.mulf %126, %125 : vector<2x28x28xf32>
    %128 = arith.addf %123, %127 : vector<2x28x28xf32>
    %c2_50 = arith.constant 2 : index
    %c3_51 = arith.constant 3 : index
    %129 = memref.load %arg1[%c2_50, %c3_51] : memref<4x9xf32, #tpu.memory_space<smem>>
    %130 = vector.extract_strided_slice %2 {offsets = [0, 1, 0], sizes = [2, 28, 28], strides = [1, 1, 1]} : vector<2x30x30xf32> to vector<2x28x28xf32>
    %131 = vector.broadcast %129 : f32 to vector<2x28x28xf32>
    %132 = arith.mulf %131, %130 : vector<2x28x28xf32>
    %133 = arith.addf %128, %132 : vector<2x28x28xf32>
    %c2_52 = arith.constant 2 : index
    %c4_53 = arith.constant 4 : index
    %134 = memref.load %arg1[%c2_52, %c4_53] : memref<4x9xf32, #tpu.memory_space<smem>>
    %135 = vector.extract_strided_slice %2 {offsets = [0, 1, 1], sizes = [2, 28, 28], strides = [1, 1, 1]} : vector<2x30x30xf32> to vector<2x28x28xf32>
    %136 = vector.broadcast %134 : f32 to vector<2x28x28xf32>
    %137 = arith.mulf %136, %135 : vector<2x28x28xf32>
    %138 = arith.addf %133, %137 : vector<2x28x28xf32>
    %c2_54 = arith.constant 2 : index
    %c5_55 = arith.constant 5 : index
    %139 = memref.load %arg1[%c2_54, %c5_55] : memref<4x9xf32, #tpu.memory_space<smem>>
    %140 = vector.extract_strided_slice %2 {offsets = [0, 1, 2], sizes = [2, 28, 28], strides = [1, 1, 1]} : vector<2x30x30xf32> to vector<2x28x28xf32>
    %141 = vector.broadcast %139 : f32 to vector<2x28x28xf32>
    %142 = arith.mulf %141, %140 : vector<2x28x28xf32>
    %143 = arith.addf %138, %142 : vector<2x28x28xf32>
    %c2_56 = arith.constant 2 : index
    %c6_57 = arith.constant 6 : index
    %144 = memref.load %arg1[%c2_56, %c6_57] : memref<4x9xf32, #tpu.memory_space<smem>>
    %145 = vector.extract_strided_slice %2 {offsets = [0, 2, 0], sizes = [2, 28, 28], strides = [1, 1, 1]} : vector<2x30x30xf32> to vector<2x28x28xf32>
    %146 = vector.broadcast %144 : f32 to vector<2x28x28xf32>
    %147 = arith.mulf %146, %145 : vector<2x28x28xf32>
    %148 = arith.addf %143, %147 : vector<2x28x28xf32>
    %c2_58 = arith.constant 2 : index
    %c7_59 = arith.constant 7 : index
    %149 = memref.load %arg1[%c2_58, %c7_59] : memref<4x9xf32, #tpu.memory_space<smem>>
    %150 = vector.extract_strided_slice %2 {offsets = [0, 2, 1], sizes = [2, 28, 28], strides = [1, 1, 1]} : vector<2x30x30xf32> to vector<2x28x28xf32>
    %151 = vector.broadcast %149 : f32 to vector<2x28x28xf32>
    %152 = arith.mulf %151, %150 : vector<2x28x28xf32>
    %153 = arith.addf %148, %152 : vector<2x28x28xf32>
    %c2_60 = arith.constant 2 : index
    %c8_61 = arith.constant 8 : index
    %154 = memref.load %arg1[%c2_60, %c8_61] : memref<4x9xf32, #tpu.memory_space<smem>>
    %155 = vector.extract_strided_slice %2 {offsets = [0, 2, 2], sizes = [2, 28, 28], strides = [1, 1, 1]} : vector<2x30x30xf32> to vector<2x28x28xf32>
    %156 = vector.broadcast %154 : f32 to vector<2x28x28xf32>
    %157 = arith.mulf %156, %155 : vector<2x28x28xf32>
    %158 = arith.addf %153, %157 : vector<2x28x28xf32>
    %c2_62 = arith.constant 2 : index
    %159 = memref.load %arg2[%c2_62] : memref<4xf32, #tpu.memory_space<smem>>
    %160 = vector.broadcast %159 : f32 to vector<2x28x28xf32>
    %161 = arith.addf %158, %160 : vector<2x28x28xf32>
    %162 = vector.extract_strided_slice %161 {offsets = [0, 0, 0], sizes = [1, 28, 28], strides = [1, 1, 1]} : vector<2x28x28xf32> to vector<1x28x28xf32>
    %163 = vector.shape_cast %162 : vector<1x28x28xf32> to vector<28x28xf32>
    %c3_63 = arith.constant 3 : index
    %c71 = arith.constant 71 : index
    %164 = vector.load %arg10[%c3_63, %c71] : memref<76x136xf32, #tpu.memory_space<vmem>>, vector<28x28xf32>
    tpu.vector_store %arg10[%c3_63, %c71], %163 {strides = array<i32>} : memref<76x136xf32, #tpu.memory_space<vmem>>, vector<28x28xf32>,
    %165 = vector.extract_strided_slice %161 {offsets = [1, 0, 0], sizes = [1, 28, 28], strides = [1, 1, 1]} : vector<2x28x28xf32> to vector<1x28x28xf32>
    %166 = vector.shape_cast %165 : vector<1x28x28xf32> to vector<28x28xf32>
    %c37_64 = arith.constant 37 : index
    %c71_65 = arith.constant 71 : index
    %167 = vector.load %arg10[%c37_64, %c71_65] : memref<76x136xf32, #tpu.memory_space<vmem>>, vector<28x28xf32>
    tpu.vector_store %arg10[%c37_64, %c71_65], %166 {strides = array<i32>} : memref<76x136xf32, #tpu.memory_space<vmem>>, vector<28x28xf32>,
    %cst_66 = arith.constant 0.000000e+00 : f32
    %168 = vector.broadcast %cst_66 : f32 to vector<2x28x28xf32>
    %c3_67 = arith.constant 3 : index
    %c0_68 = arith.constant 0 : index
    %169 = memref.load %arg1[%c3_67, %c0_68] : memref<4x9xf32, #tpu.memory_space<smem>>
    %170 = vector.extract_strided_slice %2 {offsets = [0, 0, 0], sizes = [2, 28, 28], strides = [1, 1, 1]} : vector<2x30x30xf32> to vector<2x28x28xf32>
    %171 = vector.broadcast %169 : f32 to vector<2x28x28xf32>
    %172 = arith.mulf %171, %170 : vector<2x28x28xf32>
    %173 = arith.addf %168, %172 : vector<2x28x28xf32>
    %c3_69 = arith.constant 3 : index
    %c1_70 = arith.constant 1 : index
    %174 = memref.load %arg1[%c3_69, %c1_70] : memref<4x9xf32, #tpu.memory_space<smem>>
    %175 = vector.extract_strided_slice %2 {offsets = [0, 0, 1], sizes = [2, 28, 28], strides = [1, 1, 1]} : vector<2x30x30xf32> to vector<2x28x28xf32>
    %176 = vector.broadcast %174 : f32 to vector<2x28x28xf32>
    %177 = arith.mulf %176, %175 : vector<2x28x28xf32>
    %178 = arith.addf %173, %177 : vector<2x28x28xf32>
    %c3_71 = arith.constant 3 : index
    %c2_72 = arith.constant 2 : index
    %179 = memref.load %arg1[%c3_71, %c2_72] : memref<4x9xf32, #tpu.memory_space<smem>>
    %180 = vector.extract_strided_slice %2 {offsets = [0, 0, 2], sizes = [2, 28, 28], strides = [1, 1, 1]} : vector<2x30x30xf32> to vector<2x28x28xf32>
    %181 = vector.broadcast %179 : f32 to vector<2x28x28xf32>
    %182 = arith.mulf %181, %180 : vector<2x28x28xf32>
    %183 = arith.addf %178, %182 : vector<2x28x28xf32>
    %c3_73 = arith.constant 3 : index
    %c3_74 = arith.constant 3 : index
    %184 = memref.load %arg1[%c3_73, %c3_74] : memref<4x9xf32, #tpu.memory_space<smem>>
    %185 = vector.extract_strided_slice %2 {offsets = [0, 1, 0], sizes = [2, 28, 28], strides = [1, 1, 1]} : vector<2x30x30xf32> to vector<2x28x28xf32>
    %186 = vector.broadcast %184 : f32 to vector<2x28x28xf32>
    %187 = arith.mulf %186, %185 : vector<2x28x28xf32>
    %188 = arith.addf %183, %187 : vector<2x28x28xf32>
    %c3_75 = arith.constant 3 : index
    %c4_76 = arith.constant 4 : index
    %189 = memref.load %arg1[%c3_75, %c4_76] : memref<4x9xf32, #tpu.memory_space<smem>>
    %190 = vector.extract_strided_slice %2 {offsets = [0, 1, 1], sizes = [2, 28, 28], strides = [1, 1, 1]} : vector<2x30x30xf32> to vector<2x28x28xf32>
    %191 = vector.broadcast %189 : f32 to vector<2x28x28xf32>
    %192 = arith.mulf %191, %190 : vector<2x28x28xf32>
    %193 = arith.addf %188, %192 : vector<2x28x28xf32>
    %c3_77 = arith.constant 3 : index
    %c5_78 = arith.constant 5 : index
    %194 = memref.load %arg1[%c3_77, %c5_78] : memref<4x9xf32, #tpu.memory_space<smem>>
    %195 = vector.extract_strided_slice %2 {offsets = [0, 1, 2], sizes = [2, 28, 28], strides = [1, 1, 1]} : vector<2x30x30xf32> to vector<2x28x28xf32>
    %196 = vector.broadcast %194 : f32 to vector<2x28x28xf32>
    %197 = arith.mulf %196, %195 : vector<2x28x28xf32>
    %198 = arith.addf %193, %197 : vector<2x28x28xf32>
    %c3_79 = arith.constant 3 : index
    %c6_80 = arith.constant 6 : index
    %199 = memref.load %arg1[%c3_79, %c6_80] : memref<4x9xf32, #tpu.memory_space<smem>>
    %200 = vector.extract_strided_slice %2 {offsets = [0, 2, 0], sizes = [2, 28, 28], strides = [1, 1, 1]} : vector<2x30x30xf32> to vector<2x28x28xf32>
    %201 = vector.broadcast %199 : f32 to vector<2x28x28xf32>
    %202 = arith.mulf %201, %200 : vector<2x28x28xf32>
    %203 = arith.addf %198, %202 : vector<2x28x28xf32>
    %c3_81 = arith.constant 3 : index
    %c7_82 = arith.constant 7 : index
    %204 = memref.load %arg1[%c3_81, %c7_82] : memref<4x9xf32, #tpu.memory_space<smem>>
    %205 = vector.extract_strided_slice %2 {offsets = [0, 2, 1], sizes = [2, 28, 28], strides = [1, 1, 1]} : vector<2x30x30xf32> to vector<2x28x28xf32>
    %206 = vector.broadcast %204 : f32 to vector<2x28x28xf32>
    %207 = arith.mulf %206, %205 : vector<2x28x28xf32>
    %208 = arith.addf %203, %207 : vector<2x28x28xf32>
    %c3_83 = arith.constant 3 : index
    %c8_84 = arith.constant 8 : index
    %209 = memref.load %arg1[%c3_83, %c8_84] : memref<4x9xf32, #tpu.memory_space<smem>>
    %210 = vector.extract_strided_slice %2 {offsets = [0, 2, 2], sizes = [2, 28, 28], strides = [1, 1, 1]} : vector<2x30x30xf32> to vector<2x28x28xf32>
    %211 = vector.broadcast %209 : f32 to vector<2x28x28xf32>
    %212 = arith.mulf %211, %210 : vector<2x28x28xf32>
    %213 = arith.addf %208, %212 : vector<2x28x28xf32>
    %c3_85 = arith.constant 3 : index
    %214 = memref.load %arg2[%c3_85] : memref<4xf32, #tpu.memory_space<smem>>
    %215 = vector.broadcast %214 : f32 to vector<2x28x28xf32>
    %216 = arith.addf %213, %215 : vector<2x28x28xf32>
    %217 = vector.extract_strided_slice %216 {offsets = [0, 0, 0], sizes = [1, 28, 28], strides = [1, 1, 1]} : vector<2x28x28xf32> to vector<1x28x28xf32>
    %218 = vector.shape_cast %217 : vector<1x28x28xf32> to vector<28x28xf32>
    %c3_86 = arith.constant 3 : index
    %c105 = arith.constant 105 : index
    %219 = vector.load %arg10[%c3_86, %c105] : memref<76x136xf32, #tpu.memory_space<vmem>>, vector<28x28xf32>
    tpu.vector_store %arg10[%c3_86, %c105], %218 {strides = array<i32>} : memref<76x136xf32, #tpu.memory_space<vmem>>, vector<28x28xf32>,
    %220 = vector.extract_strided_slice %216 {offsets = [1, 0, 0], sizes = [1, 28, 28], strides = [1, 1, 1]} : vector<2x28x28xf32> to vector<1x28x28xf32>
    %221 = vector.shape_cast %220 : vector<1x28x28xf32> to vector<28x28xf32>
    %c37_87 = arith.constant 37 : index
    %c105_88 = arith.constant 105 : index
    %222 = vector.load %arg10[%c37_87, %c105_88] : memref<76x136xf32, #tpu.memory_space<vmem>>, vector<28x28xf32>
    tpu.vector_store %arg10[%c37_87, %c105_88], %221 {strides = array<i32>} : memref<76x136xf32, #tpu.memory_space<vmem>>, vector<28x28xf32>,
    %c0_89 = arith.constant 0 : index
    %c0_90 = arith.constant 0 : index
    %223 = vector.load %arg5[%c0_89, %c0_90] : memref<28x68xf32, #tpu.memory_space<vmem>>, vector<28x68xf32>
    %c0_91 = arith.constant 0 : index
    %c0_92 = arith.constant 0 : index
    %224 = vector.load %arg6[%c0_91, %c0_92] : memref<16x28xf32, #tpu.memory_space<vmem>>, vector<16x28xf32>
    %c0_93 = arith.constant 0 : index
    %c0_94 = arith.constant 0 : index
    %225 = vector.load %arg7[%c0_93, %c0_94] : memref<112x56xf32, #tpu.memory_space<vmem>>, vector<112x56xf32>
    %c0_95 = arith.constant 0 : index
    %c0_96 = arith.constant 0 : index
    %226 = vector.load %arg8[%c0_95, %c0_96] : memref<56x28xf32, #tpu.memory_space<vmem>>, vector<56x28xf32>
    %cst_97 = arith.constant 0.000000e+00 : f32
    %227 = vector.broadcast %cst_97 : f32 to vector<68x112xf32>
    %c0_98 = arith.constant 0 : index
    %c0_99 = arith.constant 0 : index
    %228 = vector.load %arg10[%c0_98, %c0_99] : memref<76x136xf32, #tpu.memory_space<vmem>>, vector<68x136xf32>
    %c0_100 = arith.constant 0 : index
    %c0_101 = arith.constant 0 : index
    %c0_102 = arith.constant 0 : index
    %229 = vector.load %arg4[%c0_100, %c0_101, %c0_102] : memref<7x136x448xf32, #tpu.memory_space<vmem>>, vector<1x136x112xf32>
    %230 = vector.shape_cast %229 : vector<1x136x112xf32> to vector<136x112xf32>
    %cst_103 = arith.constant dense<0.000000e+00> : vector<68x112xf32>
    %231 = tpu.matmul %228, %230, %cst_103 {dimension_numbers = #tpu.dot_dimension_numbers<[1], [0], [0], [1], [0, 0, 1, 1], [], []>} : vector<68x136xf32>, vector<136x112xf32>, vector<68x112xf32> -> vector<68x112xf32>
    %232 = arith.addf %227, %231 : vector<68x112xf32>
    %c1_104 = arith.constant 1 : index
    %c0_105 = arith.constant 0 : index
    %233 = vector.load %arg10[%c1_104, %c0_105] : memref<76x136xf32, #tpu.memory_space<vmem>>, vector<68x136xf32>
    %c1_106 = arith.constant 1 : index
    %c0_107 = arith.constant 0 : index
    %c0_108 = arith.constant 0 : index
    %234 = vector.load %arg4[%c1_106, %c0_107, %c0_108] : memref<7x136x448xf32, #tpu.memory_space<vmem>>, vector<1x136x112xf32>
    %235 = vector.shape_cast %234 : vector<1x136x112xf32> to vector<136x112xf32>
    %cst_109 = arith.constant dense<0.000000e+00> : vector<68x112xf32>
    %236 = tpu.matmul %233, %235, %cst_109 {dimension_numbers = #tpu.dot_dimension_numbers<[1], [0], [0], [1], [0, 0, 1, 1], [], []>} : vector<68x136xf32>, vector<136x112xf32>, vector<68x112xf32> -> vector<68x112xf32>
    %237 = arith.addf %232, %236 : vector<68x112xf32>
    %c2_110 = arith.constant 2 : index
    %c0_111 = arith.constant 0 : index
    %238 = vector.load %arg10[%c2_110, %c0_111] : memref<76x136xf32, #tpu.memory_space<vmem>>, vector<68x136xf32>
    %c2_112 = arith.constant 2 : index
    %c0_113 = arith.constant 0 : index
    %c0_114 = arith.constant 0 : index
    %239 = vector.load %arg4[%c2_112, %c0_113, %c0_114] : memref<7x136x448xf32, #tpu.memory_space<vmem>>, vector<1x136x112xf32>
    %240 = vector.shape_cast %239 : vector<1x136x112xf32> to vector<136x112xf32>
    %cst_115 = arith.constant dense<0.000000e+00> : vector<68x112xf32>
    %241 = tpu.matmul %238, %240, %cst_115 {dimension_numbers = #tpu.dot_dimension_numbers<[1], [0], [0], [1], [0, 0, 1, 1], [], []>} : vector<68x136xf32>, vector<136x112xf32>, vector<68x112xf32> -> vector<68x112xf32>
    %242 = arith.addf %237, %241 : vector<68x112xf32>
    %c3_116 = arith.constant 3 : index
    %c0_117 = arith.constant 0 : index
    %243 = vector.load %arg10[%c3_116, %c0_117] : memref<76x136xf32, #tpu.memory_space<vmem>>, vector<68x136xf32>
    %c3_118 = arith.constant 3 : index
    %c0_119 = arith.constant 0 : index
    %c0_120 = arith.constant 0 : index
    %244 = vector.load %arg4[%c3_118, %c0_119, %c0_120] : memref<7x136x448xf32, #tpu.memory_space<vmem>>, vector<1x136x112xf32>
    %245 = vector.shape_cast %244 : vector<1x136x112xf32> to vector<136x112xf32>
    %cst_121 = arith.constant dense<0.000000e+00> : vector<68x112xf32>
    %246 = tpu.matmul %243, %245, %cst_121 {dimension_numbers = #tpu.dot_dimension_numbers<[1], [0], [0], [1], [0, 0, 1, 1], [], []>} : vector<68x136xf32>, vector<136x112xf32>, vector<68x112xf32> -> vector<68x112xf32>
    %247 = arith.addf %242, %246 : vector<68x112xf32>
    %c4_122 = arith.constant 4 : index
    %c0_123 = arith.constant 0 : index
    %248 = vector.load %arg10[%c4_122, %c0_123] : memref<76x136xf32, #tpu.memory_space<vmem>>, vector<68x136xf32>
    %c4_124 = arith.constant 4 : index
    %c0_125 = arith.constant 0 : index
    %c0_126 = arith.constant 0 : index
    %249 = vector.load %arg4[%c4_124, %c0_125, %c0_126] : memref<7x136x448xf32, #tpu.memory_space<vmem>>, vector<1x136x112xf32>
    %250 = vector.shape_cast %249 : vector<1x136x112xf32> to vector<136x112xf32>
    %cst_127 = arith.constant dense<0.000000e+00> : vector<68x112xf32>
    %251 = tpu.matmul %248, %250, %cst_127 {dimension_numbers = #tpu.dot_dimension_numbers<[1], [0], [0], [1], [0, 0, 1, 1], [], []>} : vector<68x136xf32>, vector<136x112xf32>, vector<68x112xf32> -> vector<68x112xf32>
    %252 = arith.addf %247, %251 : vector<68x112xf32>
    %c5_128 = arith.constant 5 : index
    %c0_129 = arith.constant 0 : index
    %253 = vector.load %arg10[%c5_128, %c0_129] : memref<76x136xf32, #tpu.memory_space<vmem>>, vector<68x136xf32>
    %c5_130 = arith.constant 5 : index
    %c0_131 = arith.constant 0 : index
    %c0_132 = arith.constant 0 : index
    %254 = vector.load %arg4[%c5_130, %c0_131, %c0_132] : memref<7x136x448xf32, #tpu.memory_space<vmem>>, vector<1x136x112xf32>
    %255 = vector.shape_cast %254 : vector<1x136x112xf32> to vector<136x112xf32>
    %cst_133 = arith.constant dense<0.000000e+00> : vector<68x112xf32>
    %256 = tpu.matmul %253, %255, %cst_133 {dimension_numbers = #tpu.dot_dimension_numbers<[1], [0], [0], [1], [0, 0, 1, 1], [], []>} : vector<68x136xf32>, vector<136x112xf32>, vector<68x112xf32> -> vector<68x112xf32>
    %257 = arith.addf %252, %256 : vector<68x112xf32>
    %c6_134 = arith.constant 6 : index
    %c0_135 = arith.constant 0 : index
    %258 = vector.load %arg10[%c6_134, %c0_135] : memref<76x136xf32, #tpu.memory_space<vmem>>, vector<68x136xf32>
    %c6_136 = arith.constant 6 : index
    %c0_137 = arith.constant 0 : index
    %c0_138 = arith.constant 0 : index
    %259 = vector.load %arg4[%c6_136, %c0_137, %c0_138] : memref<7x136x448xf32, #tpu.memory_space<vmem>>, vector<1x136x112xf32>
    %260 = vector.shape_cast %259 : vector<1x136x112xf32> to vector<136x112xf32>
    %cst_139 = arith.constant dense<0.000000e+00> : vector<68x112xf32>
    %261 = tpu.matmul %258, %260, %cst_139 {dimension_numbers = #tpu.dot_dimension_numbers<[1], [0], [0], [1], [0, 0, 1, 1], [], []>} : vector<68x136xf32>, vector<136x112xf32>, vector<68x112xf32> -> vector<68x112xf32>
    %262 = arith.addf %257, %261 : vector<68x112xf32>
    %cst_140 = arith.constant 0.000000e+00 : f32
    %263 = vector.broadcast %cst_140 : f32 to vector<68x112xf32>
    %c0_141 = arith.constant 0 : index
    %c0_142 = arith.constant 0 : index
    %264 = vector.load %arg10[%c0_141, %c0_142] : memref<76x136xf32, #tpu.memory_space<vmem>>, vector<68x136xf32>
    %c0_143 = arith.constant 0 : index
    %c0_144 = arith.constant 0 : index
    %c112 = arith.constant 112 : index
    %265 = vector.load %arg4[%c0_143, %c0_144, %c112] : memref<7x136x448xf32, #tpu.memory_space<vmem>>, vector<1x136x112xf32>
    %266 = vector.shape_cast %265 : vector<1x136x112xf32> to vector<136x112xf32>
    %cst_145 = arith.constant dense<0.000000e+00> : vector<68x112xf32>
    %267 = tpu.matmul %264, %266, %cst_145 {dimension_numbers = #tpu.dot_dimension_numbers<[1], [0], [0], [1], [0, 0, 1, 1], [], []>} : vector<68x136xf32>, vector<136x112xf32>, vector<68x112xf32> -> vector<68x112xf32>
    %268 = arith.addf %263, %267 : vector<68x112xf32>
    %c1_146 = arith.constant 1 : index
    %c0_147 = arith.constant 0 : index
    %269 = vector.load %arg10[%c1_146, %c0_147] : memref<76x136xf32, #tpu.memory_space<vmem>>, vector<68x136xf32>
    %c1_148 = arith.constant 1 : index
    %c0_149 = arith.constant 0 : index
    %c112_150 = arith.constant 112 : index
    %270 = vector.load %arg4[%c1_148, %c0_149, %c112_150] : memref<7x136x448xf32, #tpu.memory_space<vmem>>, vector<1x136x112xf32>
    %271 = vector.shape_cast %270 : vector<1x136x112xf32> to vector<136x112xf32>
    %cst_151 = arith.constant dense<0.000000e+00> : vector<68x112xf32>
    %272 = tpu.matmul %269, %271, %cst_151 {dimension_numbers = #tpu.dot_dimension_numbers<[1], [0], [0], [1], [0, 0, 1, 1], [], []>} : vector<68x136xf32>, vector<136x112xf32>, vector<68x112xf32> -> vector<68x112xf32>
    %273 = arith.addf %268, %272 : vector<68x112xf32>
    %c2_152 = arith.constant 2 : index
    %c0_153 = arith.constant 0 : index
    %274 = vector.load %arg10[%c2_152, %c0_153] : memref<76x136xf32, #tpu.memory_space<vmem>>, vector<68x136xf32>
    %c2_154 = arith.constant 2 : index
    %c0_155 = arith.constant 0 : index
    %c112_156 = arith.constant 112 : index
    %275 = vector.load %arg4[%c2_154, %c0_155, %c112_156] : memref<7x136x448xf32, #tpu.memory_space<vmem>>, vector<1x136x112xf32>
    %276 = vector.shape_cast %275 : vector<1x136x112xf32> to vector<136x112xf32>
    %cst_157 = arith.constant dense<0.000000e+00> : vector<68x112xf32>
    %277 = tpu.matmul %274, %276, %cst_157 {dimension_numbers = #tpu.dot_dimension_numbers<[1], [0], [0], [1], [0, 0, 1, 1], [], []>} : vector<68x136xf32>, vector<136x112xf32>, vector<68x112xf32> -> vector<68x112xf32>
    %278 = arith.addf %273, %277 : vector<68x112xf32>
    %c3_158 = arith.constant 3 : index
    %c0_159 = arith.constant 0 : index
    %279 = vector.load %arg10[%c3_158, %c0_159] : memref<76x136xf32, #tpu.memory_space<vmem>>, vector<68x136xf32>
    %c3_160 = arith.constant 3 : index
    %c0_161 = arith.constant 0 : index
    %c112_162 = arith.constant 112 : index
    %280 = vector.load %arg4[%c3_160, %c0_161, %c112_162] : memref<7x136x448xf32, #tpu.memory_space<vmem>>, vector<1x136x112xf32>
    %281 = vector.shape_cast %280 : vector<1x136x112xf32> to vector<136x112xf32>
    %cst_163 = arith.constant dense<0.000000e+00> : vector<68x112xf32>
    %282 = tpu.matmul %279, %281, %cst_163 {dimension_numbers = #tpu.dot_dimension_numbers<[1], [0], [0], [1], [0, 0, 1, 1], [], []>} : vector<68x136xf32>, vector<136x112xf32>, vector<68x112xf32> -> vector<68x112xf32>
    %283 = arith.addf %278, %282 : vector<68x112xf32>
    %c4_164 = arith.constant 4 : index
    %c0_165 = arith.constant 0 : index
    %284 = vector.load %arg10[%c4_164, %c0_165] : memref<76x136xf32, #tpu.memory_space<vmem>>, vector<68x136xf32>
    %c4_166 = arith.constant 4 : index
    %c0_167 = arith.constant 0 : index
    %c112_168 = arith.constant 112 : index
    %285 = vector.load %arg4[%c4_166, %c0_167, %c112_168] : memref<7x136x448xf32, #tpu.memory_space<vmem>>, vector<1x136x112xf32>
    %286 = vector.shape_cast %285 : vector<1x136x112xf32> to vector<136x112xf32>
    %cst_169 = arith.constant dense<0.000000e+00> : vector<68x112xf32>
    %287 = tpu.matmul %284, %286, %cst_169 {dimension_numbers = #tpu.dot_dimension_numbers<[1], [0], [0], [1], [0, 0, 1, 1], [], []>} : vector<68x136xf32>, vector<136x112xf32>, vector<68x112xf32> -> vector<68x112xf32>
    %288 = arith.addf %283, %287 : vector<68x112xf32>
    %c5_170 = arith.constant 5 : index
    %c0_171 = arith.constant 0 : index
    %289 = vector.load %arg10[%c5_170, %c0_171] : memref<76x136xf32, #tpu.memory_space<vmem>>, vector<68x136xf32>
    %c5_172 = arith.constant 5 : index
    %c0_173 = arith.constant 0 : index
    %c112_174 = arith.constant 112 : index
    %290 = vector.load %arg4[%c5_172, %c0_173, %c112_174] : memref<7x136x448xf32, #tpu.memory_space<vmem>>, vector<1x136x112xf32>
    %291 = vector.shape_cast %290 : vector<1x136x112xf32> to vector<136x112xf32>
    %cst_175 = arith.constant dense<0.000000e+00> : vector<68x112xf32>
    %292 = tpu.matmul %289, %291, %cst_175 {dimension_numbers = #tpu.dot_dimension_numbers<[1], [0], [0], [1], [0, 0, 1, 1], [], []>} : vector<68x136xf32>, vector<136x112xf32>, vector<68x112xf32> -> vector<68x112xf32>
    %293 = arith.addf %288, %292 : vector<68x112xf32>
    %c6_176 = arith.constant 6 : index
    %c0_177 = arith.constant 0 : index
    %294 = vector.load %arg10[%c6_176, %c0_177] : memref<76x136xf32, #tpu.memory_space<vmem>>, vector<68x136xf32>
    %c6_178 = arith.constant 6 : index
    %c0_179 = arith.constant 0 : index
    %c112_180 = arith.constant 112 : index
    %295 = vector.load %arg4[%c6_178, %c0_179, %c112_180] : memref<7x136x448xf32, #tpu.memory_space<vmem>>, vector<1x136x112xf32>
    %296 = vector.shape_cast %295 : vector<1x136x112xf32> to vector<136x112xf32>
    %cst_181 = arith.constant dense<0.000000e+00> : vector<68x112xf32>
    %297 = tpu.matmul %294, %296, %cst_181 {dimension_numbers = #tpu.dot_dimension_numbers<[1], [0], [0], [1], [0, 0, 1, 1], [], []>} : vector<68x136xf32>, vector<136x112xf32>, vector<68x112xf32> -> vector<68x112xf32>
    %298 = arith.addf %293, %297 : vector<68x112xf32>
    %299 = arith.mulf %298, %262 : vector<68x112xf32>
    %300 = arith.addf %299, %262 : vector<68x112xf32>
    %cst_182 = arith.constant dense<0.000000e+00> : vector<28x112xf32>
    %301 = tpu.matmul %223, %300, %cst_182 {dimension_numbers = #tpu.dot_dimension_numbers<[1], [0], [0], [1], [0, 0, 1, 1], [], []>} : vector<28x68xf32>, vector<68x112xf32>, vector<28x112xf32> -> vector<28x112xf32>
    %cst_183 = arith.constant dense<0.000000e+00> : vector<28x56xf32>
    %302 = tpu.matmul %301, %225, %cst_183 {dimension_numbers = #tpu.dot_dimension_numbers<[1], [0], [0], [1], [0, 0, 1, 1], [], []>} : vector<28x112xf32>, vector<112x56xf32>, vector<28x56xf32> -> vector<28x56xf32>
    %cst_184 = arith.constant 0.000000e+00 : f32
    %303 = vector.broadcast %cst_184 : f32 to vector<68x112xf32>
    %c0_185 = arith.constant 0 : index
    %c0_186 = arith.constant 0 : index
    %304 = vector.load %arg10[%c0_185, %c0_186] : memref<76x136xf32, #tpu.memory_space<vmem>>, vector<68x136xf32>
    %c0_187 = arith.constant 0 : index
    %c0_188 = arith.constant 0 : index
    %c224 = arith.constant 224 : index
    %305 = vector.load %arg4[%c0_187, %c0_188, %c224] : memref<7x136x448xf32, #tpu.memory_space<vmem>>, vector<1x136x112xf32>
    %306 = vector.shape_cast %305 : vector<1x136x112xf32> to vector<136x112xf32>
    %cst_189 = arith.constant dense<0.000000e+00> : vector<68x112xf32>
    %307 = tpu.matmul %304, %306, %cst_189 {dimension_numbers = #tpu.dot_dimension_numbers<[1], [0], [0], [1], [0, 0, 1, 1], [], []>} : vector<68x136xf32>, vector<136x112xf32>, vector<68x112xf32> -> vector<68x112xf32>
    %308 = arith.addf %303, %307 : vector<68x112xf32>
    %c1_190 = arith.constant 1 : index
    %c0_191 = arith.constant 0 : index
    %309 = vector.load %arg10[%c1_190, %c0_191] : memref<76x136xf32, #tpu.memory_space<vmem>>, vector<68x136xf32>
    %c1_192 = arith.constant 1 : index
    %c0_193 = arith.constant 0 : index
    %c224_194 = arith.constant 224 : index
    %310 = vector.load %arg4[%c1_192, %c0_193, %c224_194] : memref<7x136x448xf32, #tpu.memory_space<vmem>>, vector<1x136x112xf32>
    %311 = vector.shape_cast %310 : vector<1x136x112xf32> to vector<136x112xf32>
    %cst_195 = arith.constant dense<0.000000e+00> : vector<68x112xf32>
    %312 = tpu.matmul %309, %311, %cst_195 {dimension_numbers = #tpu.dot_dimension_numbers<[1], [0], [0], [1], [0, 0, 1, 1], [], []>} : vector<68x136xf32>, vector<136x112xf32>, vector<68x112xf32> -> vector<68x112xf32>
    %313 = arith.addf %308, %312 : vector<68x112xf32>
    %c2_196 = arith.constant 2 : index
    %c0_197 = arith.constant 0 : index
    %314 = vector.load %arg10[%c2_196, %c0_197] : memref<76x136xf32, #tpu.memory_space<vmem>>, vector<68x136xf32>
    %c2_198 = arith.constant 2 : index
    %c0_199 = arith.constant 0 : index
    %c224_200 = arith.constant 224 : index
    %315 = vector.load %arg4[%c2_198, %c0_199, %c224_200] : memref<7x136x448xf32, #tpu.memory_space<vmem>>, vector<1x136x112xf32>
    %316 = vector.shape_cast %315 : vector<1x136x112xf32> to vector<136x112xf32>
    %cst_201 = arith.constant dense<0.000000e+00> : vector<68x112xf32>
    %317 = tpu.matmul %314, %316, %cst_201 {dimension_numbers = #tpu.dot_dimension_numbers<[1], [0], [0], [1], [0, 0, 1, 1], [], []>} : vector<68x136xf32>, vector<136x112xf32>, vector<68x112xf32> -> vector<68x112xf32>
    %318 = arith.addf %313, %317 : vector<68x112xf32>
    %c3_202 = arith.constant 3 : index
    %c0_203 = arith.constant 0 : index
    %319 = vector.load %arg10[%c3_202, %c0_203] : memref<76x136xf32, #tpu.memory_space<vmem>>, vector<68x136xf32>
    %c3_204 = arith.constant 3 : index
    %c0_205 = arith.constant 0 : index
    %c224_206 = arith.constant 224 : index
    %320 = vector.load %arg4[%c3_204, %c0_205, %c224_206] : memref<7x136x448xf32, #tpu.memory_space<vmem>>, vector<1x136x112xf32>
    %321 = vector.shape_cast %320 : vector<1x136x112xf32> to vector<136x112xf32>
    %cst_207 = arith.constant dense<0.000000e+00> : vector<68x112xf32>
    %322 = tpu.matmul %319, %321, %cst_207 {dimension_numbers = #tpu.dot_dimension_numbers<[1], [0], [0], [1], [0, 0, 1, 1], [], []>} : vector<68x136xf32>, vector<136x112xf32>, vector<68x112xf32> -> vector<68x112xf32>
    %323 = arith.addf %318, %322 : vector<68x112xf32>
    %c4_208 = arith.constant 4 : index
    %c0_209 = arith.constant 0 : index
    %324 = vector.load %arg10[%c4_208, %c0_209] : memref<76x136xf32, #tpu.memory_space<vmem>>, vector<68x136xf32>
    %c4_210 = arith.constant 4 : index
    %c0_211 = arith.constant 0 : index
    %c224_212 = arith.constant 224 : index
    %325 = vector.load %arg4[%c4_210, %c0_211, %c224_212] : memref<7x136x448xf32, #tpu.memory_space<vmem>>, vector<1x136x112xf32>
    %326 = vector.shape_cast %325 : vector<1x136x112xf32> to vector<136x112xf32>
    %cst_213 = arith.constant dense<0.000000e+00> : vector<68x112xf32>
    %327 = tpu.matmul %324, %326, %cst_213 {dimension_numbers = #tpu.dot_dimension_numbers<[1], [0], [0], [1], [0, 0, 1, 1], [], []>} : vector<68x136xf32>, vector<136x112xf32>, vector<68x112xf32> -> vector<68x112xf32>
    %328 = arith.addf %323, %327 : vector<68x112xf32>
    %c5_214 = arith.constant 5 : index
    %c0_215 = arith.constant 0 : index
    %329 = vector.load %arg10[%c5_214, %c0_215] : memref<76x136xf32, #tpu.memory_space<vmem>>, vector<68x136xf32>
    %c5_216 = arith.constant 5 : index
    %c0_217 = arith.constant 0 : index
    %c224_218 = arith.constant 224 : index
    %330 = vector.load %arg4[%c5_216, %c0_217, %c224_218] : memref<7x136x448xf32, #tpu.memory_space<vmem>>, vector<1x136x112xf32>
    %331 = vector.shape_cast %330 : vector<1x136x112xf32> to vector<136x112xf32>
    %cst_219 = arith.constant dense<0.000000e+00> : vector<68x112xf32>
    %332 = tpu.matmul %329, %331, %cst_219 {dimension_numbers = #tpu.dot_dimension_numbers<[1], [0], [0], [1], [0, 0, 1, 1], [], []>} : vector<68x136xf32>, vector<136x112xf32>, vector<68x112xf32> -> vector<68x112xf32>
    %333 = arith.addf %328, %332 : vector<68x112xf32>
    %c6_220 = arith.constant 6 : index
    %c0_221 = arith.constant 0 : index
    %334 = vector.load %arg10[%c6_220, %c0_221] : memref<76x136xf32, #tpu.memory_space<vmem>>, vector<68x136xf32>
    %c6_222 = arith.constant 6 : index
    %c0_223 = arith.constant 0 : index
    %c224_224 = arith.constant 224 : index
    %335 = vector.load %arg4[%c6_222, %c0_223, %c224_224] : memref<7x136x448xf32, #tpu.memory_space<vmem>>, vector<1x136x112xf32>
    %336 = vector.shape_cast %335 : vector<1x136x112xf32> to vector<136x112xf32>
    %cst_225 = arith.constant dense<0.000000e+00> : vector<68x112xf32>
    %337 = tpu.matmul %334, %336, %cst_225 {dimension_numbers = #tpu.dot_dimension_numbers<[1], [0], [0], [1], [0, 0, 1, 1], [], []>} : vector<68x136xf32>, vector<136x112xf32>, vector<68x112xf32> -> vector<68x112xf32>
    %338 = arith.addf %333, %337 : vector<68x112xf32>
    %cst_226 = arith.constant dense<0.000000e+00> : vector<28x112xf32>
    %339 = tpu.matmul %223, %338, %cst_226 {dimension_numbers = #tpu.dot_dimension_numbers<[1], [0], [0], [1], [0, 0, 1, 1], [], []>} : vector<28x68xf32>, vector<68x112xf32>, vector<28x112xf32> -> vector<28x112xf32>
    %cst_227 = arith.constant dense<0.000000e+00> : vector<28x56xf32>
    %340 = tpu.matmul %339, %225, %cst_227 {dimension_numbers = #tpu.dot_dimension_numbers<[1], [0], [0], [1], [0, 0, 1, 1], [], []>} : vector<28x112xf32>, vector<112x56xf32>, vector<28x56xf32> -> vector<28x56xf32>
    %341 = arith.mulf %340, %302 : vector<28x56xf32>
    %342 = arith.addf %341, %302 : vector<28x56xf32>
    %cst_228 = arith.constant dense<0.000000e+00> : vector<16x56xf32>
    %343 = tpu.matmul %224, %342, %cst_228 {dimension_numbers = #tpu.dot_dimension_numbers<[1], [0], [0], [1], [0, 0, 1, 1], [], []>} : vector<16x28xf32>, vector<28x56xf32>, vector<16x56xf32> -> vector<16x56xf32>
    %cst_229 = arith.constant dense<0.000000e+00> : vector<16x28xf32>
    %344 = tpu.matmul %343, %226, %cst_229 {dimension_numbers = #tpu.dot_dimension_numbers<[1], [0], [0], [1], [0, 0, 1, 1], [], []>} : vector<16x56xf32>, vector<56x28xf32>, vector<16x28xf32> -> vector<16x28xf32>
    %cst_230 = arith.constant 0.000000e+00 : f32
    %345 = vector.broadcast %cst_230 : f32 to vector<68x112xf32>
    %c0_231 = arith.constant 0 : index
    %c0_232 = arith.constant 0 : index
    %346 = vector.load %arg10[%c0_231, %c0_232] : memref<76x136xf32, #tpu.memory_space<vmem>>, vector<68x136xf32>
    %c0_233 = arith.constant 0 : index
    %c0_234 = arith.constant 0 : index
    %c336 = arith.constant 336 : index
    %347 = vector.load %arg4[%c0_233, %c0_234, %c336] : memref<7x136x448xf32, #tpu.memory_space<vmem>>, vector<1x136x112xf32>
    %348 = vector.shape_cast %347 : vector<1x136x112xf32> to vector<136x112xf32>
    %cst_235 = arith.constant dense<0.000000e+00> : vector<68x112xf32>
    %349 = tpu.matmul %346, %348, %cst_235 {dimension_numbers = #tpu.dot_dimension_numbers<[1], [0], [0], [1], [0, 0, 1, 1], [], []>} : vector<68x136xf32>, vector<136x112xf32>, vector<68x112xf32> -> vector<68x112xf32>
    %350 = arith.addf %345, %349 : vector<68x112xf32>
    %c1_236 = arith.constant 1 : index
    %c0_237 = arith.constant 0 : index
    %351 = vector.load %arg10[%c1_236, %c0_237] : memref<76x136xf32, #tpu.memory_space<vmem>>, vector<68x136xf32>
    %c1_238 = arith.constant 1 : index
    %c0_239 = arith.constant 0 : index
    %c336_240 = arith.constant 336 : index
    %352 = vector.load %arg4[%c1_238, %c0_239, %c336_240] : memref<7x136x448xf32, #tpu.memory_space<vmem>>, vector<1x136x112xf32>
    %353 = vector.shape_cast %352 : vector<1x136x112xf32> to vector<136x112xf32>
    %cst_241 = arith.constant dense<0.000000e+00> : vector<68x112xf32>
    %354 = tpu.matmul %351, %353, %cst_241 {dimension_numbers = #tpu.dot_dimension_numbers<[1], [0], [0], [1], [0, 0, 1, 1], [], []>} : vector<68x136xf32>, vector<136x112xf32>, vector<68x112xf32> -> vector<68x112xf32>
    %355 = arith.addf %350, %354 : vector<68x112xf32>
    %c2_242 = arith.constant 2 : index
    %c0_243 = arith.constant 0 : index
    %356 = vector.load %arg10[%c2_242, %c0_243] : memref<76x136xf32, #tpu.memory_space<vmem>>, vector<68x136xf32>
    %c2_244 = arith.constant 2 : index
    %c0_245 = arith.constant 0 : index
    %c336_246 = arith.constant 336 : index
    %357 = vector.load %arg4[%c2_244, %c0_245, %c336_246] : memref<7x136x448xf32, #tpu.memory_space<vmem>>, vector<1x136x112xf32>
    %358 = vector.shape_cast %357 : vector<1x136x112xf32> to vector<136x112xf32>
    %cst_247 = arith.constant dense<0.000000e+00> : vector<68x112xf32>
    %359 = tpu.matmul %356, %358, %cst_247 {dimension_numbers = #tpu.dot_dimension_numbers<[1], [0], [0], [1], [0, 0, 1, 1], [], []>} : vector<68x136xf32>, vector<136x112xf32>, vector<68x112xf32> -> vector<68x112xf32>
    %360 = arith.addf %355, %359 : vector<68x112xf32>
    %c3_248 = arith.constant 3 : index
    %c0_249 = arith.constant 0 : index
    %361 = vector.load %arg10[%c3_248, %c0_249] : memref<76x136xf32, #tpu.memory_space<vmem>>, vector<68x136xf32>
    %c3_250 = arith.constant 3 : index
    %c0_251 = arith.constant 0 : index
    %c336_252 = arith.constant 336 : index
    %362 = vector.load %arg4[%c3_250, %c0_251, %c336_252] : memref<7x136x448xf32, #tpu.memory_space<vmem>>, vector<1x136x112xf32>
    %363 = vector.shape_cast %362 : vector<1x136x112xf32> to vector<136x112xf32>
    %cst_253 = arith.constant dense<0.000000e+00> : vector<68x112xf32>
    %364 = tpu.matmul %361, %363, %cst_253 {dimension_numbers = #tpu.dot_dimension_numbers<[1], [0], [0], [1], [0, 0, 1, 1], [], []>} : vector<68x136xf32>, vector<136x112xf32>, vector<68x112xf32> -> vector<68x112xf32>
    %365 = arith.addf %360, %364 : vector<68x112xf32>
    %c4_254 = arith.constant 4 : index
    %c0_255 = arith.constant 0 : index
    %366 = vector.load %arg10[%c4_254, %c0_255] : memref<76x136xf32, #tpu.memory_space<vmem>>, vector<68x136xf32>
    %c4_256 = arith.constant 4 : index
    %c0_257 = arith.constant 0 : index
    %c336_258 = arith.constant 336 : index
    %367 = vector.load %arg4[%c4_256, %c0_257, %c336_258] : memref<7x136x448xf32, #tpu.memory_space<vmem>>, vector<1x136x112xf32>
    %368 = vector.shape_cast %367 : vector<1x136x112xf32> to vector<136x112xf32>
    %cst_259 = arith.constant dense<0.000000e+00> : vector<68x112xf32>
    %369 = tpu.matmul %366, %368, %cst_259 {dimension_numbers = #tpu.dot_dimension_numbers<[1], [0], [0], [1], [0, 0, 1, 1], [], []>} : vector<68x136xf32>, vector<136x112xf32>, vector<68x112xf32> -> vector<68x112xf32>
    %370 = arith.addf %365, %369 : vector<68x112xf32>
    %c5_260 = arith.constant 5 : index
    %c0_261 = arith.constant 0 : index
    %371 = vector.load %arg10[%c5_260, %c0_261] : memref<76x136xf32, #tpu.memory_space<vmem>>, vector<68x136xf32>
    %c5_262 = arith.constant 5 : index
    %c0_263 = arith.constant 0 : index
    %c336_264 = arith.constant 336 : index
    %372 = vector.load %arg4[%c5_262, %c0_263, %c336_264] : memref<7x136x448xf32, #tpu.memory_space<vmem>>, vector<1x136x112xf32>
    %373 = vector.shape_cast %372 : vector<1x136x112xf32> to vector<136x112xf32>
    %cst_265 = arith.constant dense<0.000000e+00> : vector<68x112xf32>
    %374 = tpu.matmul %371, %373, %cst_265 {dimension_numbers = #tpu.dot_dimension_numbers<[1], [0], [0], [1], [0, 0, 1, 1], [], []>} : vector<68x136xf32>, vector<136x112xf32>, vector<68x112xf32> -> vector<68x112xf32>
    %375 = arith.addf %370, %374 : vector<68x112xf32>
    %c6_266 = arith.constant 6 : index
    %c0_267 = arith.constant 0 : index
    %376 = vector.load %arg10[%c6_266, %c0_267] : memref<76x136xf32, #tpu.memory_space<vmem>>, vector<68x136xf32>
    %c6_268 = arith.constant 6 : index
    %c0_269 = arith.constant 0 : index
    %c336_270 = arith.constant 336 : index
    %377 = vector.load %arg4[%c6_268, %c0_269, %c336_270] : memref<7x136x448xf32, #tpu.memory_space<vmem>>, vector<1x136x112xf32>
    %378 = vector.shape_cast %377 : vector<1x136x112xf32> to vector<136x112xf32>
    %cst_271 = arith.constant dense<0.000000e+00> : vector<68x112xf32>
    %379 = tpu.matmul %376, %378, %cst_271 {dimension_numbers = #tpu.dot_dimension_numbers<[1], [0], [0], [1], [0, 0, 1, 1], [], []>} : vector<68x136xf32>, vector<136x112xf32>, vector<68x112xf32> -> vector<68x112xf32>
    %380 = arith.addf %375, %379 : vector<68x112xf32>
    %cst_272 = arith.constant dense<0.000000e+00> : vector<28x112xf32>
    %381 = tpu.matmul %223, %380, %cst_272 {dimension_numbers = #tpu.dot_dimension_numbers<[1], [0], [0], [1], [0, 0, 1, 1], [], []>} : vector<28x68xf32>, vector<68x112xf32>, vector<28x112xf32> -> vector<28x112xf32>
    %cst_273 = arith.constant dense<0.000000e+00> : vector<28x56xf32>
    %382 = tpu.matmul %381, %225, %cst_273 {dimension_numbers = #tpu.dot_dimension_numbers<[1], [0], [0], [1], [0, 0, 1, 1], [], []>} : vector<28x112xf32>, vector<112x56xf32>, vector<28x56xf32> -> vector<28x56xf32>
    %cst_274 = arith.constant dense<0.000000e+00> : vector<16x56xf32>
    %383 = tpu.matmul %224, %382, %cst_274 {dimension_numbers = #tpu.dot_dimension_numbers<[1], [0], [0], [1], [0, 0, 1, 1], [], []>} : vector<16x28xf32>, vector<28x56xf32>, vector<16x56xf32> -> vector<16x56xf32>
    %cst_275 = arith.constant dense<0.000000e+00> : vector<16x28xf32>
    %384 = tpu.matmul %383, %226, %cst_275 {dimension_numbers = #tpu.dot_dimension_numbers<[1], [0], [0], [1], [0, 0, 1, 1], [], []>} : vector<16x56xf32>, vector<56x28xf32>, vector<16x28xf32> -> vector<16x28xf32>
    %385 = arith.mulf %384, %344 : vector<16x28xf32>
    %386 = arith.addf %385, %344 : vector<16x28xf32>
    %c0_276 = arith.constant 0 : index
    %c0_277 = arith.constant 0 : index
    %387 = vector.load %arg9[%c0_276, %c0_277] : memref<16x28xf32, #tpu.memory_space<vmem>>, vector<16x28xf32>
    tpu.vector_store %arg9[%c0_276, %c0_277], %386 {strides = array<i32>} : memref<16x28xf32, #tpu.memory_space<vmem>>, vector<16x28xf32>,
    return
  }
  func.func @transform_0(%arg0: i32) -> (i32, i32) {
    %c0_i32 = arith.constant 0 : i32
    %c0_i32_0 = arith.constant 0 : i32
    %c0_i32_1 = arith.constant 0 : i32
    return %c0_i32, %c0_i32_0 : i32, i32
  }
  func.func @transform_1(%arg0: i32) -> i32 {
    %c0_i32 = arith.constant 0 : i32
    %c0_i32_0 = arith.constant 0 : i32
    return %c0_i32 : i32
  }
  func.func @transform_2(%arg0: i32) -> (i32, i32, i32) {
    %c0_i32 = arith.constant 0 : i32
    %c0_i32_0 = arith.constant 0 : i32
    %c0_i32_1 = arith.constant 0 : i32
    return %arg0, %c0_i32, %c0_i32_0 : i32, i32, i32
  }
  func.func @transform_3(%arg0: i32) -> (i32, i32, i32) {
    %c0_i32 = arith.constant 0 : i32
    %c0_i32_0 = arith.constant 0 : i32
    %c0_i32_1 = arith.constant 0 : i32
    %c0_i32_2 = arith.constant 0 : i32
    return %c0_i32, %c0_i32_0, %c0_i32_1 : i32, i32, i32
  }
  func.func @transform_4(%arg0: i32) -> (i32, i32) {
    %c0_i32 = arith.constant 0 : i32
    %c0_i32_0 = arith.constant 0 : i32
    %c0_i32_1 = arith.constant 0 : i32
    return %c0_i32, %c0_i32_0 : i32, i32
  }
  func.func @transform_5(%arg0: i32) -> (i32, i32) {
    %c0_i32 = arith.constant 0 : i32
    %c0_i32_0 = arith.constant 0 : i32
    %c0_i32_1 = arith.constant 0 : i32
    return %c0_i32, %c0_i32_0 : i32, i32
  }
  func.func @transform_6(%arg0: i32) -> (i32, i32) {
    %c0_i32 = arith.constant 0 : i32
    %c0_i32_0 = arith.constant 0 : i32
    %c0_i32_1 = arith.constant 0 : i32
    return %c0_i32, %c0_i32_0 : i32, i32
  }
  func.func @transform_7(%arg0: i32) -> (i32, i32) {
    %c0_i32 = arith.constant 0 : i32
    %c0_i32_0 = arith.constant 0 : i32
    %c0_i32_1 = arith.constant 0 : i32
    return %c0_i32, %c0_i32_0 : i32, i32
  }
  func.func @transform_8(%arg0: i32) -> (i32, i32) {
    %c0_i32 = arith.constant 0 : i32
    %c0_i32_0 = arith.constant 0 : i32
    return %arg0, %c0_i32 : i32, i32
  }
}

module attributes {stable_mosaic.version = 11 : i64} {
  func.func @_linear_kernel(%arg0: i32, %arg1: memref<2x196xf32, #tpu.memory_space<vmem>>, %arg2: memref<196x10xf32, #tpu.memory_space<vmem>>, %arg3: memref<1x10xf32, #tpu.memory_space<vmem>>, %arg4: memref<2x10xf32, #tpu.memory_space<vmem>>) attributes {dimension_semantics = [#tpu.dimension_semantics<parallel>], iteration_bounds = array<i64: 1>, scalar_prefetch = 0 : i64, scratch_operands = 0 : i64, tpu.core_type = #tpu.core_type<tc>, window_params = [{transform_indices = @transform_0, window_bounds = array<i64: 2, 196>}, {pipeline_mode = #tpu.pipeline_mode<synchronous>, transform_indices = @transform_1, window_bounds = array<i64: 196, 10>}, {pipeline_mode = #tpu.pipeline_mode<synchronous>, transform_indices = @transform_2, window_bounds = array<i64: 1, 10>}, {transform_indices = @transform_3, window_bounds = array<i64: 2, 10>}]} {
    %c0 = arith.constant 0 : index
    %c0_0 = arith.constant 0 : index
    %0 = vector.load %arg1[%c0, %c0_0] : memref<2x196xf32, #tpu.memory_space<vmem>>, vector<2x196xf32>
    %c0_1 = arith.constant 0 : index
    %c0_2 = arith.constant 0 : index
    %1 = vector.load %arg2[%c0_1, %c0_2] : memref<196x10xf32, #tpu.memory_space<vmem>>, vector<196x10xf32>
    %cst = arith.constant dense<0.000000e+00> : vector<2x10xf32>
    %2 = tpu.matmul %0, %1, %cst {dimension_numbers = #tpu.dot_dimension_numbers<[1], [0], [0], [1], [0, 0, 1, 1], [], []>} : vector<2x196xf32>, vector<196x10xf32>, vector<2x10xf32> -> vector<2x10xf32>
    %c0_3 = arith.constant 0 : index
    %c0_4 = arith.constant 0 : index
    %3 = vector.load %arg3[%c0_3, %c0_4] : memref<1x10xf32, #tpu.memory_space<vmem>>, vector<1x10xf32>
    %4 = vector.broadcast %3 : vector<1x10xf32> to vector<2x10xf32>
    %5 = arith.addf %2, %4 : vector<2x10xf32>
    %c0_5 = arith.constant 0 : index
    %c0_6 = arith.constant 0 : index
    %6 = vector.load %arg4[%c0_5, %c0_6] : memref<2x10xf32, #tpu.memory_space<vmem>>, vector<2x10xf32>
    tpu.vector_store %arg4[%c0_5, %c0_6], %5 {strides = array<i32>} : memref<2x10xf32, #tpu.memory_space<vmem>>, vector<2x10xf32>,
    return
  }
  func.func @transform_0(%arg0: i32) -> (i32, i32) {
    %c0_i32 = arith.constant 0 : i32
    %c0_i32_0 = arith.constant 0 : i32
    return %arg0, %c0_i32 : i32, i32
  }
  func.func @transform_1(%arg0: i32) -> (i32, i32) {
    %c0_i32 = arith.constant 0 : i32
    %c0_i32_0 = arith.constant 0 : i32
    %c0_i32_1 = arith.constant 0 : i32
    return %c0_i32, %c0_i32_0 : i32, i32
  }
  func.func @transform_2(%arg0: i32) -> (i32, i32) {
    %c0_i32 = arith.constant 0 : i32
    %c0_i32_0 = arith.constant 0 : i32
    %c0_i32_1 = arith.constant 0 : i32
    return %c0_i32, %c0_i32_0 : i32, i32
  }
  func.func @transform_3(%arg0: i32) -> (i32, i32) {
    %c0_i32 = arith.constant 0 : i32
    %c0_i32_0 = arith.constant 0 : i32
    return %arg0, %c0_i32 : i32, i32
  }
}

</mosaic_0001>

<llo_original>
// kernel: ccp_forward.3
$region0: #{ccp_forward.3}
  #allocation0 [shape = 'u32[]', space=smem, size = 0x4, offset = 0x4, fixed_abs, tag = 'smem constant byte address 0x4 - core index']
  #allocation1 [shape = 'u32[144,128]{1,0:T(1,128)}', space=vmem, size = 0x12000, scoped, tag = 'internal scratch']
  %s0 = inlined_call_operand.vmem [shape: f32[2,196], index: 0, kind: input, shape index: {}]
  %s1 = inlined_call_operand.vmem [shape: f32[196,10], index: 1, kind: input, shape index: {}]
  %s2 = inlined_call_operand.vmem [shape: f32[1,10], index: 2, kind: input, shape index: {}]
  %s3 = inlined_call_operand.hbm [shape: f32[2,10], index: 3, kind: output, shape index: {}]
  %s4 = sld [smem:[#allocation0]]
  $region22: #{ccp_forward.3} parent=0
    _
  %s6 = ssub.s32 1, %s4
  %s7 = scalar_select 0, %s6, %s4
  $region1: #{ccp_forward.3} parent=0
    #allocation2 [shape = 'u8[1024]{0}', space=vmem, size = 0x400, scoped, tag = 'output window, operand 0, single buffered']
    #allocation3 [shape = 's32[1]{0}', space=sflag, size = 0x4, scoped, tag = 'scoped memory for ccp_forward.3']
    %8 = vsyncpa [#allocation3], 0
    // Predicated region
    $region2: #{ccp_forward.3} parent=1 // pred_check
      _
    $region3: #{ccp_forward.3} parent=1 // pred_check_branch
      %10 = sbr.rel (0) target = $region5
    $region4: #{ccp_forward.3} parent=1 // pred_region
      _
    $region5: #{ccp_forward.3} parent=1 // pred_fallthru
      _
    // Predicated region
    $region6: #{ccp_forward.3} parent=1 // pred_check
      _
    $region7: #{ccp_forward.3} parent=1 // pred_check_branch
      %12 = sbr.rel (0) target = $region9
    $region8: #{ccp_forward.3} parent=1 // pred_region
      _
    $region9: #{ccp_forward.3} parent=1 // pred_fallthru
      _
    // Predicated region
    $region10: #{ccp_forward.3} parent=1 // pred_check
      _
    $region11: #{ccp_forward.3} parent=1 // pred_check_branch
      %14 = sbr.rel (0) target = $region13
    $region12: #{ccp_forward.3} parent=1 // pred_region
      _
    $region13: #{ccp_forward.3} parent=1 // pred_fallthru
      _
    %v15 = vld [vmem:[%s0] sm:$0xf]
    %v16 = vld [vmem:[%s1] sm:$0xff]
    %v17 = vld [vmem:[%s1 + $0x8] sm:$0xff]
    %v18 = vld [vmem:[%s1 + $0x10] sm:$0xff]
    %v19 = vld [vmem:[%s1 + $0x18] sm:$0xff]
    %v20 = vld [vmem:[%s1 + $0x20] sm:$0xff]
    %v21 = vld [vmem:[%s1 + $0x28] sm:$0xff]
    %v22 = vld [vmem:[%s1 + $0x30] sm:$0xff]
    %v23 = vld [vmem:[%s1 + $0x38] sm:$0xff]
    %v24 = vld [vmem:[%s1 + $0x40] sm:$0xff]
    %v25 = vld [vmem:[%s1 + $0x48] sm:$0xff]
    %v26 = vld [vmem:[%s1 + $0x50] sm:$0xff]
    %v27 = vld [vmem:[%s1 + $0x58] sm:$0xff]
    %v28 = vld [vmem:[%s1 + $0x60] sm:$0xff]
    %v29 = vld [vmem:[%s1 + $0x68] sm:$0xff]
    %v30 = vld [vmem:[%s1 + $0x70] sm:$0xff]
    %v31 = vld [vmem:[%s1 + $0x78] sm:$0xff]
    %v32 = vld [vmem:[%s1 + $0x80] sm:$0xff]
    %v33 = vld [vmem:[%s1 + $0x88] sm:$0xff]
    %v34 = vld [vmem:[%s1 + $0x90] sm:$0xff]
    %v35 = vld [vmem:[%s1 + $0x98] sm:$0xff]
    %v36 = vld [vmem:[%s1 + $0xa0] sm:$0xff]
    %v37 = vld [vmem:[%s1 + $0xa8] sm:$0xff]
    %v38 = vld [vmem:[%s1 + $0xb0] sm:$0xff]
    %v39 = vld [vmem:[%s1 + $0xb8] sm:$0xff]
    %v40 = vld [vmem:[%s1 + $0xc0] sm:$0xf]
    %v41 = vld [vmem:[%s2] sm:$0x1]
    %v43 = vlaneseq
    %v44 = vshrl.u32 %v43, 7
    %v45 = vsub.s32 0, %v44
    %v46 = vrot.slane %v41, %v45
    %v50 = vunpack.c.l.s4 1983009808
    %v51 = vunpack.c.0.s8 %v50
    %v52 = vlaneseq
    %v53 = vshrl.u32 %v52, 7
    %v54 = vsub.s32 %v51, %v53
    %v55 = vrot.slane %v15, %v54
    %v56 = vcombine.high %v55, %v55
    %vm58 = vcmask 556032
    %v59 = vsel %vm58, %v56, 0
    %vm61 = vcmask 1043456
    %v63 = vsel %vm61, %v40, 0
    %65 = vmatprep.subr.mxu0 0.0
    %66 = vmatpush1.msra.mxu0 %v31
    %67 = vmatprep.subr.mxu0 0.0
    %68 = vmatpush1.msra.mxu0 %v30
    %69 = vmatprep.subr.mxu0 0.0
    %70 = vmatpush1.msra.mxu0 %v29
    %71 = vmatprep.subr.mxu0 0.0
    %72 = vmatpush1.msra.mxu0 %v28
    %73 = vmatprep.subr.mxu0 0.0
    %74 = vmatpush1.msra.mxu0 %v27
    %75 = vmatprep.subr.mxu0 0.0
    %76 = vmatpush1.msra.mxu0 %v26
    %77 = vmatprep.subr.mxu0 0.0
    %78 = vmatpush1.msra.mxu0 %v25
    %79 = vmatprep.subr.mxu0 0.0
    %80 = vmatpush1.msra.mxu0 %v24
    %81 = vmatprep.subr.mxu0 0.0
    %82 = vmatpush1.msra.mxu0 %v23
    %83 = vmatprep.subr.mxu0 0.0
    %84 = vmatpush1.msra.mxu0 %v22
    %85 = vmatprep.subr.mxu0 0.0
    %86 = vmatpush1.msra.mxu0 %v21
    %87 = vmatprep.subr.mxu0 0.0
    %88 = vmatpush1.msra.mxu0 %v20
    %89 = vmatprep.subr.mxu0 0.0
    %90 = vmatpush1.msra.mxu0 %v19
    %91 = vmatprep.subr.mxu0 0.0
    %92 = vmatpush1.msra.mxu0 %v18
    %93 = vmatprep.subr.mxu0 0.0
    %94 = vmatpush1.msra.mxu0 %v17
    %95 = vmatprep.subr.mxu0 0.0
    %96 = vmatpush1.msra.mxu0 %v16
    %97 = vmatprep.subr.mxu0 0.0
    %98 = vmatpush2.msra.mxu0 0.0
    %99 = vmatprep.subr.mxu0 0.0
    %100 = vmatpush2.msra.mxu0 0.0
    %101 = vmatprep.subr.mxu0 0.0
    %102 = vmatpush2.msra.mxu0 0.0
    %103 = vmatprep.subr.mxu0 0.0
    %104 = vmatpush2.msra.mxu0 0.0
    %105 = vmatprep.subr.mxu0 0.0
    %106 = vmatpush2.msra.mxu0 0.0
    %107 = vmatprep.subr.mxu0 0.0
    %108 = vmatpush2.msra.mxu0 0.0
    %109 = vmatprep.subr.mxu0 0.0
    %110 = vmatpush2.msra.mxu0 0.0
    %111 = vmatprep.subr.mxu0 0.0
    %112 = vmatpush2.msra.mxu0 %v63
    %113 = vmatprep.subr.mxu0 0.0
    %114 = vmatpush2.msra.mxu0 %v39
    %115 = vmatprep.subr.mxu0 0.0
    %116 = vmatpush2.msra.mxu0 %v38
    %117 = vmatprep.subr.mxu0 0.0
    %118 = vmatpush2.msra.mxu0 %v37
    %119 = vmatprep.subr.mxu0 0.0
    %120 = vmatpush2.msra.mxu0 %v36
    %121 = vmatprep.subr.mxu0 0.0
    %122 = vmatpush2.msra.mxu0 %v35
    %123 = vmatprep.subr.mxu0 0.0
    %124 = vmatpush2.msra.mxu0 %v34
    %125 = vmatprep.subr.mxu0 0.0
    %126 = vmatpush2.msra.mxu0 %v33
    %127 = vmatprep.subr.mxu0 0.0
    %128 = vmatpush2.msra.mxu0 %v32
    %129 = vmatprep.mubr.f32.mxu0 %v59
    %130 = vmatmul.mubr.f32.gmra.mxu0 %v55
    %v131 = vpop.f32.mrf.mxu0
    %v132 = vadd.f32 %v46, %v131
    %v133 = vpop.f32.mrf.mxu0
    %134 = vdwg.mxu0
    %vm135 = vcmask 74752
    %136 = vst.msk [vmem:[#allocation2] sm:$0x3] %vm135, %v132
    // Predicated region
    $region14: #{ccp_forward.3} parent=1 // pred_check
      _
    $region15: #{ccp_forward.3} parent=1 // pred_check_branch
      %138 = sbr.rel (0) target = $region17
    $region16: #{ccp_forward.3} parent=1 // pred_region
      %s140 = ssub.s32 32, 32
      %141 = vsyncadd [#allocation3], %s140
      %s143 = sshll.u32 [#allocation2], 4
      %s144 = int_to_ptr.vmem [resolvable:$true] %s143
      %146 = dma.vmem_to_hbm [thread:$0]  %s144, 32, %s3, [#allocation3]
    $region17: #{ccp_forward.3} parent=1 // pred_fallthru
      _
    // Predicated region
    $region18: #{ccp_forward.3} parent=1 // pred_check
      _
    $region19: #{ccp_forward.3} parent=1 // pred_check_branch
      %148 = sbr.rel (0) target = $region21
    $region20: #{ccp_forward.3} parent=1 // pred_region
      %149 = dma.done [#allocation3], 32
    $region21: #{ccp_forward.3} parent=1 // pred_fallthru
      _
    %150 = vsyncpa [#allocation3], 1

// kernel: ccp_forward.2
$region0: #{ccp_forward.2}
  #allocation0 [shape = 'u32[]', space=smem, size = 0x4, offset = 0x4, fixed_abs, tag = 'smem constant byte address 0x4 - core index']
  #allocation1 [shape = 'u32[144,128]{1,0:T(1,128)}', space=vmem, size = 0x12000, scoped, tag = 'internal scratch']
  #allocation2 [shape = 'f32[76,136]{1,0:T(8,128)}', space=vmem, size = 0x14000, scoped, tag = 'scratch operand']
  %s0 = inlined_call_operand.vmem [shape: f32[4,9], index: 0, kind: input, shape index: {}]
  %s1 = inlined_call_operand.vmem [shape: f32[4], index: 1, kind: input, shape index: {}]
  %s2 = inlined_call_operand.vmem [shape: f32[2,30,30], index: 2, kind: input, shape index: {}]
  %s3 = inlined_call_operand.vmem [shape: f32[7,136,448], index: 3, kind: input, shape index: {}]
  %s4 = inlined_call_operand.vmem [shape: f32[28,68], index: 4, kind: input, shape index: {}]
  %s5 = inlined_call_operand.vmem [shape: f32[16,28], index: 5, kind: input, shape index: {}]
  %s6 = inlined_call_operand.vmem [shape: f32[112,56], index: 6, kind: input, shape index: {}]
  %s7 = inlined_call_operand.vmem [shape: f32[56,28], index: 7, kind: input, shape index: {}]
  %s8 = inlined_call_operand.vmem [shape: f32[16,28], index: 8, kind: output, shape index: {}]
  %s9 = sld [smem:[#allocation0]]
  $region50: #{ccp_forward.2} parent=0
    _
  %s11 = ssub.s32 1, %s9
  %s12 = scalar_select 0, %s11, %s9
  $region1: #{ccp_forward.2} parent=0
    #allocation3 [shape = 'u8[2048]{0}', space=smem, size = 0x800, scoped, tag = 'input window, operand 0, single buffered']
    #allocation4 [shape = 's32[1]{0}', space=sflag, size = 0x4, scoped, tag = 'scoped memory for ccp_forward.2']
    #allocation5 [shape = 'u8[512]{0}', space=smem, size = 0x200, scoped, tag = 'input window, operand 1, single buffered']
    #allocation6 [shape = 's32[1]{0}', space=sflag, size = 0x4, scoped, tag = 'scoped memory for ccp_forward.2']
    %13 = vsyncpa [#allocation4], 0
    %14 = vsyncpa [#allocation6], 0
    // Predicated region
    $region2: #{ccp_forward.2} parent=1 // pred_check
      _
    $region3: #{ccp_forward.2} parent=1 // pred_check_branch
      %16 = sbr.rel (0) target = $region5
    $region4: #{ccp_forward.2} parent=1 // pred_region
      %s18 = ssub.s32 64, 64
      %19 = vsyncadd [#allocation4], %s18
      %s21 = sshll.u32 %s0, 4
      %s22 = int_to_ptr.vmem [resolvable:$true] %s21
      %24 = dma.vmem_to_smem %s22, 64, [#allocation3], [#allocation4]
    $region5: #{ccp_forward.2} parent=1 // pred_fallthru
      _
    // Predicated region
    $region6: #{ccp_forward.2} parent=1 // pred_check
      _
    $region7: #{ccp_forward.2} parent=1 // pred_check_branch
      %26 = sbr.rel (0) target = $region9
    $region8: #{ccp_forward.2} parent=1 // pred_region
      %s28 = ssub.s32 16, 16
      %29 = vsyncadd [#allocation6], %s28
      %s31 = sshll.u32 %s1, 4
      %s32 = int_to_ptr.vmem [resolvable:$true] %s31
      %34 = dma.vmem_to_smem %s32, 16, [#allocation5], [#allocation6]
    $region9: #{ccp_forward.2} parent=1 // pred_fallthru
      _
    // Predicated region
    $region10: #{ccp_forward.2} parent=1 // pred_check
      _
    $region11: #{ccp_forward.2} parent=1 // pred_check_branch
      %36 = sbr.rel (0) target = $region13
    $region12: #{ccp_forward.2} parent=1 // pred_region
      _
    $region13: #{ccp_forward.2} parent=1 // pred_fallthru
      _
    // Predicated region
    $region14: #{ccp_forward.2} parent=1 // pred_check
      _
    $region15: #{ccp_forward.2} parent=1 // pred_check_branch
      %38 = sbr.rel (0) target = $region17
    $region16: #{ccp_forward.2} parent=1 // pred_region
      _
    $region17: #{ccp_forward.2} parent=1 // pred_fallthru
      _
    // Predicated region
    $region18: #{ccp_forward.2} parent=1 // pred_check
      _
    $region19: #{ccp_forward.2} parent=1 // pred_check_branch
      %40 = sbr.rel (0) target = $region21
    $region20: #{ccp_forward.2} parent=1 // pred_region
      _
    $region21: #{ccp_forward.2} parent=1 // pred_fallthru
      _
    // Predicated region
    $region22: #{ccp_forward.2} parent=1 // pred_check
      _
    $region23: #{ccp_forward.2} parent=1 // pred_check_branch
      %42 = sbr.rel (0) target = $region25
    $region24: #{ccp_forward.2} parent=1 // pred_region
      _
    $region25: #{ccp_forward.2} parent=1 // pred_fallthru
      _
    // Predicated region
    $region26: #{ccp_forward.2} parent=1 // pred_check
      _
    $region27: #{ccp_forward.2} parent=1 // pred_check_branch
      %44 = sbr.rel (0) target = $region29
    $region28: #{ccp_forward.2} parent=1 // pred_region
      _
    $region29: #{ccp_forward.2} parent=1 // pred_fallthru
      _
    // Predicated region
    $region30: #{ccp_forward.2} parent=1 // pred_check
      _
    $region31: #{ccp_forward.2} parent=1 // pred_check_branch
      %46 = sbr.rel (0) target = $region33
    $region32: #{ccp_forward.2} parent=1 // pred_region
      _
    $region33: #{ccp_forward.2} parent=1 // pred_fallthru
      _
    // Predicated region
    $region34: #{ccp_forward.2} parent=1 // pred_check
      _
    $region35: #{ccp_forward.2} parent=1 // pred_check_branch
      %48 = sbr.rel (0) target = $region37
    $region36: #{ccp_forward.2} parent=1 // pred_region
      %49 = dma.done [#allocation4], 64
    $region37: #{ccp_forward.2} parent=1 // pred_fallthru
      _
    // Predicated region
    $region38: #{ccp_forward.2} parent=1 // pred_check
      _
    $region39: #{ccp_forward.2} parent=1 // pred_check_branch
      %51 = sbr.rel (0) target = $region41
    $region40: #{ccp_forward.2} parent=1 // pred_region
      %52 = dma.done [#allocation6], 16
    $region41: #{ccp_forward.2} parent=1 // pred_fallthru
      _
    %53 = sfence
    %54 = vst [vmem:[#allocation2] sm:$0xff] 0.0
    %vm55 = vcmask 64512
    %56 = vst.msk [vmem:[#allocation2 + $0x8] sm:$0xff] %vm55, 0.0
    %57 = vst [vmem:[#allocation2 + $0x10] sm:$0xff] 0.0
    %58 = vst.msk [vmem:[#allocation2 + $0x18] sm:$0xff] %vm55, 0.0
    %59 = vst [vmem:[#allocation2 + $0x20] sm:$0xff] 0.0
    %60 = vst.msk [vmem:[#allocation2 + $0x28] sm:$0xff] %vm55, 0.0
    %61 = vst [vmem:[#allocation2 + $0x30] sm:$0xff] 0.0
    %62 = vst.msk [vmem:[#allocation2 + $0x38] sm:$0xff] %vm55, 0.0
    %63 = vst [vmem:[#allocation2 + $0x40] sm:$0xff] 0.0
    %64 = vst.msk [vmem:[#allocation2 + $0x48] sm:$0xff] %vm55, 0.0
    %65 = vst [vmem:[#allocation2 + $0x50] sm:$0xff] 0.0
    %66 = vst.msk [vmem:[#allocation2 + $0x58] sm:$0xff] %vm55, 0.0
    %67 = vst [vmem:[#allocation2 + $0x60] sm:$0xff] 0.0
    %68 = vst.msk [vmem:[#allocation2 + $0x68] sm:$0xff] %vm55, 0.0
    %69 = vst [vmem:[#allocation2 + $0x70] sm:$0xff] 0.0
    %70 = vst.msk [vmem:[#allocation2 + $0x78] sm:$0xff] %vm55, 0.0
    %71 = vst [vmem:[#allocation2 + $0x80] sm:$0xff] 0.0
    %72 = vst.msk [vmem:[#allocation2 + $0x88] sm:$0xff] %vm55, 0.0
    %73 = vst [vmem:[#allocation2 + $0x90] sm:$0xf] 0.0
    %vm74 = vcmask 60416
    %75 = vst.msk [vmem:[#allocation2 + $0x98] sm:$0xf] %vm74, 0.0
    %v76 = vld [vmem:[%s2] sm:$0xff]
    %v77 = vld [vmem:[%s2 + $0x8] sm:$0xff]
    %v78 = vld [vmem:[%s2 + $0x10] sm:$0xff]
    %v79 = vld [vmem:[%s2 + $0x18] sm:$0x3f]
    %v80 = vld [vmem:[%s2 + $0x20] sm:$0xff]
    %v81 = vld [vmem:[%s2 + $0x28] sm:$0xff]
    %v82 = vld [vmem:[%s2 + $0x30] sm:$0xff]
    %v83 = vld [vmem:[%s2 + $0x38] sm:$0x3f]
    %s84 = sld [smem:[#allocation3]]
    %v85 = vstv %s84
    %v86 = vmul.f32 %v85, %v76
    %v87 = vmul.f32 %v85, %v77
    %v88 = vmul.f32 %v85, %v78
    %v89 = vmul.f32 %v85, %v79
    %v90 = vmul.f32 %v85, %v80
    %v91 = vmul.f32 %v85, %v81
    %v92 = vmul.f32 %v85, %v82
    %v93 = vmul.f32 %v85, %v83
    %v94 = vadd.f32 %v86, 0.0
    %v95 = vadd.f32 %v87, 0.0
    %v96 = vadd.f32 %v88, 0.0
    %v97 = vadd.f32 %v89, 0.0
    %v98 = vadd.f32 %v90, 0.0
    %v99 = vadd.f32 %v91, 0.0
    %v100 = vadd.f32 %v92, 0.0
    %v101 = vadd.f32 %v93, 0.0
    %s102 = sld [smem:[#allocation3 + $0x1]]
    %v103 = vstv %s102
    %v104 = vmul.f32 %v103, %v76
    %v105 = vmul.f32 %v103, %v77
    %v106 = vmul.f32 %v103, %v78
    %v107 = vmul.f32 %v103, %v79
    %v108 = vmul.f32 %v103, %v80
    %v109 = vmul.f32 %v103, %v81
    %v110 = vmul.f32 %v103, %v82
    %v111 = vmul.f32 %v103, %v83
    %120 = vrot.lane.b32.xlu0 %v104, 127
    %v121 = vpop.permute.xlu0 %120
    %122 = vrot.lane.b32.xlu0 %v105, 127
    %v123 = vpop.permute.xlu0 %122
    %124 = vrot.lane.b32.xlu0 %v106, 127
    %v125 = vpop.permute.xlu0 %124
    %126 = vrot.lane.b32.xlu0 %v107, 127
    %v127 = vpop.permute.xlu0 %126
    %128 = vrot.lane.b32.xlu0 %v108, 127
    %v129 = vpop.permute.xlu0 %128
    %130 = vrot.lane.b32.xlu0 %v109, 127
    %v131 = vpop.permute.xlu0 %130
    %132 = vrot.lane.b32.xlu0 %v110, 127
    %v133 = vpop.permute.xlu0 %132
    %134 = vrot.lane.b32.xlu0 %v111, 127
    %v135 = vpop.permute.xlu0 %134
    %v144 = vadd.f32 %v94, %v121
    %v145 = vadd.f32 %v95, %v123
    %v146 = vadd.f32 %v96, %v125
    %v147 = vadd.f32 %v97, %v127
    %v148 = vadd.f32 %v98, %v129
    %v149 = vadd.f32 %v99, %v131
    %v150 = vadd.f32 %v100, %v133
    %v151 = vadd.f32 %v101, %v135
    %s152 = sld [smem:[#allocation3 + $0x2]]
    %v153 = vstv %s152
    %v154 = vmul.f32 %v153, %v76
    %v155 = vmul.f32 %v153, %v77
    %v156 = vmul.f32 %v153, %v78
    %v157 = vmul.f32 %v153, %v79
    %v158 = vmul.f32 %v153, %v80
    %v159 = vmul.f32 %v153, %v81
    %v160 = vmul.f32 %v153, %v82
    %v161 = vmul.f32 %v153, %v83
    %170 = vrot.lane.b32.xlu0 %v154, 126
    %v171 = vpop.permute.xlu0 %170
    %172 = vrot.lane.b32.xlu0 %v155, 126
    %v173 = vpop.permute.xlu0 %172
    %174 = vrot.lane.b32.xlu0 %v156, 126
    %v175 = vpop.permute.xlu0 %174
    %176 = vrot.lane.b32.xlu0 %v157, 126
    %v177 = vpop.permute.xlu0 %176
    %178 = vrot.lane.b32.xlu0 %v158, 126
    %v179 = vpop.permute.xlu0 %178
    %180 = vrot.lane.b32.xlu0 %v159, 126
    %v181 = vpop.permute.xlu0 %180
    %182 = vrot.lane.b32.xlu0 %v160, 126
    %v183 = vpop.permute.xlu0 %182
    %184 = vrot.lane.b32.xlu0 %v161, 126
    %v185 = vpop.permute.xlu0 %184
    %v194 = vadd.f32 %v144, %v171
    %v195 = vadd.f32 %v145, %v173
    %v196 = vadd.f32 %v146, %v175
    %v197 = vadd.f32 %v147, %v177
    %v198 = vadd.f32 %v148, %v179
    %v199 = vadd.f32 %v149, %v181
    %v200 = vadd.f32 %v150, %v183
    %v201 = vadd.f32 %v151, %v185
    %s202 = sld [smem:[#allocation3 + $0x3]]
    %v203 = vstv %s202
    %v204 = vmul.f32 %v203, %v76
    %v205 = vmul.f32 %v203, %v77
    %v206 = vmul.f32 %v203, %v78
    %v207 = vmul.f32 %v203, %v79
    %v208 = vmul.f32 %v203, %v80
    %v209 = vmul.f32 %v203, %v81
    %v210 = vmul.f32 %v203, %v82
    %v211 = vmul.f32 %v203, %v83
    %vm220 = vcmask 1046528
    %v221 = vrot.slane %v204, 1
    %v222 = vrot.slane %v205, 1
    %v223 = vsel %vm220, %v221, %v222
    %v224 = vrot.slane %v206, 1
    %v225 = vsel %vm220, %v222, %v224
    %v226 = vrot.slane %v207, 1
    %v227 = vsel %vm220, %v224, %v226
    %v228 = vrot.slane %v208, 1
    %v229 = vrot.slane %v209, 1
    %v230 = vsel %vm220, %v228, %v229
    %v231 = vrot.slane %v210, 1
    %v232 = vsel %vm220, %v229, %v231
    %v233 = vrot.slane %v211, 1
    %v234 = vsel %vm220, %v231, %v233
    %v243 = vadd.f32 %v194, %v223
    %v244 = vadd.f32 %v195, %v225
    %v245 = vadd.f32 %v196, %v227
    %v246 = vadd.f32 %v197, %v226
    %v247 = vadd.f32 %v198, %v230
    %v248 = vadd.f32 %v199, %v232
    %v249 = vadd.f32 %v200, %v234
    %v250 = vadd.f32 %v201, %v233
    %s251 = sld [smem:[#allocation3 + $0x4]]
    %v252 = vstv %s251
    %v253 = vmul.f32 %v252, %v76
    %v254 = vmul.f32 %v252, %v77
    %v255 = vmul.f32 %v252, %v78
    %v256 = vmul.f32 %v252, %v79
    %v257 = vmul.f32 %v252, %v80
    %v258 = vmul.f32 %v252, %v81
    %v259 = vmul.f32 %v252, %v82
    %v260 = vmul.f32 %v252, %v83
    %v269 = vrot.slane %v253, 1
    %v270 = vrot.slane %v254, 1
    %v271 = vsel %vm220, %v269, %v270
    %v272 = vrot.slane %v255, 1
    %v273 = vsel %vm220, %v270, %v272
    %v274 = vrot.slane %v256, 1
    %v275 = vsel %vm220, %v272, %v274
    %v276 = vrot.slane %v257, 1
    %v277 = vrot.slane %v258, 1
    %v278 = vsel %vm220, %v276, %v277
    %v279 = vrot.slane %v259, 1
    %v280 = vsel %vm220, %v277, %v279
    %v281 = vrot.slane %v260, 1
    %v282 = vsel %vm220, %v279, %v281
    %283 = vrot.lane.b32.xlu0 %v271, 127
    %v284 = vpop.permute.xlu0 %283
    %285 = vrot.lane.b32.xlu0 %v273, 127
    %v286 = vpop.permute.xlu0 %285
    %287 = vrot.lane.b32.xlu0 %v275, 127
    %v288 = vpop.permute.xlu0 %287
    %289 = vrot.lane.b32.xlu0 %v274, 127
    %v290 = vpop.permute.xlu0 %289
    %291 = vrot.lane.b32.xlu0 %v278, 127
    %v292 = vpop.permute.xlu0 %291
    %293 = vrot.lane.b32.xlu0 %v280, 127
    %v294 = vpop.permute.xlu0 %293
    %295 = vrot.lane.b32.xlu0 %v282, 127
    %v296 = vpop.permute.xlu0 %295
    %297 = vrot.lane.b32.xlu0 %v281, 127
    %v298 = vpop.permute.xlu0 %297
    %v307 = vadd.f32 %v243, %v284
    %v308 = vadd.f32 %v244, %v286
    %v309 = vadd.f32 %v245, %v288
    %v310 = vadd.f32 %v246, %v290
    %v311 = vadd.f32 %v247, %v292
    %v312 = vadd.f32 %v248, %v294
    %v313 = vadd.f32 %v249, %v296
    %v314 = vadd.f32 %v250, %v298
    %s315 = sld [smem:[#allocation3 + $0x5]]
    %v316 = vstv %s315
    %v317 = vmul.f32 %v316, %v76
    %v318 = vmul.f32 %v316, %v77
    %v319 = vmul.f32 %v316, %v78
    %v320 = vmul.f32 %v316, %v79
    %v321 = vmul.f32 %v316, %v80
    %v322 = vmul.f32 %v316, %v81
    %v323 = vmul.f32 %v316, %v82
    %v324 = vmul.f32 %v316, %v83
    %v333 = vrot.slane %v317, 1
    %v334 = vrot.slane %v318, 1
    %v335 = vsel %vm220, %v333, %v334
    %v336 = vrot.slane %v319, 1
    %v337 = vsel %vm220, %v334, %v336
    %v338 = vrot.slane %v320, 1
    %v339 = vsel %vm220, %v336, %v338
    %v340 = vrot.slane %v321, 1
    %v341 = vrot.slane %v322, 1
    %v342 = vsel %vm220, %v340, %v341
    %v343 = vrot.slane %v323, 1
    %v344 = vsel %vm220, %v341, %v343
    %v345 = vrot.slane %v324, 1
    %v346 = vsel %vm220, %v343, %v345
    %347 = vrot.lane.b32.xlu0 %v335, 126
    %v348 = vpop.permute.xlu0 %347
    %349 = vrot.lane.b32.xlu0 %v337, 126
    %v350 = vpop.permute.xlu0 %349
    %351 = vrot.lane.b32.xlu0 %v339, 126
    %v352 = vpop.permute.xlu0 %351
    %353 = vrot.lane.b32.xlu0 %v338, 126
    %v354 = vpop.permute.xlu0 %353
    %355 = vrot.lane.b32.xlu0 %v342, 126
    %v356 = vpop.permute.xlu0 %355
    %357 = vrot.lane.b32.xlu0 %v344, 126
    %v358 = vpop.permute.xlu0 %357
    %359 = vrot.lane.b32.xlu0 %v346, 126
    %v360 = vpop.permute.xlu0 %359
    %361 = vrot.lane.b32.xlu0 %v345, 126
    %v362 = vpop.permute.xlu0 %361
    %v371 = vadd.f32 %v307, %v348
    %v372 = vadd.f32 %v308, %v350
    %v373 = vadd.f32 %v309, %v352
    %v374 = vadd.f32 %v310, %v354
    %v375 = vadd.f32 %v311, %v356
    %v376 = vadd.f32 %v312, %v358
    %v377 = vadd.f32 %v313, %v360
    %v378 = vadd.f32 %v314, %v362
    %s379 = sld [smem:[#allocation3 + $0x6]]
    %v380 = vstv %s379
    %v381 = vmul.f32 %v380, %v76
    %v382 = vmul.f32 %v380, %v77
    %v383 = vmul.f32 %v380, %v78
    %v384 = vmul.f32 %v380, %v79
    %v385 = vmul.f32 %v380, %v80
    %v386 = vmul.f32 %v380, %v81
    %v387 = vmul.f32 %v380, %v82
    %v388 = vmul.f32 %v380, %v83
    %vm397 = vcmask 1045504
    %v398 = vrot.slane %v381, 2
    %v399 = vrot.slane %v382, 2
    %v400 = vsel %vm397, %v398, %v399
    %v401 = vrot.slane %v383, 2
    %v402 = vsel %vm397, %v399, %v401
    %v403 = vrot.slane %v384, 2
    %v404 = vsel %vm397, %v401, %v403
    %v405 = vrot.slane %v385, 2
    %v406 = vrot.slane %v386, 2
    %v407 = vsel %vm397, %v405, %v406
    %v408 = vrot.slane %v387, 2
    %v409 = vsel %vm397, %v406, %v408
    %v410 = vrot.slane %v388, 2
    %v411 = vsel %vm397, %v408, %v410
    %v420 = vadd.f32 %v371, %v400
    %v421 = vadd.f32 %v372, %v402
    %v422 = vadd.f32 %v373, %v404
    %v423 = vadd.f32 %v374, %v403
    %v424 = vadd.f32 %v375, %v407
    %v425 = vadd.f32 %v376, %v409
    %v426 = vadd.f32 %v377, %v411
    %v427 = vadd.f32 %v378, %v410
    %s428 = sld [smem:[#allocation3 + $0x7]]
    %v429 = vstv %s428
    %v430 = vmul.f32 %v429, %v76
    %v431 = vmul.f32 %v429, %v77
    %v432 = vmul.f32 %v429, %v78
    %v433 = vmul.f32 %v429, %v79
    %v434 = vmul.f32 %v429, %v80
    %v435 = vmul.f32 %v429, %v81
    %v436 = vmul.f32 %v429, %v82
    %v437 = vmul.f32 %v429, %v83
    %v446 = vrot.slane %v430, 2
    %v447 = vrot.slane %v431, 2
    %v448 = vsel %vm397, %v446, %v447
    %v449 = vrot.slane %v432, 2
    %v450 = vsel %vm397, %v447, %v449
    %v451 = vrot.slane %v433, 2
    %v452 = vsel %vm397, %v449, %v451
    %v453 = vrot.slane %v434, 2
    %v454 = vrot.slane %v435, 2
    %v455 = vsel %vm397, %v453, %v454
    %v456 = vrot.slane %v436, 2
    %v457 = vsel %vm397, %v454, %v456
    %v458 = vrot.slane %v437, 2
    %v459 = vsel %vm397, %v456, %v458
    %460 = vrot.lane.b32.xlu0 %v448, 127
    %v461 = vpop.permute.xlu0 %460
    %462 = vrot.lane.b32.xlu0 %v450, 127
    %v463 = vpop.permute.xlu0 %462
    %464 = vrot.lane.b32.xlu0 %v452, 127
    %v465 = vpop.permute.xlu0 %464
    %466 = vrot.lane.b32.xlu0 %v451, 127
    %v467 = vpop.permute.xlu0 %466
    %468 = vrot.lane.b32.xlu0 %v455, 127
    %v469 = vpop.permute.xlu0 %468
    %470 = vrot.lane.b32.xlu0 %v457, 127
    %v471 = vpop.permute.xlu0 %470
    %472 = vrot.lane.b32.xlu0 %v459, 127
    %v473 = vpop.permute.xlu0 %472
    %474 = vrot.lane.b32.xlu0 %v458, 127
    %v475 = vpop.permute.xlu0 %474
    %v484 = vadd.f32 %v420, %v461
    %v485 = vadd.f32 %v421, %v463
    %v486 = vadd.f32 %v422, %v465
    %v487 = vadd.f32 %v423, %v467
    %v488 = vadd.f32 %v424, %v469
    %v489 = vadd.f32 %v425, %v471
    %v490 = vadd.f32 %v426, %v473
    %v491 = vadd.f32 %v427, %v475
    %s492 = sld [smem:[#allocation3 + $0x8]]
    %v493 = vstv %s492
    %v494 = vmul.f32 %v493, %v76
    %v495 = vmul.f32 %v493, %v77
    %v496 = vmul.f32 %v493, %v78
    %v497 = vmul.f32 %v493, %v79
    %v498 = vmul.f32 %v493, %v80
    %v499 = vmul.f32 %v493, %v81
    %v500 = vmul.f32 %v493, %v82
    %v501 = vmul.f32 %v493, %v83
    %v510 = vrot.slane %v494, 2
    %v511 = vrot.slane %v495, 2
    %v512 = vsel %vm397, %v510, %v511
    %v513 = vrot.slane %v496, 2
    %v514 = vsel %vm397, %v511, %v513
    %v515 = vrot.slane %v497, 2
    %v516 = vsel %vm397, %v513, %v515
    %v517 = vrot.slane %v498, 2
    %v518 = vrot.slane %v499, 2
    %v519 = vsel %vm397, %v517, %v518
    %v520 = vrot.slane %v500, 2
    %v521 = vsel %vm397, %v518, %v520
    %v522 = vrot.slane %v501, 2
    %v523 = vsel %vm397, %v520, %v522
    %524 = vrot.lane.b32.xlu0 %v512, 126
    %v525 = vpop.permute.xlu0 %524
    %526 = vrot.lane.b32.xlu0 %v514, 126
    %v527 = vpop.permute.xlu0 %526
    %528 = vrot.lane.b32.xlu0 %v516, 126
    %v529 = vpop.permute.xlu0 %528
    %530 = vrot.lane.b32.xlu0 %v515, 126
    %v531 = vpop.permute.xlu0 %530
    %532 = vrot.lane.b32.xlu0 %v519, 126
    %v533 = vpop.permute.xlu0 %532
    %534 = vrot.lane.b32.xlu0 %v521, 126
    %v535 = vpop.permute.xlu0 %534
    %536 = vrot.lane.b32.xlu0 %v523, 126
    %v537 = vpop.permute.xlu0 %536
    %538 = vrot.lane.b32.xlu0 %v522, 126
    %v539 = vpop.permute.xlu0 %538
    %v548 = vadd.f32 %v484, %v525
    %v549 = vadd.f32 %v485, %v527
    %v550 = vadd.f32 %v486, %v529
    %v551 = vadd.f32 %v487, %v531
    %v552 = vadd.f32 %v488, %v533
    %v553 = vadd.f32 %v489, %v535
    %v554 = vadd.f32 %v490, %v537
    %v555 = vadd.f32 %v491, %v539
    %s556 = sld [smem:[#allocation5]]
    %v557 = vstv %s556
    %v558 = vadd.f32 %v548, %v557
    %v559 = vadd.f32 %v549, %v557
    %v560 = vadd.f32 %v550, %v557
    %v561 = vadd.f32 %v551, %v557
    %v562 = vadd.f32 %v552, %v557
    %v563 = vadd.f32 %v553, %v557
    %v564 = vadd.f32 %v554, %v557
    %v565 = vadd.f32 %v555, %v557
    %vm570 = vcmask 1042432
    %v571 = vrot.slane %v558, 5
    %v572 = vrot.slane %v559, 5
    %v573 = vsel %vm570, %v571, %v572
    %v574 = vrot.slane %v560, 5
    %v575 = vsel %vm570, %v572, %v574
    %v576 = vrot.slane %v561, 5
    %v577 = vsel %vm570, %v574, %v576
    %578 = vrot.lane.b32.xlu0 %v571, 3
    %v579 = vpop.permute.xlu0 %578
    %580 = vrot.lane.b32.xlu0 %v573, 3
    %v581 = vpop.permute.xlu0 %580
    %582 = vrot.lane.b32.xlu0 %v575, 3
    %v583 = vpop.permute.xlu0 %582
    %584 = vrot.lane.b32.xlu0 %v577, 3
    %v585 = vpop.permute.xlu0 %584
    %vm590 = vcmask 252955
    %591 = vst.msk [vmem:[#allocation2] sm:$0xf8] %vm590, %v579
    %vm592 = vcmask 252952
    %593 = vst.msk [vmem:[#allocation2 + $0x10] sm:$0xff] %vm592, %v581
    %594 = vst.msk [vmem:[#allocation2 + $0x20] sm:$0xff] %vm592, %v583
    %vm595 = vcmask 251928
    %596 = vst.msk [vmem:[#allocation2 + $0x30] sm:$0x7f] %vm595, %v585
    %vm601 = vcmask 1044480
    %v602 = vrot.slane %v562, 3
    %v603 = vrot.slane %v563, 3
    %v604 = vsel %vm601, %v602, %v603
    %v605 = vrot.slane %v564, 3
    %v606 = vsel %vm601, %v603, %v605
    %v607 = vrot.slane %v565, 3
    %v608 = vsel %vm601, %v605, %v607
    %609 = vrot.lane.b32.xlu0 %v602, 3
    %v610 = vpop.permute.xlu0 %609
    %611 = vrot.lane.b32.xlu0 %v604, 3
    %v612 = vpop.permute.xlu0 %611
    %613 = vrot.lane.b32.xlu0 %v606, 3
    %v614 = vpop.permute.xlu0 %613
    %615 = vrot.lane.b32.xlu0 %v608, 3
    %v616 = vpop.permute.xlu0 %615
    %617 = vrot.lane.b32.xlu0 %v607, 3
    %v618 = vpop.permute.xlu0 %617
    %vm624 = vcmask 252957
    %625 = vst.msk [vmem:[#allocation2 + $0x40] sm:$0xe0] %vm624, %v610
    %626 = vst.msk [vmem:[#allocation2 + $0x50] sm:$0xff] %vm592, %v612
    %627 = vst.msk [vmem:[#allocation2 + $0x60] sm:$0xff] %vm592, %v614
    %628 = vst.msk [vmem:[#allocation2 + $0x70] sm:$0xff] %vm592, %v616
    %vm629 = vcmask 245784
    %630 = vst.msk [vmem:[#allocation2 + $0x80] sm:$0x1] %vm629, %v618
    %s631 = sld [smem:[#allocation3 + $0x80]]
    %v632 = vstv %s631
    %v633 = vmul.f32 %v632, %v76
    %v634 = vmul.f32 %v632, %v77
    %v635 = vmul.f32 %v632, %v78
    %v636 = vmul.f32 %v632, %v79
    %v637 = vmul.f32 %v632, %v80
    %v638 = vmul.f32 %v632, %v81
    %v639 = vmul.f32 %v632, %v82
    %v640 = vmul.f32 %v632, %v83
    %v641 = vadd.f32 %v633, 0.0
    %v642 = vadd.f32 %v634, 0.0
    %v643 = vadd.f32 %v635, 0.0
    %v644 = vadd.f32 %v636, 0.0
    %v645 = vadd.f32 %v637, 0.0
    %v646 = vadd.f32 %v638, 0.0
    %v647 = vadd.f32 %v639, 0.0
    %v648 = vadd.f32 %v640, 0.0
    %s649 = sld [smem:[#allocation3 + $0x81]]
    %v650 = vstv %s649
    %v651 = vmul.f32 %v650, %v76
    %v652 = vmul.f32 %v650, %v77
    %v653 = vmul.f32 %v650, %v78
    %v654 = vmul.f32 %v650, %v79
    %v655 = vmul.f32 %v650, %v80
    %v656 = vmul.f32 %v650, %v81
    %v657 = vmul.f32 %v650, %v82
    %v658 = vmul.f32 %v650, %v83
    %667 = vrot.lane.b32.xlu0 %v651, 127
    %v668 = vpop.permute.xlu0 %667
    %669 = vrot.lane.b32.xlu0 %v652, 127
    %v670 = vpop.permute.xlu0 %669
    %671 = vrot.lane.b32.xlu0 %v653, 127
    %v672 = vpop.permute.xlu0 %671
    %673 = vrot.lane.b32.xlu0 %v654, 127
    %v674 = vpop.permute.xlu0 %673
    %675 = vrot.lane.b32.xlu0 %v655, 127
    %v676 = vpop.permute.xlu0 %675
    %677 = vrot.lane.b32.xlu0 %v656, 127
    %v678 = vpop.permute.xlu0 %677
    %679 = vrot.lane.b32.xlu0 %v657, 127
    %v680 = vpop.permute.xlu0 %679
    %681 = vrot.lane.b32.xlu0 %v658, 127
    %v682 = vpop.permute.xlu0 %681
    %v691 = vadd.f32 %v641, %v668
    %v692 = vadd.f32 %v642, %v670
    %v693 = vadd.f32 %v643, %v672
    %v694 = vadd.f32 %v644, %v674
    %v695 = vadd.f32 %v645, %v676
    %v696 = vadd.f32 %v646, %v678
    %v697 = vadd.f32 %v647, %v680
    %v698 = vadd.f32 %v648, %v682
    %s699 = sld [smem:[#allocation3 + $0x82]]
    %v700 = vstv %s699
    %v701 = vmul.f32 %v700, %v76
    %v702 = vmul.f32 %v700, %v77
    %v703 = vmul.f32 %v700, %v78
    %v704 = vmul.f32 %v700, %v79
    %v705 = vmul.f32 %v700, %v80
    %v706 = vmul.f32 %v700, %v81
    %v707 = vmul.f32 %v700, %v82
    %v708 = vmul.f32 %v700, %v83
    %717 = vrot.lane.b32.xlu0 %v701, 126
    %v718 = vpop.permute.xlu0 %717
    %719 = vrot.lane.b32.xlu0 %v702, 126
    %v720 = vpop.permute.xlu0 %719
    %721 = vrot.lane.b32.xlu0 %v703, 126
    %v722 = vpop.permute.xlu0 %721
    %723 = vrot.lane.b32.xlu0 %v704, 126
    %v724 = vpop.permute.xlu0 %723
    %725 = vrot.lane.b32.xlu0 %v705, 126
    %v726 = vpop.permute.xlu0 %725
    %727 = vrot.lane.b32.xlu0 %v706, 126
    %v728 = vpop.permute.xlu0 %727
    %729 = vrot.lane.b32.xlu0 %v707, 126
    %v730 = vpop.permute.xlu0 %729
    %731 = vrot.lane.b32.xlu0 %v708, 126
    %v732 = vpop.permute.xlu0 %731
    %v741 = vadd.f32 %v691, %v718
    %v742 = vadd.f32 %v692, %v720
    %v743 = vadd.f32 %v693, %v722
    %v744 = vadd.f32 %v694, %v724
    %v745 = vadd.f32 %v695, %v726
    %v746 = vadd.f32 %v696, %v728
    %v747 = vadd.f32 %v697, %v730
    %v748 = vadd.f32 %v698, %v732
    %s749 = sld [smem:[#allocation3 + $0x83]]
    %v750 = vstv %s749
    %v751 = vmul.f32 %v750, %v76
    %v752 = vmul.f32 %v750, %v77
    %v753 = vmul.f32 %v750, %v78
    %v754 = vmul.f32 %v750, %v79
    %v755 = vmul.f32 %v750, %v80
    %v756 = vmul.f32 %v750, %v81
    %v757 = vmul.f32 %v750, %v82
    %v758 = vmul.f32 %v750, %v83
    %v767 = vrot.slane %v751, 1
    %v768 = vrot.slane %v752, 1
    %v769 = vsel %vm220, %v767, %v768
    %v770 = vrot.slane %v753, 1
    %v771 = vsel %vm220, %v768, %v770
    %v772 = vrot.slane %v754, 1
    %v773 = vsel %vm220, %v770, %v772
    %v774 = vrot.slane %v755, 1
    %v775 = vrot.slane %v756, 1
    %v776 = vsel %vm220, %v774, %v775
    %v777 = vrot.slane %v757, 1
    %v778 = vsel %vm220, %v775, %v777
    %v779 = vrot.slane %v758, 1
    %v780 = vsel %vm220, %v777, %v779
    %v789 = vadd.f32 %v741, %v769
    %v790 = vadd.f32 %v742, %v771
    %v791 = vadd.f32 %v743, %v773
    %v792 = vadd.f32 %v744, %v772
    %v793 = vadd.f32 %v745, %v776
    %v794 = vadd.f32 %v746, %v778
    %v795 = vadd.f32 %v747, %v780
    %v796 = vadd.f32 %v748, %v779
    %s797 = sld [smem:[#allocation3 + $0x84]]
    %v798 = vstv %s797
    %v799 = vmul.f32 %v798, %v76
    %v800 = vmul.f32 %v798, %v77
    %v801 = vmul.f32 %v798, %v78
    %v802 = vmul.f32 %v798, %v79
    %v803 = vmul.f32 %v798, %v80
    %v804 = vmul.f32 %v798, %v81
    %v805 = vmul.f32 %v798, %v82
    %v806 = vmul.f32 %v798, %v83
    %v815 = vrot.slane %v799, 1
    %v816 = vrot.slane %v800, 1
    %v817 = vsel %vm220, %v815, %v816
    %v818 = vrot.slane %v801, 1
    %v819 = vsel %vm220, %v816, %v818
    %v820 = vrot.slane %v802, 1
    %v821 = vsel %vm220, %v818, %v820
    %v822 = vrot.slane %v803, 1
    %v823 = vrot.slane %v804, 1
    %v824 = vsel %vm220, %v822, %v823
    %v825 = vrot.slane %v805, 1
    %v826 = vsel %vm220, %v823, %v825
    %v827 = vrot.slane %v806, 1
    %v828 = vsel %vm220, %v825, %v827
    %829 = vrot.lane.b32.xlu0 %v817, 127
    %v830 = vpop.permute.xlu0 %829
    %831 = vrot.lane.b32.xlu0 %v819, 127
    %v832 = vpop.permute.xlu0 %831
    %833 = vrot.lane.b32.xlu0 %v821, 127
    %v834 = vpop.permute.xlu0 %833
    %835 = vrot.lane.b32.xlu0 %v820, 127
    %v836 = vpop.permute.xlu0 %835
    %837 = vrot.lane.b32.xlu0 %v824, 127
    %v838 = vpop.permute.xlu0 %837
    %839 = vrot.lane.b32.xlu0 %v826, 127
    %v840 = vpop.permute.xlu0 %839
    %841 = vrot.lane.b32.xlu0 %v828, 127
    %v842 = vpop.permute.xlu0 %841
    %843 = vrot.lane.b32.xlu0 %v827, 127
    %v844 = vpop.permute.xlu0 %843
    %v853 = vadd.f32 %v789, %v830
    %v854 = vadd.f32 %v790, %v832
    %v855 = vadd.f32 %v791, %v834
    %v856 = vadd.f32 %v792, %v836
    %v857 = vadd.f32 %v793, %v838
    %v858 = vadd.f32 %v794, %v840
    %v859 = vadd.f32 %v795, %v842
    %v860 = vadd.f32 %v796, %v844
    %s861 = sld [smem:[#allocation3 + $0x85]]
    %v862 = vstv %s861
    %v863 = vmul.f32 %v862, %v76
    %v864 = vmul.f32 %v862, %v77
    %v865 = vmul.f32 %v862, %v78
    %v866 = vmul.f32 %v862, %v79
    %v867 = vmul.f32 %v862, %v80
    %v868 = vmul.f32 %v862, %v81
    %v869 = vmul.f32 %v862, %v82
    %v870 = vmul.f32 %v862, %v83
    %v879 = vrot.slane %v863, 1
    %v880 = vrot.slane %v864, 1
    %v881 = vsel %vm220, %v879, %v880
    %v882 = vrot.slane %v865, 1
    %v883 = vsel %vm220, %v880, %v882
    %v884 = vrot.slane %v866, 1
    %v885 = vsel %vm220, %v882, %v884
    %v886 = vrot.slane %v867, 1
    %v887 = vrot.slane %v868, 1
    %v888 = vsel %vm220, %v886, %v887
    %v889 = vrot.slane %v869, 1
    %v890 = vsel %vm220, %v887, %v889
    %v891 = vrot.slane %v870, 1
    %v892 = vsel %vm220, %v889, %v891
    %893 = vrot.lane.b32.xlu0 %v881, 126
    %v894 = vpop.permute.xlu0 %893
    %895 = vrot.lane.b32.xlu0 %v883, 126
    %v896 = vpop.permute.xlu0 %895
    %897 = vrot.lane.b32.xlu0 %v885, 126
    %v898 = vpop.permute.xlu0 %897
    %899 = vrot.lane.b32.xlu0 %v884, 126
    %v900 = vpop.permute.xlu0 %899
    %901 = vrot.lane.b32.xlu0 %v888, 126
    %v902 = vpop.permute.xlu0 %901
    %903 = vrot.lane.b32.xlu0 %v890, 126
    %v904 = vpop.permute.xlu0 %903
    %905 = vrot.lane.b32.xlu0 %v892, 126
    %v906 = vpop.permute.xlu0 %905
    %907 = vrot.lane.b32.xlu0 %v891, 126
    %v908 = vpop.permute.xlu0 %907
    %v917 = vadd.f32 %v853, %v894
    %v918 = vadd.f32 %v854, %v896
    %v919 = vadd.f32 %v855, %v898
    %v920 = vadd.f32 %v856, %v900
    %v921 = vadd.f32 %v857, %v902
    %v922 = vadd.f32 %v858, %v904
    %v923 = vadd.f32 %v859, %v906
    %v924 = vadd.f32 %v860, %v908
    %s925 = sld [smem:[#allocation3 + $0x86]]
    %v926 = vstv %s925
    %v927 = vmul.f32 %v926, %v76
    %v928 = vmul.f32 %v926, %v77
    %v929 = vmul.f32 %v926, %v78
    %v930 = vmul.f32 %v926, %v79
    %v931 = vmul.f32 %v926, %v80
    %v932 = vmul.f32 %v926, %v81
    %v933 = vmul.f32 %v926, %v82
    %v934 = vmul.f32 %v926, %v83
    %v943 = vrot.slane %v927, 2
    %v944 = vrot.slane %v928, 2
    %v945 = vsel %vm397, %v943, %v944
    %v946 = vrot.slane %v929, 2
    %v947 = vsel %vm397, %v944, %v946
    %v948 = vrot.slane %v930, 2
    %v949 = vsel %vm397, %v946, %v948
    %v950 = vrot.slane %v931, 2
    %v951 = vrot.slane %v932, 2
    %v952 = vsel %vm397, %v950, %v951
    %v953 = vrot.slane %v933, 2
    %v954 = vsel %vm397, %v951, %v953
    %v955 = vrot.slane %v934, 2
    %v956 = vsel %vm397, %v953, %v955
    %v965 = vadd.f32 %v917, %v945
    %v966 = vadd.f32 %v918, %v947
    %v967 = vadd.f32 %v919, %v949
    %v968 = vadd.f32 %v920, %v948
    %v969 = vadd.f32 %v921, %v952
    %v970 = vadd.f32 %v922, %v954
    %v971 = vadd.f32 %v923, %v956
    %v972 = vadd.f32 %v924, %v955
    %s973 = sld [smem:[#allocation3 + $0x87]]
    %v974 = vstv %s973
    %v975 = vmul.f32 %v974, %v76
    %v976 = vmul.f32 %v974, %v77
    %v977 = vmul.f32 %v974, %v78
    %v978 = vmul.f32 %v974, %v79
    %v979 = vmul.f32 %v974, %v80
    %v980 = vmul.f32 %v974, %v81
    %v981 = vmul.f32 %v974, %v82
    %v982 = vmul.f32 %v974, %v83
    %v991 = vrot.slane %v975, 2
    %v992 = vrot.slane %v976, 2
    %v993 = vsel %vm397, %v991, %v992
    %v994 = vrot.slane %v977, 2
    %v995 = vsel %vm397, %v992, %v994
    %v996 = vrot.slane %v978, 2
    %v997 = vsel %vm397, %v994, %v996
    %v998 = vrot.slane %v979, 2
    %v999 = vrot.slane %v980, 2
    %v1000 = vsel %vm397, %v998, %v999
    %v1001 = vrot.slane %v981, 2
    %v1002 = vsel %vm397, %v999, %v1001
    %v1003 = vrot.slane %v982, 2
    %v1004 = vsel %vm397, %v1001, %v1003
    %1005 = vrot.lane.b32.xlu0 %v993, 127
    %v1006 = vpop.permute.xlu0 %1005
    %1007 = vrot.lane.b32.xlu0 %v995, 127
    %v1008 = vpop.permute.xlu0 %1007
    %1009 = vrot.lane.b32.xlu0 %v997, 127
    %v1010 = vpop.permute.xlu0 %1009
    %1011 = vrot.lane.b32.xlu0 %v996, 127
    %v1012 = vpop.permute.xlu0 %1011
    %1013 = vrot.lane.b32.xlu0 %v1000, 127
    %v1014 = vpop.permute.xlu0 %1013
    %1015 = vrot.lane.b32.xlu0 %v1002, 127
    %v1016 = vpop.permute.xlu0 %1015
    %1017 = vrot.lane.b32.xlu0 %v1004, 127
    %v1018 = vpop.permute.xlu0 %1017
    %1019 = vrot.lane.b32.xlu0 %v1003, 127
    %v1020 = vpop.permute.xlu0 %1019
    %v1029 = vadd.f32 %v965, %v1006
    %v1030 = vadd.f32 %v966, %v1008
    %v1031 = vadd.f32 %v967, %v1010
    %v1032 = vadd.f32 %v968, %v1012
    %v1033 = vadd.f32 %v969, %v1014
    %v1034 = vadd.f32 %v970, %v1016
    %v1035 = vadd.f32 %v971, %v1018
    %v1036 = vadd.f32 %v972, %v1020
    %s1037 = sld [smem:[#allocation3 + $0x88]]
    %v1038 = vstv %s1037
    %v1039 = vmul.f32 %v1038, %v76
    %v1040 = vmul.f32 %v1038, %v77
    %v1041 = vmul.f32 %v1038, %v78
    %v1042 = vmul.f32 %v1038, %v79
    %v1043 = vmul.f32 %v1038, %v80
    %v1044 = vmul.f32 %v1038, %v81
    %v1045 = vmul.f32 %v1038, %v82
    %v1046 = vmul.f32 %v1038, %v83
    %v1055 = vrot.slane %v1039, 2
    %v1056 = vrot.slane %v1040, 2
    %v1057 = vsel %vm397, %v1055, %v1056
    %v1058 = vrot.slane %v1041, 2
    %v1059 = vsel %vm397, %v1056, %v1058
    %v1060 = vrot.slane %v1042, 2
    %v1061 = vsel %vm397, %v1058, %v1060
    %v1062 = vrot.slane %v1043, 2
    %v1063 = vrot.slane %v1044, 2
    %v1064 = vsel %vm397, %v1062, %v1063
    %v1065 = vrot.slane %v1045, 2
    %v1066 = vsel %vm397, %v1063, %v1065
    %v1067 = vrot.slane %v1046, 2
    %v1068 = vsel %vm397, %v1065, %v1067
    %1069 = vrot.lane.b32.xlu0 %v1057, 126
    %v1070 = vpop.permute.xlu0 %1069
    %1071 = vrot.lane.b32.xlu0 %v1059, 126
    %v1072 = vpop.permute.xlu0 %1071
    %1073 = vrot.lane.b32.xlu0 %v1061, 126
    %v1074 = vpop.permute.xlu0 %1073
    %1075 = vrot.lane.b32.xlu0 %v1060, 126
    %v1076 = vpop.permute.xlu0 %1075
    %1077 = vrot.lane.b32.xlu0 %v1064, 126
    %v1078 = vpop.permute.xlu0 %1077
    %1079 = vrot.lane.b32.xlu0 %v1066, 126
    %v1080 = vpop.permute.xlu0 %1079
    %1081 = vrot.lane.b32.xlu0 %v1068, 126
    %v1082 = vpop.permute.xlu0 %1081
    %1083 = vrot.lane.b32.xlu0 %v1067, 126
    %v1084 = vpop.permute.xlu0 %1083
    %v1093 = vadd.f32 %v1029, %v1070
    %v1094 = vadd.f32 %v1030, %v1072
    %v1095 = vadd.f32 %v1031, %v1074
    %v1096 = vadd.f32 %v1032, %v1076
    %v1097 = vadd.f32 %v1033, %v1078
    %v1098 = vadd.f32 %v1034, %v1080
    %v1099 = vadd.f32 %v1035, %v1082
    %v1100 = vadd.f32 %v1036, %v1084
    %s1101 = sld [smem:[#allocation5 + $0x1]]
    %v1102 = vstv %s1101
    %v1103 = vadd.f32 %v1093, %v1102
    %v1104 = vadd.f32 %v1094, %v1102
    %v1105 = vadd.f32 %v1095, %v1102
    %v1106 = vadd.f32 %v1096, %v1102
    %v1107 = vadd.f32 %v1097, %v1102
    %v1108 = vadd.f32 %v1098, %v1102
    %v1109 = vadd.f32 %v1099, %v1102
    %v1110 = vadd.f32 %v1100, %v1102
    %v1115 = vrot.slane %v1103, 5
    %v1116 = vrot.slane %v1104, 5
    %v1117 = vsel %vm570, %v1115, %v1116
    %v1118 = vrot.slane %v1105, 5
    %v1119 = vsel %vm570, %v1116, %v1118
    %v1120 = vrot.slane %v1106, 5
    %v1121 = vsel %vm570, %v1118, %v1120
    %1122 = vrot.lane.b32.xlu0 %v1115, 37
    %v1123 = vpop.permute.xlu0 %1122
    %1124 = vrot.lane.b32.xlu0 %v1117, 37
    %v1125 = vpop.permute.xlu0 %1124
    %1126 = vrot.lane.b32.xlu0 %v1119, 37
    %v1127 = vpop.permute.xlu0 %1126
    %1128 = vrot.lane.b32.xlu0 %v1121, 37
    %v1129 = vpop.permute.xlu0 %1128
    %vm1134 = vcmask 531755
    %1135 = vst.msk [vmem:[#allocation2] sm:$0xf8] %vm1134, %v1123
    %vm1136 = vcmask 531752
    %1137 = vst.msk [vmem:[#allocation2 + $0x10] sm:$0xff] %vm1136, %v1125
    %1138 = vst.msk [vmem:[#allocation2 + $0x20] sm:$0xff] %vm1136, %v1127
    %vm1139 = vcmask 530728
    %1140 = vst.msk [vmem:[#allocation2 + $0x30] sm:$0x7f] %vm1139, %v1129
    %v1145 = vrot.slane %v1107, 3
    %v1146 = vrot.slane %v1108, 3
    %v1147 = vsel %vm601, %v1145, %v1146
    %v1148 = vrot.slane %v1109, 3
    %v1149 = vsel %vm601, %v1146, %v1148
    %v1150 = vrot.slane %v1110, 3
    %v1151 = vsel %vm601, %v1148, %v1150
    %1152 = vrot.lane.b32.xlu0 %v1145, 37
    %v1153 = vpop.permute.xlu0 %1152
    %1154 = vrot.lane.b32.xlu0 %v1147, 37
    %v1155 = vpop.permute.xlu0 %1154
    %1156 = vrot.lane.b32.xlu0 %v1149, 37
    %v1157 = vpop.permute.xlu0 %1156
    %1158 = vrot.lane.b32.xlu0 %v1151, 37
    %v1159 = vpop.permute.xlu0 %1158
    %1160 = vrot.lane.b32.xlu0 %v1150, 37
    %v1161 = vpop.permute.xlu0 %1160
    %vm1167 = vcmask 531757
    %1168 = vst.msk [vmem:[#allocation2 + $0x40] sm:$0xe0] %vm1167, %v1153
    %1169 = vst.msk [vmem:[#allocation2 + $0x50] sm:$0xff] %vm1136, %v1155
    %1170 = vst.msk [vmem:[#allocation2 + $0x60] sm:$0xff] %vm1136, %v1157
    %1171 = vst.msk [vmem:[#allocation2 + $0x70] sm:$0xff] %vm1136, %v1159
    %vm1172 = vcmask 524584
    %1173 = vst.msk [vmem:[#allocation2 + $0x80] sm:$0x1] %vm1172, %v1161
    %s1174 = sld [smem:[#allocation3 + $0x100]]
    %v1175 = vstv %s1174
    %v1176 = vmul.f32 %v1175, %v76
    %v1177 = vmul.f32 %v1175, %v77
    %v1178 = vmul.f32 %v1175, %v78
    %v1179 = vmul.f32 %v1175, %v79
    %v1180 = vmul.f32 %v1175, %v80
    %v1181 = vmul.f32 %v1175, %v81
    %v1182 = vmul.f32 %v1175, %v82
    %v1183 = vmul.f32 %v1175, %v83
    %v1184 = vadd.f32 %v1176, 0.0
    %v1185 = vadd.f32 %v1177, 0.0
    %v1186 = vadd.f32 %v1178, 0.0
    %v1187 = vadd.f32 %v1179, 0.0
    %v1188 = vadd.f32 %v1180, 0.0
    %v1189 = vadd.f32 %v1181, 0.0
    %v1190 = vadd.f32 %v1182, 0.0
    %v1191 = vadd.f32 %v1183, 0.0
    %s1192 = sld [smem:[#allocation3 + $0x101]]
    %v1193 = vstv %s1192
    %v1194 = vmul.f32 %v1193, %v76
    %v1195 = vmul.f32 %v1193, %v77
    %v1196 = vmul.f32 %v1193, %v78
    %v1197 = vmul.f32 %v1193, %v79
    %v1198 = vmul.f32 %v1193, %v80
    %v1199 = vmul.f32 %v1193, %v81
    %v1200 = vmul.f32 %v1193, %v82
    %v1201 = vmul.f32 %v1193, %v83
    %1210 = vrot.lane.b32.xlu0 %v1194, 127
    %v1211 = vpop.permute.xlu0 %1210
    %1212 = vrot.lane.b32.xlu0 %v1195, 127
    %v1213 = vpop.permute.xlu0 %1212
    %1214 = vrot.lane.b32.xlu0 %v1196, 127
    %v1215 = vpop.permute.xlu0 %1214
    %1216 = vrot.lane.b32.xlu0 %v1197, 127
    %v1217 = vpop.permute.xlu0 %1216
    %1218 = vrot.lane.b32.xlu0 %v1198, 127
    %v1219 = vpop.permute.xlu0 %1218
    %1220 = vrot.lane.b32.xlu0 %v1199, 127
    %v1221 = vpop.permute.xlu0 %1220
    %1222 = vrot.lane.b32.xlu0 %v1200, 127
    %v1223 = vpop.permute.xlu0 %1222
    %1224 = vrot.lane.b32.xlu0 %v1201, 127
    %v1225 = vpop.permute.xlu0 %1224
    %v1234 = vadd.f32 %v1184, %v1211
    %v1235 = vadd.f32 %v1185, %v1213
    %v1236 = vadd.f32 %v1186, %v1215
    %v1237 = vadd.f32 %v1187, %v1217
    %v1238 = vadd.f32 %v1188, %v1219
    %v1239 = vadd.f32 %v1189, %v1221
    %v1240 = vadd.f32 %v1190, %v1223
    %v1241 = vadd.f32 %v1191, %v1225
    %s1242 = sld [smem:[#allocation3 + $0x102]]
    %v1243 = vstv %s1242
    %v1244 = vmul.f32 %v1243, %v76
    %v1245 = vmul.f32 %v1243, %v77
    %v1246 = vmul.f32 %v1243, %v78
    %v1247 = vmul.f32 %v1243, %v79
    %v1248 = vmul.f32 %v1243, %v80
    %v1249 = vmul.f32 %v1243, %v81
    %v1250 = vmul.f32 %v1243, %v82
    %v1251 = vmul.f32 %v1243, %v83
    %1260 = vrot.lane.b32.xlu0 %v1244, 126
    %v1261 = vpop.permute.xlu0 %1260
    %1262 = vrot.lane.b32.xlu0 %v1245, 126
    %v1263 = vpop.permute.xlu0 %1262
    %1264 = vrot.lane.b32.xlu0 %v1246, 126
    %v1265 = vpop.permute.xlu0 %1264
    %1266 = vrot.lane.b32.xlu0 %v1247, 126
    %v1267 = vpop.permute.xlu0 %1266
    %1268 = vrot.lane.b32.xlu0 %v1248, 126
    %v1269 = vpop.permute.xlu0 %1268
    %1270 = vrot.lane.b32.xlu0 %v1249, 126
    %v1271 = vpop.permute.xlu0 %1270
    %1272 = vrot.lane.b32.xlu0 %v1250, 126
    %v1273 = vpop.permute.xlu0 %1272
    %1274 = vrot.lane.b32.xlu0 %v1251, 126
    %v1275 = vpop.permute.xlu0 %1274
    %v1284 = vadd.f32 %v1234, %v1261
    %v1285 = vadd.f32 %v1235, %v1263
    %v1286 = vadd.f32 %v1236, %v1265
    %v1287 = vadd.f32 %v1237, %v1267
    %v1288 = vadd.f32 %v1238, %v1269
    %v1289 = vadd.f32 %v1239, %v1271
    %v1290 = vadd.f32 %v1240, %v1273
    %v1291 = vadd.f32 %v1241, %v1275
    %s1292 = sld [smem:[#allocation3 + $0x103]]
    %v1293 = vstv %s1292
    %v1294 = vmul.f32 %v1293, %v76
    %v1295 = vmul.f32 %v1293, %v77
    %v1296 = vmul.f32 %v1293, %v78
    %v1297 = vmul.f32 %v1293, %v79
    %v1298 = vmul.f32 %v1293, %v80
    %v1299 = vmul.f32 %v1293, %v81
    %v1300 = vmul.f32 %v1293, %v82
    %v1301 = vmul.f32 %v1293, %v83
    %v1310 = vrot.slane %v1294, 1
    %v1311 = vrot.slane %v1295, 1
    %v1312 = vsel %vm220, %v1310, %v1311
    %v1313 = vrot.slane %v1296, 1
    %v1314 = vsel %vm220, %v1311, %v1313
    %v1315 = vrot.slane %v1297, 1
    %v1316 = vsel %vm220, %v1313, %v1315
    %v1317 = vrot.slane %v1298, 1
    %v1318 = vrot.slane %v1299, 1
    %v1319 = vsel %vm220, %v1317, %v1318
    %v1320 = vrot.slane %v1300, 1
    %v1321 = vsel %vm220, %v1318, %v1320
    %v1322 = vrot.slane %v1301, 1
    %v1323 = vsel %vm220, %v1320, %v1322
    %v1332 = vadd.f32 %v1284, %v1312
    %v1333 = vadd.f32 %v1285, %v1314
    %v1334 = vadd.f32 %v1286, %v1316
    %v1335 = vadd.f32 %v1287, %v1315
    %v1336 = vadd.f32 %v1288, %v1319
    %v1337 = vadd.f32 %v1289, %v1321
    %v1338 = vadd.f32 %v1290, %v1323
    %v1339 = vadd.f32 %v1291, %v1322
    %s1340 = sld [smem:[#allocation3 + $0x104]]
    %v1341 = vstv %s1340
    %v1342 = vmul.f32 %v1341, %v76
    %v1343 = vmul.f32 %v1341, %v77
    %v1344 = vmul.f32 %v1341, %v78
    %v1345 = vmul.f32 %v1341, %v79
    %v1346 = vmul.f32 %v1341, %v80
    %v1347 = vmul.f32 %v1341, %v81
    %v1348 = vmul.f32 %v1341, %v82
    %v1349 = vmul.f32 %v1341, %v83
    %v1358 = vrot.slane %v1342, 1
    %v1359 = vrot.slane %v1343, 1
    %v1360 = vsel %vm220, %v1358, %v1359
    %v1361 = vrot.slane %v1344, 1
    %v1362 = vsel %vm220, %v1359, %v1361
    %v1363 = vrot.slane %v1345, 1
    %v1364 = vsel %vm220, %v1361, %v1363
    %v1365 = vrot.slane %v1346, 1
    %v1366 = vrot.slane %v1347, 1
    %v1367 = vsel %vm220, %v1365, %v1366
    %v1368 = vrot.slane %v1348, 1
    %v1369 = vsel %vm220, %v1366, %v1368
    %v1370 = vrot.slane %v1349, 1
    %v1371 = vsel %vm220, %v1368, %v1370
    %1372 = vrot.lane.b32.xlu0 %v1360, 127
    %v1373 = vpop.permute.xlu0 %1372
    %1374 = vrot.lane.b32.xlu0 %v1362, 127
    %v1375 = vpop.permute.xlu0 %1374
    %1376 = vrot.lane.b32.xlu0 %v1364, 127
    %v1377 = vpop.permute.xlu0 %1376
    %1378 = vrot.lane.b32.xlu0 %v1363, 127
    %v1379 = vpop.permute.xlu0 %1378
    %1380 = vrot.lane.b32.xlu0 %v1367, 127
    %v1381 = vpop.permute.xlu0 %1380
    %1382 = vrot.lane.b32.xlu0 %v1369, 127
    %v1383 = vpop.permute.xlu0 %1382
    %1384 = vrot.lane.b32.xlu0 %v1371, 127
    %v1385 = vpop.permute.xlu0 %1384
    %1386 = vrot.lane.b32.xlu0 %v1370, 127
    %v1387 = vpop.permute.xlu0 %1386
    %v1396 = vadd.f32 %v1332, %v1373
    %v1397 = vadd.f32 %v1333, %v1375
    %v1398 = vadd.f32 %v1334, %v1377
    %v1399 = vadd.f32 %v1335, %v1379
    %v1400 = vadd.f32 %v1336, %v1381
    %v1401 = vadd.f32 %v1337, %v1383
    %v1402 = vadd.f32 %v1338, %v1385
    %v1403 = vadd.f32 %v1339, %v1387
    %s1404 = sld [smem:[#allocation3 + $0x105]]
    %v1405 = vstv %s1404
    %v1406 = vmul.f32 %v1405, %v76
    %v1407 = vmul.f32 %v1405, %v77
    %v1408 = vmul.f32 %v1405, %v78
    %v1409 = vmul.f32 %v1405, %v79
    %v1410 = vmul.f32 %v1405, %v80
    %v1411 = vmul.f32 %v1405, %v81
    %v1412 = vmul.f32 %v1405, %v82
    %v1413 = vmul.f32 %v1405, %v83
    %v1422 = vrot.slane %v1406, 1
    %v1423 = vrot.slane %v1407, 1
    %v1424 = vsel %vm220, %v1422, %v1423
    %v1425 = vrot.slane %v1408, 1
    %v1426 = vsel %vm220, %v1423, %v1425
    %v1427 = vrot.slane %v1409, 1
    %v1428 = vsel %vm220, %v1425, %v1427
    %v1429 = vrot.slane %v1410, 1
    %v1430 = vrot.slane %v1411, 1
    %v1431 = vsel %vm220, %v1429, %v1430
    %v1432 = vrot.slane %v1412, 1
    %v1433 = vsel %vm220, %v1430, %v1432
    %v1434 = vrot.slane %v1413, 1
    %v1435 = vsel %vm220, %v1432, %v1434
    %1436 = vrot.lane.b32.xlu0 %v1424, 126
    %v1437 = vpop.permute.xlu0 %1436
    %1438 = vrot.lane.b32.xlu0 %v1426, 126
    %v1439 = vpop.permute.xlu0 %1438
    %1440 = vrot.lane.b32.xlu0 %v1428, 126
    %v1441 = vpop.permute.xlu0 %1440
    %1442 = vrot.lane.b32.xlu0 %v1427, 126
    %v1443 = vpop.permute.xlu0 %1442
    %1444 = vrot.lane.b32.xlu0 %v1431, 126
    %v1445 = vpop.permute.xlu0 %1444
    %1446 = vrot.lane.b32.xlu0 %v1433, 126
    %v1447 = vpop.permute.xlu0 %1446
    %1448 = vrot.lane.b32.xlu0 %v1435, 126
    %v1449 = vpop.permute.xlu0 %1448
    %1450 = vrot.lane.b32.xlu0 %v1434, 126
    %v1451 = vpop.permute.xlu0 %1450
    %v1460 = vadd.f32 %v1396, %v1437
    %v1461 = vadd.f32 %v1397, %v1439
    %v1462 = vadd.f32 %v1398, %v1441
    %v1463 = vadd.f32 %v1399, %v1443
    %v1464 = vadd.f32 %v1400, %v1445
    %v1465 = vadd.f32 %v1401, %v1447
    %v1466 = vadd.f32 %v1402, %v1449
    %v1467 = vadd.f32 %v1403, %v1451
    %s1468 = sld [smem:[#allocation3 + $0x106]]
    %v1469 = vstv %s1468
    %v1470 = vmul.f32 %v1469, %v76
    %v1471 = vmul.f32 %v1469, %v77
    %v1472 = vmul.f32 %v1469, %v78
    %v1473 = vmul.f32 %v1469, %v79
    %v1474 = vmul.f32 %v1469, %v80
    %v1475 = vmul.f32 %v1469, %v81
    %v1476 = vmul.f32 %v1469, %v82
    %v1477 = vmul.f32 %v1469, %v83
    %v1486 = vrot.slane %v1470, 2
    %v1487 = vrot.slane %v1471, 2
    %v1488 = vsel %vm397, %v1486, %v1487
    %v1489 = vrot.slane %v1472, 2
    %v1490 = vsel %vm397, %v1487, %v1489
    %v1491 = vrot.slane %v1473, 2
    %v1492 = vsel %vm397, %v1489, %v1491
    %v1493 = vrot.slane %v1474, 2
    %v1494 = vrot.slane %v1475, 2
    %v1495 = vsel %vm397, %v1493, %v1494
    %v1496 = vrot.slane %v1476, 2
    %v1497 = vsel %vm397, %v1494, %v1496
    %v1498 = vrot.slane %v1477, 2
    %v1499 = vsel %vm397, %v1496, %v1498
    %v1508 = vadd.f32 %v1460, %v1488
    %v1509 = vadd.f32 %v1461, %v1490
    %v1510 = vadd.f32 %v1462, %v1492
    %v1511 = vadd.f32 %v1463, %v1491
    %v1512 = vadd.f32 %v1464, %v1495
    %v1513 = vadd.f32 %v1465, %v1497
    %v1514 = vadd.f32 %v1466, %v1499
    %v1515 = vadd.f32 %v1467, %v1498
    %s1516 = sld [smem:[#allocation3 + $0x107]]
    %v1517 = vstv %s1516
    %v1518 = vmul.f32 %v1517, %v76
    %v1519 = vmul.f32 %v1517, %v77
    %v1520 = vmul.f32 %v1517, %v78
    %v1521 = vmul.f32 %v1517, %v79
    %v1522 = vmul.f32 %v1517, %v80
    %v1523 = vmul.f32 %v1517, %v81
    %v1524 = vmul.f32 %v1517, %v82
    %v1525 = vmul.f32 %v1517, %v83
    %v1534 = vrot.slane %v1518, 2
    %v1535 = vrot.slane %v1519, 2
    %v1536 = vsel %vm397, %v1534, %v1535
    %v1537 = vrot.slane %v1520, 2
    %v1538 = vsel %vm397, %v1535, %v1537
    %v1539 = vrot.slane %v1521, 2
    %v1540 = vsel %vm397, %v1537, %v1539
    %v1541 = vrot.slane %v1522, 2
    %v1542 = vrot.slane %v1523, 2
    %v1543 = vsel %vm397, %v1541, %v1542
    %v1544 = vrot.slane %v1524, 2
    %v1545 = vsel %vm397, %v1542, %v1544
    %v1546 = vrot.slane %v1525, 2
    %v1547 = vsel %vm397, %v1544, %v1546
    %1548 = vrot.lane.b32.xlu0 %v1536, 127
    %v1549 = vpop.permute.xlu0 %1548
    %1550 = vrot.lane.b32.xlu0 %v1538, 127
    %v1551 = vpop.permute.xlu0 %1550
    %1552 = vrot.lane.b32.xlu0 %v1540, 127
    %v1553 = vpop.permute.xlu0 %1552
    %1554 = vrot.lane.b32.xlu0 %v1539, 127
    %v1555 = vpop.permute.xlu0 %1554
    %1556 = vrot.lane.b32.xlu0 %v1543, 127
    %v1557 = vpop.permute.xlu0 %1556
    %1558 = vrot.lane.b32.xlu0 %v1545, 127
    %v1559 = vpop.permute.xlu0 %1558
    %1560 = vrot.lane.b32.xlu0 %v1547, 127
    %v1561 = vpop.permute.xlu0 %1560
    %1562 = vrot.lane.b32.xlu0 %v1546, 127
    %v1563 = vpop.permute.xlu0 %1562
    %v1572 = vadd.f32 %v1508, %v1549
    %v1573 = vadd.f32 %v1509, %v1551
    %v1574 = vadd.f32 %v1510, %v1553
    %v1575 = vadd.f32 %v1511, %v1555
    %v1576 = vadd.f32 %v1512, %v1557
    %v1577 = vadd.f32 %v1513, %v1559
    %v1578 = vadd.f32 %v1514, %v1561
    %v1579 = vadd.f32 %v1515, %v1563
    %s1580 = sld [smem:[#allocation3 + $0x108]]
    %v1581 = vstv %s1580
    %v1582 = vmul.f32 %v1581, %v76
    %v1583 = vmul.f32 %v1581, %v77
    %v1584 = vmul.f32 %v1581, %v78
    %v1585 = vmul.f32 %v1581, %v79
    %v1586 = vmul.f32 %v1581, %v80
    %v1587 = vmul.f32 %v1581, %v81
    %v1588 = vmul.f32 %v1581, %v82
    %v1589 = vmul.f32 %v1581, %v83
    %v1598 = vrot.slane %v1582, 2
    %v1599 = vrot.slane %v1583, 2
    %v1600 = vsel %vm397, %v1598, %v1599
    %v1601 = vrot.slane %v1584, 2
    %v1602 = vsel %vm397, %v1599, %v1601
    %v1603 = vrot.slane %v1585, 2
    %v1604 = vsel %vm397, %v1601, %v1603
    %v1605 = vrot.slane %v1586, 2
    %v1606 = vrot.slane %v1587, 2
    %v1607 = vsel %vm397, %v1605, %v1606
    %v1608 = vrot.slane %v1588, 2
    %v1609 = vsel %vm397, %v1606, %v1608
    %v1610 = vrot.slane %v1589, 2
    %v1611 = vsel %vm397, %v1608, %v1610
    %1612 = vrot.lane.b32.xlu0 %v1600, 126
    %v1613 = vpop.permute.xlu0 %1612
    %1614 = vrot.lane.b32.xlu0 %v1602, 126
    %v1615 = vpop.permute.xlu0 %1614
    %1616 = vrot.lane.b32.xlu0 %v1604, 126
    %v1617 = vpop.permute.xlu0 %1616
    %1618 = vrot.lane.b32.xlu0 %v1603, 126
    %v1619 = vpop.permute.xlu0 %1618
    %1620 = vrot.lane.b32.xlu0 %v1607, 126
    %v1621 = vpop.permute.xlu0 %1620
    %1622 = vrot.lane.b32.xlu0 %v1609, 126
    %v1623 = vpop.permute.xlu0 %1622
    %1624 = vrot.lane.b32.xlu0 %v1611, 126
    %v1625 = vpop.permute.xlu0 %1624
    %1626 = vrot.lane.b32.xlu0 %v1610, 126
    %v1627 = vpop.permute.xlu0 %1626
    %v1636 = vadd.f32 %v1572, %v1613
    %v1637 = vadd.f32 %v1573, %v1615
    %v1638 = vadd.f32 %v1574, %v1617
    %v1639 = vadd.f32 %v1575, %v1619
    %v1640 = vadd.f32 %v1576, %v1621
    %v1641 = vadd.f32 %v1577, %v1623
    %v1642 = vadd.f32 %v1578, %v1625
    %v1643 = vadd.f32 %v1579, %v1627
    %s1644 = sld [smem:[#allocation5 + $0x2]]
    %v1645 = vstv %s1644
    %v1646 = vadd.f32 %v1636, %v1645
    %v1647 = vadd.f32 %v1637, %v1645
    %v1648 = vadd.f32 %v1638, %v1645
    %v1649 = vadd.f32 %v1639, %v1645
    %v1650 = vadd.f32 %v1640, %v1645
    %v1651 = vadd.f32 %v1641, %v1645
    %v1652 = vadd.f32 %v1642, %v1645
    %v1653 = vadd.f32 %v1643, %v1645
    %v1658 = vrot.slane %v1646, 5
    %v1659 = vrot.slane %v1647, 5
    %v1660 = vsel %vm570, %v1658, %v1659
    %v1661 = vrot.slane %v1648, 5
    %v1662 = vsel %vm570, %v1659, %v1661
    %v1663 = vrot.slane %v1649, 5
    %v1664 = vsel %vm570, %v1661, %v1663
    %1665 = vrot.lane.b32.xlu0 %v1658, 71
    %v1666 = vpop.permute.xlu0 %1665
    %1667 = vrot.lane.b32.xlu0 %v1660, 71
    %v1668 = vpop.permute.xlu0 %1667
    %1669 = vrot.lane.b32.xlu0 %v1662, 71
    %v1670 = vpop.permute.xlu0 %1669
    %1671 = vrot.lane.b32.xlu0 %v1664, 71
    %v1672 = vpop.permute.xlu0 %1671
    %vm1677 = vcmask 810555
    %1678 = vst.msk [vmem:[#allocation2] sm:$0xf8] %vm1677, %v1666
    %vm1679 = vcmask 810552
    %1680 = vst.msk [vmem:[#allocation2 + $0x10] sm:$0xff] %vm1679, %v1668
    %1681 = vst.msk [vmem:[#allocation2 + $0x20] sm:$0xff] %vm1679, %v1670
    %vm1682 = vcmask 809528
    %1683 = vst.msk [vmem:[#allocation2 + $0x30] sm:$0x7f] %vm1682, %v1672
    %v1688 = vrot.slane %v1650, 3
    %v1689 = vrot.slane %v1651, 3
    %v1690 = vsel %vm601, %v1688, %v1689
    %v1691 = vrot.slane %v1652, 3
    %v1692 = vsel %vm601, %v1689, %v1691
    %v1693 = vrot.slane %v1653, 3
    %v1694 = vsel %vm601, %v1691, %v1693
    %1695 = vrot.lane.b32.xlu0 %v1688, 71
    %v1696 = vpop.permute.xlu0 %1695
    %1697 = vrot.lane.b32.xlu0 %v1690, 71
    %v1698 = vpop.permute.xlu0 %1697
    %1699 = vrot.lane.b32.xlu0 %v1692, 71
    %v1700 = vpop.permute.xlu0 %1699
    %1701 = vrot.lane.b32.xlu0 %v1694, 71
    %v1702 = vpop.permute.xlu0 %1701
    %1703 = vrot.lane.b32.xlu0 %v1693, 71
    %v1704 = vpop.permute.xlu0 %1703
    %vm1710 = vcmask 810557
    %1711 = vst.msk [vmem:[#allocation2 + $0x40] sm:$0xe0] %vm1710, %v1696
    %1712 = vst.msk [vmem:[#allocation2 + $0x50] sm:$0xff] %vm1679, %v1698
    %1713 = vst.msk [vmem:[#allocation2 + $0x60] sm:$0xff] %vm1679, %v1700
    %1714 = vst.msk [vmem:[#allocation2 + $0x70] sm:$0xff] %vm1679, %v1702
    %vm1715 = vcmask 803384
    %1716 = vst.msk [vmem:[#allocation2 + $0x80] sm:$0x1] %vm1715, %v1704
    %s1717 = sld [smem:[#allocation3 + $0x180]]
    %v1718 = vstv %s1717
    %v1719 = vmul.f32 %v1718, %v76
    %v1720 = vmul.f32 %v1718, %v77
    %v1721 = vmul.f32 %v1718, %v78
    %v1722 = vmul.f32 %v1718, %v79
    %v1723 = vmul.f32 %v1718, %v80
    %v1724 = vmul.f32 %v1718, %v81
    %v1725 = vmul.f32 %v1718, %v82
    %v1726 = vmul.f32 %v1718, %v83
    %v1727 = vadd.f32 %v1719, 0.0
    %v1728 = vadd.f32 %v1720, 0.0
    %v1729 = vadd.f32 %v1721, 0.0
    %v1730 = vadd.f32 %v1722, 0.0
    %v1731 = vadd.f32 %v1723, 0.0
    %v1732 = vadd.f32 %v1724, 0.0
    %v1733 = vadd.f32 %v1725, 0.0
    %v1734 = vadd.f32 %v1726, 0.0
    %s1735 = sld [smem:[#allocation3 + $0x181]]
    %v1736 = vstv %s1735
    %v1737 = vmul.f32 %v1736, %v76
    %v1738 = vmul.f32 %v1736, %v77
    %v1739 = vmul.f32 %v1736, %v78
    %v1740 = vmul.f32 %v1736, %v79
    %v1741 = vmul.f32 %v1736, %v80
    %v1742 = vmul.f32 %v1736, %v81
    %v1743 = vmul.f32 %v1736, %v82
    %v1744 = vmul.f32 %v1736, %v83
    %1753 = vrot.lane.b32.xlu0 %v1737, 127
    %v1754 = vpop.permute.xlu0 %1753
    %1755 = vrot.lane.b32.xlu0 %v1738, 127
    %v1756 = vpop.permute.xlu0 %1755
    %1757 = vrot.lane.b32.xlu0 %v1739, 127
    %v1758 = vpop.permute.xlu0 %1757
    %1759 = vrot.lane.b32.xlu0 %v1740, 127
    %v1760 = vpop.permute.xlu0 %1759
    %1761 = vrot.lane.b32.xlu0 %v1741, 127
    %v1762 = vpop.permute.xlu0 %1761
    %1763 = vrot.lane.b32.xlu0 %v1742, 127
    %v1764 = vpop.permute.xlu0 %1763
    %1765 = vrot.lane.b32.xlu0 %v1743, 127
    %v1766 = vpop.permute.xlu0 %1765
    %1767 = vrot.lane.b32.xlu0 %v1744, 127
    %v1768 = vpop.permute.xlu0 %1767
    %v1777 = vadd.f32 %v1727, %v1754
    %v1778 = vadd.f32 %v1728, %v1756
    %v1779 = vadd.f32 %v1729, %v1758
    %v1780 = vadd.f32 %v1730, %v1760
    %v1781 = vadd.f32 %v1731, %v1762
    %v1782 = vadd.f32 %v1732, %v1764
    %v1783 = vadd.f32 %v1733, %v1766
    %v1784 = vadd.f32 %v1734, %v1768
    %s1785 = sld [smem:[#allocation3 + $0x182]]
    %v1786 = vstv %s1785
    %v1787 = vmul.f32 %v1786, %v76
    %v1788 = vmul.f32 %v1786, %v77
    %v1789 = vmul.f32 %v1786, %v78
    %v1790 = vmul.f32 %v1786, %v79
    %v1791 = vmul.f32 %v1786, %v80
    %v1792 = vmul.f32 %v1786, %v81
    %v1793 = vmul.f32 %v1786, %v82
    %v1794 = vmul.f32 %v1786, %v83
    %1803 = vrot.lane.b32.xlu0 %v1787, 126
    %v1804 = vpop.permute.xlu0 %1803
    %1805 = vrot.lane.b32.xlu0 %v1788, 126
    %v1806 = vpop.permute.xlu0 %1805
    %1807 = vrot.lane.b32.xlu0 %v1789, 126
    %v1808 = vpop.permute.xlu0 %1807
    %1809 = vrot.lane.b32.xlu0 %v1790, 126
    %v1810 = vpop.permute.xlu0 %1809
    %1811 = vrot.lane.b32.xlu0 %v1791, 126
    %v1812 = vpop.permute.xlu0 %1811
    %1813 = vrot.lane.b32.xlu0 %v1792, 126
    %v1814 = vpop.permute.xlu0 %1813
    %1815 = vrot.lane.b32.xlu0 %v1793, 126
    %v1816 = vpop.permute.xlu0 %1815
    %1817 = vrot.lane.b32.xlu0 %v1794, 126
    %v1818 = vpop.permute.xlu0 %1817
    %v1827 = vadd.f32 %v1777, %v1804
    %v1828 = vadd.f32 %v1778, %v1806
    %v1829 = vadd.f32 %v1779, %v1808
    %v1830 = vadd.f32 %v1780, %v1810
    %v1831 = vadd.f32 %v1781, %v1812
    %v1832 = vadd.f32 %v1782, %v1814
    %v1833 = vadd.f32 %v1783, %v1816
    %v1834 = vadd.f32 %v1784, %v1818
    %s1835 = sld [smem:[#allocation3 + $0x183]]
    %v1836 = vstv %s1835
    %v1837 = vmul.f32 %v1836, %v76
    %v1838 = vmul.f32 %v1836, %v77
    %v1839 = vmul.f32 %v1836, %v78
    %v1840 = vmul.f32 %v1836, %v79
    %v1841 = vmul.f32 %v1836, %v80
    %v1842 = vmul.f32 %v1836, %v81
    %v1843 = vmul.f32 %v1836, %v82
    %v1844 = vmul.f32 %v1836, %v83
    %v1853 = vrot.slane %v1837, 1
    %v1854 = vrot.slane %v1838, 1
    %v1855 = vsel %vm220, %v1853, %v1854
    %v1856 = vrot.slane %v1839, 1
    %v1857 = vsel %vm220, %v1854, %v1856
    %v1858 = vrot.slane %v1840, 1
    %v1859 = vsel %vm220, %v1856, %v1858
    %v1860 = vrot.slane %v1841, 1
    %v1861 = vrot.slane %v1842, 1
    %v1862 = vsel %vm220, %v1860, %v1861
    %v1863 = vrot.slane %v1843, 1
    %v1864 = vsel %vm220, %v1861, %v1863
    %v1865 = vrot.slane %v1844, 1
    %v1866 = vsel %vm220, %v1863, %v1865
    %v1875 = vadd.f32 %v1827, %v1855
    %v1876 = vadd.f32 %v1828, %v1857
    %v1877 = vadd.f32 %v1829, %v1859
    %v1878 = vadd.f32 %v1830, %v1858
    %v1879 = vadd.f32 %v1831, %v1862
    %v1880 = vadd.f32 %v1832, %v1864
    %v1881 = vadd.f32 %v1833, %v1866
    %v1882 = vadd.f32 %v1834, %v1865
    %s1883 = sld [smem:[#allocation3 + $0x184]]
    %v1884 = vstv %s1883
    %v1885 = vmul.f32 %v1884, %v76
    %v1886 = vmul.f32 %v1884, %v77
    %v1887 = vmul.f32 %v1884, %v78
    %v1888 = vmul.f32 %v1884, %v79
    %v1889 = vmul.f32 %v1884, %v80
    %v1890 = vmul.f32 %v1884, %v81
    %v1891 = vmul.f32 %v1884, %v82
    %v1892 = vmul.f32 %v1884, %v83
    %v1901 = vrot.slane %v1885, 1
    %v1902 = vrot.slane %v1886, 1
    %v1903 = vsel %vm220, %v1901, %v1902
    %v1904 = vrot.slane %v1887, 1
    %v1905 = vsel %vm220, %v1902, %v1904
    %v1906 = vrot.slane %v1888, 1
    %v1907 = vsel %vm220, %v1904, %v1906
    %v1908 = vrot.slane %v1889, 1
    %v1909 = vrot.slane %v1890, 1
    %v1910 = vsel %vm220, %v1908, %v1909
    %v1911 = vrot.slane %v1891, 1
    %v1912 = vsel %vm220, %v1909, %v1911
    %v1913 = vrot.slane %v1892, 1
    %v1914 = vsel %vm220, %v1911, %v1913
    %1915 = vrot.lane.b32.xlu0 %v1903, 127
    %v1916 = vpop.permute.xlu0 %1915
    %1917 = vrot.lane.b32.xlu0 %v1905, 127
    %v1918 = vpop.permute.xlu0 %1917
    %1919 = vrot.lane.b32.xlu0 %v1907, 127
    %v1920 = vpop.permute.xlu0 %1919
    %1921 = vrot.lane.b32.xlu0 %v1906, 127
    %v1922 = vpop.permute.xlu0 %1921
    %1923 = vrot.lane.b32.xlu0 %v1910, 127
    %v1924 = vpop.permute.xlu0 %1923
    %1925 = vrot.lane.b32.xlu0 %v1912, 127
    %v1926 = vpop.permute.xlu0 %1925
    %1927 = vrot.lane.b32.xlu0 %v1914, 127
    %v1928 = vpop.permute.xlu0 %1927
    %1929 = vrot.lane.b32.xlu0 %v1913, 127
    %v1930 = vpop.permute.xlu0 %1929
    %v1939 = vadd.f32 %v1875, %v1916
    %v1940 = vadd.f32 %v1876, %v1918
    %v1941 = vadd.f32 %v1877, %v1920
    %v1942 = vadd.f32 %v1878, %v1922
    %v1943 = vadd.f32 %v1879, %v1924
    %v1944 = vadd.f32 %v1880, %v1926
    %v1945 = vadd.f32 %v1881, %v1928
    %v1946 = vadd.f32 %v1882, %v1930
    %s1947 = sld [smem:[#allocation3 + $0x185]]
    %v1948 = vstv %s1947
    %v1949 = vmul.f32 %v1948, %v76
    %v1950 = vmul.f32 %v1948, %v77
    %v1951 = vmul.f32 %v1948, %v78
    %v1952 = vmul.f32 %v1948, %v79
    %v1953 = vmul.f32 %v1948, %v80
    %v1954 = vmul.f32 %v1948, %v81
    %v1955 = vmul.f32 %v1948, %v82
    %v1956 = vmul.f32 %v1948, %v83
    %v1965 = vrot.slane %v1949, 1
    %v1966 = vrot.slane %v1950, 1
    %v1967 = vsel %vm220, %v1965, %v1966
    %v1968 = vrot.slane %v1951, 1
    %v1969 = vsel %vm220, %v1966, %v1968
    %v1970 = vrot.slane %v1952, 1
    %v1971 = vsel %vm220, %v1968, %v1970
    %v1972 = vrot.slane %v1953, 1
    %v1973 = vrot.slane %v1954, 1
    %v1974 = vsel %vm220, %v1972, %v1973
    %v1975 = vrot.slane %v1955, 1
    %v1976 = vsel %vm220, %v1973, %v1975
    %v1977 = vrot.slane %v1956, 1
    %v1978 = vsel %vm220, %v1975, %v1977
    %1979 = vrot.lane.b32.xlu0 %v1967, 126
    %v1980 = vpop.permute.xlu0 %1979
    %1981 = vrot.lane.b32.xlu0 %v1969, 126
    %v1982 = vpop.permute.xlu0 %1981
    %1983 = vrot.lane.b32.xlu0 %v1971, 126
    %v1984 = vpop.permute.xlu0 %1983
    %1985 = vrot.lane.b32.xlu0 %v1970, 126
    %v1986 = vpop.permute.xlu0 %1985
    %1987 = vrot.lane.b32.xlu0 %v1974, 126
    %v1988 = vpop.permute.xlu0 %1987
    %1989 = vrot.lane.b32.xlu0 %v1976, 126
    %v1990 = vpop.permute.xlu0 %1989
    %1991 = vrot.lane.b32.xlu0 %v1978, 126
    %v1992 = vpop.permute.xlu0 %1991
    %1993 = vrot.lane.b32.xlu0 %v1977, 126
    %v1994 = vpop.permute.xlu0 %1993
    %v2003 = vadd.f32 %v1939, %v1980
    %v2004 = vadd.f32 %v1940, %v1982
    %v2005 = vadd.f32 %v1941, %v1984
    %v2006 = vadd.f32 %v1942, %v1986
    %v2007 = vadd.f32 %v1943, %v1988
    %v2008 = vadd.f32 %v1944, %v1990
    %v2009 = vadd.f32 %v1945, %v1992
    %v2010 = vadd.f32 %v1946, %v1994
    %s2011 = sld [smem:[#allocation3 + $0x186]]
    %v2012 = vstv %s2011
    %v2013 = vmul.f32 %v2012, %v76
    %v2014 = vmul.f32 %v2012, %v77
    %v2015 = vmul.f32 %v2012, %v78
    %v2016 = vmul.f32 %v2012, %v79
    %v2017 = vmul.f32 %v2012, %v80
    %v2018 = vmul.f32 %v2012, %v81
    %v2019 = vmul.f32 %v2012, %v82
    %v2020 = vmul.f32 %v2012, %v83
    %v2029 = vrot.slane %v2013, 2
    %v2030 = vrot.slane %v2014, 2
    %v2031 = vsel %vm397, %v2029, %v2030
    %v2032 = vrot.slane %v2015, 2
    %v2033 = vsel %vm397, %v2030, %v2032
    %v2034 = vrot.slane %v2016, 2
    %v2035 = vsel %vm397, %v2032, %v2034
    %v2036 = vrot.slane %v2017, 2
    %v2037 = vrot.slane %v2018, 2
    %v2038 = vsel %vm397, %v2036, %v2037
    %v2039 = vrot.slane %v2019, 2
    %v2040 = vsel %vm397, %v2037, %v2039
    %v2041 = vrot.slane %v2020, 2
    %v2042 = vsel %vm397, %v2039, %v2041
    %v2051 = vadd.f32 %v2003, %v2031
    %v2052 = vadd.f32 %v2004, %v2033
    %v2053 = vadd.f32 %v2005, %v2035
    %v2054 = vadd.f32 %v2006, %v2034
    %v2055 = vadd.f32 %v2007, %v2038
    %v2056 = vadd.f32 %v2008, %v2040
    %v2057 = vadd.f32 %v2009, %v2042
    %v2058 = vadd.f32 %v2010, %v2041
    %s2059 = sld [smem:[#allocation3 + $0x187]]
    %v2060 = vstv %s2059
    %v2061 = vmul.f32 %v2060, %v76
    %v2062 = vmul.f32 %v2060, %v77
    %v2063 = vmul.f32 %v2060, %v78
    %v2064 = vmul.f32 %v2060, %v79
    %v2065 = vmul.f32 %v2060, %v80
    %v2066 = vmul.f32 %v2060, %v81
    %v2067 = vmul.f32 %v2060, %v82
    %v2068 = vmul.f32 %v2060, %v83
    %v2077 = vrot.slane %v2061, 2
    %v2078 = vrot.slane %v2062, 2
    %v2079 = vsel %vm397, %v2077, %v2078
    %v2080 = vrot.slane %v2063, 2
    %v2081 = vsel %vm397, %v2078, %v2080
    %v2082 = vrot.slane %v2064, 2
    %v2083 = vsel %vm397, %v2080, %v2082
    %v2084 = vrot.slane %v2065, 2
    %v2085 = vrot.slane %v2066, 2
    %v2086 = vsel %vm397, %v2084, %v2085
    %v2087 = vrot.slane %v2067, 2
    %v2088 = vsel %vm397, %v2085, %v2087
    %v2089 = vrot.slane %v2068, 2
    %v2090 = vsel %vm397, %v2087, %v2089
    %2091 = vrot.lane.b32.xlu0 %v2079, 127
    %v2092 = vpop.permute.xlu0 %2091
    %2093 = vrot.lane.b32.xlu0 %v2081, 127
    %v2094 = vpop.permute.xlu0 %2093
    %2095 = vrot.lane.b32.xlu0 %v2083, 127
    %v2096 = vpop.permute.xlu0 %2095
    %2097 = vrot.lane.b32.xlu0 %v2082, 127
    %v2098 = vpop.permute.xlu0 %2097
    %2099 = vrot.lane.b32.xlu0 %v2086, 127
    %v2100 = vpop.permute.xlu0 %2099
    %2101 = vrot.lane.b32.xlu0 %v2088, 127
    %v2102 = vpop.permute.xlu0 %2101
    %2103 = vrot.lane.b32.xlu0 %v2090, 127
    %v2104 = vpop.permute.xlu0 %2103
    %2105 = vrot.lane.b32.xlu0 %v2089, 127
    %v2106 = vpop.permute.xlu0 %2105
    %v2115 = vadd.f32 %v2051, %v2092
    %v2116 = vadd.f32 %v2052, %v2094
    %v2117 = vadd.f32 %v2053, %v2096
    %v2118 = vadd.f32 %v2054, %v2098
    %v2119 = vadd.f32 %v2055, %v2100
    %v2120 = vadd.f32 %v2056, %v2102
    %v2121 = vadd.f32 %v2057, %v2104
    %v2122 = vadd.f32 %v2058, %v2106
    %s2123 = sld [smem:[#allocation3 + $0x188]]
    %v2124 = vstv %s2123
    %v2125 = vmul.f32 %v2124, %v76
    %v2126 = vmul.f32 %v2124, %v77
    %v2127 = vmul.f32 %v2124, %v78
    %v2128 = vmul.f32 %v2124, %v79
    %v2129 = vmul.f32 %v2124, %v80
    %v2130 = vmul.f32 %v2124, %v81
    %v2131 = vmul.f32 %v2124, %v82
    %v2132 = vmul.f32 %v2124, %v83
    %v2141 = vrot.slane %v2125, 2
    %v2142 = vrot.slane %v2126, 2
    %v2143 = vsel %vm397, %v2141, %v2142
    %v2144 = vrot.slane %v2127, 2
    %v2145 = vsel %vm397, %v2142, %v2144
    %v2146 = vrot.slane %v2128, 2
    %v2147 = vsel %vm397, %v2144, %v2146
    %v2148 = vrot.slane %v2129, 2
    %v2149 = vrot.slane %v2130, 2
    %v2150 = vsel %vm397, %v2148, %v2149
    %v2151 = vrot.slane %v2131, 2
    %v2152 = vsel %vm397, %v2149, %v2151
    %v2153 = vrot.slane %v2132, 2
    %v2154 = vsel %vm397, %v2151, %v2153
    %2155 = vrot.lane.b32.xlu0 %v2143, 126
    %v2156 = vpop.permute.xlu0 %2155
    %2157 = vrot.lane.b32.xlu0 %v2145, 126
    %v2158 = vpop.permute.xlu0 %2157
    %2159 = vrot.lane.b32.xlu0 %v2147, 126
    %v2160 = vpop.permute.xlu0 %2159
    %2161 = vrot.lane.b32.xlu0 %v2146, 126
    %v2162 = vpop.permute.xlu0 %2161
    %2163 = vrot.lane.b32.xlu0 %v2150, 126
    %v2164 = vpop.permute.xlu0 %2163
    %2165 = vrot.lane.b32.xlu0 %v2152, 126
    %v2166 = vpop.permute.xlu0 %2165
    %2167 = vrot.lane.b32.xlu0 %v2154, 126
    %v2168 = vpop.permute.xlu0 %2167
    %2169 = vrot.lane.b32.xlu0 %v2153, 126
    %v2170 = vpop.permute.xlu0 %2169
    %v2179 = vadd.f32 %v2115, %v2156
    %v2180 = vadd.f32 %v2116, %v2158
    %v2181 = vadd.f32 %v2117, %v2160
    %v2182 = vadd.f32 %v2118, %v2162
    %v2183 = vadd.f32 %v2119, %v2164
    %v2184 = vadd.f32 %v2120, %v2166
    %v2185 = vadd.f32 %v2121, %v2168
    %v2186 = vadd.f32 %v2122, %v2170
    %s2187 = sld [smem:[#allocation5 + $0x3]]
    %v2188 = vstv %s2187
    %v2189 = vadd.f32 %v2179, %v2188
    %v2190 = vadd.f32 %v2180, %v2188
    %v2191 = vadd.f32 %v2181, %v2188
    %v2192 = vadd.f32 %v2182, %v2188
    %v2193 = vadd.f32 %v2183, %v2188
    %v2194 = vadd.f32 %v2184, %v2188
    %v2195 = vadd.f32 %v2185, %v2188
    %v2196 = vadd.f32 %v2186, %v2188
    %v2201 = vrot.slane %v2189, 5
    %v2202 = vrot.slane %v2190, 5
    %v2203 = vsel %vm570, %v2201, %v2202
    %v2204 = vrot.slane %v2191, 5
    %v2205 = vsel %vm570, %v2202, %v2204
    %v2206 = vrot.slane %v2192, 5
    %v2207 = vsel %vm570, %v2204, %v2206
    %2208 = vrot.lane.b32.xlu0 %v2201, 105
    %v2209 = vpop.permute.xlu0 %2208
    %2210 = vrot.lane.b32.xlu0 %v2203, 105
    %v2211 = vpop.permute.xlu0 %2210
    %2212 = vrot.lane.b32.xlu0 %v2205, 105
    %v2213 = vpop.permute.xlu0 %2212
    %2214 = vrot.lane.b32.xlu0 %v2207, 105
    %v2215 = vpop.permute.xlu0 %2214
    %vm2220 = vcmask 1048395
    %2221 = vst.msk [vmem:[#allocation2] sm:$0xf8] %vm2220, %v2209
    %vm2222 = vcmask 39939
    %2223 = vst.msk [vmem:[#allocation2 + $0x8] sm:$0xf8] %vm2222, %v2209
    %vm2224 = vcmask 1048392
    %2225 = vst.msk [vmem:[#allocation2 + $0x10] sm:$0xff] %vm2224, %v2211
    %vm2226 = vcmask 39936
    %2227 = vst.msk [vmem:[#allocation2 + $0x18] sm:$0xff] %vm2226, %v2211
    %2228 = vst.msk [vmem:[#allocation2 + $0x20] sm:$0xff] %vm2224, %v2213
    %2229 = vst.msk [vmem:[#allocation2 + $0x28] sm:$0xff] %vm2226, %v2213
    %vm2230 = vcmask 1047368
    %2231 = vst.msk [vmem:[#allocation2 + $0x30] sm:$0x7f] %vm2230, %v2215
    %vm2232 = vcmask 38912
    %2233 = vst.msk [vmem:[#allocation2 + $0x38] sm:$0x7f] %vm2232, %v2215
    %v2238 = vrot.slane %v2193, 3
    %v2239 = vrot.slane %v2194, 3
    %v2240 = vsel %vm601, %v2238, %v2239
    %v2241 = vrot.slane %v2195, 3
    %v2242 = vsel %vm601, %v2239, %v2241
    %v2243 = vrot.slane %v2196, 3
    %v2244 = vsel %vm601, %v2241, %v2243
    %2245 = vrot.lane.b32.xlu0 %v2238, 105
    %v2246 = vpop.permute.xlu0 %2245
    %2247 = vrot.lane.b32.xlu0 %v2240, 105
    %v2248 = vpop.permute.xlu0 %2247
    %2249 = vrot.lane.b32.xlu0 %v2242, 105
    %v2250 = vpop.permute.xlu0 %2249
    %2251 = vrot.lane.b32.xlu0 %v2244, 105
    %v2252 = vpop.permute.xlu0 %2251
    %2253 = vrot.lane.b32.xlu0 %v2243, 105
    %v2254 = vpop.permute.xlu0 %2253
    %vm2260 = vcmask 1048397
    %2261 = vst.msk [vmem:[#allocation2 + $0x40] sm:$0xe0] %vm2260, %v2246
    %vm2262 = vcmask 39941
    %2263 = vst.msk [vmem:[#allocation2 + $0x48] sm:$0xe0] %vm2262, %v2246
    %2264 = vst.msk [vmem:[#allocation2 + $0x50] sm:$0xff] %vm2224, %v2248
    %2265 = vst.msk [vmem:[#allocation2 + $0x58] sm:$0xff] %vm2226, %v2248
    %2266 = vst.msk [vmem:[#allocation2 + $0x60] sm:$0xff] %vm2224, %v2250
    %2267 = vst.msk [vmem:[#allocation2 + $0x68] sm:$0xff] %vm2226, %v2250
    %2268 = vst.msk [vmem:[#allocation2 + $0x70] sm:$0xff] %vm2224, %v2252
    %2269 = vst.msk [vmem:[#allocation2 + $0x78] sm:$0xff] %vm2226, %v2252
    %vm2270 = vcmask 1041224
    %2271 = vst.msk [vmem:[#allocation2 + $0x80] sm:$0x1] %vm2270, %v2254
    %vm2272 = vcmask 32768
    %2273 = vst.msk [vmem:[#allocation2 + $0x88] sm:$0x1] %vm2272, %v2254
    %v2274 = vld [vmem:[%s4] sm:$0xff]
    %v2275 = vld [vmem:[%s4 + $0x8] sm:$0xff]
    %v2276 = vld [vmem:[%s4 + $0x10] sm:$0xff]
    %v2277 = vld [vmem:[%s4 + $0x18] sm:$0xf]
    %v2278 = vld [vmem:[%s5] sm:$0xff]
    %v2279 = vld [vmem:[%s5 + $0x8] sm:$0xff]
    %v2280 = vld [vmem:[%s6] sm:$0xff]
    %v2281 = vld [vmem:[%s6 + $0x8] sm:$0xff]
    %v2282 = vld [vmem:[%s6 + $0x10] sm:$0xff]
    %v2283 = vld [vmem:[%s6 + $0x18] sm:$0xff]
    %v2284 = vld [vmem:[%s6 + $0x20] sm:$0xff]
    %v2285 = vld [vmem:[%s6 + $0x28] sm:$0xff]
    %v2286 = vld [vmem:[%s6 + $0x30] sm:$0xff]
    %v2287 = vld [vmem:[%s6 + $0x38] sm:$0xff]
    %v2288 = vld [vmem:[%s6 + $0x40] sm:$0xff]
    %v2289 = vld [vmem:[%s6 + $0x48] sm:$0xff]
    %v2290 = vld [vmem:[%s6 + $0x50] sm:$0xff]
    %v2291 = vld [vmem:[%s6 + $0x58] sm:$0xff]
    %v2292 = vld [vmem:[%s6 + $0x60] sm:$0xff]
    %v2293 = vld [vmem:[%s6 + $0x68] sm:$0xff]
    %v2294 = vld [vmem:[%s7] sm:$0xff]
    %v2295 = vld [vmem:[%s7 + $0x8] sm:$0xff]
    %v2296 = vld [vmem:[%s7 + $0x10] sm:$0xff]
    %v2297 = vld [vmem:[%s7 + $0x18] sm:$0xff]
    %v2298 = vld [vmem:[%s7 + $0x20] sm:$0xff]
    %v2299 = vld [vmem:[%s7 + $0x28] sm:$0xff]
    %v2300 = vld [vmem:[%s7 + $0x30] sm:$0xff]
    %v2301 = vld [vmem:[#allocation2] sm:$0xff]
    %v2302 = vld [vmem:[#allocation2 + $0x8] sm:$0xff]
    %v2303 = vld [vmem:[#allocation2 + $0x10] sm:$0xff]
    %v2304 = vld [vmem:[#allocation2 + $0x18] sm:$0xff]
    %v2305 = vld [vmem:[#allocation2 + $0x20] sm:$0xff]
    %v2306 = vld [vmem:[#allocation2 + $0x28] sm:$0xff]
    %v2307 = vld [vmem:[#allocation2 + $0x30] sm:$0xff]
    %v2308 = vld [vmem:[#allocation2 + $0x38] sm:$0xff]
    %v2309 = vld [vmem:[#allocation2 + $0x40] sm:$0xff]
    %v2310 = vld [vmem:[#allocation2 + $0x48] sm:$0xff]
    %v2311 = vld [vmem:[#allocation2 + $0x50] sm:$0xff]
    %v2312 = vld [vmem:[#allocation2 + $0x58] sm:$0xff]
    %v2313 = vld [vmem:[#allocation2 + $0x60] sm:$0xff]
    %v2314 = vld [vmem:[#allocation2 + $0x68] sm:$0xff]
    %v2315 = vld [vmem:[#allocation2 + $0x70] sm:$0xff]
    %v2316 = vld [vmem:[#allocation2 + $0x78] sm:$0xff]
    %v2317 = vld [vmem:[#allocation2 + $0x80] sm:$0xf]
    %v2318 = vld [vmem:[#allocation2 + $0x88] sm:$0xf]
    %v2319 = vld [vmem:[%s3] sm:$0xff]
    %v2320 = vld [vmem:[%s3 + $0x20] sm:$0xff]
    %v2321 = vld [vmem:[%s3 + $0x40] sm:$0xff]
    %v2322 = vld [vmem:[%s3 + $0x60] sm:$0xff]
    %v2323 = vld [vmem:[%s3 + $0x80] sm:$0xff]
    %v2324 = vld [vmem:[%s3 + $0xa0] sm:$0xff]
    %v2325 = vld [vmem:[%s3 + $0xc0] sm:$0xff]
    %v2326 = vld [vmem:[%s3 + $0xe0] sm:$0xff]
    %v2327 = vld [vmem:[%s3 + $0x100] sm:$0xff]
    %v2328 = vld [vmem:[%s3 + $0x120] sm:$0xff]
    %v2329 = vld [vmem:[%s3 + $0x140] sm:$0xff]
    %v2330 = vld [vmem:[%s3 + $0x160] sm:$0xff]
    %v2331 = vld [vmem:[%s3 + $0x180] sm:$0xff]
    %v2332 = vld [vmem:[%s3 + $0x1a0] sm:$0xff]
    %v2333 = vld [vmem:[%s3 + $0x1c0] sm:$0xff]
    %v2334 = vld [vmem:[%s3 + $0x1e0] sm:$0xff]
    %v2335 = vld [vmem:[%s3 + $0x200] sm:$0xff]
    %v2336 = vld [vmem:[#allocation2] sm:$0xfe]
    %v2337 = vld [vmem:[#allocation2 + $0x8] sm:$0xfe]
    %v2338 = vld [vmem:[#allocation2 + $0x80] sm:$0x1f]
    %v2339 = vld [vmem:[#allocation2 + $0x88] sm:$0x1f]
    %s2340 = scalar_lea.vmem %s3, 544
    %v2341 = vld [vmem:[%s2340] sm:$0xff]
    %v2342 = vld [vmem:[%s2340 + $0x20] sm:$0xff]
    %v2343 = vld [vmem:[%s2340 + $0x40] sm:$0xff]
    %v2344 = vld [vmem:[%s2340 + $0x60] sm:$0xff]
    %v2345 = vld [vmem:[%s2340 + $0x80] sm:$0xff]
    %v2346 = vld [vmem:[%s2340 + $0xa0] sm:$0xff]
    %v2347 = vld [vmem:[%s2340 + $0xc0] sm:$0xff]
    %v2348 = vld [vmem:[%s2340 + $0xe0] sm:$0xff]
    %v2349 = vld [vmem:[%s2340 + $0x100] sm:$0xff]
    %v2350 = vld [vmem:[%s2340 + $0x120] sm:$0xff]
    %v2351 = vld [vmem:[%s2340 + $0x140] sm:$0xff]
    %v2352 = vld [vmem:[%s2340 + $0x160] sm:$0xff]
    %v2353 = vld [vmem:[%s2340 + $0x180] sm:$0xff]
    %v2354 = vld [vmem:[%s2340 + $0x1a0] sm:$0xff]
    %v2355 = vld [vmem:[%s2340 + $0x1c0] sm:$0xff]
    %v2356 = vld [vmem:[%s2340 + $0x1e0] sm:$0xff]
    %v2357 = vld [vmem:[%s2340 + $0x200] sm:$0xff]
    %v2376 = vrot.slane %v2336, 1
    %v2377 = vrot.slane %v2303, 1
    %v2378 = vsel %vm220, %v2376, %v2377
    %v2379 = vrot.slane %v2337, 1
    %v2380 = vrot.slane %v2304, 1
    %v2381 = vsel %vm220, %v2379, %v2380
    %v2382 = vrot.slane %v2305, 1
    %v2383 = vsel %vm220, %v2377, %v2382
    %v2384 = vrot.slane %v2306, 1
    %v2385 = vsel %vm220, %v2380, %v2384
    %v2386 = vrot.slane %v2307, 1
    %v2387 = vsel %vm220, %v2382, %v2386
    %v2388 = vrot.slane %v2308, 1
    %v2389 = vsel %vm220, %v2384, %v2388
    %v2390 = vrot.slane %v2309, 1
    %v2391 = vsel %vm220, %v2386, %v2390
    %v2392 = vrot.slane %v2310, 1
    %v2393 = vsel %vm220, %v2388, %v2392
    %v2394 = vrot.slane %v2311, 1
    %v2395 = vsel %vm220, %v2390, %v2394
    %v2396 = vrot.slane %v2312, 1
    %v2397 = vsel %vm220, %v2392, %v2396
    %v2398 = vrot.slane %v2313, 1
    %v2399 = vsel %vm220, %v2394, %v2398
    %v2400 = vrot.slane %v2314, 1
    %v2401 = vsel %vm220, %v2396, %v2400
    %v2402 = vrot.slane %v2315, 1
    %v2403 = vsel %vm220, %v2398, %v2402
    %v2404 = vrot.slane %v2316, 1
    %v2405 = vsel %vm220, %v2400, %v2404
    %v2406 = vrot.slane %v2338, 1
    %v2407 = vsel %vm220, %v2402, %v2406
    %v2408 = vrot.slane %v2339, 1
    %v2409 = vsel %vm220, %v2404, %v2408
    %v2419 = vsel %vm55, %v2381, 0
    %v2421 = vsel %vm55, %v2385, 0
    %v2423 = vsel %vm55, %v2389, 0
    %v2425 = vsel %vm55, %v2393, 0
    %v2427 = vsel %vm55, %v2397, 0
    %v2429 = vsel %vm55, %v2401, 0
    %v2431 = vsel %vm55, %v2405, 0
    %v2433 = vsel %vm55, %v2409, 0
    %v2435 = vsel %vm55, %v2408, 0
    %2437 = vmatprep.subr.mxu0 0.0
    %2438 = vmatpush1.msra.mxu0 %v2356
    %2439 = vmatprep.subr.mxu0 0.0
    %2440 = vmatpush1.msra.mxu0 %v2355
    %2441 = vmatprep.subr.mxu0 0.0
    %2442 = vmatpush1.msra.mxu0 %v2354
    %2443 = vmatprep.subr.mxu0 0.0
    %2444 = vmatpush1.msra.mxu0 %v2353
    %2445 = vmatprep.subr.mxu0 0.0
    %2446 = vmatpush1.msra.mxu0 %v2352
    %2447 = vmatprep.subr.mxu0 0.0
    %2448 = vmatpush1.msra.mxu0 %v2351
    %2449 = vmatprep.subr.mxu0 0.0
    %2450 = vmatpush1.msra.mxu0 %v2350
    %2451 = vmatprep.subr.mxu0 0.0
    %2452 = vmatpush1.msra.mxu0 %v2349
    %2453 = vmatprep.subr.mxu0 0.0
    %2454 = vmatpush1.msra.mxu0 %v2348
    %2455 = vmatprep.subr.mxu0 0.0
    %2456 = vmatpush1.msra.mxu0 %v2347
    %2457 = vmatprep.subr.mxu0 0.0
    %2458 = vmatpush1.msra.mxu0 %v2346
    %2459 = vmatprep.subr.mxu0 0.0
    %2460 = vmatpush1.msra.mxu0 %v2345
    %2461 = vmatprep.subr.mxu0 0.0
    %2462 = vmatpush1.msra.mxu0 %v2344
    %2463 = vmatprep.subr.mxu0 0.0
    %2464 = vmatpush1.msra.mxu0 %v2343
    %2465 = vmatprep.subr.mxu0 0.0
    %2466 = vmatpush1.msra.mxu0 %v2342
    %2467 = vmatprep.subr.mxu0 0.0
    %2468 = vmatpush1.msra.mxu0 %v2341
    %2469 = vmatprep.subr.mxu0 0.0
    %2470 = vmatpush2.msra.mxu0 0.0
    %2471 = vmatprep.subr.mxu0 0.0
    %2472 = vmatpush2.msra.mxu0 0.0
    %2473 = vmatprep.subr.mxu0 0.0
    %2474 = vmatpush2.msra.mxu0 0.0
    %2475 = vmatprep.subr.mxu0 0.0
    %2476 = vmatpush2.msra.mxu0 0.0
    %2477 = vmatprep.subr.mxu0 0.0
    %2478 = vmatpush2.msra.mxu0 0.0
    %2479 = vmatprep.subr.mxu0 0.0
    %2480 = vmatpush2.msra.mxu0 0.0
    %2481 = vmatprep.subr.mxu0 0.0
    %2482 = vmatpush2.msra.mxu0 0.0
    %2483 = vmatprep.subr.mxu0 0.0
    %2484 = vmatpush2.msra.mxu0 0.0
    %2485 = vmatprep.subr.mxu0 0.0
    %2486 = vmatpush2.msra.mxu0 0.0
    %2487 = vmatprep.subr.mxu0 0.0
    %2488 = vmatpush2.msra.mxu0 0.0
    %2489 = vmatprep.subr.mxu0 0.0
    %2490 = vmatpush2.msra.mxu0 0.0
    %2491 = vmatprep.subr.mxu0 0.0
    %2492 = vmatpush2.msra.mxu0 0.0
    %2493 = vmatprep.subr.mxu0 0.0
    %2494 = vmatpush2.msra.mxu0 0.0
    %2495 = vmatprep.subr.mxu0 0.0
    %2496 = vmatpush2.msra.mxu0 0.0
    %2497 = vmatprep.subr.mxu0 0.0
    %2498 = vmatpush2.msra.mxu0 0.0
    %2499 = vmatprep.subr.mxu0 0.0
    %2500 = vmatpush2.msra.mxu0 %v2357
    %2501 = vmatprep.mubr.f32.mxu0 %v2419
    %2502 = vmatmul.mubr.f32.gmra.mxu0 %v2378
    %v2503 = vpop.f32.mrf.mxu0
    %v2504 = vadd.f32 0.0, %v2503
    %v2505 = vpop.f32.mrf.mxu0
    %2506 = vmatprep.mubr.f32.mxu0 %v2421
    %2507 = vmatmul.mubr.f32.gmra.mxu0 %v2383
    %v2508 = vpop.f32.mrf.mxu0
    %v2509 = vadd.f32 0.0, %v2508
    %v2510 = vpop.f32.mrf.mxu0
    %2511 = vmatprep.mubr.f32.mxu0 %v2423
    %2512 = vmatmul.mubr.f32.gmra.mxu0 %v2387
    %v2513 = vpop.f32.mrf.mxu0
    %v2514 = vadd.f32 0.0, %v2513
    %v2515 = vpop.f32.mrf.mxu0
    %2516 = vmatprep.mubr.f32.mxu0 %v2425
    %2517 = vmatmul.mubr.f32.gmra.mxu0 %v2391
    %v2518 = vpop.f32.mrf.mxu0
    %v2519 = vadd.f32 0.0, %v2518
    %v2520 = vpop.f32.mrf.mxu0
    %2521 = vmatprep.mubr.f32.mxu0 %v2427
    %2522 = vmatmul.mubr.f32.gmra.mxu0 %v2395
    %v2523 = vpop.f32.mrf.mxu0
    %v2524 = vadd.f32 0.0, %v2523
    %v2525 = vpop.f32.mrf.mxu0
    %2526 = vmatprep.mubr.f32.mxu0 %v2429
    %2527 = vmatmul.mubr.f32.gmra.mxu0 %v2399
    %v2528 = vpop.f32.mrf.mxu0
    %v2529 = vadd.f32 0.0, %v2528
    %v2530 = vpop.f32.mrf.mxu0
    %2531 = vmatprep.mubr.f32.mxu0 %v2431
    %2532 = vmatmul.mubr.f32.gmra.mxu0 %v2403
    %v2533 = vpop.f32.mrf.mxu0
    %v2534 = vadd.f32 0.0, %v2533
    %v2535 = vpop.f32.mrf.mxu0
    %2536 = vmatprep.mubr.f32.mxu0 %v2433
    %2537 = vmatmul.mubr.f32.gmra.mxu0 %v2407
    %v2538 = vpop.f32.mrf.mxu0
    %v2539 = vadd.f32 0.0, %v2538
    %v2540 = vpop.f32.mrf.mxu0
    %2541 = vmatprep.mubr.f32.mxu0 %v2435
    %2542 = vmatmul.mubr.f32.gmra.mxu0 %v2406
    %v2543 = vpop.f32.mrf.mxu0
    %v2544 = vadd.f32 0.0, %v2543
    %v2545 = vpop.f32.mrf.mxu0
    %2546 = vdwg.mxu0
    %v2548 = vsel %vm55, %v2302, 0
    %v2550 = vsel %vm55, %v2304, 0
    %v2552 = vsel %vm55, %v2306, 0
    %v2554 = vsel %vm55, %v2308, 0
    %v2556 = vsel %vm55, %v2310, 0
    %v2558 = vsel %vm55, %v2312, 0
    %v2560 = vsel %vm55, %v2314, 0
    %v2562 = vsel %vm55, %v2316, 0
    %v2565 = vsel %vm55, %v2318, 0
    %2567 = vmatprep.subr.mxu0 0.0
    %2568 = vmatpush1.msra.mxu0 %v2334
    %2569 = vmatprep.subr.mxu0 0.0
    %2570 = vmatpush1.msra.mxu0 %v2333
    %2571 = vmatprep.subr.mxu0 0.0
    %2572 = vmatpush1.msra.mxu0 %v2332
    %2573 = vmatprep.subr.mxu0 0.0
    %2574 = vmatpush1.msra.mxu0 %v2331
    %2575 = vmatprep.subr.mxu0 0.0
    %2576 = vmatpush1.msra.mxu0 %v2330
    %2577 = vmatprep.subr.mxu0 0.0
    %2578 = vmatpush1.msra.mxu0 %v2329
    %2579 = vmatprep.subr.mxu0 0.0
    %2580 = vmatpush1.msra.mxu0 %v2328
    %2581 = vmatprep.subr.mxu0 0.0
    %2582 = vmatpush1.msra.mxu0 %v2327
    %2583 = vmatprep.subr.mxu0 0.0
    %2584 = vmatpush1.msra.mxu0 %v2326
    %2585 = vmatprep.subr.mxu0 0.0
    %2586 = vmatpush1.msra.mxu0 %v2325
    %2587 = vmatprep.subr.mxu0 0.0
    %2588 = vmatpush1.msra.mxu0 %v2324
    %2589 = vmatprep.subr.mxu0 0.0
    %2590 = vmatpush1.msra.mxu0 %v2323
    %2591 = vmatprep.subr.mxu0 0.0
    %2592 = vmatpush1.msra.mxu0 %v2322
    %2593 = vmatprep.subr.mxu0 0.0
    %2594 = vmatpush1.msra.mxu0 %v2321
    %2595 = vmatprep.subr.mxu0 0.0
    %2596 = vmatpush1.msra.mxu0 %v2320
    %2597 = vmatprep.subr.mxu0 0.0
    %2598 = vmatpush1.msra.mxu0 %v2319
    %2599 = vmatprep.subr.mxu0 0.0
    %2600 = vmatpush2.msra.mxu0 0.0
    %2601 = vmatprep.subr.mxu0 0.0
    %2602 = vmatpush2.msra.mxu0 0.0
    %2603 = vmatprep.subr.mxu0 0.0
    %2604 = vmatpush2.msra.mxu0 0.0
    %2605 = vmatprep.subr.mxu0 0.0
    %2606 = vmatpush2.msra.mxu0 0.0
    %2607 = vmatprep.subr.mxu0 0.0
    %2608 = vmatpush2.msra.mxu0 0.0
    %2609 = vmatprep.subr.mxu0 0.0
    %2610 = vmatpush2.msra.mxu0 0.0
    %2611 = vmatprep.subr.mxu0 0.0
    %2612 = vmatpush2.msra.mxu0 0.0
    %2613 = vmatprep.subr.mxu0 0.0
    %2614 = vmatpush2.msra.mxu0 0.0
    %2615 = vmatprep.subr.mxu0 0.0
    %2616 = vmatpush2.msra.mxu0 0.0
    %2617 = vmatprep.subr.mxu0 0.0
    %2618 = vmatpush2.msra.mxu0 0.0
    %2619 = vmatprep.subr.mxu0 0.0
    %2620 = vmatpush2.msra.mxu0 0.0
    %2621 = vmatprep.subr.mxu0 0.0
    %2622 = vmatpush2.msra.mxu0 0.0
    %2623 = vmatprep.subr.mxu0 0.0
    %2624 = vmatpush2.msra.mxu0 0.0
    %2625 = vmatprep.subr.mxu0 0.0
    %2626 = vmatpush2.msra.mxu0 0.0
    %2627 = vmatprep.subr.mxu0 0.0
    %2628 = vmatpush2.msra.mxu0 0.0
    %2629 = vmatprep.subr.mxu0 0.0
    %2630 = vmatpush2.msra.mxu0 %v2335
    %2631 = vmatprep.mubr.f32.mxu0 %v2548
    %2632 = vmatmul.mubr.f32.gmra.mxu0 %v2301
    %v2633 = vpop.f32.mrf.mxu0
    %v2634 = vadd.f32 %v2504, %v2633
    %v2635 = vpop.f32.mrf.mxu0
    %2636 = vmatprep.mubr.f32.mxu0 %v2550
    %2637 = vmatmul.mubr.f32.gmra.mxu0 %v2303
    %v2638 = vpop.f32.mrf.mxu0
    %v2639 = vadd.f32 %v2509, %v2638
    %v2640 = vpop.f32.mrf.mxu0
    %2641 = vmatprep.mubr.f32.mxu0 %v2552
    %2642 = vmatmul.mubr.f32.gmra.mxu0 %v2305
    %v2643 = vpop.f32.mrf.mxu0
    %v2644 = vadd.f32 %v2514, %v2643
    %v2645 = vpop.f32.mrf.mxu0
    %2646 = vmatprep.mubr.f32.mxu0 %v2554
    %2647 = vmatmul.mubr.f32.gmra.mxu0 %v2307
    %v2648 = vpop.f32.mrf.mxu0
    %v2649 = vadd.f32 %v2519, %v2648
    %v2650 = vpop.f32.mrf.mxu0
    %2651 = vmatprep.mubr.f32.mxu0 %v2556
    %2652 = vmatmul.mubr.f32.gmra.mxu0 %v2309
    %v2653 = vpop.f32.mrf.mxu0
    %v2654 = vadd.f32 %v2524, %v2653
    %v2655 = vpop.f32.mrf.mxu0
    %2656 = vmatprep.mubr.f32.mxu0 %v2558
    %2657 = vmatmul.mubr.f32.gmra.mxu0 %v2311
    %v2658 = vpop.f32.mrf.mxu0
    %v2659 = vadd.f32 %v2529, %v2658
    %v2660 = vpop.f32.mrf.mxu0
    %2661 = vmatprep.mubr.f32.mxu0 %v2560
    %2662 = vmatmul.mubr.f32.gmra.mxu0 %v2313
    %v2663 = vpop.f32.mrf.mxu0
    %v2664 = vadd.f32 %v2534, %v2663
    %v2665 = vpop.f32.mrf.mxu0
    %2666 = vmatprep.mubr.f32.mxu0 %v2562
    %2667 = vmatmul.mubr.f32.gmra.mxu0 %v2315
    %v2668 = vpop.f32.mrf.mxu0
    %v2669 = vadd.f32 %v2539, %v2668
    %v2670 = vpop.f32.mrf.mxu0
    %2671 = vmatprep.mubr.f32.mxu0 %v2565
    %2672 = vmatmul.mubr.f32.gmra.mxu0 %v2317
    %v2673 = vpop.f32.mrf.mxu0
    %v2674 = vadd.f32 %v2544, %v2673
    %v2675 = vpop.f32.mrf.mxu0
    %2676 = vdwg.mxu0
    %v2677 = vld [vmem:[#allocation2] sm:$0xfc]
    %v2678 = vld [vmem:[#allocation2 + $0x8] sm:$0xfc]
    %v2679 = vld [vmem:[#allocation2 + $0x80] sm:$0x3f]
    %v2680 = vld [vmem:[#allocation2 + $0x88] sm:$0x3f]
    %s2681 = scalar_lea.vmem %s3, 1088
    %v2682 = vld [vmem:[%s2681] sm:$0xff]
    %v2683 = vld [vmem:[%s2681 + $0x20] sm:$0xff]
    %v2684 = vld [vmem:[%s2681 + $0x40] sm:$0xff]
    %v2685 = vld [vmem:[%s2681 + $0x60] sm:$0xff]
    %v2686 = vld [vmem:[%s2681 + $0x80] sm:$0xff]
    %v2687 = vld [vmem:[%s2681 + $0xa0] sm:$0xff]
    %v2688 = vld [vmem:[%s2681 + $0xc0] sm:$0xff]
    %v2689 = vld [vmem:[%s2681 + $0xe0] sm:$0xff]
    %v2690 = vld [vmem:[%s2681 + $0x100] sm:$0xff]
    %v2691 = vld [vmem:[%s2681 + $0x120] sm:$0xff]
    %v2692 = vld [vmem:[%s2681 + $0x140] sm:$0xff]
    %v2693 = vld [vmem:[%s2681 + $0x160] sm:$0xff]
    %v2694 = vld [vmem:[%s2681 + $0x180] sm:$0xff]
    %v2695 = vld [vmem:[%s2681 + $0x1a0] sm:$0xff]
    %v2696 = vld [vmem:[%s2681 + $0x1c0] sm:$0xff]
    %v2697 = vld [vmem:[%s2681 + $0x1e0] sm:$0xff]
    %v2698 = vld [vmem:[%s2681 + $0x200] sm:$0xff]
    %v2703 = vrot.slane %v2677, 2
    %v2704 = vrot.slane %v2303, 2
    %v2705 = vsel %vm397, %v2703, %v2704
    %v2706 = vrot.slane %v2678, 2
    %v2707 = vrot.slane %v2304, 2
    %v2708 = vsel %vm397, %v2706, %v2707
    %v2709 = vrot.slane %v2305, 2
    %v2710 = vsel %vm397, %v2704, %v2709
    %v2711 = vrot.slane %v2306, 2
    %v2712 = vsel %vm397, %v2707, %v2711
    %v2713 = vrot.slane %v2307, 2
    %v2714 = vsel %vm397, %v2709, %v2713
    %v2715 = vrot.slane %v2308, 2
    %v2716 = vsel %vm397, %v2711, %v2715
    %v2717 = vrot.slane %v2309, 2
    %v2718 = vsel %vm397, %v2713, %v2717
    %v2719 = vrot.slane %v2310, 2
    %v2720 = vsel %vm397, %v2715, %v2719
    %v2721 = vrot.slane %v2311, 2
    %v2722 = vsel %vm397, %v2717, %v2721
    %v2723 = vrot.slane %v2312, 2
    %v2724 = vsel %vm397, %v2719, %v2723
    %v2725 = vrot.slane %v2313, 2
    %v2726 = vsel %vm397, %v2721, %v2725
    %v2727 = vrot.slane %v2314, 2
    %v2728 = vsel %vm397, %v2723, %v2727
    %v2729 = vrot.slane %v2315, 2
    %v2730 = vsel %vm397, %v2725, %v2729
    %v2731 = vrot.slane %v2316, 2
    %v2732 = vsel %vm397, %v2727, %v2731
    %v2733 = vrot.slane %v2679, 2
    %v2734 = vsel %vm397, %v2729, %v2733
    %v2735 = vrot.slane %v2680, 2
    %v2736 = vsel %vm397, %v2731, %v2735
    %v2746 = vsel %vm55, %v2708, 0
    %v2748 = vsel %vm55, %v2712, 0
    %v2750 = vsel %vm55, %v2716, 0
    %v2752 = vsel %vm55, %v2720, 0
    %v2754 = vsel %vm55, %v2724, 0
    %v2756 = vsel %vm55, %v2728, 0
    %v2758 = vsel %vm55, %v2732, 0
    %v2760 = vsel %vm55, %v2736, 0
    %v2762 = vsel %vm55, %v2735, 0
    %2764 = vmatprep.subr.mxu0 0.0
    %2765 = vmatpush1.msra.mxu0 %v2697
    %2766 = vmatprep.subr.mxu0 0.0
    %2767 = vmatpush1.msra.mxu0 %v2696
    %2768 = vmatprep.subr.mxu0 0.0
    %2769 = vmatpush1.msra.mxu0 %v2695
    %2770 = vmatprep.subr.mxu0 0.0
    %2771 = vmatpush1.msra.mxu0 %v2694
    %2772 = vmatprep.subr.mxu0 0.0
    %2773 = vmatpush1.msra.mxu0 %v2693
    %2774 = vmatprep.subr.mxu0 0.0
    %2775 = vmatpush1.msra.mxu0 %v2692
    %2776 = vmatprep.subr.mxu0 0.0
    %2777 = vmatpush1.msra.mxu0 %v2691
    %2778 = vmatprep.subr.mxu0 0.0
    %2779 = vmatpush1.msra.mxu0 %v2690
    %2780 = vmatprep.subr.mxu0 0.0
    %2781 = vmatpush1.msra.mxu0 %v2689
    %2782 = vmatprep.subr.mxu0 0.0
    %2783 = vmatpush1.msra.mxu0 %v2688
    %2784 = vmatprep.subr.mxu0 0.0
    %2785 = vmatpush1.msra.mxu0 %v2687
    %2786 = vmatprep.subr.mxu0 0.0
    %2787 = vmatpush1.msra.mxu0 %v2686
    %2788 = vmatprep.subr.mxu0 0.0
    %2789 = vmatpush1.msra.mxu0 %v2685
    %2790 = vmatprep.subr.mxu0 0.0
    %2791 = vmatpush1.msra.mxu0 %v2684
    %2792 = vmatprep.subr.mxu0 0.0
    %2793 = vmatpush1.msra.mxu0 %v2683
    %2794 = vmatprep.subr.mxu0 0.0
    %2795 = vmatpush1.msra.mxu0 %v2682
    %2796 = vmatprep.subr.mxu0 0.0
    %2797 = vmatpush2.msra.mxu0 0.0
    %2798 = vmatprep.subr.mxu0 0.0
    %2799 = vmatpush2.msra.mxu0 0.0
    %2800 = vmatprep.subr.mxu0 0.0
    %2801 = vmatpush2.msra.mxu0 0.0
    %2802 = vmatprep.subr.mxu0 0.0
    %2803 = vmatpush2.msra.mxu0 0.0
    %2804 = vmatprep.subr.mxu0 0.0
    %2805 = vmatpush2.msra.mxu0 0.0
    %2806 = vmatprep.subr.mxu0 0.0
    %2807 = vmatpush2.msra.mxu0 0.0
    %2808 = vmatprep.subr.mxu0 0.0
    %2809 = vmatpush2.msra.mxu0 0.0
    %2810 = vmatprep.subr.mxu0 0.0
    %2811 = vmatpush2.msra.mxu0 0.0
    %2812 = vmatprep.subr.mxu0 0.0
    %2813 = vmatpush2.msra.mxu0 0.0
    %2814 = vmatprep.subr.mxu0 0.0
    %2815 = vmatpush2.msra.mxu0 0.0
    %2816 = vmatprep.subr.mxu0 0.0
    %2817 = vmatpush2.msra.mxu0 0.0
    %2818 = vmatprep.subr.mxu0 0.0
    %2819 = vmatpush2.msra.mxu0 0.0
    %2820 = vmatprep.subr.mxu0 0.0
    %2821 = vmatpush2.msra.mxu0 0.0
    %2822 = vmatprep.subr.mxu0 0.0
    %2823 = vmatpush2.msra.mxu0 0.0
    %2824 = vmatprep.subr.mxu0 0.0
    %2825 = vmatpush2.msra.mxu0 0.0
    %2826 = vmatprep.subr.mxu0 0.0
    %2827 = vmatpush2.msra.mxu0 %v2698
    %2828 = vmatprep.mubr.f32.mxu0 %v2746
    %2829 = vmatmul.mubr.f32.gmra.mxu0 %v2705
    %v2830 = vpop.f32.mrf.mxu0
    %v2831 = vadd.f32 0.0, %v2830
    %v2832 = vpop.f32.mrf.mxu0
    %2833 = vmatprep.mubr.f32.mxu0 %v2748
    %2834 = vmatmul.mubr.f32.gmra.mxu0 %v2710
    %v2835 = vpop.f32.mrf.mxu0
    %v2836 = vadd.f32 0.0, %v2835
    %v2837 = vpop.f32.mrf.mxu0
    %2838 = vmatprep.mubr.f32.mxu0 %v2750
    %2839 = vmatmul.mubr.f32.gmra.mxu0 %v2714
    %v2840 = vpop.f32.mrf.mxu0
    %v2841 = vadd.f32 0.0, %v2840
    %v2842 = vpop.f32.mrf.mxu0
    %2843 = vmatprep.mubr.f32.mxu0 %v2752
    %2844 = vmatmul.mubr.f32.gmra.mxu0 %v2718
    %v2845 = vpop.f32.mrf.mxu0
    %v2846 = vadd.f32 0.0, %v2845
    %v2847 = vpop.f32.mrf.mxu0
    %2848 = vmatprep.mubr.f32.mxu0 %v2754
    %2849 = vmatmul.mubr.f32.gmra.mxu0 %v2722
    %v2850 = vpop.f32.mrf.mxu0
    %v2851 = vadd.f32 0.0, %v2850
    %v2852 = vpop.f32.mrf.mxu0
    %2853 = vmatprep.mubr.f32.mxu0 %v2756
    %2854 = vmatmul.mubr.f32.gmra.mxu0 %v2726
    %v2855 = vpop.f32.mrf.mxu0
    %v2856 = vadd.f32 0.0, %v2855
    %v2857 = vpop.f32.mrf.mxu0
    %2858 = vmatprep.mubr.f32.mxu0 %v2758
    %2859 = vmatmul.mubr.f32.gmra.mxu0 %v2730
    %v2860 = vpop.f32.mrf.mxu0
    %v2861 = vadd.f32 0.0, %v2860
    %v2862 = vpop.f32.mrf.mxu0
    %2863 = vmatprep.mubr.f32.mxu0 %v2760
    %2864 = vmatmul.mubr.f32.gmra.mxu0 %v2734
    %v2865 = vpop.f32.mrf.mxu0
    %v2866 = vadd.f32 0.0, %v2865
    %v2867 = vpop.f32.mrf.mxu0
    %2868 = vmatprep.mubr.f32.mxu0 %v2762
    %2869 = vmatmul.mubr.f32.gmra.mxu0 %v2733
    %v2870 = vpop.f32.mrf.mxu0
    %v2871 = vadd.f32 0.0, %v2870
    %v2872 = vpop.f32.mrf.mxu0
    %2873 = vdwg.mxu0
    %v2874 = vadd.f32 %v2634, %v2831
    %v2875 = vadd.f32 %v2639, %v2836
    %v2876 = vadd.f32 %v2644, %v2841
    %v2877 = vadd.f32 %v2649, %v2846
    %v2878 = vadd.f32 %v2654, %v2851
    %v2879 = vadd.f32 %v2659, %v2856
    %v2880 = vadd.f32 %v2664, %v2861
    %v2881 = vadd.f32 %v2669, %v2866
    %v2882 = vadd.f32 %v2674, %v2871
    %v2883 = vld [vmem:[#allocation2] sm:$0xf8]
    %v2884 = vld [vmem:[#allocation2 + $0x8] sm:$0xf8]
    %v2885 = vld [vmem:[#allocation2 + $0x80] sm:$0x7f]
    %v2886 = vld [vmem:[#allocation2 + $0x88] sm:$0x7f]
    %s2887 = scalar_lea.vmem %s3, 1632
    %v2888 = vld [vmem:[%s2887] sm:$0xff]
    %v2889 = vld [vmem:[%s2887 + $0x20] sm:$0xff]
    %v2890 = vld [vmem:[%s2887 + $0x40] sm:$0xff]
    %v2891 = vld [vmem:[%s2887 + $0x60] sm:$0xff]
    %v2892 = vld [vmem:[%s2887 + $0x80] sm:$0xff]
    %v2893 = vld [vmem:[%s2887 + $0xa0] sm:$0xff]
    %v2894 = vld [vmem:[%s2887 + $0xc0] sm:$0xff]
    %v2895 = vld [vmem:[%s2887 + $0xe0] sm:$0xff]
    %v2896 = vld [vmem:[%s2887 + $0x100] sm:$0xff]
    %v2897 = vld [vmem:[%s2887 + $0x120] sm:$0xff]
    %v2898 = vld [vmem:[%s2887 + $0x140] sm:$0xff]
    %v2899 = vld [vmem:[%s2887 + $0x160] sm:$0xff]
    %v2900 = vld [vmem:[%s2887 + $0x180] sm:$0xff]
    %v2901 = vld [vmem:[%s2887 + $0x1a0] sm:$0xff]
    %v2902 = vld [vmem:[%s2887 + $0x1c0] sm:$0xff]
    %v2903 = vld [vmem:[%s2887 + $0x1e0] sm:$0xff]
    %v2904 = vld [vmem:[%s2887 + $0x200] sm:$0xff]
    %v2909 = vrot.slane %v2883, 3
    %v2910 = vrot.slane %v2303, 3
    %v2911 = vsel %vm601, %v2909, %v2910
    %v2912 = vrot.slane %v2884, 3
    %v2913 = vrot.slane %v2304, 3
    %v2914 = vsel %vm601, %v2912, %v2913
    %v2915 = vrot.slane %v2305, 3
    %v2916 = vsel %vm601, %v2910, %v2915
    %v2917 = vrot.slane %v2306, 3
    %v2918 = vsel %vm601, %v2913, %v2917
    %v2919 = vrot.slane %v2307, 3
    %v2920 = vsel %vm601, %v2915, %v2919
    %v2921 = vrot.slane %v2308, 3
    %v2922 = vsel %vm601, %v2917, %v2921
    %v2923 = vrot.slane %v2309, 3
    %v2924 = vsel %vm601, %v2919, %v2923
    %v2925 = vrot.slane %v2310, 3
    %v2926 = vsel %vm601, %v2921, %v2925
    %v2927 = vrot.slane %v2311, 3
    %v2928 = vsel %vm601, %v2923, %v2927
    %v2929 = vrot.slane %v2312, 3
    %v2930 = vsel %vm601, %v2925, %v2929
    %v2931 = vrot.slane %v2313, 3
    %v2932 = vsel %vm601, %v2927, %v2931
    %v2933 = vrot.slane %v2314, 3
    %v2934 = vsel %vm601, %v2929, %v2933
    %v2935 = vrot.slane %v2315, 3
    %v2936 = vsel %vm601, %v2931, %v2935
    %v2937 = vrot.slane %v2316, 3
    %v2938 = vsel %vm601, %v2933, %v2937
    %v2939 = vrot.slane %v2885, 3
    %v2940 = vsel %vm601, %v2935, %v2939
    %v2941 = vrot.slane %v2886, 3
    %v2942 = vsel %vm601, %v2937, %v2941
    %v2952 = vsel %vm55, %v2914, 0
    %v2954 = vsel %vm55, %v2918, 0
    %v2956 = vsel %vm55, %v2922, 0
    %v2958 = vsel %vm55, %v2926, 0
    %v2960 = vsel %vm55, %v2930, 0
    %v2962 = vsel %vm55, %v2934, 0
    %v2964 = vsel %vm55, %v2938, 0
    %v2966 = vsel %vm55, %v2942, 0
    %v2968 = vsel %vm55, %v2941, 0
    %2970 = vmatprep.subr.mxu0 0.0
    %2971 = vmatpush1.msra.mxu0 %v2903
    %2972 = vmatprep.subr.mxu0 0.0
    %2973 = vmatpush1.msra.mxu0 %v2902
    %2974 = vmatprep.subr.mxu0 0.0
    %2975 = vmatpush1.msra.mxu0 %v2901
    %2976 = vmatprep.subr.mxu0 0.0
    %2977 = vmatpush1.msra.mxu0 %v2900
    %2978 = vmatprep.subr.mxu0 0.0
    %2979 = vmatpush1.msra.mxu0 %v2899
    %2980 = vmatprep.subr.mxu0 0.0
    %2981 = vmatpush1.msra.mxu0 %v2898
    %2982 = vmatprep.subr.mxu0 0.0
    %2983 = vmatpush1.msra.mxu0 %v2897
    %2984 = vmatprep.subr.mxu0 0.0
    %2985 = vmatpush1.msra.mxu0 %v2896
    %2986 = vmatprep.subr.mxu0 0.0
    %2987 = vmatpush1.msra.mxu0 %v2895
    %2988 = vmatprep.subr.mxu0 0.0
    %2989 = vmatpush1.msra.mxu0 %v2894
    %2990 = vmatprep.subr.mxu0 0.0
    %2991 = vmatpush1.msra.mxu0 %v2893
    %2992 = vmatprep.subr.mxu0 0.0
    %2993 = vmatpush1.msra.mxu0 %v2892
    %2994 = vmatprep.subr.mxu0 0.0
    %2995 = vmatpush1.msra.mxu0 %v2891
    %2996 = vmatprep.subr.mxu0 0.0
    %2997 = vmatpush1.msra.mxu0 %v2890
    %2998 = vmatprep.subr.mxu0 0.0
    %2999 = vmatpush1.msra.mxu0 %v2889
    %3000 = vmatprep.subr.mxu0 0.0
    %3001 = vmatpush1.msra.mxu0 %v2888
    %3002 = vmatprep.subr.mxu0 0.0
    %3003 = vmatpush2.msra.mxu0 0.0
    %3004 = vmatprep.subr.mxu0 0.0
    %3005 = vmatpush2.msra.mxu0 0.0
    %3006 = vmatprep.subr.mxu0 0.0
    %3007 = vmatpush2.msra.mxu0 0.0
    %3008 = vmatprep.subr.mxu0 0.0
    %3009 = vmatpush2.msra.mxu0 0.0
    %3010 = vmatprep.subr.mxu0 0.0
    %3011 = vmatpush2.msra.mxu0 0.0
    %3012 = vmatprep.subr.mxu0 0.0
    %3013 = vmatpush2.msra.mxu0 0.0
    %3014 = vmatprep.subr.mxu0 0.0
    %3015 = vmatpush2.msra.mxu0 0.0
    %3016 = vmatprep.subr.mxu0 0.0
    %3017 = vmatpush2.msra.mxu0 0.0
    %3018 = vmatprep.subr.mxu0 0.0
    %3019 = vmatpush2.msra.mxu0 0.0
    %3020 = vmatprep.subr.mxu0 0.0
    %3021 = vmatpush2.msra.mxu0 0.0
    %3022 = vmatprep.subr.mxu0 0.0
    %3023 = vmatpush2.msra.mxu0 0.0
    %3024 = vmatprep.subr.mxu0 0.0
    %3025 = vmatpush2.msra.mxu0 0.0
    %3026 = vmatprep.subr.mxu0 0.0
    %3027 = vmatpush2.msra.mxu0 0.0
    %3028 = vmatprep.subr.mxu0 0.0
    %3029 = vmatpush2.msra.mxu0 0.0
    %3030 = vmatprep.subr.mxu0 0.0
    %3031 = vmatpush2.msra.mxu0 0.0
    %3032 = vmatprep.subr.mxu0 0.0
    %3033 = vmatpush2.msra.mxu0 %v2904
    %3034 = vmatprep.mubr.f32.mxu0 %v2952
    %3035 = vmatmul.mubr.f32.gmra.mxu0 %v2911
    %v3036 = vpop.f32.mrf.mxu0
    %v3037 = vadd.f32 0.0, %v3036
    %v3038 = vpop.f32.mrf.mxu0
    %3039 = vmatprep.mubr.f32.mxu0 %v2954
    %3040 = vmatmul.mubr.f32.gmra.mxu0 %v2916
    %v3041 = vpop.f32.mrf.mxu0
    %v3042 = vadd.f32 0.0, %v3041
    %v3043 = vpop.f32.mrf.mxu0
    %3044 = vmatprep.mubr.f32.mxu0 %v2956
    %3045 = vmatmul.mubr.f32.gmra.mxu0 %v2920
    %v3046 = vpop.f32.mrf.mxu0
    %v3047 = vadd.f32 0.0, %v3046
    %v3048 = vpop.f32.mrf.mxu0
    %3049 = vmatprep.mubr.f32.mxu0 %v2958
    %3050 = vmatmul.mubr.f32.gmra.mxu0 %v2924
    %v3051 = vpop.f32.mrf.mxu0
    %v3052 = vadd.f32 0.0, %v3051
    %v3053 = vpop.f32.mrf.mxu0
    %3054 = vmatprep.mubr.f32.mxu0 %v2960
    %3055 = vmatmul.mubr.f32.gmra.mxu0 %v2928
    %v3056 = vpop.f32.mrf.mxu0
    %v3057 = vadd.f32 0.0, %v3056
    %v3058 = vpop.f32.mrf.mxu0
    %3059 = vmatprep.mubr.f32.mxu0 %v2962
    %3060 = vmatmul.mubr.f32.gmra.mxu0 %v2932
    %v3061 = vpop.f32.mrf.mxu0
    %v3062 = vadd.f32 0.0, %v3061
    %v3063 = vpop.f32.mrf.mxu0
    %3064 = vmatprep.mubr.f32.mxu0 %v2964
    %3065 = vmatmul.mubr.f32.gmra.mxu0 %v2936
    %v3066 = vpop.f32.mrf.mxu0
    %v3067 = vadd.f32 0.0, %v3066
    %v3068 = vpop.f32.mrf.mxu0
    %3069 = vmatprep.mubr.f32.mxu0 %v2966
    %3070 = vmatmul.mubr.f32.gmra.mxu0 %v2940
    %v3071 = vpop.f32.mrf.mxu0
    %v3072 = vadd.f32 0.0, %v3071
    %v3073 = vpop.f32.mrf.mxu0
    %3074 = vmatprep.mubr.f32.mxu0 %v2968
    %3075 = vmatmul.mubr.f32.gmra.mxu0 %v2939
    %v3076 = vpop.f32.mrf.mxu0
    %v3077 = vadd.f32 0.0, %v3076
    %v3078 = vpop.f32.mrf.mxu0
    %3079 = vdwg.mxu0
    %v3080 = vadd.f32 %v2874, %v3037
    %v3081 = vadd.f32 %v2875, %v3042
    %v3082 = vadd.f32 %v2876, %v3047
    %v3083 = vadd.f32 %v2877, %v3052
    %v3084 = vadd.f32 %v2878, %v3057
    %v3085 = vadd.f32 %v2879, %v3062
    %v3086 = vadd.f32 %v2880, %v3067
    %v3087 = vadd.f32 %v2881, %v3072
    %v3088 = vadd.f32 %v2882, %v3077
    %v3089 = vld [vmem:[#allocation2] sm:$0xf0]
    %v3090 = vld [vmem:[#allocation2 + $0x8] sm:$0xf0]
    %v3091 = vld [vmem:[#allocation2 + $0x80] sm:$0xff]
    %v3092 = vld [vmem:[#allocation2 + $0x88] sm:$0xff]
    %s3093 = scalar_lea.vmem %s3, 2176
    %v3094 = vld [vmem:[%s3093] sm:$0xff]
    %v3095 = vld [vmem:[%s3093 + $0x20] sm:$0xff]
    %v3096 = vld [vmem:[%s3093 + $0x40] sm:$0xff]
    %v3097 = vld [vmem:[%s3093 + $0x60] sm:$0xff]
    %v3098 = vld [vmem:[%s3093 + $0x80] sm:$0xff]
    %v3099 = vld [vmem:[%s3093 + $0xa0] sm:$0xff]
    %v3100 = vld [vmem:[%s3093 + $0xc0] sm:$0xff]
    %v3101 = vld [vmem:[%s3093 + $0xe0] sm:$0xff]
    %v3102 = vld [vmem:[%s3093 + $0x100] sm:$0xff]
    %v3103 = vld [vmem:[%s3093 + $0x120] sm:$0xff]
    %v3104 = vld [vmem:[%s3093 + $0x140] sm:$0xff]
    %v3105 = vld [vmem:[%s3093 + $0x160] sm:$0xff]
    %v3106 = vld [vmem:[%s3093 + $0x180] sm:$0xff]
    %v3107 = vld [vmem:[%s3093 + $0x1a0] sm:$0xff]
    %v3108 = vld [vmem:[%s3093 + $0x1c0] sm:$0xff]
    %v3109 = vld [vmem:[%s3093 + $0x1e0] sm:$0xff]
    %v3110 = vld [vmem:[%s3093 + $0x200] sm:$0xff]
    %vm3115 = vcmask 1043456
    %v3116 = vrot.slane %v3089, 4
    %v3117 = vrot.slane %v2303, 4
    %v3118 = vsel %vm3115, %v3116, %v3117
    %v3119 = vrot.slane %v3090, 4
    %v3120 = vrot.slane %v2304, 4
    %v3121 = vsel %vm3115, %v3119, %v3120
    %v3122 = vrot.slane %v2305, 4
    %v3123 = vsel %vm3115, %v3117, %v3122
    %v3124 = vrot.slane %v2306, 4
    %v3125 = vsel %vm3115, %v3120, %v3124
    %v3126 = vrot.slane %v2307, 4
    %v3127 = vsel %vm3115, %v3122, %v3126
    %v3128 = vrot.slane %v2308, 4
    %v3129 = vsel %vm3115, %v3124, %v3128
    %v3130 = vrot.slane %v2309, 4
    %v3131 = vsel %vm3115, %v3126, %v3130
    %v3132 = vrot.slane %v2310, 4
    %v3133 = vsel %vm3115, %v3128, %v3132
    %v3134 = vrot.slane %v2311, 4
    %v3135 = vsel %vm3115, %v3130, %v3134
    %v3136 = vrot.slane %v2312, 4
    %v3137 = vsel %vm3115, %v3132, %v3136
    %v3138 = vrot.slane %v2313, 4
    %v3139 = vsel %vm3115, %v3134, %v3138
    %v3140 = vrot.slane %v2314, 4
    %v3141 = vsel %vm3115, %v3136, %v3140
    %v3142 = vrot.slane %v2315, 4
    %v3143 = vsel %vm3115, %v3138, %v3142
    %v3144 = vrot.slane %v2316, 4
    %v3145 = vsel %vm3115, %v3140, %v3144
    %v3146 = vrot.slane %v3091, 4
    %v3147 = vsel %vm3115, %v3142, %v3146
    %v3148 = vrot.slane %v3092, 4
    %v3149 = vsel %vm3115, %v3144, %v3148
    %v3159 = vsel %vm55, %v3121, 0
    %v3161 = vsel %vm55, %v3125, 0
    %v3163 = vsel %vm55, %v3129, 0
    %v3165 = vsel %vm55, %v3133, 0
    %v3167 = vsel %vm55, %v3137, 0
    %v3169 = vsel %vm55, %v3141, 0
    %v3171 = vsel %vm55, %v3145, 0
    %v3173 = vsel %vm55, %v3149, 0
    %v3175 = vsel %vm55, %v3148, 0
    %3177 = vmatprep.subr.mxu0 0.0
    %3178 = vmatpush1.msra.mxu0 %v3109
    %3179 = vmatprep.subr.mxu0 0.0
    %3180 = vmatpush1.msra.mxu0 %v3108
    %3181 = vmatprep.subr.mxu0 0.0
    %3182 = vmatpush1.msra.mxu0 %v3107
    %3183 = vmatprep.subr.mxu0 0.0
    %3184 = vmatpush1.msra.mxu0 %v3106
    %3185 = vmatprep.subr.mxu0 0.0
    %3186 = vmatpush1.msra.mxu0 %v3105
    %3187 = vmatprep.subr.mxu0 0.0
    %3188 = vmatpush1.msra.mxu0 %v3104
    %3189 = vmatprep.subr.mxu0 0.0
    %3190 = vmatpush1.msra.mxu0 %v3103
    %3191 = vmatprep.subr.mxu0 0.0
    %3192 = vmatpush1.msra.mxu0 %v3102
    %3193 = vmatprep.subr.mxu0 0.0
    %3194 = vmatpush1.msra.mxu0 %v3101
    %3195 = vmatprep.subr.mxu0 0.0
    %3196 = vmatpush1.msra.mxu0 %v3100
    %3197 = vmatprep.subr.mxu0 0.0
    %3198 = vmatpush1.msra.mxu0 %v3099
    %3199 = vmatprep.subr.mxu0 0.0
    %3200 = vmatpush1.msra.mxu0 %v3098
    %3201 = vmatprep.subr.mxu0 0.0
    %3202 = vmatpush1.msra.mxu0 %v3097
    %3203 = vmatprep.subr.mxu0 0.0
    %3204 = vmatpush1.msra.mxu0 %v3096
    %3205 = vmatprep.subr.mxu0 0.0
    %3206 = vmatpush1.msra.mxu0 %v3095
    %3207 = vmatprep.subr.mxu0 0.0
    %3208 = vmatpush1.msra.mxu0 %v3094
    %3209 = vmatprep.subr.mxu0 0.0
    %3210 = vmatpush2.msra.mxu0 0.0
    %3211 = vmatprep.subr.mxu0 0.0
    %3212 = vmatpush2.msra.mxu0 0.0
    %3213 = vmatprep.subr.mxu0 0.0
    %3214 = vmatpush2.msra.mxu0 0.0
    %3215 = vmatprep.subr.mxu0 0.0
    %3216 = vmatpush2.msra.mxu0 0.0
    %3217 = vmatprep.subr.mxu0 0.0
    %3218 = vmatpush2.msra.mxu0 0.0
    %3219 = vmatprep.subr.mxu0 0.0
    %3220 = vmatpush2.msra.mxu0 0.0
    %3221 = vmatprep.subr.mxu0 0.0
    %3222 = vmatpush2.msra.mxu0 0.0
    %3223 = vmatprep.subr.mxu0 0.0
    %3224 = vmatpush2.msra.mxu0 0.0
    %3225 = vmatprep.subr.mxu0 0.0
    %3226 = vmatpush2.msra.mxu0 0.0
    %3227 = vmatprep.subr.mxu0 0.0
    %3228 = vmatpush2.msra.mxu0 0.0
    %3229 = vmatprep.subr.mxu0 0.0
    %3230 = vmatpush2.msra.mxu0 0.0
    %3231 = vmatprep.subr.mxu0 0.0
    %3232 = vmatpush2.msra.mxu0 0.0
    %3233 = vmatprep.subr.mxu0 0.0
    %3234 = vmatpush2.msra.mxu0 0.0
    %3235 = vmatprep.subr.mxu0 0.0
    %3236 = vmatpush2.msra.mxu0 0.0
    %3237 = vmatprep.subr.mxu0 0.0
    %3238 = vmatpush2.msra.mxu0 0.0
    %3239 = vmatprep.subr.mxu0 0.0
    %3240 = vmatpush2.msra.mxu0 %v3110
    %3241 = vmatprep.mubr.f32.mxu0 %v3159
    %3242 = vmatmul.mubr.f32.gmra.mxu0 %v3118
    %v3243 = vpop.f32.mrf.mxu0
    %v3244 = vadd.f32 0.0, %v3243
    %v3245 = vpop.f32.mrf.mxu0
    %3246 = vmatprep.mubr.f32.mxu0 %v3161
    %3247 = vmatmul.mubr.f32.gmra.mxu0 %v3123
    %v3248 = vpop.f32.mrf.mxu0
    %v3249 = vadd.f32 0.0, %v3248
    %v3250 = vpop.f32.mrf.mxu0
    %3251 = vmatprep.mubr.f32.mxu0 %v3163
    %3252 = vmatmul.mubr.f32.gmra.mxu0 %v3127
    %v3253 = vpop.f32.mrf.mxu0
    %v3254 = vadd.f32 0.0, %v3253
    %v3255 = vpop.f32.mrf.mxu0
    %3256 = vmatprep.mubr.f32.mxu0 %v3165
    %3257 = vmatmul.mubr.f32.gmra.mxu0 %v3131
    %v3258 = vpop.f32.mrf.mxu0
    %v3259 = vadd.f32 0.0, %v3258
    %v3260 = vpop.f32.mrf.mxu0
    %3261 = vmatprep.mubr.f32.mxu0 %v3167
    %3262 = vmatmul.mubr.f32.gmra.mxu0 %v3135
    %v3263 = vpop.f32.mrf.mxu0
    %v3264 = vadd.f32 0.0, %v3263
    %v3265 = vpop.f32.mrf.mxu0
    %3266 = vmatprep.mubr.f32.mxu0 %v3169
    %3267 = vmatmul.mubr.f32.gmra.mxu0 %v3139
    %v3268 = vpop.f32.mrf.mxu0
    %v3269 = vadd.f32 0.0, %v3268
    %v3270 = vpop.f32.mrf.mxu0
    %3271 = vmatprep.mubr.f32.mxu0 %v3171
    %3272 = vmatmul.mubr.f32.gmra.mxu0 %v3143
    %v3273 = vpop.f32.mrf.mxu0
    %v3274 = vadd.f32 0.0, %v3273
    %v3275 = vpop.f32.mrf.mxu0
    %3276 = vmatprep.mubr.f32.mxu0 %v3173
    %3277 = vmatmul.mubr.f32.gmra.mxu0 %v3147
    %v3278 = vpop.f32.mrf.mxu0
    %v3279 = vadd.f32 0.0, %v3278
    %v3280 = vpop.f32.mrf.mxu0
    %3281 = vmatprep.mubr.f32.mxu0 %v3175
    %3282 = vmatmul.mubr.f32.gmra.mxu0 %v3146
    %v3283 = vpop.f32.mrf.mxu0
    %v3284 = vadd.f32 0.0, %v3283
    %v3285 = vpop.f32.mrf.mxu0
    %3286 = vdwg.mxu0
    %v3287 = vadd.f32 %v3080, %v3244
    %v3288 = vadd.f32 %v3081, %v3249
    %v3289 = vadd.f32 %v3082, %v3254
    %v3290 = vadd.f32 %v3083, %v3259
    %v3291 = vadd.f32 %v3084, %v3264
    %v3292 = vadd.f32 %v3085, %v3269
    %v3293 = vadd.f32 %v3086, %v3274
    %v3294 = vadd.f32 %v3087, %v3279
    %v3295 = vadd.f32 %v3088, %v3284
    %v3296 = vld [vmem:[#allocation2] sm:$0xe0]
    %v3297 = vld [vmem:[#allocation2 + $0x8] sm:$0xe0]
    %v3298 = vld [vmem:[#allocation2 + $0x10] sm:$0xff]
    %v3299 = vld [vmem:[#allocation2 + $0x18] sm:$0xff]
    %v3300 = vld [vmem:[#allocation2 + $0x20] sm:$0xff]
    %v3301 = vld [vmem:[#allocation2 + $0x28] sm:$0xff]
    %v3302 = vld [vmem:[#allocation2 + $0x30] sm:$0xff]
    %v3303 = vld [vmem:[#allocation2 + $0x38] sm:$0xff]
    %v3304 = vld [vmem:[#allocation2 + $0x40] sm:$0xff]
    %v3305 = vld [vmem:[#allocation2 + $0x48] sm:$0xff]
    %v3306 = vld [vmem:[#allocation2 + $0x50] sm:$0xff]
    %v3307 = vld [vmem:[#allocation2 + $0x58] sm:$0xff]
    %v3308 = vld [vmem:[#allocation2 + $0x60] sm:$0xff]
    %v3309 = vld [vmem:[#allocation2 + $0x68] sm:$0xff]
    %v3310 = vld [vmem:[#allocation2 + $0x70] sm:$0xff]
    %v3311 = vld [vmem:[#allocation2 + $0x78] sm:$0xff]
    %v3312 = vld [vmem:[#allocation2 + $0x80] sm:$0xff]
    %v3313 = vld [vmem:[#allocation2 + $0x88] sm:$0xff]
    %v3314 = vld [vmem:[#allocation2 + $0x90] sm:$0x1]
    %v3315 = vld [vmem:[#allocation2 + $0x98] sm:$0x1]
    %s3316 = scalar_lea.vmem %s3, 2720
    %v3317 = vld [vmem:[%s3316] sm:$0xff]
    %v3318 = vld [vmem:[%s3316 + $0x20] sm:$0xff]
    %v3319 = vld [vmem:[%s3316 + $0x40] sm:$0xff]
    %v3320 = vld [vmem:[%s3316 + $0x60] sm:$0xff]
    %v3321 = vld [vmem:[%s3316 + $0x80] sm:$0xff]
    %v3322 = vld [vmem:[%s3316 + $0xa0] sm:$0xff]
    %v3323 = vld [vmem:[%s3316 + $0xc0] sm:$0xff]
    %v3324 = vld [vmem:[%s3316 + $0xe0] sm:$0xff]
    %v3325 = vld [vmem:[%s3316 + $0x100] sm:$0xff]
    %v3326 = vld [vmem:[%s3316 + $0x120] sm:$0xff]
    %v3327 = vld [vmem:[%s3316 + $0x140] sm:$0xff]
    %v3328 = vld [vmem:[%s3316 + $0x160] sm:$0xff]
    %v3329 = vld [vmem:[%s3316 + $0x180] sm:$0xff]
    %v3330 = vld [vmem:[%s3316 + $0x1a0] sm:$0xff]
    %v3331 = vld [vmem:[%s3316 + $0x1c0] sm:$0xff]
    %v3332 = vld [vmem:[%s3316 + $0x1e0] sm:$0xff]
    %v3333 = vld [vmem:[%s3316 + $0x200] sm:$0xff]
    %v3354 = vrot.slane %v3296, 5
    %v3355 = vrot.slane %v3298, 5
    %v3356 = vsel %vm570, %v3354, %v3355
    %v3357 = vrot.slane %v3297, 5
    %v3358 = vrot.slane %v3299, 5
    %v3359 = vsel %vm570, %v3357, %v3358
    %v3360 = vrot.slane %v3300, 5
    %v3361 = vsel %vm570, %v3355, %v3360
    %v3362 = vrot.slane %v3301, 5
    %v3363 = vsel %vm570, %v3358, %v3362
    %v3364 = vrot.slane %v3302, 5
    %v3365 = vsel %vm570, %v3360, %v3364
    %v3366 = vrot.slane %v3303, 5
    %v3367 = vsel %vm570, %v3362, %v3366
    %v3368 = vrot.slane %v3304, 5
    %v3369 = vsel %vm570, %v3364, %v3368
    %v3370 = vrot.slane %v3305, 5
    %v3371 = vsel %vm570, %v3366, %v3370
    %v3372 = vrot.slane %v3306, 5
    %v3373 = vsel %vm570, %v3368, %v3372
    %v3374 = vrot.slane %v3307, 5
    %v3375 = vsel %vm570, %v3370, %v3374
    %v3376 = vrot.slane %v3308, 5
    %v3377 = vsel %vm570, %v3372, %v3376
    %v3378 = vrot.slane %v3309, 5
    %v3379 = vsel %vm570, %v3374, %v3378
    %v3380 = vrot.slane %v3310, 5
    %v3381 = vsel %vm570, %v3376, %v3380
    %v3382 = vrot.slane %v3311, 5
    %v3383 = vsel %vm570, %v3378, %v3382
    %v3384 = vrot.slane %v3312, 5
    %v3385 = vsel %vm570, %v3380, %v3384
    %v3386 = vrot.slane %v3313, 5
    %v3387 = vsel %vm570, %v3382, %v3386
    %v3388 = vrot.slane %v3314, 5
    %v3389 = vsel %vm570, %v3384, %v3388
    %v3390 = vrot.slane %v3315, 5
    %v3391 = vsel %vm570, %v3386, %v3390
    %v3401 = vsel %vm55, %v3359, 0
    %v3403 = vsel %vm55, %v3363, 0
    %v3405 = vsel %vm55, %v3367, 0
    %v3407 = vsel %vm55, %v3371, 0
    %v3409 = vsel %vm55, %v3375, 0
    %v3411 = vsel %vm55, %v3379, 0
    %v3413 = vsel %vm55, %v3383, 0
    %v3415 = vsel %vm55, %v3387, 0
    %v3417 = vsel %vm55, %v3391, 0
    %3419 = vmatprep.subr.mxu0 0.0
    %3420 = vmatpush1.msra.mxu0 %v3332
    %3421 = vmatprep.subr.mxu0 0.0
    %3422 = vmatpush1.msra.mxu0 %v3331
    %3423 = vmatprep.subr.mxu0 0.0
    %3424 = vmatpush1.msra.mxu0 %v3330
    %3425 = vmatprep.subr.mxu0 0.0
    %3426 = vmatpush1.msra.mxu0 %v3329
    %3427 = vmatprep.subr.mxu0 0.0
    %3428 = vmatpush1.msra.mxu0 %v3328
    %3429 = vmatprep.subr.mxu0 0.0
    %3430 = vmatpush1.msra.mxu0 %v3327
    %3431 = vmatprep.subr.mxu0 0.0
    %3432 = vmatpush1.msra.mxu0 %v3326
    %3433 = vmatprep.subr.mxu0 0.0
    %3434 = vmatpush1.msra.mxu0 %v3325
    %3435 = vmatprep.subr.mxu0 0.0
    %3436 = vmatpush1.msra.mxu0 %v3324
    %3437 = vmatprep.subr.mxu0 0.0
    %3438 = vmatpush1.msra.mxu0 %v3323
    %3439 = vmatprep.subr.mxu0 0.0
    %3440 = vmatpush1.msra.mxu0 %v3322
    %3441 = vmatprep.subr.mxu0 0.0
    %3442 = vmatpush1.msra.mxu0 %v3321
    %3443 = vmatprep.subr.mxu0 0.0
    %3444 = vmatpush1.msra.mxu0 %v3320
    %3445 = vmatprep.subr.mxu0 0.0
    %3446 = vmatpush1.msra.mxu0 %v3319
    %3447 = vmatprep.subr.mxu0 0.0
    %3448 = vmatpush1.msra.mxu0 %v3318
    %3449 = vmatprep.subr.mxu0 0.0
    %3450 = vmatpush1.msra.mxu0 %v3317
    %3451 = vmatprep.subr.mxu0 0.0
    %3452 = vmatpush2.msra.mxu0 0.0
    %3453 = vmatprep.subr.mxu0 0.0
    %3454 = vmatpush2.msra.mxu0 0.0
    %3455 = vmatprep.subr.mxu0 0.0
    %3456 = vmatpush2.msra.mxu0 0.0
    %3457 = vmatprep.subr.mxu0 0.0
    %3458 = vmatpush2.msra.mxu0 0.0
    %3459 = vmatprep.subr.mxu0 0.0
    %3460 = vmatpush2.msra.mxu0 0.0
    %3461 = vmatprep.subr.mxu0 0.0
    %3462 = vmatpush2.msra.mxu0 0.0
    %3463 = vmatprep.subr.mxu0 0.0
    %3464 = vmatpush2.msra.mxu0 0.0
    %3465 = vmatprep.subr.mxu0 0.0
    %3466 = vmatpush2.msra.mxu0 0.0
    %3467 = vmatprep.subr.mxu0 0.0
    %3468 = vmatpush2.msra.mxu0 0.0
    %3469 = vmatprep.subr.mxu0 0.0
    %3470 = vmatpush2.msra.mxu0 0.0
    %3471 = vmatprep.subr.mxu0 0.0
    %3472 = vmatpush2.msra.mxu0 0.0
    %3473 = vmatprep.subr.mxu0 0.0
    %3474 = vmatpush2.msra.mxu0 0.0
    %3475 = vmatprep.subr.mxu0 0.0
    %3476 = vmatpush2.msra.mxu0 0.0
    %3477 = vmatprep.subr.mxu0 0.0
    %3478 = vmatpush2.msra.mxu0 0.0
    %3479 = vmatprep.subr.mxu0 0.0
    %3480 = vmatpush2.msra.mxu0 0.0
    %3481 = vmatprep.subr.mxu0 0.0
    %3482 = vmatpush2.msra.mxu0 %v3333
    %3483 = vmatprep.mubr.f32.mxu0 %v3401
    %3484 = vmatmul.mubr.f32.gmra.mxu0 %v3356
    %v3485 = vpop.f32.mrf.mxu0
    %v3486 = vadd.f32 0.0, %v3485
    %v3487 = vpop.f32.mrf.mxu0
    %3488 = vmatprep.mubr.f32.mxu0 %v3403
    %3489 = vmatmul.mubr.f32.gmra.mxu0 %v3361
    %v3490 = vpop.f32.mrf.mxu0
    %v3491 = vadd.f32 0.0, %v3490
    %v3492 = vpop.f32.mrf.mxu0
    %3493 = vmatprep.mubr.f32.mxu0 %v3405
    %3494 = vmatmul.mubr.f32.gmra.mxu0 %v3365
    %v3495 = vpop.f32.mrf.mxu0
    %v3496 = vadd.f32 0.0, %v3495
    %v3497 = vpop.f32.mrf.mxu0
    %3498 = vmatprep.mubr.f32.mxu0 %v3407
    %3499 = vmatmul.mubr.f32.gmra.mxu0 %v3369
    %v3500 = vpop.f32.mrf.mxu0
    %v3501 = vadd.f32 0.0, %v3500
    %v3502 = vpop.f32.mrf.mxu0
    %3503 = vmatprep.mubr.f32.mxu0 %v3409
    %3504 = vmatmul.mubr.f32.gmra.mxu0 %v3373
    %v3505 = vpop.f32.mrf.mxu0
    %v3506 = vadd.f32 0.0, %v3505
    %v3507 = vpop.f32.mrf.mxu0
    %3508 = vmatprep.mubr.f32.mxu0 %v3411
    %3509 = vmatmul.mubr.f32.gmra.mxu0 %v3377
    %v3510 = vpop.f32.mrf.mxu0
    %v3511 = vadd.f32 0.0, %v3510
    %v3512 = vpop.f32.mrf.mxu0
    %3513 = vmatprep.mubr.f32.mxu0 %v3413
    %3514 = vmatmul.mubr.f32.gmra.mxu0 %v3381
    %v3515 = vpop.f32.mrf.mxu0
    %v3516 = vadd.f32 0.0, %v3515
    %v3517 = vpop.f32.mrf.mxu0
    %3518 = vmatprep.mubr.f32.mxu0 %v3415
    %3519 = vmatmul.mubr.f32.gmra.mxu0 %v3385
    %v3520 = vpop.f32.mrf.mxu0
    %v3521 = vadd.f32 0.0, %v3520
    %v3522 = vpop.f32.mrf.mxu0
    %3523 = vmatprep.mubr.f32.mxu0 %v3417
    %3524 = vmatmul.mubr.f32.gmra.mxu0 %v3389
    %v3525 = vpop.f32.mrf.mxu0
    %v3526 = vadd.f32 0.0, %v3525
    %v3527 = vpop.f32.mrf.mxu0
    %3528 = vdwg.mxu0
    %v3529 = vadd.f32 %v3287, %v3486
    %v3530 = vadd.f32 %v3288, %v3491
    %v3531 = vadd.f32 %v3289, %v3496
    %v3532 = vadd.f32 %v3290, %v3501
    %v3533 = vadd.f32 %v3291, %v3506
    %v3534 = vadd.f32 %v3292, %v3511
    %v3535 = vadd.f32 %v3293, %v3516
    %v3536 = vadd.f32 %v3294, %v3521
    %v3537 = vadd.f32 %v3295, %v3526
    %v3538 = vld [vmem:[#allocation2] sm:$0xc0]
    %v3539 = vld [vmem:[#allocation2 + $0x8] sm:$0xc0]
    %v3540 = vld [vmem:[#allocation2 + $0x90] sm:$0x3]
    %v3541 = vld [vmem:[#allocation2 + $0x98] sm:$0x3]
    %s3542 = scalar_lea.vmem %s3, 3264
    %v3543 = vld [vmem:[%s3542] sm:$0xff]
    %v3544 = vld [vmem:[%s3542 + $0x20] sm:$0xff]
    %v3545 = vld [vmem:[%s3542 + $0x40] sm:$0xff]
    %v3546 = vld [vmem:[%s3542 + $0x60] sm:$0xff]
    %v3547 = vld [vmem:[%s3542 + $0x80] sm:$0xff]
    %v3548 = vld [vmem:[%s3542 + $0xa0] sm:$0xff]
    %v3549 = vld [vmem:[%s3542 + $0xc0] sm:$0xff]
    %v3550 = vld [vmem:[%s3542 + $0xe0] sm:$0xff]
    %v3551 = vld [vmem:[%s3542 + $0x100] sm:$0xff]
    %v3552 = vld [vmem:[%s3542 + $0x120] sm:$0xff]
    %v3553 = vld [vmem:[%s3542 + $0x140] sm:$0xff]
    %v3554 = vld [vmem:[%s3542 + $0x160] sm:$0xff]
    %v3555 = vld [vmem:[%s3542 + $0x180] sm:$0xff]
    %v3556 = vld [vmem:[%s3542 + $0x1a0] sm:$0xff]
    %v3557 = vld [vmem:[%s3542 + $0x1c0] sm:$0xff]
    %v3558 = vld [vmem:[%s3542 + $0x1e0] sm:$0xff]
    %v3559 = vld [vmem:[%s3542 + $0x200] sm:$0xff]
    %vm3564 = vcmask 1041408
    %v3565 = vrot.slane %v3538, 6
    %v3566 = vrot.slane %v3298, 6
    %v3567 = vsel %vm3564, %v3565, %v3566
    %v3568 = vrot.slane %v3539, 6
    %v3569 = vrot.slane %v3299, 6
    %v3570 = vsel %vm3564, %v3568, %v3569
    %v3571 = vrot.slane %v3300, 6
    %v3572 = vsel %vm3564, %v3566, %v3571
    %v3573 = vrot.slane %v3301, 6
    %v3574 = vsel %vm3564, %v3569, %v3573
    %v3575 = vrot.slane %v3302, 6
    %v3576 = vsel %vm3564, %v3571, %v3575
    %v3577 = vrot.slane %v3303, 6
    %v3578 = vsel %vm3564, %v3573, %v3577
    %v3579 = vrot.slane %v3304, 6
    %v3580 = vsel %vm3564, %v3575, %v3579
    %v3581 = vrot.slane %v3305, 6
    %v3582 = vsel %vm3564, %v3577, %v3581
    %v3583 = vrot.slane %v3306, 6
    %v3584 = vsel %vm3564, %v3579, %v3583
    %v3585 = vrot.slane %v3307, 6
    %v3586 = vsel %vm3564, %v3581, %v3585
    %v3587 = vrot.slane %v3308, 6
    %v3588 = vsel %vm3564, %v3583, %v3587
    %v3589 = vrot.slane %v3309, 6
    %v3590 = vsel %vm3564, %v3585, %v3589
    %v3591 = vrot.slane %v3310, 6
    %v3592 = vsel %vm3564, %v3587, %v3591
    %v3593 = vrot.slane %v3311, 6
    %v3594 = vsel %vm3564, %v3589, %v3593
    %v3595 = vrot.slane %v3312, 6
    %v3596 = vsel %vm3564, %v3591, %v3595
    %v3597 = vrot.slane %v3313, 6
    %v3598 = vsel %vm3564, %v3593, %v3597
    %v3599 = vrot.slane %v3540, 6
    %v3600 = vsel %vm3564, %v3595, %v3599
    %v3601 = vrot.slane %v3541, 6
    %v3602 = vsel %vm3564, %v3597, %v3601
    %v3612 = vsel %vm55, %v3570, 0
    %v3614 = vsel %vm55, %v3574, 0
    %v3616 = vsel %vm55, %v3578, 0
    %v3618 = vsel %vm55, %v3582, 0
    %v3620 = vsel %vm55, %v3586, 0
    %v3622 = vsel %vm55, %v3590, 0
    %v3624 = vsel %vm55, %v3594, 0
    %v3626 = vsel %vm55, %v3598, 0
    %v3628 = vsel %vm55, %v3602, 0
    %3630 = vmatprep.subr.mxu0 0.0
    %3631 = vmatpush1.msra.mxu0 %v3558
    %3632 = vmatprep.subr.mxu0 0.0
    %3633 = vmatpush1.msra.mxu0 %v3557
    %3634 = vmatprep.subr.mxu0 0.0
    %3635 = vmatpush1.msra.mxu0 %v3556
    %3636 = vmatprep.subr.mxu0 0.0
    %3637 = vmatpush1.msra.mxu0 %v3555
    %3638 = vmatprep.subr.mxu0 0.0
    %3639 = vmatpush1.msra.mxu0 %v3554
    %3640 = vmatprep.subr.mxu0 0.0
    %3641 = vmatpush1.msra.mxu0 %v3553
    %3642 = vmatprep.subr.mxu0 0.0
    %3643 = vmatpush1.msra.mxu0 %v3552
    %3644 = vmatprep.subr.mxu0 0.0
    %3645 = vmatpush1.msra.mxu0 %v3551
    %3646 = vmatprep.subr.mxu0 0.0
    %3647 = vmatpush1.msra.mxu0 %v3550
    %3648 = vmatprep.subr.mxu0 0.0
    %3649 = vmatpush1.msra.mxu0 %v3549
    %3650 = vmatprep.subr.mxu0 0.0
    %3651 = vmatpush1.msra.mxu0 %v3548
    %3652 = vmatprep.subr.mxu0 0.0
    %3653 = vmatpush1.msra.mxu0 %v3547
    %3654 = vmatprep.subr.mxu0 0.0
    %3655 = vmatpush1.msra.mxu0 %v3546
    %3656 = vmatprep.subr.mxu0 0.0
    %3657 = vmatpush1.msra.mxu0 %v3545
    %3658 = vmatprep.subr.mxu0 0.0
    %3659 = vmatpush1.msra.mxu0 %v3544
    %3660 = vmatprep.subr.mxu0 0.0
    %3661 = vmatpush1.msra.mxu0 %v3543
    %3662 = vmatprep.subr.mxu0 0.0
    %3663 = vmatpush2.msra.mxu0 0.0
    %3664 = vmatprep.subr.mxu0 0.0
    %3665 = vmatpush2.msra.mxu0 0.0
    %3666 = vmatprep.subr.mxu0 0.0
    %3667 = vmatpush2.msra.mxu0 0.0
    %3668 = vmatprep.subr.mxu0 0.0
    %3669 = vmatpush2.msra.mxu0 0.0
    %3670 = vmatprep.subr.mxu0 0.0
    %3671 = vmatpush2.msra.mxu0 0.0
    %3672 = vmatprep.subr.mxu0 0.0
    %3673 = vmatpush2.msra.mxu0 0.0
    %3674 = vmatprep.subr.mxu0 0.0
    %3675 = vmatpush2.msra.mxu0 0.0
    %3676 = vmatprep.subr.mxu0 0.0
    %3677 = vmatpush2.msra.mxu0 0.0
    %3678 = vmatprep.subr.mxu0 0.0
    %3679 = vmatpush2.msra.mxu0 0.0
    %3680 = vmatprep.subr.mxu0 0.0
    %3681 = vmatpush2.msra.mxu0 0.0
    %3682 = vmatprep.subr.mxu0 0.0
    %3683 = vmatpush2.msra.mxu0 0.0
    %3684 = vmatprep.subr.mxu0 0.0
    %3685 = vmatpush2.msra.mxu0 0.0
    %3686 = vmatprep.subr.mxu0 0.0
    %3687 = vmatpush2.msra.mxu0 0.0
    %3688 = vmatprep.subr.mxu0 0.0
    %3689 = vmatpush2.msra.mxu0 0.0
    %3690 = vmatprep.subr.mxu0 0.0
    %3691 = vmatpush2.msra.mxu0 0.0
    %3692 = vmatprep.subr.mxu0 0.0
    %3693 = vmatpush2.msra.mxu0 %v3559
    %3694 = vmatprep.mubr.f32.mxu0 %v3612
    %3695 = vmatmul.mubr.f32.gmra.mxu0 %v3567
    %v3696 = vpop.f32.mrf.mxu0
    %v3697 = vadd.f32 0.0, %v3696
    %v3698 = vpop.f32.mrf.mxu0
    %3699 = vmatprep.mubr.f32.mxu0 %v3614
    %3700 = vmatmul.mubr.f32.gmra.mxu0 %v3572
    %v3701 = vpop.f32.mrf.mxu0
    %v3702 = vadd.f32 0.0, %v3701
    %v3703 = vpop.f32.mrf.mxu0
    %3704 = vmatprep.mubr.f32.mxu0 %v3616
    %3705 = vmatmul.mubr.f32.gmra.mxu0 %v3576
    %v3706 = vpop.f32.mrf.mxu0
    %v3707 = vadd.f32 0.0, %v3706
    %v3708 = vpop.f32.mrf.mxu0
    %3709 = vmatprep.mubr.f32.mxu0 %v3618
    %3710 = vmatmul.mubr.f32.gmra.mxu0 %v3580
    %v3711 = vpop.f32.mrf.mxu0
    %v3712 = vadd.f32 0.0, %v3711
    %v3713 = vpop.f32.mrf.mxu0
    %3714 = vmatprep.mubr.f32.mxu0 %v3620
    %3715 = vmatmul.mubr.f32.gmra.mxu0 %v3584
    %v3716 = vpop.f32.mrf.mxu0
    %v3717 = vadd.f32 0.0, %v3716
    %v3718 = vpop.f32.mrf.mxu0
    %3719 = vmatprep.mubr.f32.mxu0 %v3622
    %3720 = vmatmul.mubr.f32.gmra.mxu0 %v3588
    %v3721 = vpop.f32.mrf.mxu0
    %v3722 = vadd.f32 0.0, %v3721
    %v3723 = vpop.f32.mrf.mxu0
    %3724 = vmatprep.mubr.f32.mxu0 %v3624
    %3725 = vmatmul.mubr.f32.gmra.mxu0 %v3592
    %v3726 = vpop.f32.mrf.mxu0
    %v3727 = vadd.f32 0.0, %v3726
    %v3728 = vpop.f32.mrf.mxu0
    %3729 = vmatprep.mubr.f32.mxu0 %v3626
    %3730 = vmatmul.mubr.f32.gmra.mxu0 %v3596
    %v3731 = vpop.f32.mrf.mxu0
    %v3732 = vadd.f32 0.0, %v3731
    %v3733 = vpop.f32.mrf.mxu0
    %3734 = vmatprep.mubr.f32.mxu0 %v3628
    %3735 = vmatmul.mubr.f32.gmra.mxu0 %v3600
    %v3736 = vpop.f32.mrf.mxu0
    %v3737 = vadd.f32 0.0, %v3736
    %v3738 = vpop.f32.mrf.mxu0
    %3739 = vdwg.mxu0
    %v3740 = vadd.f32 %v3529, %v3697
    %v3741 = vadd.f32 %v3530, %v3702
    %v3742 = vadd.f32 %v3531, %v3707
    %v3743 = vadd.f32 %v3532, %v3712
    %v3744 = vadd.f32 %v3533, %v3717
    %v3745 = vadd.f32 %v3534, %v3722
    %v3746 = vadd.f32 %v3535, %v3727
    %v3747 = vadd.f32 %v3536, %v3732
    %v3748 = vadd.f32 %v3537, %v3737
    %v3749 = vld [vmem:[%s3] sm:$0xff]
    %v3750 = vld [vmem:[%s3 + $0x8] sm:$0xff]
    %v3751 = vld [vmem:[%s3 + $0x20] sm:$0xff]
    %v3752 = vld [vmem:[%s3 + $0x28] sm:$0xff]
    %v3753 = vld [vmem:[%s3 + $0x40] sm:$0xff]
    %v3754 = vld [vmem:[%s3 + $0x48] sm:$0xff]
    %v3755 = vld [vmem:[%s3 + $0x60] sm:$0xff]
    %v3756 = vld [vmem:[%s3 + $0x68] sm:$0xff]
    %v3757 = vld [vmem:[%s3 + $0x80] sm:$0xff]
    %v3758 = vld [vmem:[%s3 + $0x88] sm:$0xff]
    %v3759 = vld [vmem:[%s3 + $0xa0] sm:$0xff]
    %v3760 = vld [vmem:[%s3 + $0xa8] sm:$0xff]
    %v3761 = vld [vmem:[%s3 + $0xc0] sm:$0xff]
    %v3762 = vld [vmem:[%s3 + $0xc8] sm:$0xff]
    %v3763 = vld [vmem:[%s3 + $0xe0] sm:$0xff]
    %v3764 = vld [vmem:[%s3 + $0xe8] sm:$0xff]
    %v3765 = vld [vmem:[%s3 + $0x100] sm:$0xff]
    %v3766 = vld [vmem:[%s3 + $0x108] sm:$0xff]
    %v3767 = vld [vmem:[%s3 + $0x120] sm:$0xff]
    %v3768 = vld [vmem:[%s3 + $0x128] sm:$0xff]
    %v3769 = vld [vmem:[%s3 + $0x140] sm:$0xff]
    %v3770 = vld [vmem:[%s3 + $0x148] sm:$0xff]
    %v3771 = vld [vmem:[%s3 + $0x160] sm:$0xff]
    %v3772 = vld [vmem:[%s3 + $0x168] sm:$0xff]
    %v3773 = vld [vmem:[%s3 + $0x180] sm:$0xff]
    %v3774 = vld [vmem:[%s3 + $0x188] sm:$0xff]
    %v3775 = vld [vmem:[%s3 + $0x1a0] sm:$0xff]
    %v3776 = vld [vmem:[%s3 + $0x1a8] sm:$0xff]
    %v3777 = vld [vmem:[%s3 + $0x1c0] sm:$0xff]
    %v3778 = vld [vmem:[%s3 + $0x1c8] sm:$0xff]
    %v3779 = vld [vmem:[%s3 + $0x1e0] sm:$0xff]
    %v3780 = vld [vmem:[%s3 + $0x1e8] sm:$0xff]
    %v3781 = vld [vmem:[%s3 + $0x200] sm:$0xff]
    %v3782 = vld [vmem:[%s3 + $0x208] sm:$0xff]
    %v3783 = vld [vmem:[%s2340] sm:$0xff]
    %v3784 = vld [vmem:[%s2340 + $0x8] sm:$0xff]
    %v3785 = vld [vmem:[%s2340 + $0x20] sm:$0xff]
    %v3786 = vld [vmem:[%s2340 + $0x28] sm:$0xff]
    %v3787 = vld [vmem:[%s2340 + $0x40] sm:$0xff]
    %v3788 = vld [vmem:[%s2340 + $0x48] sm:$0xff]
    %v3789 = vld [vmem:[%s2340 + $0x60] sm:$0xff]
    %v3790 = vld [vmem:[%s2340 + $0x68] sm:$0xff]
    %v3791 = vld [vmem:[%s2340 + $0x80] sm:$0xff]
    %v3792 = vld [vmem:[%s2340 + $0x88] sm:$0xff]
    %v3793 = vld [vmem:[%s2340 + $0xa0] sm:$0xff]
    %v3794 = vld [vmem:[%s2340 + $0xa8] sm:$0xff]
    %v3795 = vld [vmem:[%s2340 + $0xc0] sm:$0xff]
    %v3796 = vld [vmem:[%s2340 + $0xc8] sm:$0xff]
    %v3797 = vld [vmem:[%s2340 + $0xe0] sm:$0xff]
    %v3798 = vld [vmem:[%s2340 + $0xe8] sm:$0xff]
    %v3799 = vld [vmem:[%s2340 + $0x100] sm:$0xff]
    %v3800 = vld [vmem:[%s2340 + $0x108] sm:$0xff]
    %v3801 = vld [vmem:[%s2340 + $0x120] sm:$0xff]
    %v3802 = vld [vmem:[%s2340 + $0x128] sm:$0xff]
    %v3803 = vld [vmem:[%s2340 + $0x140] sm:$0xff]
    %v3804 = vld [vmem:[%s2340 + $0x148] sm:$0xff]
    %v3805 = vld [vmem:[%s2340 + $0x160] sm:$0xff]
    %v3806 = vld [vmem:[%s2340 + $0x168] sm:$0xff]
    %v3807 = vld [vmem:[%s2340 + $0x180] sm:$0xff]
    %v3808 = vld [vmem:[%s2340 + $0x188] sm:$0xff]
    %v3809 = vld [vmem:[%s2340 + $0x1a0] sm:$0xff]
    %v3810 = vld [vmem:[%s2340 + $0x1a8] sm:$0xff]
    %v3811 = vld [vmem:[%s2340 + $0x1c0] sm:$0xff]
    %v3812 = vld [vmem:[%s2340 + $0x1c8] sm:$0xff]
    %v3813 = vld [vmem:[%s2340 + $0x1e0] sm:$0xff]
    %v3814 = vld [vmem:[%s2340 + $0x1e8] sm:$0xff]
    %v3815 = vld [vmem:[%s2340 + $0x200] sm:$0xff]
    %v3816 = vld [vmem:[%s2340 + $0x208] sm:$0xff]
    %3851 = vrot.lane.b32.xlu0 %v3783, 16
    %v3852 = vpop.permute.xlu0 %3851
    %3853 = vrot.lane.b32.xlu0 %v3784, 16
    %v3854 = vpop.permute.xlu0 %3853
    %3855 = vrot.lane.b32.xlu0 %v3785, 16
    %v3856 = vpop.permute.xlu0 %3855
    %3857 = vrot.lane.b32.xlu0 %v3786, 16
    %v3858 = vpop.permute.xlu0 %3857
    %3859 = vrot.lane.b32.xlu0 %v3787, 16
    %v3860 = vpop.permute.xlu0 %3859
    %3861 = vrot.lane.b32.xlu0 %v3788, 16
    %v3862 = vpop.permute.xlu0 %3861
    %3863 = vrot.lane.b32.xlu0 %v3789, 16
    %v3864 = vpop.permute.xlu0 %3863
    %3865 = vrot.lane.b32.xlu0 %v3790, 16
    %v3866 = vpop.permute.xlu0 %3865
    %3867 = vrot.lane.b32.xlu0 %v3791, 16
    %v3868 = vpop.permute.xlu0 %3867
    %3869 = vrot.lane.b32.xlu0 %v3792, 16
    %v3870 = vpop.permute.xlu0 %3869
    %3871 = vrot.lane.b32.xlu0 %v3793, 16
    %v3872 = vpop.permute.xlu0 %3871
    %3873 = vrot.lane.b32.xlu0 %v3794, 16
    %v3874 = vpop.permute.xlu0 %3873
    %3875 = vrot.lane.b32.xlu0 %v3795, 16
    %v3876 = vpop.permute.xlu0 %3875
    %3877 = vrot.lane.b32.xlu0 %v3796, 16
    %v3878 = vpop.permute.xlu0 %3877
    %3879 = vrot.lane.b32.xlu0 %v3797, 16
    %v3880 = vpop.permute.xlu0 %3879
    %3881 = vrot.lane.b32.xlu0 %v3798, 16
    %v3882 = vpop.permute.xlu0 %3881
    %3883 = vrot.lane.b32.xlu0 %v3799, 16
    %v3884 = vpop.permute.xlu0 %3883
    %3885 = vrot.lane.b32.xlu0 %v3800, 16
    %v3886 = vpop.permute.xlu0 %3885
    %3887 = vrot.lane.b32.xlu0 %v3801, 16
    %v3888 = vpop.permute.xlu0 %3887
    %3889 = vrot.lane.b32.xlu0 %v3802, 16
    %v3890 = vpop.permute.xlu0 %3889
    %3891 = vrot.lane.b32.xlu0 %v3803, 16
    %v3892 = vpop.permute.xlu0 %3891
    %3893 = vrot.lane.b32.xlu0 %v3804, 16
    %v3894 = vpop.permute.xlu0 %3893
    %3895 = vrot.lane.b32.xlu0 %v3805, 16
    %v3896 = vpop.permute.xlu0 %3895
    %3897 = vrot.lane.b32.xlu0 %v3806, 16
    %v3898 = vpop.permute.xlu0 %3897
    %3899 = vrot.lane.b32.xlu0 %v3807, 16
    %v3900 = vpop.permute.xlu0 %3899
    %3901 = vrot.lane.b32.xlu0 %v3808, 16
    %v3902 = vpop.permute.xlu0 %3901
    %3903 = vrot.lane.b32.xlu0 %v3809, 16
    %v3904 = vpop.permute.xlu0 %3903
    %3905 = vrot.lane.b32.xlu0 %v3810, 16
    %v3906 = vpop.permute.xlu0 %3905
    %3907 = vrot.lane.b32.xlu0 %v3811, 16
    %v3908 = vpop.permute.xlu0 %3907
    %3909 = vrot.lane.b32.xlu0 %v3812, 16
    %v3910 = vpop.permute.xlu0 %3909
    %3911 = vrot.lane.b32.xlu0 %v3813, 16
    %v3912 = vpop.permute.xlu0 %3911
    %3913 = vrot.lane.b32.xlu0 %v3814, 16
    %v3914 = vpop.permute.xlu0 %3913
    %3915 = vrot.lane.b32.xlu0 %v3815, 16
    %v3916 = vpop.permute.xlu0 %3915
    %3917 = vrot.lane.b32.xlu0 %v3816, 16
    %v3918 = vpop.permute.xlu0 %3917
    %vm3919 = vcmask 130048
    %v3920 = vsel %vm3919, %v3852, %v3854
    %v3921 = vsel %vm3919, %v3856, %v3858
    %v3922 = vsel %vm3919, %v3860, %v3862
    %v3923 = vsel %vm3919, %v3864, %v3866
    %v3924 = vsel %vm3919, %v3868, %v3870
    %v3925 = vsel %vm3919, %v3872, %v3874
    %v3926 = vsel %vm3919, %v3876, %v3878
    %v3927 = vsel %vm3919, %v3880, %v3882
    %v3928 = vsel %vm3919, %v3884, %v3886
    %v3929 = vsel %vm3919, %v3888, %v3890
    %v3930 = vsel %vm3919, %v3892, %v3894
    %v3931 = vsel %vm3919, %v3896, %v3898
    %v3932 = vsel %vm3919, %v3900, %v3902
    %v3933 = vsel %vm3919, %v3904, %v3906
    %v3934 = vsel %vm3919, %v3908, %v3910
    %v3935 = vsel %vm3919, %v3912, %v3914
    %v3936 = vsel %vm3919, %v3916, %v3918
    %3954 = vmatprep.subr.mxu0 0.0
    %3955 = vmatpush1.msra.mxu0 %v3935
    %3956 = vmatprep.subr.mxu0 0.0
    %3957 = vmatpush1.msra.mxu0 %v3934
    %3958 = vmatprep.subr.mxu0 0.0
    %3959 = vmatpush1.msra.mxu0 %v3933
    %3960 = vmatprep.subr.mxu0 0.0
    %3961 = vmatpush1.msra.mxu0 %v3932
    %3962 = vmatprep.subr.mxu0 0.0
    %3963 = vmatpush1.msra.mxu0 %v3931
    %3964 = vmatprep.subr.mxu0 0.0
    %3965 = vmatpush1.msra.mxu0 %v3930
    %3966 = vmatprep.subr.mxu0 0.0
    %3967 = vmatpush1.msra.mxu0 %v3929
    %3968 = vmatprep.subr.mxu0 0.0
    %3969 = vmatpush1.msra.mxu0 %v3928
    %3970 = vmatprep.subr.mxu0 0.0
    %3971 = vmatpush1.msra.mxu0 %v3927
    %3972 = vmatprep.subr.mxu0 0.0
    %3973 = vmatpush1.msra.mxu0 %v3926
    %3974 = vmatprep.subr.mxu0 0.0
    %3975 = vmatpush1.msra.mxu0 %v3925
    %3976 = vmatprep.subr.mxu0 0.0
    %3977 = vmatpush1.msra.mxu0 %v3924
    %3978 = vmatprep.subr.mxu0 0.0
    %3979 = vmatpush1.msra.mxu0 %v3923
    %3980 = vmatprep.subr.mxu0 0.0
    %3981 = vmatpush1.msra.mxu0 %v3922
    %3982 = vmatprep.subr.mxu0 0.0
    %3983 = vmatpush1.msra.mxu0 %v3921
    %3984 = vmatprep.subr.mxu0 0.0
    %3985 = vmatpush1.msra.mxu0 %v3920
    %3986 = vmatprep.subr.mxu0 0.0
    %3987 = vmatpush2.msra.mxu0 0.0
    %3988 = vmatprep.subr.mxu0 0.0
    %3989 = vmatpush2.msra.mxu0 0.0
    %3990 = vmatprep.subr.mxu0 0.0
    %3991 = vmatpush2.msra.mxu0 0.0
    %3992 = vmatprep.subr.mxu0 0.0
    %3993 = vmatpush2.msra.mxu0 0.0
    %3994 = vmatprep.subr.mxu0 0.0
    %3995 = vmatpush2.msra.mxu0 0.0
    %3996 = vmatprep.subr.mxu0 0.0
    %3997 = vmatpush2.msra.mxu0 0.0
    %3998 = vmatprep.subr.mxu0 0.0
    %3999 = vmatpush2.msra.mxu0 0.0
    %4000 = vmatprep.subr.mxu0 0.0
    %4001 = vmatpush2.msra.mxu0 0.0
    %4002 = vmatprep.subr.mxu0 0.0
    %4003 = vmatpush2.msra.mxu0 0.0
    %4004 = vmatprep.subr.mxu0 0.0
    %4005 = vmatpush2.msra.mxu0 0.0
    %4006 = vmatprep.subr.mxu0 0.0
    %4007 = vmatpush2.msra.mxu0 0.0
    %4008 = vmatprep.subr.mxu0 0.0
    %4009 = vmatpush2.msra.mxu0 0.0
    %4010 = vmatprep.subr.mxu0 0.0
    %4011 = vmatpush2.msra.mxu0 0.0
    %4012 = vmatprep.subr.mxu0 0.0
    %4013 = vmatpush2.msra.mxu0 0.0
    %4014 = vmatprep.subr.mxu0 0.0
    %4015 = vmatpush2.msra.mxu0 0.0
    %4016 = vmatprep.subr.mxu0 0.0
    %4017 = vmatpush2.msra.mxu0 %v3936
    %4018 = vmatprep.mubr.f32.mxu0 %v2419
    %4019 = vmatmul.mubr.f32.gmra.mxu0 %v2378
    %v4020 = vpop.f32.mrf.mxu0
    %v4021 = vadd.f32 0.0, %v4020
    %v4022 = vpop.f32.mrf.mxu0
    %4023 = vmatprep.mubr.f32.mxu0 %v2421
    %4024 = vmatmul.mubr.f32.gmra.mxu0 %v2383
    %v4025 = vpop.f32.mrf.mxu0
    %v4026 = vadd.f32 0.0, %v4025
    %v4027 = vpop.f32.mrf.mxu0
    %4028 = vmatprep.mubr.f32.mxu0 %v2423
    %4029 = vmatmul.mubr.f32.gmra.mxu0 %v2387
    %v4030 = vpop.f32.mrf.mxu0
    %v4031 = vadd.f32 0.0, %v4030
    %v4032 = vpop.f32.mrf.mxu0
    %4033 = vmatprep.mubr.f32.mxu0 %v2425
    %4034 = vmatmul.mubr.f32.gmra.mxu0 %v2391
    %v4035 = vpop.f32.mrf.mxu0
    %v4036 = vadd.f32 0.0, %v4035
    %v4037 = vpop.f32.mrf.mxu0
    %4038 = vmatprep.mubr.f32.mxu0 %v2427
    %4039 = vmatmul.mubr.f32.gmra.mxu0 %v2395
    %v4040 = vpop.f32.mrf.mxu0
    %v4041 = vadd.f32 0.0, %v4040
    %v4042 = vpop.f32.mrf.mxu0
    %4043 = vmatprep.mubr.f32.mxu0 %v2429
    %4044 = vmatmul.mubr.f32.gmra.mxu0 %v2399
    %v4045 = vpop.f32.mrf.mxu0
    %v4046 = vadd.f32 0.0, %v4045
    %v4047 = vpop.f32.mrf.mxu0
    %4048 = vmatprep.mubr.f32.mxu0 %v2431
    %4049 = vmatmul.mubr.f32.gmra.mxu0 %v2403
    %v4050 = vpop.f32.mrf.mxu0
    %v4051 = vadd.f32 0.0, %v4050
    %v4052 = vpop.f32.mrf.mxu0
    %4053 = vmatprep.mubr.f32.mxu0 %v2433
    %4054 = vmatmul.mubr.f32.gmra.mxu0 %v2407
    %v4055 = vpop.f32.mrf.mxu0
    %v4056 = vadd.f32 0.0, %v4055
    %v4057 = vpop.f32.mrf.mxu0
    %4058 = vmatprep.mubr.f32.mxu0 %v2435
    %4059 = vmatmul.mubr.f32.gmra.mxu0 %v2406
    %v4060 = vpop.f32.mrf.mxu0
    %v4061 = vadd.f32 0.0, %v4060
    %v4062 = vpop.f32.mrf.mxu0
    %4063 = vdwg.mxu0
    %4098 = vrot.lane.b32.xlu0 %v3749, 16
    %v4099 = vpop.permute.xlu0 %4098
    %4100 = vrot.lane.b32.xlu0 %v3750, 16
    %v4101 = vpop.permute.xlu0 %4100
    %4102 = vrot.lane.b32.xlu0 %v3751, 16
    %v4103 = vpop.permute.xlu0 %4102
    %4104 = vrot.lane.b32.xlu0 %v3752, 16
    %v4105 = vpop.permute.xlu0 %4104
    %4106 = vrot.lane.b32.xlu0 %v3753, 16
    %v4107 = vpop.permute.xlu0 %4106
    %4108 = vrot.lane.b32.xlu0 %v3754, 16
    %v4109 = vpop.permute.xlu0 %4108
    %4110 = vrot.lane.b32.xlu0 %v3755, 16
    %v4111 = vpop.permute.xlu0 %4110
    %4112 = vrot.lane.b32.xlu0 %v3756, 16
    %v4113 = vpop.permute.xlu0 %4112
    %4114 = vrot.lane.b32.xlu0 %v3757, 16
    %v4115 = vpop.permute.xlu0 %4114
    %4116 = vrot.lane.b32.xlu0 %v3758, 16
    %v4117 = vpop.permute.xlu0 %4116
    %4118 = vrot.lane.b32.xlu0 %v3759, 16
    %v4119 = vpop.permute.xlu0 %4118
    %4120 = vrot.lane.b32.xlu0 %v3760, 16
    %v4121 = vpop.permute.xlu0 %4120
    %4122 = vrot.lane.b32.xlu0 %v3761, 16
    %v4123 = vpop.permute.xlu0 %4122
    %4124 = vrot.lane.b32.xlu0 %v3762, 16
    %v4125 = vpop.permute.xlu0 %4124
    %4126 = vrot.lane.b32.xlu0 %v3763, 16
    %v4127 = vpop.permute.xlu0 %4126
    %4128 = vrot.lane.b32.xlu0 %v3764, 16
    %v4129 = vpop.permute.xlu0 %4128
    %4130 = vrot.lane.b32.xlu0 %v3765, 16
    %v4131 = vpop.permute.xlu0 %4130
    %4132 = vrot.lane.b32.xlu0 %v3766, 16
    %v4133 = vpop.permute.xlu0 %4132
    %4134 = vrot.lane.b32.xlu0 %v3767, 16
    %v4135 = vpop.permute.xlu0 %4134
    %4136 = vrot.lane.b32.xlu0 %v3768, 16
    %v4137 = vpop.permute.xlu0 %4136
    %4138 = vrot.lane.b32.xlu0 %v3769, 16
    %v4139 = vpop.permute.xlu0 %4138
    %4140 = vrot.lane.b32.xlu0 %v3770, 16
    %v4141 = vpop.permute.xlu0 %4140
    %4142 = vrot.lane.b32.xlu0 %v3771, 16
    %v4143 = vpop.permute.xlu0 %4142
    %4144 = vrot.lane.b32.xlu0 %v3772, 16
    %v4145 = vpop.permute.xlu0 %4144
    %4146 = vrot.lane.b32.xlu0 %v3773, 16
    %v4147 = vpop.permute.xlu0 %4146
    %4148 = vrot.lane.b32.xlu0 %v3774, 16
    %v4149 = vpop.permute.xlu0 %4148
    %4150 = vrot.lane.b32.xlu0 %v3775, 16
    %v4151 = vpop.permute.xlu0 %4150
    %4152 = vrot.lane.b32.xlu0 %v3776, 16
    %v4153 = vpop.permute.xlu0 %4152
    %4154 = vrot.lane.b32.xlu0 %v3777, 16
    %v4155 = vpop.permute.xlu0 %4154
    %4156 = vrot.lane.b32.xlu0 %v3778, 16
    %v4157 = vpop.permute.xlu0 %4156
    %4158 = vrot.lane.b32.xlu0 %v3779, 16
    %v4159 = vpop.permute.xlu0 %4158
    %4160 = vrot.lane.b32.xlu0 %v3780, 16
    %v4161 = vpop.permute.xlu0 %4160
    %4162 = vrot.lane.b32.xlu0 %v3781, 16
    %v4163 = vpop.permute.xlu0 %4162
    %4164 = vrot.lane.b32.xlu0 %v3782, 16
    %v4165 = vpop.permute.xlu0 %4164
    %v4166 = vsel %vm3919, %v4099, %v4101
    %v4167 = vsel %vm3919, %v4103, %v4105
    %v4168 = vsel %vm3919, %v4107, %v4109
    %v4169 = vsel %vm3919, %v4111, %v4113
    %v4170 = vsel %vm3919, %v4115, %v4117
    %v4171 = vsel %vm3919, %v4119, %v4121
    %v4172 = vsel %vm3919, %v4123, %v4125
    %v4173 = vsel %vm3919, %v4127, %v4129
    %v4174 = vsel %vm3919, %v4131, %v4133
    %v4175 = vsel %vm3919, %v4135, %v4137
    %v4176 = vsel %vm3919, %v4139, %v4141
    %v4177 = vsel %vm3919, %v4143, %v4145
    %v4178 = vsel %vm3919, %v4147, %v4149
    %v4179 = vsel %vm3919, %v4151, %v4153
    %v4180 = vsel %vm3919, %v4155, %v4157
    %v4181 = vsel %vm3919, %v4159, %v4161
    %v4182 = vsel %vm3919, %v4163, %v4165
    %4200 = vmatprep.subr.mxu0 0.0
    %4201 = vmatpush1.msra.mxu0 %v4181
    %4202 = vmatprep.subr.mxu0 0.0
    %4203 = vmatpush1.msra.mxu0 %v4180
    %4204 = vmatprep.subr.mxu0 0.0
    %4205 = vmatpush1.msra.mxu0 %v4179
    %4206 = vmatprep.subr.mxu0 0.0
    %4207 = vmatpush1.msra.mxu0 %v4178
    %4208 = vmatprep.subr.mxu0 0.0
    %4209 = vmatpush1.msra.mxu0 %v4177
    %4210 = vmatprep.subr.mxu0 0.0
    %4211 = vmatpush1.msra.mxu0 %v4176
    %4212 = vmatprep.subr.mxu0 0.0
    %4213 = vmatpush1.msra.mxu0 %v4175
    %4214 = vmatprep.subr.mxu0 0.0
    %4215 = vmatpush1.msra.mxu0 %v4174
    %4216 = vmatprep.subr.mxu0 0.0
    %4217 = vmatpush1.msra.mxu0 %v4173
    %4218 = vmatprep.subr.mxu0 0.0
    %4219 = vmatpush1.msra.mxu0 %v4172
    %4220 = vmatprep.subr.mxu0 0.0
    %4221 = vmatpush1.msra.mxu0 %v4171
    %4222 = vmatprep.subr.mxu0 0.0
    %4223 = vmatpush1.msra.mxu0 %v4170
    %4224 = vmatprep.subr.mxu0 0.0
    %4225 = vmatpush1.msra.mxu0 %v4169
    %4226 = vmatprep.subr.mxu0 0.0
    %4227 = vmatpush1.msra.mxu0 %v4168
    %4228 = vmatprep.subr.mxu0 0.0
    %4229 = vmatpush1.msra.mxu0 %v4167
    %4230 = vmatprep.subr.mxu0 0.0
    %4231 = vmatpush1.msra.mxu0 %v4166
    %4232 = vmatprep.subr.mxu0 0.0
    %4233 = vmatpush2.msra.mxu0 0.0
    %4234 = vmatprep.subr.mxu0 0.0
    %4235 = vmatpush2.msra.mxu0 0.0
    %4236 = vmatprep.subr.mxu0 0.0
    %4237 = vmatpush2.msra.mxu0 0.0
    %4238 = vmatprep.subr.mxu0 0.0
    %4239 = vmatpush2.msra.mxu0 0.0
    %4240 = vmatprep.subr.mxu0 0.0
    %4241 = vmatpush2.msra.mxu0 0.0
    %4242 = vmatprep.subr.mxu0 0.0
    %4243 = vmatpush2.msra.mxu0 0.0
    %4244 = vmatprep.subr.mxu0 0.0
    %4245 = vmatpush2.msra.mxu0 0.0
    %4246 = vmatprep.subr.mxu0 0.0
    %4247 = vmatpush2.msra.mxu0 0.0
    %4248 = vmatprep.subr.mxu0 0.0
    %4249 = vmatpush2.msra.mxu0 0.0
    %4250 = vmatprep.subr.mxu0 0.0
    %4251 = vmatpush2.msra.mxu0 0.0
    %4252 = vmatprep.subr.mxu0 0.0
    %4253 = vmatpush2.msra.mxu0 0.0
    %4254 = vmatprep.subr.mxu0 0.0
    %4255 = vmatpush2.msra.mxu0 0.0
    %4256 = vmatprep.subr.mxu0 0.0
    %4257 = vmatpush2.msra.mxu0 0.0
    %4258 = vmatprep.subr.mxu0 0.0
    %4259 = vmatpush2.msra.mxu0 0.0
    %4260 = vmatprep.subr.mxu0 0.0
    %4261 = vmatpush2.msra.mxu0 0.0
    %4262 = vmatprep.subr.mxu0 0.0
    %4263 = vmatpush2.msra.mxu0 %v4182
    %4264 = vmatprep.mubr.f32.mxu0 %v2548
    %4265 = vmatmul.mubr.f32.gmra.mxu0 %v2301
    %v4266 = vpop.f32.mrf.mxu0
    %v4267 = vadd.f32 %v4021, %v4266
    %v4268 = vpop.f32.mrf.mxu0
    %4269 = vmatprep.mubr.f32.mxu0 %v2550
    %4270 = vmatmul.mubr.f32.gmra.mxu0 %v2303
    %v4271 = vpop.f32.mrf.mxu0
    %v4272 = vadd.f32 %v4026, %v4271
    %v4273 = vpop.f32.mrf.mxu0
    %4274 = vmatprep.mubr.f32.mxu0 %v2552
    %4275 = vmatmul.mubr.f32.gmra.mxu0 %v2305
    %v4276 = vpop.f32.mrf.mxu0
    %v4277 = vadd.f32 %v4031, %v4276
    %v4278 = vpop.f32.mrf.mxu0
    %4279 = vmatprep.mubr.f32.mxu0 %v2554
    %4280 = vmatmul.mubr.f32.gmra.mxu0 %v2307
    %v4281 = vpop.f32.mrf.mxu0
    %v4282 = vadd.f32 %v4036, %v4281
    %v4283 = vpop.f32.mrf.mxu0
    %4284 = vmatprep.mubr.f32.mxu0 %v2556
    %4285 = vmatmul.mubr.f32.gmra.mxu0 %v2309
    %v4286 = vpop.f32.mrf.mxu0
    %v4287 = vadd.f32 %v4041, %v4286
    %v4288 = vpop.f32.mrf.mxu0
    %4289 = vmatprep.mubr.f32.mxu0 %v2558
    %4290 = vmatmul.mubr.f32.gmra.mxu0 %v2311
    %v4291 = vpop.f32.mrf.mxu0
    %v4292 = vadd.f32 %v4046, %v4291
    %v4293 = vpop.f32.mrf.mxu0
    %4294 = vmatprep.mubr.f32.mxu0 %v2560
    %4295 = vmatmul.mubr.f32.gmra.mxu0 %v2313
    %v4296 = vpop.f32.mrf.mxu0
    %v4297 = vadd.f32 %v4051, %v4296
    %v4298 = vpop.f32.mrf.mxu0
    %4299 = vmatprep.mubr.f32.mxu0 %v2562
    %4300 = vmatmul.mubr.f32.gmra.mxu0 %v2315
    %v4301 = vpop.f32.mrf.mxu0
    %v4302 = vadd.f32 %v4056, %v4301
    %v4303 = vpop.f32.mrf.mxu0
    %4304 = vmatprep.mubr.f32.mxu0 %v2565
    %4305 = vmatmul.mubr.f32.gmra.mxu0 %v2317
    %v4306 = vpop.f32.mrf.mxu0
    %v4307 = vadd.f32 %v4061, %v4306
    %v4308 = vpop.f32.mrf.mxu0
    %4309 = vdwg.mxu0
    %v4310 = vld [vmem:[%s2681] sm:$0xff]
    %v4311 = vld [vmem:[%s2681 + $0x8] sm:$0xff]
    %v4312 = vld [vmem:[%s2681 + $0x20] sm:$0xff]
    %v4313 = vld [vmem:[%s2681 + $0x28] sm:$0xff]
    %v4314 = vld [vmem:[%s2681 + $0x40] sm:$0xff]
    %v4315 = vld [vmem:[%s2681 + $0x48] sm:$0xff]
    %v4316 = vld [vmem:[%s2681 + $0x60] sm:$0xff]
    %v4317 = vld [vmem:[%s2681 + $0x68] sm:$0xff]
    %v4318 = vld [vmem:[%s2681 + $0x80] sm:$0xff]
    %v4319 = vld [vmem:[%s2681 + $0x88] sm:$0xff]
    %v4320 = vld [vmem:[%s2681 + $0xa0] sm:$0xff]
    %v4321 = vld [vmem:[%s2681 + $0xa8] sm:$0xff]
    %v4322 = vld [vmem:[%s2681 + $0xc0] sm:$0xff]
    %v4323 = vld [vmem:[%s2681 + $0xc8] sm:$0xff]
    %v4324 = vld [vmem:[%s2681 + $0xe0] sm:$0xff]
    %v4325 = vld [vmem:[%s2681 + $0xe8] sm:$0xff]
    %v4326 = vld [vmem:[%s2681 + $0x100] sm:$0xff]
    %v4327 = vld [vmem:[%s2681 + $0x108] sm:$0xff]
    %v4328 = vld [vmem:[%s2681 + $0x120] sm:$0xff]
    %v4329 = vld [vmem:[%s2681 + $0x128] sm:$0xff]
    %v4330 = vld [vmem:[%s2681 + $0x140] sm:$0xff]
    %v4331 = vld [vmem:[%s2681 + $0x148] sm:$0xff]
    %v4332 = vld [vmem:[%s2681 + $0x160] sm:$0xff]
    %v4333 = vld [vmem:[%s2681 + $0x168] sm:$0xff]
    %v4334 = vld [vmem:[%s2681 + $0x180] sm:$0xff]
    %v4335 = vld [vmem:[%s2681 + $0x188] sm:$0xff]
    %v4336 = vld [vmem:[%s2681 + $0x1a0] sm:$0xff]
    %v4337 = vld [vmem:[%s2681 + $0x1a8] sm:$0xff]
    %v4338 = vld [vmem:[%s2681 + $0x1c0] sm:$0xff]
    %v4339 = vld [vmem:[%s2681 + $0x1c8] sm:$0xff]
    %v4340 = vld [vmem:[%s2681 + $0x1e0] sm:$0xff]
    %v4341 = vld [vmem:[%s2681 + $0x1e8] sm:$0xff]
    %v4342 = vld [vmem:[%s2681 + $0x200] sm:$0xff]
    %v4343 = vld [vmem:[%s2681 + $0x208] sm:$0xff]
    %4378 = vrot.lane.b32.xlu0 %v4310, 16
    %v4379 = vpop.permute.xlu0 %4378
    %4380 = vrot.lane.b32.xlu0 %v4311, 16
    %v4381 = vpop.permute.xlu0 %4380
    %4382 = vrot.lane.b32.xlu0 %v4312, 16
    %v4383 = vpop.permute.xlu0 %4382
    %4384 = vrot.lane.b32.xlu0 %v4313, 16
    %v4385 = vpop.permute.xlu0 %4384
    %4386 = vrot.lane.b32.xlu0 %v4314, 16
    %v4387 = vpop.permute.xlu0 %4386
    %4388 = vrot.lane.b32.xlu0 %v4315, 16
    %v4389 = vpop.permute.xlu0 %4388
    %4390 = vrot.lane.b32.xlu0 %v4316, 16
    %v4391 = vpop.permute.xlu0 %4390
    %4392 = vrot.lane.b32.xlu0 %v4317, 16
    %v4393 = vpop.permute.xlu0 %4392
    %4394 = vrot.lane.b32.xlu0 %v4318, 16
    %v4395 = vpop.permute.xlu0 %4394
    %4396 = vrot.lane.b32.xlu0 %v4319, 16
    %v4397 = vpop.permute.xlu0 %4396
    %4398 = vrot.lane.b32.xlu0 %v4320, 16
    %v4399 = vpop.permute.xlu0 %4398
    %4400 = vrot.lane.b32.xlu0 %v4321, 16
    %v4401 = vpop.permute.xlu0 %4400
    %4402 = vrot.lane.b32.xlu0 %v4322, 16
    %v4403 = vpop.permute.xlu0 %4402
    %4404 = vrot.lane.b32.xlu0 %v4323, 16
    %v4405 = vpop.permute.xlu0 %4404
    %4406 = vrot.lane.b32.xlu0 %v4324, 16
    %v4407 = vpop.permute.xlu0 %4406
    %4408 = vrot.lane.b32.xlu0 %v4325, 16
    %v4409 = vpop.permute.xlu0 %4408
    %4410 = vrot.lane.b32.xlu0 %v4326, 16
    %v4411 = vpop.permute.xlu0 %4410
    %4412 = vrot.lane.b32.xlu0 %v4327, 16
    %v4413 = vpop.permute.xlu0 %4412
    %4414 = vrot.lane.b32.xlu0 %v4328, 16
    %v4415 = vpop.permute.xlu0 %4414
    %4416 = vrot.lane.b32.xlu0 %v4329, 16
    %v4417 = vpop.permute.xlu0 %4416
    %4418 = vrot.lane.b32.xlu0 %v4330, 16
    %v4419 = vpop.permute.xlu0 %4418
    %4420 = vrot.lane.b32.xlu0 %v4331, 16
    %v4421 = vpop.permute.xlu0 %4420
    %4422 = vrot.lane.b32.xlu0 %v4332, 16
    %v4423 = vpop.permute.xlu0 %4422
    %4424 = vrot.lane.b32.xlu0 %v4333, 16
    %v4425 = vpop.permute.xlu0 %4424
    %4426 = vrot.lane.b32.xlu0 %v4334, 16
    %v4427 = vpop.permute.xlu0 %4426
    %4428 = vrot.lane.b32.xlu0 %v4335, 16
    %v4429 = vpop.permute.xlu0 %4428
    %4430 = vrot.lane.b32.xlu0 %v4336, 16
    %v4431 = vpop.permute.xlu0 %4430
    %4432 = vrot.lane.b32.xlu0 %v4337, 16
    %v4433 = vpop.permute.xlu0 %4432
    %4434 = vrot.lane.b32.xlu0 %v4338, 16
    %v4435 = vpop.permute.xlu0 %4434
    %4436 = vrot.lane.b32.xlu0 %v4339, 16
    %v4437 = vpop.permute.xlu0 %4436
    %4438 = vrot.lane.b32.xlu0 %v4340, 16
    %v4439 = vpop.permute.xlu0 %4438
    %4440 = vrot.lane.b32.xlu0 %v4341, 16
    %v4441 = vpop.permute.xlu0 %4440
    %4442 = vrot.lane.b32.xlu0 %v4342, 16
    %v4443 = vpop.permute.xlu0 %4442
    %4444 = vrot.lane.b32.xlu0 %v4343, 16
    %v4445 = vpop.permute.xlu0 %4444
    %v4446 = vsel %vm3919, %v4379, %v4381
    %v4447 = vsel %vm3919, %v4383, %v4385
    %v4448 = vsel %vm3919, %v4387, %v4389
    %v4449 = vsel %vm3919, %v4391, %v4393
    %v4450 = vsel %vm3919, %v4395, %v4397
    %v4451 = vsel %vm3919, %v4399, %v4401
    %v4452 = vsel %vm3919, %v4403, %v4405
    %v4453 = vsel %vm3919, %v4407, %v4409
    %v4454 = vsel %vm3919, %v4411, %v4413
    %v4455 = vsel %vm3919, %v4415, %v4417
    %v4456 = vsel %vm3919, %v4419, %v4421
    %v4457 = vsel %vm3919, %v4423, %v4425
    %v4458 = vsel %vm3919, %v4427, %v4429
    %v4459 = vsel %vm3919, %v4431, %v4433
    %v4460 = vsel %vm3919, %v4435, %v4437
    %v4461 = vsel %vm3919, %v4439, %v4441
    %v4462 = vsel %vm3919, %v4443, %v4445
    %4480 = vmatprep.subr.mxu0 0.0
    %4481 = vmatpush1.msra.mxu0 %v4461
    %4482 = vmatprep.subr.mxu0 0.0
    %4483 = vmatpush1.msra.mxu0 %v4460
    %4484 = vmatprep.subr.mxu0 0.0
    %4485 = vmatpush1.msra.mxu0 %v4459
    %4486 = vmatprep.subr.mxu0 0.0
    %4487 = vmatpush1.msra.mxu0 %v4458
    %4488 = vmatprep.subr.mxu0 0.0
    %4489 = vmatpush1.msra.mxu0 %v4457
    %4490 = vmatprep.subr.mxu0 0.0
    %4491 = vmatpush1.msra.mxu0 %v4456
    %4492 = vmatprep.subr.mxu0 0.0
    %4493 = vmatpush1.msra.mxu0 %v4455
    %4494 = vmatprep.subr.mxu0 0.0
    %4495 = vmatpush1.msra.mxu0 %v4454
    %4496 = vmatprep.subr.mxu0 0.0
    %4497 = vmatpush1.msra.mxu0 %v4453
    %4498 = vmatprep.subr.mxu0 0.0
    %4499 = vmatpush1.msra.mxu0 %v4452
    %4500 = vmatprep.subr.mxu0 0.0
    %4501 = vmatpush1.msra.mxu0 %v4451
    %4502 = vmatprep.subr.mxu0 0.0
    %4503 = vmatpush1.msra.mxu0 %v4450
    %4504 = vmatprep.subr.mxu0 0.0
    %4505 = vmatpush1.msra.mxu0 %v4449
    %4506 = vmatprep.subr.mxu0 0.0
    %4507 = vmatpush1.msra.mxu0 %v4448
    %4508 = vmatprep.subr.mxu0 0.0
    %4509 = vmatpush1.msra.mxu0 %v4447
    %4510 = vmatprep.subr.mxu0 0.0
    %4511 = vmatpush1.msra.mxu0 %v4446
    %4512 = vmatprep.subr.mxu0 0.0
    %4513 = vmatpush2.msra.mxu0 0.0
    %4514 = vmatprep.subr.mxu0 0.0
    %4515 = vmatpush2.msra.mxu0 0.0
    %4516 = vmatprep.subr.mxu0 0.0
    %4517 = vmatpush2.msra.mxu0 0.0
    %4518 = vmatprep.subr.mxu0 0.0
    %4519 = vmatpush2.msra.mxu0 0.0
    %4520 = vmatprep.subr.mxu0 0.0
    %4521 = vmatpush2.msra.mxu0 0.0
    %4522 = vmatprep.subr.mxu0 0.0
    %4523 = vmatpush2.msra.mxu0 0.0
    %4524 = vmatprep.subr.mxu0 0.0
    %4525 = vmatpush2.msra.mxu0 0.0
    %4526 = vmatprep.subr.mxu0 0.0
    %4527 = vmatpush2.msra.mxu0 0.0
    %4528 = vmatprep.subr.mxu0 0.0
    %4529 = vmatpush2.msra.mxu0 0.0
    %4530 = vmatprep.subr.mxu0 0.0
    %4531 = vmatpush2.msra.mxu0 0.0
    %4532 = vmatprep.subr.mxu0 0.0
    %4533 = vmatpush2.msra.mxu0 0.0
    %4534 = vmatprep.subr.mxu0 0.0
    %4535 = vmatpush2.msra.mxu0 0.0
    %4536 = vmatprep.subr.mxu0 0.0
    %4537 = vmatpush2.msra.mxu0 0.0
    %4538 = vmatprep.subr.mxu0 0.0
    %4539 = vmatpush2.msra.mxu0 0.0
    %4540 = vmatprep.subr.mxu0 0.0
    %4541 = vmatpush2.msra.mxu0 0.0
    %4542 = vmatprep.subr.mxu0 0.0
    %4543 = vmatpush2.msra.mxu0 %v4462
    %4544 = vmatprep.mubr.f32.mxu0 %v2746
    %4545 = vmatmul.mubr.f32.gmra.mxu0 %v2705
    %v4546 = vpop.f32.mrf.mxu0
    %v4547 = vadd.f32 0.0, %v4546
    %v4548 = vpop.f32.mrf.mxu0
    %4549 = vmatprep.mubr.f32.mxu0 %v2748
    %4550 = vmatmul.mubr.f32.gmra.mxu0 %v2710
    %v4551 = vpop.f32.mrf.mxu0
    %v4552 = vadd.f32 0.0, %v4551
    %v4553 = vpop.f32.mrf.mxu0
    %4554 = vmatprep.mubr.f32.mxu0 %v2750
    %4555 = vmatmul.mubr.f32.gmra.mxu0 %v2714
    %v4556 = vpop.f32.mrf.mxu0
    %v4557 = vadd.f32 0.0, %v4556
    %v4558 = vpop.f32.mrf.mxu0
    %4559 = vmatprep.mubr.f32.mxu0 %v2752
    %4560 = vmatmul.mubr.f32.gmra.mxu0 %v2718
    %v4561 = vpop.f32.mrf.mxu0
    %v4562 = vadd.f32 0.0, %v4561
    %v4563 = vpop.f32.mrf.mxu0
    %4564 = vmatprep.mubr.f32.mxu0 %v2754
    %4565 = vmatmul.mubr.f32.gmra.mxu0 %v2722
    %v4566 = vpop.f32.mrf.mxu0
    %v4567 = vadd.f32 0.0, %v4566
    %v4568 = vpop.f32.mrf.mxu0
    %4569 = vmatprep.mubr.f32.mxu0 %v2756
    %4570 = vmatmul.mubr.f32.gmra.mxu0 %v2726
    %v4571 = vpop.f32.mrf.mxu0
    %v4572 = vadd.f32 0.0, %v4571
    %v4573 = vpop.f32.mrf.mxu0
    %4574 = vmatprep.mubr.f32.mxu0 %v2758
    %4575 = vmatmul.mubr.f32.gmra.mxu0 %v2730
    %v4576 = vpop.f32.mrf.mxu0
    %v4577 = vadd.f32 0.0, %v4576
    %v4578 = vpop.f32.mrf.mxu0
    %4579 = vmatprep.mubr.f32.mxu0 %v2760
    %4580 = vmatmul.mubr.f32.gmra.mxu0 %v2734
    %v4581 = vpop.f32.mrf.mxu0
    %v4582 = vadd.f32 0.0, %v4581
    %v4583 = vpop.f32.mrf.mxu0
    %4584 = vmatprep.mubr.f32.mxu0 %v2762
    %4585 = vmatmul.mubr.f32.gmra.mxu0 %v2733
    %v4586 = vpop.f32.mrf.mxu0
    %v4587 = vadd.f32 0.0, %v4586
    %v4588 = vpop.f32.mrf.mxu0
    %4589 = vdwg.mxu0
    %v4590 = vadd.f32 %v4267, %v4547
    %v4591 = vadd.f32 %v4272, %v4552
    %v4592 = vadd.f32 %v4277, %v4557
    %v4593 = vadd.f32 %v4282, %v4562
    %v4594 = vadd.f32 %v4287, %v4567
    %v4595 = vadd.f32 %v4292, %v4572
    %v4596 = vadd.f32 %v4297, %v4577
    %v4597 = vadd.f32 %v4302, %v4582
    %v4598 = vadd.f32 %v4307, %v4587
    %v4599 = vld [vmem:[%s2887] sm:$0xff]
    %v4600 = vld [vmem:[%s2887 + $0x8] sm:$0xff]
    %v4601 = vld [vmem:[%s2887 + $0x20] sm:$0xff]
    %v4602 = vld [vmem:[%s2887 + $0x28] sm:$0xff]
    %v4603 = vld [vmem:[%s2887 + $0x40] sm:$0xff]
    %v4604 = vld [vmem:[%s2887 + $0x48] sm:$0xff]
    %v4605 = vld [vmem:[%s2887 + $0x60] sm:$0xff]
    %v4606 = vld [vmem:[%s2887 + $0x68] sm:$0xff]
    %v4607 = vld [vmem:[%s2887 + $0x80] sm:$0xff]
    %v4608 = vld [vmem:[%s2887 + $0x88] sm:$0xff]
    %v4609 = vld [vmem:[%s2887 + $0xa0] sm:$0xff]
    %v4610 = vld [vmem:[%s2887 + $0xa8] sm:$0xff]
    %v4611 = vld [vmem:[%s2887 + $0xc0] sm:$0xff]
    %v4612 = vld [vmem:[%s2887 + $0xc8] sm:$0xff]
    %v4613 = vld [vmem:[%s2887 + $0xe0] sm:$0xff]
    %v4614 = vld [vmem:[%s2887 + $0xe8] sm:$0xff]
    %v4615 = vld [vmem:[%s2887 + $0x100] sm:$0xff]
    %v4616 = vld [vmem:[%s2887 + $0x108] sm:$0xff]
    %v4617 = vld [vmem:[%s2887 + $0x120] sm:$0xff]
    %v4618 = vld [vmem:[%s2887 + $0x128] sm:$0xff]
    %v4619 = vld [vmem:[%s2887 + $0x140] sm:$0xff]
    %v4620 = vld [vmem:[%s2887 + $0x148] sm:$0xff]
    %v4621 = vld [vmem:[%s2887 + $0x160] sm:$0xff]
    %v4622 = vld [vmem:[%s2887 + $0x168] sm:$0xff]
    %v4623 = vld [vmem:[%s2887 + $0x180] sm:$0xff]
    %v4624 = vld [vmem:[%s2887 + $0x188] sm:$0xff]
    %v4625 = vld [vmem:[%s2887 + $0x1a0] sm:$0xff]
    %v4626 = vld [vmem:[%s2887 + $0x1a8] sm:$0xff]
    %v4627 = vld [vmem:[%s2887 + $0x1c0] sm:$0xff]
    %v4628 = vld [vmem:[%s2887 + $0x1c8] sm:$0xff]
    %v4629 = vld [vmem:[%s2887 + $0x1e0] sm:$0xff]
    %v4630 = vld [vmem:[%s2887 + $0x1e8] sm:$0xff]
    %v4631 = vld [vmem:[%s2887 + $0x200] sm:$0xff]
    %v4632 = vld [vmem:[%s2887 + $0x208] sm:$0xff]
    %4667 = vrot.lane.b32.xlu0 %v4599, 16
    %v4668 = vpop.permute.xlu0 %4667
    %4669 = vrot.lane.b32.xlu0 %v4600, 16
    %v4670 = vpop.permute.xlu0 %4669
    %4671 = vrot.lane.b32.xlu0 %v4601, 16
    %v4672 = vpop.permute.xlu0 %4671
    %4673 = vrot.lane.b32.xlu0 %v4602, 16
    %v4674 = vpop.permute.xlu0 %4673
    %4675 = vrot.lane.b32.xlu0 %v4603, 16
    %v4676 = vpop.permute.xlu0 %4675
    %4677 = vrot.lane.b32.xlu0 %v4604, 16
    %v4678 = vpop.permute.xlu0 %4677
    %4679 = vrot.lane.b32.xlu0 %v4605, 16
    %v4680 = vpop.permute.xlu0 %4679
    %4681 = vrot.lane.b32.xlu0 %v4606, 16
    %v4682 = vpop.permute.xlu0 %4681
    %4683 = vrot.lane.b32.xlu0 %v4607, 16
    %v4684 = vpop.permute.xlu0 %4683
    %4685 = vrot.lane.b32.xlu0 %v4608, 16
    %v4686 = vpop.permute.xlu0 %4685
    %4687 = vrot.lane.b32.xlu0 %v4609, 16
    %v4688 = vpop.permute.xlu0 %4687
    %4689 = vrot.lane.b32.xlu0 %v4610, 16
    %v4690 = vpop.permute.xlu0 %4689
    %4691 = vrot.lane.b32.xlu0 %v4611, 16
    %v4692 = vpop.permute.xlu0 %4691
    %4693 = vrot.lane.b32.xlu0 %v4612, 16
    %v4694 = vpop.permute.xlu0 %4693
    %4695 = vrot.lane.b32.xlu0 %v4613, 16
    %v4696 = vpop.permute.xlu0 %4695
    %4697 = vrot.lane.b32.xlu0 %v4614, 16
    %v4698 = vpop.permute.xlu0 %4697
    %4699 = vrot.lane.b32.xlu0 %v4615, 16
    %v4700 = vpop.permute.xlu0 %4699
    %4701 = vrot.lane.b32.xlu0 %v4616, 16
    %v4702 = vpop.permute.xlu0 %4701
    %4703 = vrot.lane.b32.xlu0 %v4617, 16
    %v4704 = vpop.permute.xlu0 %4703
    %4705 = vrot.lane.b32.xlu0 %v4618, 16
    %v4706 = vpop.permute.xlu0 %4705
    %4707 = vrot.lane.b32.xlu0 %v4619, 16
    %v4708 = vpop.permute.xlu0 %4707
    %4709 = vrot.lane.b32.xlu0 %v4620, 16
    %v4710 = vpop.permute.xlu0 %4709
    %4711 = vrot.lane.b32.xlu0 %v4621, 16
    %v4712 = vpop.permute.xlu0 %4711
    %4713 = vrot.lane.b32.xlu0 %v4622, 16
    %v4714 = vpop.permute.xlu0 %4713
    %4715 = vrot.lane.b32.xlu0 %v4623, 16
    %v4716 = vpop.permute.xlu0 %4715
    %4717 = vrot.lane.b32.xlu0 %v4624, 16
    %v4718 = vpop.permute.xlu0 %4717
    %4719 = vrot.lane.b32.xlu0 %v4625, 16
    %v4720 = vpop.permute.xlu0 %4719
    %4721 = vrot.lane.b32.xlu0 %v4626, 16
    %v4722 = vpop.permute.xlu0 %4721
    %4723 = vrot.lane.b32.xlu0 %v4627, 16
    %v4724 = vpop.permute.xlu0 %4723
    %4725 = vrot.lane.b32.xlu0 %v4628, 16
    %v4726 = vpop.permute.xlu0 %4725
    %4727 = vrot.lane.b32.xlu0 %v4629, 16
    %v4728 = vpop.permute.xlu0 %4727
    %4729 = vrot.lane.b32.xlu0 %v4630, 16
    %v4730 = vpop.permute.xlu0 %4729
    %4731 = vrot.lane.b32.xlu0 %v4631, 16
    %v4732 = vpop.permute.xlu0 %4731
    %4733 = vrot.lane.b32.xlu0 %v4632, 16
    %v4734 = vpop.permute.xlu0 %4733
    %v4735 = vsel %vm3919, %v4668, %v4670
    %v4736 = vsel %vm3919, %v4672, %v4674
    %v4737 = vsel %vm3919, %v4676, %v4678
    %v4738 = vsel %vm3919, %v4680, %v4682
    %v4739 = vsel %vm3919, %v4684, %v4686
    %v4740 = vsel %vm3919, %v4688, %v4690
    %v4741 = vsel %vm3919, %v4692, %v4694
    %v4742 = vsel %vm3919, %v4696, %v4698
    %v4743 = vsel %vm3919, %v4700, %v4702
    %v4744 = vsel %vm3919, %v4704, %v4706
    %v4745 = vsel %vm3919, %v4708, %v4710
    %v4746 = vsel %vm3919, %v4712, %v4714
    %v4747 = vsel %vm3919, %v4716, %v4718
    %v4748 = vsel %vm3919, %v4720, %v4722
    %v4749 = vsel %vm3919, %v4724, %v4726
    %v4750 = vsel %vm3919, %v4728, %v4730
    %v4751 = vsel %vm3919, %v4732, %v4734
    %4769 = vmatprep.subr.mxu0 0.0
    %4770 = vmatpush1.msra.mxu0 %v4750
    %4771 = vmatprep.subr.mxu0 0.0
    %4772 = vmatpush1.msra.mxu0 %v4749
    %4773 = vmatprep.subr.mxu0 0.0
    %4774 = vmatpush1.msra.mxu0 %v4748
    %4775 = vmatprep.subr.mxu0 0.0
    %4776 = vmatpush1.msra.mxu0 %v4747
    %4777 = vmatprep.subr.mxu0 0.0
    %4778 = vmatpush1.msra.mxu0 %v4746
    %4779 = vmatprep.subr.mxu0 0.0
    %4780 = vmatpush1.msra.mxu0 %v4745
    %4781 = vmatprep.subr.mxu0 0.0
    %4782 = vmatpush1.msra.mxu0 %v4744
    %4783 = vmatprep.subr.mxu0 0.0
    %4784 = vmatpush1.msra.mxu0 %v4743
    %4785 = vmatprep.subr.mxu0 0.0
    %4786 = vmatpush1.msra.mxu0 %v4742
    %4787 = vmatprep.subr.mxu0 0.0
    %4788 = vmatpush1.msra.mxu0 %v4741
    %4789 = vmatprep.subr.mxu0 0.0
    %4790 = vmatpush1.msra.mxu0 %v4740
    %4791 = vmatprep.subr.mxu0 0.0
    %4792 = vmatpush1.msra.mxu0 %v4739
    %4793 = vmatprep.subr.mxu0 0.0
    %4794 = vmatpush1.msra.mxu0 %v4738
    %4795 = vmatprep.subr.mxu0 0.0
    %4796 = vmatpush1.msra.mxu0 %v4737
    %4797 = vmatprep.subr.mxu0 0.0
    %4798 = vmatpush1.msra.mxu0 %v4736
    %4799 = vmatprep.subr.mxu0 0.0
    %4800 = vmatpush1.msra.mxu0 %v4735
    %4801 = vmatprep.subr.mxu0 0.0
    %4802 = vmatpush2.msra.mxu0 0.0
    %4803 = vmatprep.subr.mxu0 0.0
    %4804 = vmatpush2.msra.mxu0 0.0
    %4805 = vmatprep.subr.mxu0 0.0
    %4806 = vmatpush2.msra.mxu0 0.0
    %4807 = vmatprep.subr.mxu0 0.0
    %4808 = vmatpush2.msra.mxu0 0.0
    %4809 = vmatprep.subr.mxu0 0.0
    %4810 = vmatpush2.msra.mxu0 0.0
    %4811 = vmatprep.subr.mxu0 0.0
    %4812 = vmatpush2.msra.mxu0 0.0
    %4813 = vmatprep.subr.mxu0 0.0
    %4814 = vmatpush2.msra.mxu0 0.0
    %4815 = vmatprep.subr.mxu0 0.0
    %4816 = vmatpush2.msra.mxu0 0.0
    %4817 = vmatprep.subr.mxu0 0.0
    %4818 = vmatpush2.msra.mxu0 0.0
    %4819 = vmatprep.subr.mxu0 0.0
    %4820 = vmatpush2.msra.mxu0 0.0
    %4821 = vmatprep.subr.mxu0 0.0
    %4822 = vmatpush2.msra.mxu0 0.0
    %4823 = vmatprep.subr.mxu0 0.0
    %4824 = vmatpush2.msra.mxu0 0.0
    %4825 = vmatprep.subr.mxu0 0.0
    %4826 = vmatpush2.msra.mxu0 0.0
    %4827 = vmatprep.subr.mxu0 0.0
    %4828 = vmatpush2.msra.mxu0 0.0
    %4829 = vmatprep.subr.mxu0 0.0
    %4830 = vmatpush2.msra.mxu0 0.0
    %4831 = vmatprep.subr.mxu0 0.0
    %4832 = vmatpush2.msra.mxu0 %v4751
    %4833 = vmatprep.mubr.f32.mxu0 %v2952
    %4834 = vmatmul.mubr.f32.gmra.mxu0 %v2911
    %v4835 = vpop.f32.mrf.mxu0
    %v4836 = vadd.f32 0.0, %v4835
    %v4837 = vpop.f32.mrf.mxu0
    %4838 = vmatprep.mubr.f32.mxu0 %v2954
    %4839 = vmatmul.mubr.f32.gmra.mxu0 %v2916
    %v4840 = vpop.f32.mrf.mxu0
    %v4841 = vadd.f32 0.0, %v4840
    %v4842 = vpop.f32.mrf.mxu0
    %4843 = vmatprep.mubr.f32.mxu0 %v2956
    %4844 = vmatmul.mubr.f32.gmra.mxu0 %v2920
    %v4845 = vpop.f32.mrf.mxu0
    %v4846 = vadd.f32 0.0, %v4845
    %v4847 = vpop.f32.mrf.mxu0
    %4848 = vmatprep.mubr.f32.mxu0 %v2958
    %4849 = vmatmul.mubr.f32.gmra.mxu0 %v2924
    %v4850 = vpop.f32.mrf.mxu0
    %v4851 = vadd.f32 0.0, %v4850
    %v4852 = vpop.f32.mrf.mxu0
    %4853 = vmatprep.mubr.f32.mxu0 %v2960
    %4854 = vmatmul.mubr.f32.gmra.mxu0 %v2928
    %v4855 = vpop.f32.mrf.mxu0
    %v4856 = vadd.f32 0.0, %v4855
    %v4857 = vpop.f32.mrf.mxu0
    %4858 = vmatprep.mubr.f32.mxu0 %v2962
    %4859 = vmatmul.mubr.f32.gmra.mxu0 %v2932
    %v4860 = vpop.f32.mrf.mxu0
    %v4861 = vadd.f32 0.0, %v4860
    %v4862 = vpop.f32.mrf.mxu0
    %4863 = vmatprep.mubr.f32.mxu0 %v2964
    %4864 = vmatmul.mubr.f32.gmra.mxu0 %v2936
    %v4865 = vpop.f32.mrf.mxu0
    %v4866 = vadd.f32 0.0, %v4865
    %v4867 = vpop.f32.mrf.mxu0
    %4868 = vmatprep.mubr.f32.mxu0 %v2966
    %4869 = vmatmul.mubr.f32.gmra.mxu0 %v2940
    %v4870 = vpop.f32.mrf.mxu0
    %v4871 = vadd.f32 0.0, %v4870
    %v4872 = vpop.f32.mrf.mxu0
    %4873 = vmatprep.mubr.f32.mxu0 %v2968
    %4874 = vmatmul.mubr.f32.gmra.mxu0 %v2939
    %v4875 = vpop.f32.mrf.mxu0
    %v4876 = vadd.f32 0.0, %v4875
    %v4877 = vpop.f32.mrf.mxu0
    %4878 = vdwg.mxu0
    %v4879 = vadd.f32 %v4590, %v4836
    %v4880 = vadd.f32 %v4591, %v4841
    %v4881 = vadd.f32 %v4592, %v4846
    %v4882 = vadd.f32 %v4593, %v4851
    %v4883 = vadd.f32 %v4594, %v4856
    %v4884 = vadd.f32 %v4595, %v4861
    %v4885 = vadd.f32 %v4596, %v4866
    %v4886 = vadd.f32 %v4597, %v4871
    %v4887 = vadd.f32 %v4598, %v4876
    %v4888 = vld [vmem:[%s3093] sm:$0xff]
    %v4889 = vld [vmem:[%s3093 + $0x8] sm:$0xff]
    %v4890 = vld [vmem:[%s3093 + $0x20] sm:$0xff]
    %v4891 = vld [vmem:[%s3093 + $0x28] sm:$0xff]
    %v4892 = vld [vmem:[%s3093 + $0x40] sm:$0xff]
    %v4893 = vld [vmem:[%s3093 + $0x48] sm:$0xff]
    %v4894 = vld [vmem:[%s3093 + $0x60] sm:$0xff]
    %v4895 = vld [vmem:[%s3093 + $0x68] sm:$0xff]
    %v4896 = vld [vmem:[%s3093 + $0x80] sm:$0xff]
    %v4897 = vld [vmem:[%s3093 + $0x88] sm:$0xff]
    %v4898 = vld [vmem:[%s3093 + $0xa0] sm:$0xff]
    %v4899 = vld [vmem:[%s3093 + $0xa8] sm:$0xff]
    %v4900 = vld [vmem:[%s3093 + $0xc0] sm:$0xff]
    %v4901 = vld [vmem:[%s3093 + $0xc8] sm:$0xff]
    %v4902 = vld [vmem:[%s3093 + $0xe0] sm:$0xff]
    %v4903 = vld [vmem:[%s3093 + $0xe8] sm:$0xff]
    %v4904 = vld [vmem:[%s3093 + $0x100] sm:$0xff]
    %v4905 = vld [vmem:[%s3093 + $0x108] sm:$0xff]
    %v4906 = vld [vmem:[%s3093 + $0x120] sm:$0xff]
    %v4907 = vld [vmem:[%s3093 + $0x128] sm:$0xff]
    %v4908 = vld [vmem:[%s3093 + $0x140] sm:$0xff]
    %v4909 = vld [vmem:[%s3093 + $0x148] sm:$0xff]
    %v4910 = vld [vmem:[%s3093 + $0x160] sm:$0xff]
    %v4911 = vld [vmem:[%s3093 + $0x168] sm:$0xff]
    %v4912 = vld [vmem:[%s3093 + $0x180] sm:$0xff]
    %v4913 = vld [vmem:[%s3093 + $0x188] sm:$0xff]
    %v4914 = vld [vmem:[%s3093 + $0x1a0] sm:$0xff]
    %v4915 = vld [vmem:[%s3093 + $0x1a8] sm:$0xff]
    %v4916 = vld [vmem:[%s3093 + $0x1c0] sm:$0xff]
    %v4917 = vld [vmem:[%s3093 + $0x1c8] sm:$0xff]
    %v4918 = vld [vmem:[%s3093 + $0x1e0] sm:$0xff]
    %v4919 = vld [vmem:[%s3093 + $0x1e8] sm:$0xff]
    %v4920 = vld [vmem:[%s3093 + $0x200] sm:$0xff]
    %v4921 = vld [vmem:[%s3093 + $0x208] sm:$0xff]
    %4956 = vrot.lane.b32.xlu0 %v4888, 16
    %v4957 = vpop.permute.xlu0 %4956
    %4958 = vrot.lane.b32.xlu0 %v4889, 16
    %v4959 = vpop.permute.xlu0 %4958
    %4960 = vrot.lane.b32.xlu0 %v4890, 16
    %v4961 = vpop.permute.xlu0 %4960
    %4962 = vrot.lane.b32.xlu0 %v4891, 16
    %v4963 = vpop.permute.xlu0 %4962
    %4964 = vrot.lane.b32.xlu0 %v4892, 16
    %v4965 = vpop.permute.xlu0 %4964
    %4966 = vrot.lane.b32.xlu0 %v4893, 16
    %v4967 = vpop.permute.xlu0 %4966
    %4968 = vrot.lane.b32.xlu0 %v4894, 16
    %v4969 = vpop.permute.xlu0 %4968
    %4970 = vrot.lane.b32.xlu0 %v4895, 16
    %v4971 = vpop.permute.xlu0 %4970
    %4972 = vrot.lane.b32.xlu0 %v4896, 16
    %v4973 = vpop.permute.xlu0 %4972
    %4974 = vrot.lane.b32.xlu0 %v4897, 16
    %v4975 = vpop.permute.xlu0 %4974
    %4976 = vrot.lane.b32.xlu0 %v4898, 16
    %v4977 = vpop.permute.xlu0 %4976
    %4978 = vrot.lane.b32.xlu0 %v4899, 16
    %v4979 = vpop.permute.xlu0 %4978
    %4980 = vrot.lane.b32.xlu0 %v4900, 16
    %v4981 = vpop.permute.xlu0 %4980
    %4982 = vrot.lane.b32.xlu0 %v4901, 16
    %v4983 = vpop.permute.xlu0 %4982
    %4984 = vrot.lane.b32.xlu0 %v4902, 16
    %v4985 = vpop.permute.xlu0 %4984
    %4986 = vrot.lane.b32.xlu0 %v4903, 16
    %v4987 = vpop.permute.xlu0 %4986
    %4988 = vrot.lane.b32.xlu0 %v4904, 16
    %v4989 = vpop.permute.xlu0 %4988
    %4990 = vrot.lane.b32.xlu0 %v4905, 16
    %v4991 = vpop.permute.xlu0 %4990
    %4992 = vrot.lane.b32.xlu0 %v4906, 16
    %v4993 = vpop.permute.xlu0 %4992
    %4994 = vrot.lane.b32.xlu0 %v4907, 16
    %v4995 = vpop.permute.xlu0 %4994
    %4996 = vrot.lane.b32.xlu0 %v4908, 16
    %v4997 = vpop.permute.xlu0 %4996
    %4998 = vrot.lane.b32.xlu0 %v4909, 16
    %v4999 = vpop.permute.xlu0 %4998
    %5000 = vrot.lane.b32.xlu0 %v4910, 16
    %v5001 = vpop.permute.xlu0 %5000
    %5002 = vrot.lane.b32.xlu0 %v4911, 16
    %v5003 = vpop.permute.xlu0 %5002
    %5004 = vrot.lane.b32.xlu0 %v4912, 16
    %v5005 = vpop.permute.xlu0 %5004
    %5006 = vrot.lane.b32.xlu0 %v4913, 16
    %v5007 = vpop.permute.xlu0 %5006
    %5008 = vrot.lane.b32.xlu0 %v4914, 16
    %v5009 = vpop.permute.xlu0 %5008
    %5010 = vrot.lane.b32.xlu0 %v4915, 16
    %v5011 = vpop.permute.xlu0 %5010
    %5012 = vrot.lane.b32.xlu0 %v4916, 16
    %v5013 = vpop.permute.xlu0 %5012
    %5014 = vrot.lane.b32.xlu0 %v4917, 16
    %v5015 = vpop.permute.xlu0 %5014
    %5016 = vrot.lane.b32.xlu0 %v4918, 16
    %v5017 = vpop.permute.xlu0 %5016
    %5018 = vrot.lane.b32.xlu0 %v4919, 16
    %v5019 = vpop.permute.xlu0 %5018
    %5020 = vrot.lane.b32.xlu0 %v4920, 16
    %v5021 = vpop.permute.xlu0 %5020
    %5022 = vrot.lane.b32.xlu0 %v4921, 16
    %v5023 = vpop.permute.xlu0 %5022
    %v5024 = vsel %vm3919, %v4957, %v4959
    %v5025 = vsel %vm3919, %v4961, %v4963
    %v5026 = vsel %vm3919, %v4965, %v4967
    %v5027 = vsel %vm3919, %v4969, %v4971
    %v5028 = vsel %vm3919, %v4973, %v4975
    %v5029 = vsel %vm3919, %v4977, %v4979
    %v5030 = vsel %vm3919, %v4981, %v4983
    %v5031 = vsel %vm3919, %v4985, %v4987
    %v5032 = vsel %vm3919, %v4989, %v4991
    %v5033 = vsel %vm3919, %v4993, %v4995
    %v5034 = vsel %vm3919, %v4997, %v4999
    %v5035 = vsel %vm3919, %v5001, %v5003
    %v5036 = vsel %vm3919, %v5005, %v5007
    %v5037 = vsel %vm3919, %v5009, %v5011
    %v5038 = vsel %vm3919, %v5013, %v5015
    %v5039 = vsel %vm3919, %v5017, %v5019
    %v5040 = vsel %vm3919, %v5021, %v5023
    %5058 = vmatprep.subr.mxu0 0.0
    %5059 = vmatpush1.msra.mxu0 %v5039
    %5060 = vmatprep.subr.mxu0 0.0
    %5061 = vmatpush1.msra.mxu0 %v5038
    %5062 = vmatprep.subr.mxu0 0.0
    %5063 = vmatpush1.msra.mxu0 %v5037
    %5064 = vmatprep.subr.mxu0 0.0
    %5065 = vmatpush1.msra.mxu0 %v5036
    %5066 = vmatprep.subr.mxu0 0.0
    %5067 = vmatpush1.msra.mxu0 %v5035
    %5068 = vmatprep.subr.mxu0 0.0
    %5069 = vmatpush1.msra.mxu0 %v5034
    %5070 = vmatprep.subr.mxu0 0.0
    %5071 = vmatpush1.msra.mxu0 %v5033
    %5072 = vmatprep.subr.mxu0 0.0
    %5073 = vmatpush1.msra.mxu0 %v5032
    %5074 = vmatprep.subr.mxu0 0.0
    %5075 = vmatpush1.msra.mxu0 %v5031
    %5076 = vmatprep.subr.mxu0 0.0
    %5077 = vmatpush1.msra.mxu0 %v5030
    %5078 = vmatprep.subr.mxu0 0.0
    %5079 = vmatpush1.msra.mxu0 %v5029
    %5080 = vmatprep.subr.mxu0 0.0
    %5081 = vmatpush1.msra.mxu0 %v5028
    %5082 = vmatprep.subr.mxu0 0.0
    %5083 = vmatpush1.msra.mxu0 %v5027
    %5084 = vmatprep.subr.mxu0 0.0
    %5085 = vmatpush1.msra.mxu0 %v5026
    %5086 = vmatprep.subr.mxu0 0.0
    %5087 = vmatpush1.msra.mxu0 %v5025
    %5088 = vmatprep.subr.mxu0 0.0
    %5089 = vmatpush1.msra.mxu0 %v5024
    %5090 = vmatprep.subr.mxu0 0.0
    %5091 = vmatpush2.msra.mxu0 0.0
    %5092 = vmatprep.subr.mxu0 0.0
    %5093 = vmatpush2.msra.mxu0 0.0
    %5094 = vmatprep.subr.mxu0 0.0
    %5095 = vmatpush2.msra.mxu0 0.0
    %5096 = vmatprep.subr.mxu0 0.0
    %5097 = vmatpush2.msra.mxu0 0.0
    %5098 = vmatprep.subr.mxu0 0.0
    %5099 = vmatpush2.msra.mxu0 0.0
    %5100 = vmatprep.subr.mxu0 0.0
    %5101 = vmatpush2.msra.mxu0 0.0
    %5102 = vmatprep.subr.mxu0 0.0
    %5103 = vmatpush2.msra.mxu0 0.0
    %5104 = vmatprep.subr.mxu0 0.0
    %5105 = vmatpush2.msra.mxu0 0.0
    %5106 = vmatprep.subr.mxu0 0.0
    %5107 = vmatpush2.msra.mxu0 0.0
    %5108 = vmatprep.subr.mxu0 0.0
    %5109 = vmatpush2.msra.mxu0 0.0
    %5110 = vmatprep.subr.mxu0 0.0
    %5111 = vmatpush2.msra.mxu0 0.0
    %5112 = vmatprep.subr.mxu0 0.0
    %5113 = vmatpush2.msra.mxu0 0.0
    %5114 = vmatprep.subr.mxu0 0.0
    %5115 = vmatpush2.msra.mxu0 0.0
    %5116 = vmatprep.subr.mxu0 0.0
    %5117 = vmatpush2.msra.mxu0 0.0
    %5118 = vmatprep.subr.mxu0 0.0
    %5119 = vmatpush2.msra.mxu0 0.0
    %5120 = vmatprep.subr.mxu0 0.0
    %5121 = vmatpush2.msra.mxu0 %v5040
    %5122 = vmatprep.mubr.f32.mxu0 %v3159
    %5123 = vmatmul.mubr.f32.gmra.mxu0 %v3118
    %v5124 = vpop.f32.mrf.mxu0
    %v5125 = vadd.f32 0.0, %v5124
    %v5126 = vpop.f32.mrf.mxu0
    %5127 = vmatprep.mubr.f32.mxu0 %v3161
    %5128 = vmatmul.mubr.f32.gmra.mxu0 %v3123
    %v5129 = vpop.f32.mrf.mxu0
    %v5130 = vadd.f32 0.0, %v5129
    %v5131 = vpop.f32.mrf.mxu0
    %5132 = vmatprep.mubr.f32.mxu0 %v3163
    %5133 = vmatmul.mubr.f32.gmra.mxu0 %v3127
    %v5134 = vpop.f32.mrf.mxu0
    %v5135 = vadd.f32 0.0, %v5134
    %v5136 = vpop.f32.mrf.mxu0
    %5137 = vmatprep.mubr.f32.mxu0 %v3165
    %5138 = vmatmul.mubr.f32.gmra.mxu0 %v3131
    %v5139 = vpop.f32.mrf.mxu0
    %v5140 = vadd.f32 0.0, %v5139
    %v5141 = vpop.f32.mrf.mxu0
    %5142 = vmatprep.mubr.f32.mxu0 %v3167
    %5143 = vmatmul.mubr.f32.gmra.mxu0 %v3135
    %v5144 = vpop.f32.mrf.mxu0
    %v5145 = vadd.f32 0.0, %v5144
    %v5146 = vpop.f32.mrf.mxu0
    %5147 = vmatprep.mubr.f32.mxu0 %v3169
    %5148 = vmatmul.mubr.f32.gmra.mxu0 %v3139
    %v5149 = vpop.f32.mrf.mxu0
    %v5150 = vadd.f32 0.0, %v5149
    %v5151 = vpop.f32.mrf.mxu0
    %5152 = vmatprep.mubr.f32.mxu0 %v3171
    %5153 = vmatmul.mubr.f32.gmra.mxu0 %v3143
    %v5154 = vpop.f32.mrf.mxu0
    %v5155 = vadd.f32 0.0, %v5154
    %v5156 = vpop.f32.mrf.mxu0
    %5157 = vmatprep.mubr.f32.mxu0 %v3173
    %5158 = vmatmul.mubr.f32.gmra.mxu0 %v3147
    %v5159 = vpop.f32.mrf.mxu0
    %v5160 = vadd.f32 0.0, %v5159
    %v5161 = vpop.f32.mrf.mxu0
    %5162 = vmatprep.mubr.f32.mxu0 %v3175
    %5163 = vmatmul.mubr.f32.gmra.mxu0 %v3146
    %v5164 = vpop.f32.mrf.mxu0
    %v5165 = vadd.f32 0.0, %v5164
    %v5166 = vpop.f32.mrf.mxu0
    %5167 = vdwg.mxu0
    %v5168 = vadd.f32 %v4879, %v5125
    %v5169 = vadd.f32 %v4880, %v5130
    %v5170 = vadd.f32 %v4881, %v5135
    %v5171 = vadd.f32 %v4882, %v5140
    %v5172 = vadd.f32 %v4883, %v5145
    %v5173 = vadd.f32 %v4884, %v5150
    %v5174 = vadd.f32 %v4885, %v5155
    %v5175 = vadd.f32 %v4886, %v5160
    %v5176 = vadd.f32 %v4887, %v5165
    %v5177 = vld [vmem:[%s3316] sm:$0xff]
    %v5178 = vld [vmem:[%s3316 + $0x8] sm:$0xff]
    %v5179 = vld [vmem:[%s3316 + $0x20] sm:$0xff]
    %v5180 = vld [vmem:[%s3316 + $0x28] sm:$0xff]
    %v5181 = vld [vmem:[%s3316 + $0x40] sm:$0xff]
    %v5182 = vld [vmem:[%s3316 + $0x48] sm:$0xff]
    %v5183 = vld [vmem:[%s3316 + $0x60] sm:$0xff]
    %v5184 = vld [vmem:[%s3316 + $0x68] sm:$0xff]
    %v5185 = vld [vmem:[%s3316 + $0x80] sm:$0xff]
    %v5186 = vld [vmem:[%s3316 + $0x88] sm:$0xff]
    %v5187 = vld [vmem:[%s3316 + $0xa0] sm:$0xff]
    %v5188 = vld [vmem:[%s3316 + $0xa8] sm:$0xff]
    %v5189 = vld [vmem:[%s3316 + $0xc0] sm:$0xff]
    %v5190 = vld [vmem:[%s3316 + $0xc8] sm:$0xff]
    %v5191 = vld [vmem:[%s3316 + $0xe0] sm:$0xff]
    %v5192 = vld [vmem:[%s3316 + $0xe8] sm:$0xff]
    %v5193 = vld [vmem:[%s3316 + $0x100] sm:$0xff]
    %v5194 = vld [vmem:[%s3316 + $0x108] sm:$0xff]
    %v5195 = vld [vmem:[%s3316 + $0x120] sm:$0xff]
    %v5196 = vld [vmem:[%s3316 + $0x128] sm:$0xff]
    %v5197 = vld [vmem:[%s3316 + $0x140] sm:$0xff]
    %v5198 = vld [vmem:[%s3316 + $0x148] sm:$0xff]
    %v5199 = vld [vmem:[%s3316 + $0x160] sm:$0xff]
    %v5200 = vld [vmem:[%s3316 + $0x168] sm:$0xff]
    %v5201 = vld [vmem:[%s3316 + $0x180] sm:$0xff]
    %v5202 = vld [vmem:[%s3316 + $0x188] sm:$0xff]
    %v5203 = vld [vmem:[%s3316 + $0x1a0] sm:$0xff]
    %v5204 = vld [vmem:[%s3316 + $0x1a8] sm:$0xff]
    %v5205 = vld [vmem:[%s3316 + $0x1c0] sm:$0xff]
    %v5206 = vld [vmem:[%s3316 + $0x1c8] sm:$0xff]
    %v5207 = vld [vmem:[%s3316 + $0x1e0] sm:$0xff]
    %v5208 = vld [vmem:[%s3316 + $0x1e8] sm:$0xff]
    %v5209 = vld [vmem:[%s3316 + $0x200] sm:$0xff]
    %v5210 = vld [vmem:[%s3316 + $0x208] sm:$0xff]
    %5245 = vrot.lane.b32.xlu0 %v5177, 16
    %v5246 = vpop.permute.xlu0 %5245
    %5247 = vrot.lane.b32.xlu0 %v5178, 16
    %v5248 = vpop.permute.xlu0 %5247
    %5249 = vrot.lane.b32.xlu0 %v5179, 16
    %v5250 = vpop.permute.xlu0 %5249
    %5251 = vrot.lane.b32.xlu0 %v5180, 16
    %v5252 = vpop.permute.xlu0 %5251
    %5253 = vrot.lane.b32.xlu0 %v5181, 16
    %v5254 = vpop.permute.xlu0 %5253
    %5255 = vrot.lane.b32.xlu0 %v5182, 16
    %v5256 = vpop.permute.xlu0 %5255
    %5257 = vrot.lane.b32.xlu0 %v5183, 16
    %v5258 = vpop.permute.xlu0 %5257
    %5259 = vrot.lane.b32.xlu0 %v5184, 16
    %v5260 = vpop.permute.xlu0 %5259
    %5261 = vrot.lane.b32.xlu0 %v5185, 16
    %v5262 = vpop.permute.xlu0 %5261
    %5263 = vrot.lane.b32.xlu0 %v5186, 16
    %v5264 = vpop.permute.xlu0 %5263
    %5265 = vrot.lane.b32.xlu0 %v5187, 16
    %v5266 = vpop.permute.xlu0 %5265
    %5267 = vrot.lane.b32.xlu0 %v5188, 16
    %v5268 = vpop.permute.xlu0 %5267
    %5269 = vrot.lane.b32.xlu0 %v5189, 16
    %v5270 = vpop.permute.xlu0 %5269
    %5271 = vrot.lane.b32.xlu0 %v5190, 16
    %v5272 = vpop.permute.xlu0 %5271
    %5273 = vrot.lane.b32.xlu0 %v5191, 16
    %v5274 = vpop.permute.xlu0 %5273
    %5275 = vrot.lane.b32.xlu0 %v5192, 16
    %v5276 = vpop.permute.xlu0 %5275
    %5277 = vrot.lane.b32.xlu0 %v5193, 16
    %v5278 = vpop.permute.xlu0 %5277
    %5279 = vrot.lane.b32.xlu0 %v5194, 16
    %v5280 = vpop.permute.xlu0 %5279
    %5281 = vrot.lane.b32.xlu0 %v5195, 16
    %v5282 = vpop.permute.xlu0 %5281
    %5283 = vrot.lane.b32.xlu0 %v5196, 16
    %v5284 = vpop.permute.xlu0 %5283
    %5285 = vrot.lane.b32.xlu0 %v5197, 16
    %v5286 = vpop.permute.xlu0 %5285
    %5287 = vrot.lane.b32.xlu0 %v5198, 16
    %v5288 = vpop.permute.xlu0 %5287
    %5289 = vrot.lane.b32.xlu0 %v5199, 16
    %v5290 = vpop.permute.xlu0 %5289
    %5291 = vrot.lane.b32.xlu0 %v5200, 16
    %v5292 = vpop.permute.xlu0 %5291
    %5293 = vrot.lane.b32.xlu0 %v5201, 16
    %v5294 = vpop.permute.xlu0 %5293
    %5295 = vrot.lane.b32.xlu0 %v5202, 16
    %v5296 = vpop.permute.xlu0 %5295
    %5297 = vrot.lane.b32.xlu0 %v5203, 16
    %v5298 = vpop.permute.xlu0 %5297
    %5299 = vrot.lane.b32.xlu0 %v5204, 16
    %v5300 = vpop.permute.xlu0 %5299
    %5301 = vrot.lane.b32.xlu0 %v5205, 16
    %v5302 = vpop.permute.xlu0 %5301
    %5303 = vrot.lane.b32.xlu0 %v5206, 16
    %v5304 = vpop.permute.xlu0 %5303
    %5305 = vrot.lane.b32.xlu0 %v5207, 16
    %v5306 = vpop.permute.xlu0 %5305
    %5307 = vrot.lane.b32.xlu0 %v5208, 16
    %v5308 = vpop.permute.xlu0 %5307
    %5309 = vrot.lane.b32.xlu0 %v5209, 16
    %v5310 = vpop.permute.xlu0 %5309
    %5311 = vrot.lane.b32.xlu0 %v5210, 16
    %v5312 = vpop.permute.xlu0 %5311
    %v5313 = vsel %vm3919, %v5246, %v5248
    %v5314 = vsel %vm3919, %v5250, %v5252
    %v5315 = vsel %vm3919, %v5254, %v5256
    %v5316 = vsel %vm3919, %v5258, %v5260
    %v5317 = vsel %vm3919, %v5262, %v5264
    %v5318 = vsel %vm3919, %v5266, %v5268
    %v5319 = vsel %vm3919, %v5270, %v5272
    %v5320 = vsel %vm3919, %v5274, %v5276
    %v5321 = vsel %vm3919, %v5278, %v5280
    %v5322 = vsel %vm3919, %v5282, %v5284
    %v5323 = vsel %vm3919, %v5286, %v5288
    %v5324 = vsel %vm3919, %v5290, %v5292
    %v5325 = vsel %vm3919, %v5294, %v5296
    %v5326 = vsel %vm3919, %v5298, %v5300
    %v5327 = vsel %vm3919, %v5302, %v5304
    %v5328 = vsel %vm3919, %v5306, %v5308
    %v5329 = vsel %vm3919, %v5310, %v5312
    %5347 = vmatprep.subr.mxu0 0.0
    %5348 = vmatpush1.msra.mxu0 %v5328
    %5349 = vmatprep.subr.mxu0 0.0
    %5350 = vmatpush1.msra.mxu0 %v5327
    %5351 = vmatprep.subr.mxu0 0.0
    %5352 = vmatpush1.msra.mxu0 %v5326
    %5353 = vmatprep.subr.mxu0 0.0
    %5354 = vmatpush1.msra.mxu0 %v5325
    %5355 = vmatprep.subr.mxu0 0.0
    %5356 = vmatpush1.msra.mxu0 %v5324
    %5357 = vmatprep.subr.mxu0 0.0
    %5358 = vmatpush1.msra.mxu0 %v5323
    %5359 = vmatprep.subr.mxu0 0.0
    %5360 = vmatpush1.msra.mxu0 %v5322
    %5361 = vmatprep.subr.mxu0 0.0
    %5362 = vmatpush1.msra.mxu0 %v5321
    %5363 = vmatprep.subr.mxu0 0.0
    %5364 = vmatpush1.msra.mxu0 %v5320
    %5365 = vmatprep.subr.mxu0 0.0
    %5366 = vmatpush1.msra.mxu0 %v5319
    %5367 = vmatprep.subr.mxu0 0.0
    %5368 = vmatpush1.msra.mxu0 %v5318
    %5369 = vmatprep.subr.mxu0 0.0
    %5370 = vmatpush1.msra.mxu0 %v5317
    %5371 = vmatprep.subr.mxu0 0.0
    %5372 = vmatpush1.msra.mxu0 %v5316
    %5373 = vmatprep.subr.mxu0 0.0
    %5374 = vmatpush1.msra.mxu0 %v5315
    %5375 = vmatprep.subr.mxu0 0.0
    %5376 = vmatpush1.msra.mxu0 %v5314
    %5377 = vmatprep.subr.mxu0 0.0
    %5378 = vmatpush1.msra.mxu0 %v5313
    %5379 = vmatprep.subr.mxu0 0.0
    %5380 = vmatpush2.msra.mxu0 0.0
    %5381 = vmatprep.subr.mxu0 0.0
    %5382 = vmatpush2.msra.mxu0 0.0
    %5383 = vmatprep.subr.mxu0 0.0
    %5384 = vmatpush2.msra.mxu0 0.0
    %5385 = vmatprep.subr.mxu0 0.0
    %5386 = vmatpush2.msra.mxu0 0.0
    %5387 = vmatprep.subr.mxu0 0.0
    %5388 = vmatpush2.msra.mxu0 0.0
    %5389 = vmatprep.subr.mxu0 0.0
    %5390 = vmatpush2.msra.mxu0 0.0
    %5391 = vmatprep.subr.mxu0 0.0
    %5392 = vmatpush2.msra.mxu0 0.0
    %5393 = vmatprep.subr.mxu0 0.0
    %5394 = vmatpush2.msra.mxu0 0.0
    %5395 = vmatprep.subr.mxu0 0.0
    %5396 = vmatpush2.msra.mxu0 0.0
    %5397 = vmatprep.subr.mxu0 0.0
    %5398 = vmatpush2.msra.mxu0 0.0
    %5399 = vmatprep.subr.mxu0 0.0
    %5400 = vmatpush2.msra.mxu0 0.0
    %5401 = vmatprep.subr.mxu0 0.0
    %5402 = vmatpush2.msra.mxu0 0.0
    %5403 = vmatprep.subr.mxu0 0.0
    %5404 = vmatpush2.msra.mxu0 0.0
    %5405 = vmatprep.subr.mxu0 0.0
    %5406 = vmatpush2.msra.mxu0 0.0
    %5407 = vmatprep.subr.mxu0 0.0
    %5408 = vmatpush2.msra.mxu0 0.0
    %5409 = vmatprep.subr.mxu0 0.0
    %5410 = vmatpush2.msra.mxu0 %v5329
    %5411 = vmatprep.mubr.f32.mxu0 %v3401
    %5412 = vmatmul.mubr.f32.gmra.mxu0 %v3356
    %v5413 = vpop.f32.mrf.mxu0
    %v5414 = vadd.f32 0.0, %v5413
    %v5415 = vpop.f32.mrf.mxu0
    %5416 = vmatprep.mubr.f32.mxu0 %v3403
    %5417 = vmatmul.mubr.f32.gmra.mxu0 %v3361
    %v5418 = vpop.f32.mrf.mxu0
    %v5419 = vadd.f32 0.0, %v5418
    %v5420 = vpop.f32.mrf.mxu0
    %5421 = vmatprep.mubr.f32.mxu0 %v3405
    %5422 = vmatmul.mubr.f32.gmra.mxu0 %v3365
    %v5423 = vpop.f32.mrf.mxu0
    %v5424 = vadd.f32 0.0, %v5423
    %v5425 = vpop.f32.mrf.mxu0
    %5426 = vmatprep.mubr.f32.mxu0 %v3407
    %5427 = vmatmul.mubr.f32.gmra.mxu0 %v3369
    %v5428 = vpop.f32.mrf.mxu0
    %v5429 = vadd.f32 0.0, %v5428
    %v5430 = vpop.f32.mrf.mxu0
    %5431 = vmatprep.mubr.f32.mxu0 %v3409
    %5432 = vmatmul.mubr.f32.gmra.mxu0 %v3373
    %v5433 = vpop.f32.mrf.mxu0
    %v5434 = vadd.f32 0.0, %v5433
    %v5435 = vpop.f32.mrf.mxu0
    %5436 = vmatprep.mubr.f32.mxu0 %v3411
    %5437 = vmatmul.mubr.f32.gmra.mxu0 %v3377
    %v5438 = vpop.f32.mrf.mxu0
    %v5439 = vadd.f32 0.0, %v5438
    %v5440 = vpop.f32.mrf.mxu0
    %5441 = vmatprep.mubr.f32.mxu0 %v3413
    %5442 = vmatmul.mubr.f32.gmra.mxu0 %v3381
    %v5443 = vpop.f32.mrf.mxu0
    %v5444 = vadd.f32 0.0, %v5443
    %v5445 = vpop.f32.mrf.mxu0
    %5446 = vmatprep.mubr.f32.mxu0 %v3415
    %5447 = vmatmul.mubr.f32.gmra.mxu0 %v3385
    %v5448 = vpop.f32.mrf.mxu0
    %v5449 = vadd.f32 0.0, %v5448
    %v5450 = vpop.f32.mrf.mxu0
    %5451 = vmatprep.mubr.f32.mxu0 %v3417
    %5452 = vmatmul.mubr.f32.gmra.mxu0 %v3389
    %v5453 = vpop.f32.mrf.mxu0
    %v5454 = vadd.f32 0.0, %v5453
    %v5455 = vpop.f32.mrf.mxu0
    %5456 = vdwg.mxu0
    %v5457 = vadd.f32 %v5168, %v5414
    %v5458 = vadd.f32 %v5169, %v5419
    %v5459 = vadd.f32 %v5170, %v5424
    %v5460 = vadd.f32 %v5171, %v5429
    %v5461 = vadd.f32 %v5172, %v5434
    %v5462 = vadd.f32 %v5173, %v5439
    %v5463 = vadd.f32 %v5174, %v5444
    %v5464 = vadd.f32 %v5175, %v5449
    %v5465 = vadd.f32 %v5176, %v5454
    %v5466 = vld [vmem:[%s3542] sm:$0xff]
    %v5467 = vld [vmem:[%s3542 + $0x8] sm:$0xff]
    %v5468 = vld [vmem:[%s3542 + $0x20] sm:$0xff]
    %v5469 = vld [vmem:[%s3542 + $0x28] sm:$0xff]
    %v5470 = vld [vmem:[%s3542 + $0x40] sm:$0xff]
    %v5471 = vld [vmem:[%s3542 + $0x48] sm:$0xff]
    %v5472 = vld [vmem:[%s3542 + $0x60] sm:$0xff]
    %v5473 = vld [vmem:[%s3542 + $0x68] sm:$0xff]
    %v5474 = vld [vmem:[%s3542 + $0x80] sm:$0xff]
    %v5475 = vld [vmem:[%s3542 + $0x88] sm:$0xff]
    %v5476 = vld [vmem:[%s3542 + $0xa0] sm:$0xff]
    %v5477 = vld [vmem:[%s3542 + $0xa8] sm:$0xff]
    %v5478 = vld [vmem:[%s3542 + $0xc0] sm:$0xff]
    %v5479 = vld [vmem:[%s3542 + $0xc8] sm:$0xff]
    %v5480 = vld [vmem:[%s3542 + $0xe0] sm:$0xff]
    %v5481 = vld [vmem:[%s3542 + $0xe8] sm:$0xff]
    %v5482 = vld [vmem:[%s3542 + $0x100] sm:$0xff]
    %v5483 = vld [vmem:[%s3542 + $0x108] sm:$0xff]
    %v5484 = vld [vmem:[%s3542 + $0x120] sm:$0xff]
    %v5485 = vld [vmem:[%s3542 + $0x128] sm:$0xff]
    %v5486 = vld [vmem:[%s3542 + $0x140] sm:$0xff]
    %v5487 = vld [vmem:[%s3542 + $0x148] sm:$0xff]
    %v5488 = vld [vmem:[%s3542 + $0x160] sm:$0xff]
    %v5489 = vld [vmem:[%s3542 + $0x168] sm:$0xff]
    %v5490 = vld [vmem:[%s3542 + $0x180] sm:$0xff]
    %v5491 = vld [vmem:[%s3542 + $0x188] sm:$0xff]
    %v5492 = vld [vmem:[%s3542 + $0x1a0] sm:$0xff]
    %v5493 = vld [vmem:[%s3542 + $0x1a8] sm:$0xff]
    %v5494 = vld [vmem:[%s3542 + $0x1c0] sm:$0xff]
    %v5495 = vld [vmem:[%s3542 + $0x1c8] sm:$0xff]
    %v5496 = vld [vmem:[%s3542 + $0x1e0] sm:$0xff]
    %v5497 = vld [vmem:[%s3542 + $0x1e8] sm:$0xff]
    %v5498 = vld [vmem:[%s3542 + $0x200] sm:$0xff]
    %v5499 = vld [vmem:[%s3542 + $0x208] sm:$0xff]
    %5534 = vrot.lane.b32.xlu0 %v5466, 16
    %v5535 = vpop.permute.xlu0 %5534
    %5536 = vrot.lane.b32.xlu0 %v5467, 16
    %v5537 = vpop.permute.xlu0 %5536
    %5538 = vrot.lane.b32.xlu0 %v5468, 16
    %v5539 = vpop.permute.xlu0 %5538
    %5540 = vrot.lane.b32.xlu0 %v5469, 16
    %v5541 = vpop.permute.xlu0 %5540
    %5542 = vrot.lane.b32.xlu0 %v5470, 16
    %v5543 = vpop.permute.xlu0 %5542
    %5544 = vrot.lane.b32.xlu0 %v5471, 16
    %v5545 = vpop.permute.xlu0 %5544
    %5546 = vrot.lane.b32.xlu0 %v5472, 16
    %v5547 = vpop.permute.xlu0 %5546
    %5548 = vrot.lane.b32.xlu0 %v5473, 16
    %v5549 = vpop.permute.xlu0 %5548
    %5550 = vrot.lane.b32.xlu0 %v5474, 16
    %v5551 = vpop.permute.xlu0 %5550
    %5552 = vrot.lane.b32.xlu0 %v5475, 16
    %v5553 = vpop.permute.xlu0 %5552
    %5554 = vrot.lane.b32.xlu0 %v5476, 16
    %v5555 = vpop.permute.xlu0 %5554
    %5556 = vrot.lane.b32.xlu0 %v5477, 16
    %v5557 = vpop.permute.xlu0 %5556
    %5558 = vrot.lane.b32.xlu0 %v5478, 16
    %v5559 = vpop.permute.xlu0 %5558
    %5560 = vrot.lane.b32.xlu0 %v5479, 16
    %v5561 = vpop.permute.xlu0 %5560
    %5562 = vrot.lane.b32.xlu0 %v5480, 16
    %v5563 = vpop.permute.xlu0 %5562
    %5564 = vrot.lane.b32.xlu0 %v5481, 16
    %v5565 = vpop.permute.xlu0 %5564
    %5566 = vrot.lane.b32.xlu0 %v5482, 16
    %v5567 = vpop.permute.xlu0 %5566
    %5568 = vrot.lane.b32.xlu0 %v5483, 16
    %v5569 = vpop.permute.xlu0 %5568
    %5570 = vrot.lane.b32.xlu0 %v5484, 16
    %v5571 = vpop.permute.xlu0 %5570
    %5572 = vrot.lane.b32.xlu0 %v5485, 16
    %v5573 = vpop.permute.xlu0 %5572
    %5574 = vrot.lane.b32.xlu0 %v5486, 16
    %v5575 = vpop.permute.xlu0 %5574
    %5576 = vrot.lane.b32.xlu0 %v5487, 16
    %v5577 = vpop.permute.xlu0 %5576
    %5578 = vrot.lane.b32.xlu0 %v5488, 16
    %v5579 = vpop.permute.xlu0 %5578
    %5580 = vrot.lane.b32.xlu0 %v5489, 16
    %v5581 = vpop.permute.xlu0 %5580
    %5582 = vrot.lane.b32.xlu0 %v5490, 16
    %v5583 = vpop.permute.xlu0 %5582
    %5584 = vrot.lane.b32.xlu0 %v5491, 16
    %v5585 = vpop.permute.xlu0 %5584
    %5586 = vrot.lane.b32.xlu0 %v5492, 16
    %v5587 = vpop.permute.xlu0 %5586
    %5588 = vrot.lane.b32.xlu0 %v5493, 16
    %v5589 = vpop.permute.xlu0 %5588
    %5590 = vrot.lane.b32.xlu0 %v5494, 16
    %v5591 = vpop.permute.xlu0 %5590
    %5592 = vrot.lane.b32.xlu0 %v5495, 16
    %v5593 = vpop.permute.xlu0 %5592
    %5594 = vrot.lane.b32.xlu0 %v5496, 16
    %v5595 = vpop.permute.xlu0 %5594
    %5596 = vrot.lane.b32.xlu0 %v5497, 16
    %v5597 = vpop.permute.xlu0 %5596
    %5598 = vrot.lane.b32.xlu0 %v5498, 16
    %v5599 = vpop.permute.xlu0 %5598
    %5600 = vrot.lane.b32.xlu0 %v5499, 16
    %v5601 = vpop.permute.xlu0 %5600
    %v5602 = vsel %vm3919, %v5535, %v5537
    %v5603 = vsel %vm3919, %v5539, %v5541
    %v5604 = vsel %vm3919, %v5543, %v5545
    %v5605 = vsel %vm3919, %v5547, %v5549
    %v5606 = vsel %vm3919, %v5551, %v5553
    %v5607 = vsel %vm3919, %v5555, %v5557
    %v5608 = vsel %vm3919, %v5559, %v5561
    %v5609 = vsel %vm3919, %v5563, %v5565
    %v5610 = vsel %vm3919, %v5567, %v5569
    %v5611 = vsel %vm3919, %v5571, %v5573
    %v5612 = vsel %vm3919, %v5575, %v5577
    %v5613 = vsel %vm3919, %v5579, %v5581
    %v5614 = vsel %vm3919, %v5583, %v5585
    %v5615 = vsel %vm3919, %v5587, %v5589
    %v5616 = vsel %vm3919, %v5591, %v5593
    %v5617 = vsel %vm3919, %v5595, %v5597
    %v5618 = vsel %vm3919, %v5599, %v5601
    %5636 = vmatprep.subr.mxu0 0.0
    %5637 = vmatpush1.msra.mxu0 %v5617
    %5638 = vmatprep.subr.mxu0 0.0
    %5639 = vmatpush1.msra.mxu0 %v5616
    %5640 = vmatprep.subr.mxu0 0.0
    %5641 = vmatpush1.msra.mxu0 %v5615
    %5642 = vmatprep.subr.mxu0 0.0
    %5643 = vmatpush1.msra.mxu0 %v5614
    %5644 = vmatprep.subr.mxu0 0.0
    %5645 = vmatpush1.msra.mxu0 %v5613
    %5646 = vmatprep.subr.mxu0 0.0
    %5647 = vmatpush1.msra.mxu0 %v5612
    %5648 = vmatprep.subr.mxu0 0.0
    %5649 = vmatpush1.msra.mxu0 %v5611
    %5650 = vmatprep.subr.mxu0 0.0
    %5651 = vmatpush1.msra.mxu0 %v5610
    %5652 = vmatprep.subr.mxu0 0.0
    %5653 = vmatpush1.msra.mxu0 %v5609
    %5654 = vmatprep.subr.mxu0 0.0
    %5655 = vmatpush1.msra.mxu0 %v5608
    %5656 = vmatprep.subr.mxu0 0.0
    %5657 = vmatpush1.msra.mxu0 %v5607
    %5658 = vmatprep.subr.mxu0 0.0
    %5659 = vmatpush1.msra.mxu0 %v5606
    %5660 = vmatprep.subr.mxu0 0.0
    %5661 = vmatpush1.msra.mxu0 %v5605
    %5662 = vmatprep.subr.mxu0 0.0
    %5663 = vmatpush1.msra.mxu0 %v5604
    %5664 = vmatprep.subr.mxu0 0.0
    %5665 = vmatpush1.msra.mxu0 %v5603
    %5666 = vmatprep.subr.mxu0 0.0
    %5667 = vmatpush1.msra.mxu0 %v5602
    %5668 = vmatprep.subr.mxu0 0.0
    %5669 = vmatpush2.msra.mxu0 0.0
    %5670 = vmatprep.subr.mxu0 0.0
    %5671 = vmatpush2.msra.mxu0 0.0
    %5672 = vmatprep.subr.mxu0 0.0
    %5673 = vmatpush2.msra.mxu0 0.0
    %5674 = vmatprep.subr.mxu0 0.0
    %5675 = vmatpush2.msra.mxu0 0.0
    %5676 = vmatprep.subr.mxu0 0.0
    %5677 = vmatpush2.msra.mxu0 0.0
    %5678 = vmatprep.subr.mxu0 0.0
    %5679 = vmatpush2.msra.mxu0 0.0
    %5680 = vmatprep.subr.mxu0 0.0
    %5681 = vmatpush2.msra.mxu0 0.0
    %5682 = vmatprep.subr.mxu0 0.0
    %5683 = vmatpush2.msra.mxu0 0.0
    %5684 = vmatprep.subr.mxu0 0.0
    %5685 = vmatpush2.msra.mxu0 0.0
    %5686 = vmatprep.subr.mxu0 0.0
    %5687 = vmatpush2.msra.mxu0 0.0
    %5688 = vmatprep.subr.mxu0 0.0
    %5689 = vmatpush2.msra.mxu0 0.0
    %5690 = vmatprep.subr.mxu0 0.0
    %5691 = vmatpush2.msra.mxu0 0.0
    %5692 = vmatprep.subr.mxu0 0.0
    %5693 = vmatpush2.msra.mxu0 0.0
    %5694 = vmatprep.subr.mxu0 0.0
    %5695 = vmatpush2.msra.mxu0 0.0
    %5696 = vmatprep.subr.mxu0 0.0
    %5697 = vmatpush2.msra.mxu0 0.0
    %5698 = vmatprep.subr.mxu0 0.0
    %5699 = vmatpush2.msra.mxu0 %v5618
    %5700 = vmatprep.mubr.f32.mxu0 %v3612
    %5701 = vmatmul.mubr.f32.gmra.mxu0 %v3567
    %v5702 = vpop.f32.mrf.mxu0
    %v5703 = vadd.f32 0.0, %v5702
    %v5704 = vpop.f32.mrf.mxu0
    %5705 = vmatprep.mubr.f32.mxu0 %v3614
    %5706 = vmatmul.mubr.f32.gmra.mxu0 %v3572
    %v5707 = vpop.f32.mrf.mxu0
    %v5708 = vadd.f32 0.0, %v5707
    %v5709 = vpop.f32.mrf.mxu0
    %5710 = vmatprep.mubr.f32.mxu0 %v3616
    %5711 = vmatmul.mubr.f32.gmra.mxu0 %v3576
    %v5712 = vpop.f32.mrf.mxu0
    %v5713 = vadd.f32 0.0, %v5712
    %v5714 = vpop.f32.mrf.mxu0
    %5715 = vmatprep.mubr.f32.mxu0 %v3618
    %5716 = vmatmul.mubr.f32.gmra.mxu0 %v3580
    %v5717 = vpop.f32.mrf.mxu0
    %v5718 = vadd.f32 0.0, %v5717
    %v5719 = vpop.f32.mrf.mxu0
    %5720 = vmatprep.mubr.f32.mxu0 %v3620
    %5721 = vmatmul.mubr.f32.gmra.mxu0 %v3584
    %v5722 = vpop.f32.mrf.mxu0
    %v5723 = vadd.f32 0.0, %v5722
    %v5724 = vpop.f32.mrf.mxu0
    %5725 = vmatprep.mubr.f32.mxu0 %v3622
    %5726 = vmatmul.mubr.f32.gmra.mxu0 %v3588
    %v5727 = vpop.f32.mrf.mxu0
    %v5728 = vadd.f32 0.0, %v5727
    %v5729 = vpop.f32.mrf.mxu0
    %5730 = vmatprep.mubr.f32.mxu0 %v3624
    %5731 = vmatmul.mubr.f32.gmra.mxu0 %v3592
    %v5732 = vpop.f32.mrf.mxu0
    %v5733 = vadd.f32 0.0, %v5732
    %v5734 = vpop.f32.mrf.mxu0
    %5735 = vmatprep.mubr.f32.mxu0 %v3626
    %5736 = vmatmul.mubr.f32.gmra.mxu0 %v3596
    %v5737 = vpop.f32.mrf.mxu0
    %v5738 = vadd.f32 0.0, %v5737
    %v5739 = vpop.f32.mrf.mxu0
    %5740 = vmatprep.mubr.f32.mxu0 %v3628
    %5741 = vmatmul.mubr.f32.gmra.mxu0 %v3600
    %v5742 = vpop.f32.mrf.mxu0
    %v5743 = vadd.f32 0.0, %v5742
    %v5744 = vpop.f32.mrf.mxu0
    %5745 = vdwg.mxu0
    %v5746 = vadd.f32 %v5457, %v5703
    %v5747 = vadd.f32 %v5458, %v5708
    %v5748 = vadd.f32 %v5459, %v5713
    %v5749 = vadd.f32 %v5460, %v5718
    %v5750 = vadd.f32 %v5461, %v5723
    %v5751 = vadd.f32 %v5462, %v5728
    %v5752 = vadd.f32 %v5463, %v5733
    %v5753 = vadd.f32 %v5464, %v5738
    %v5754 = vadd.f32 %v5465, %v5743
    %v5755 = vmul.f32 %v5746, %v3740
    %v5756 = vmul.f32 %v5747, %v3741
    %v5757 = vmul.f32 %v5748, %v3742
    %v5758 = vmul.f32 %v5749, %v3743
    %v5759 = vmul.f32 %v5750, %v3744
    %v5760 = vmul.f32 %v5751, %v3745
    %v5761 = vmul.f32 %v5752, %v3746
    %v5762 = vmul.f32 %v5753, %v3747
    %v5763 = vmul.f32 %v5754, %v3748
    %v5764 = vadd.f32 %v5755, %v3740
    %v5765 = vadd.f32 %v5756, %v3741
    %v5766 = vadd.f32 %v5757, %v3742
    %v5767 = vadd.f32 %v5758, %v3743
    %v5768 = vadd.f32 %v5759, %v3744
    %v5769 = vadd.f32 %v5760, %v3745
    %v5770 = vadd.f32 %v5761, %v3746
    %v5771 = vadd.f32 %v5762, %v3747
    %v5772 = vadd.f32 %v5763, %v3748
    %vm5773 = vcmask 556032
    %v5775 = vsel %vm5773, %v2274, 0
    %v5778 = vsel %vm5773, %v2275, 0
    %v5781 = vsel %vm5773, %v2276, 0
    %v5784 = vsel %vm5773, %v2277, 0
    %v5787 = vsel %vm3115, %v5772, 0
    %5789 = vmatprep.subr.mxu0 0.0
    %5790 = vmatpush1.msra.mxu0 0.0
    %5791 = vmatprep.subr.mxu0 0.0
    %5792 = vmatpush1.msra.mxu0 0.0
    %5793 = vmatprep.subr.mxu0 0.0
    %5794 = vmatpush1.msra.mxu0 0.0
    %5795 = vmatprep.subr.mxu0 0.0
    %5796 = vmatpush1.msra.mxu0 0.0
    %5797 = vmatprep.subr.mxu0 0.0
    %5798 = vmatpush1.msra.mxu0 0.0
    %5799 = vmatprep.subr.mxu0 0.0
    %5800 = vmatpush1.msra.mxu0 0.0
    %5801 = vmatprep.subr.mxu0 0.0
    %5802 = vmatpush1.msra.mxu0 0.0
    %5803 = vmatprep.subr.mxu0 0.0
    %5804 = vmatpush1.msra.mxu0 %v5787
    %5805 = vmatprep.subr.mxu0 0.0
    %5806 = vmatpush1.msra.mxu0 %v5771
    %5807 = vmatprep.subr.mxu0 0.0
    %5808 = vmatpush1.msra.mxu0 %v5770
    %5809 = vmatprep.subr.mxu0 0.0
    %5810 = vmatpush1.msra.mxu0 %v5769
    %5811 = vmatprep.subr.mxu0 0.0
    %5812 = vmatpush1.msra.mxu0 %v5768
    %5813 = vmatprep.subr.mxu0 0.0
    %5814 = vmatpush1.msra.mxu0 %v5767
    %5815 = vmatprep.subr.mxu0 0.0
    %5816 = vmatpush1.msra.mxu0 %v5766
    %5817 = vmatprep.subr.mxu0 0.0
    %5818 = vmatpush1.msra.mxu0 %v5765
    %5819 = vmatprep.subr.mxu0 0.0
    %5820 = vmatpush1.msra.mxu0 %v5764
    %5821 = vmatprep.subr.mxu0 0.0
    %5822 = vmatpush2.msra.mxu0 0.0
    %5823 = vmatprep.subr.mxu0 0.0
    %5824 = vmatpush2.msra.mxu0 0.0
    %5825 = vmatprep.subr.mxu0 0.0
    %5826 = vmatpush2.msra.mxu0 0.0
    %5827 = vmatprep.subr.mxu0 0.0
    %5828 = vmatpush2.msra.mxu0 0.0
    %5829 = vmatprep.subr.mxu0 0.0
    %5830 = vmatpush2.msra.mxu0 0.0
    %5831 = vmatprep.subr.mxu0 0.0
    %5832 = vmatpush2.msra.mxu0 0.0
    %5833 = vmatprep.subr.mxu0 0.0
    %5834 = vmatpush2.msra.mxu0 0.0
    %5835 = vmatprep.subr.mxu0 0.0
    %5836 = vmatpush2.msra.mxu0 0.0
    %5837 = vmatprep.subr.mxu0 0.0
    %5838 = vmatpush2.msra.mxu0 0.0
    %5839 = vmatprep.subr.mxu0 0.0
    %5840 = vmatpush2.msra.mxu0 0.0
    %5841 = vmatprep.subr.mxu0 0.0
    %5842 = vmatpush2.msra.mxu0 0.0
    %5843 = vmatprep.subr.mxu0 0.0
    %5844 = vmatpush2.msra.mxu0 0.0
    %5845 = vmatprep.subr.mxu0 0.0
    %5846 = vmatpush2.msra.mxu0 0.0
    %5847 = vmatprep.subr.mxu0 0.0
    %5848 = vmatpush2.msra.mxu0 0.0
    %5849 = vmatprep.subr.mxu0 0.0
    %5850 = vmatpush2.msra.mxu0 0.0
    %5851 = vmatprep.subr.mxu0 0.0
    %5852 = vmatpush2.msra.mxu0 0.0
    %5853 = vmatprep.mubr.f32.mxu0 0.0
    %5854 = vmatmul.mubr.f32.gmra.mxu0 %v5775
    %v5855 = vpop.f32.mrf.mxu0
    %v5856 = vadd.f32 0.0, %v5855
    %v5857 = vpop.f32.mrf.mxu0
    %5858 = vmatprep.mubr.f32.mxu0 0.0
    %5859 = vmatmul.mubr.f32.gmra.mxu0 %v5778
    %v5860 = vpop.f32.mrf.mxu0
    %v5861 = vadd.f32 0.0, %v5860
    %v5862 = vpop.f32.mrf.mxu0
    %5863 = vmatprep.mubr.f32.mxu0 0.0
    %5864 = vmatmul.mubr.f32.gmra.mxu0 %v5781
    %v5865 = vpop.f32.mrf.mxu0
    %v5866 = vadd.f32 0.0, %v5865
    %v5867 = vpop.f32.mrf.mxu0
    %5868 = vmatprep.mubr.f32.mxu0 0.0
    %5869 = vmatmul.mubr.f32.gmra.mxu0 %v5784
    %v5870 = vpop.f32.mrf.mxu0
    %v5871 = vadd.f32 0.0, %v5870
    %v5872 = vpop.f32.mrf.mxu0
    %5873 = vdwg.mxu0
    %vm5874 = vcmask 916480
    %v5876 = vsel %vm5874, %v5856, 0
    %v5879 = vsel %vm5874, %v5861, 0
    %v5882 = vsel %vm5874, %v5866, 0
    %v5885 = vsel %vm5874, %v5871, 0
    %5887 = vmatprep.subr.mxu0 0.0
    %5888 = vmatpush1.msra.mxu0 0.0
    %5889 = vmatprep.subr.mxu0 0.0
    %5890 = vmatpush1.msra.mxu0 0.0
    %5891 = vmatprep.subr.mxu0 0.0
    %5892 = vmatpush1.msra.mxu0 %v2293
    %5893 = vmatprep.subr.mxu0 0.0
    %5894 = vmatpush1.msra.mxu0 %v2292
    %5895 = vmatprep.subr.mxu0 0.0
    %5896 = vmatpush1.msra.mxu0 %v2291
    %5897 = vmatprep.subr.mxu0 0.0
    %5898 = vmatpush1.msra.mxu0 %v2290
    %5899 = vmatprep.subr.mxu0 0.0
    %5900 = vmatpush1.msra.mxu0 %v2289
    %5901 = vmatprep.subr.mxu0 0.0
    %5902 = vmatpush1.msra.mxu0 %v2288
    %5903 = vmatprep.subr.mxu0 0.0
    %5904 = vmatpush1.msra.mxu0 %v2287
    %5905 = vmatprep.subr.mxu0 0.0
    %5906 = vmatpush1.msra.mxu0 %v2286
    %5907 = vmatprep.subr.mxu0 0.0
    %5908 = vmatpush1.msra.mxu0 %v2285
    %5909 = vmatprep.subr.mxu0 0.0
    %5910 = vmatpush1.msra.mxu0 %v2284
    %5911 = vmatprep.subr.mxu0 0.0
    %5912 = vmatpush1.msra.mxu0 %v2283
    %5913 = vmatprep.subr.mxu0 0.0
    %5914 = vmatpush1.msra.mxu0 %v2282
    %5915 = vmatprep.subr.mxu0 0.0
    %5916 = vmatpush1.msra.mxu0 %v2281
    %5917 = vmatprep.subr.mxu0 0.0
    %5918 = vmatpush1.msra.mxu0 %v2280
    %5919 = vmatprep.subr.mxu0 0.0
    %5920 = vmatpush2.msra.mxu0 0.0
    %5921 = vmatprep.subr.mxu0 0.0
    %5922 = vmatpush2.msra.mxu0 0.0
    %5923 = vmatprep.subr.mxu0 0.0
    %5924 = vmatpush2.msra.mxu0 0.0
    %5925 = vmatprep.subr.mxu0 0.0
    %5926 = vmatpush2.msra.mxu0 0.0
    %5927 = vmatprep.subr.mxu0 0.0
    %5928 = vmatpush2.msra.mxu0 0.0
    %5929 = vmatprep.subr.mxu0 0.0
    %5930 = vmatpush2.msra.mxu0 0.0
    %5931 = vmatprep.subr.mxu0 0.0
    %5932 = vmatpush2.msra.mxu0 0.0
    %5933 = vmatprep.subr.mxu0 0.0
    %5934 = vmatpush2.msra.mxu0 0.0
    %5935 = vmatprep.subr.mxu0 0.0
    %5936 = vmatpush2.msra.mxu0 0.0
    %5937 = vmatprep.subr.mxu0 0.0
    %5938 = vmatpush2.msra.mxu0 0.0
    %5939 = vmatprep.subr.mxu0 0.0
    %5940 = vmatpush2.msra.mxu0 0.0
    %5941 = vmatprep.subr.mxu0 0.0
    %5942 = vmatpush2.msra.mxu0 0.0
    %5943 = vmatprep.subr.mxu0 0.0
    %5944 = vmatpush2.msra.mxu0 0.0
    %5945 = vmatprep.subr.mxu0 0.0
    %5946 = vmatpush2.msra.mxu0 0.0
    %5947 = vmatprep.subr.mxu0 0.0
    %5948 = vmatpush2.msra.mxu0 0.0
    %5949 = vmatprep.subr.mxu0 0.0
    %5950 = vmatpush2.msra.mxu0 0.0
    %5951 = vmatprep.mubr.f32.mxu0 0.0
    %5952 = vmatmul.mubr.f32.gmra.mxu0 %v5876
    %v5953 = vpop.f32.mrf.mxu0
    %v5954 = vadd.f32 0.0, %v5953
    %v5955 = vpop.f32.mrf.mxu0
    %5956 = vmatprep.mubr.f32.mxu0 0.0
    %5957 = vmatmul.mubr.f32.gmra.mxu0 %v5879
    %v5958 = vpop.f32.mrf.mxu0
    %v5959 = vadd.f32 0.0, %v5958
    %v5960 = vpop.f32.mrf.mxu0
    %5961 = vmatprep.mubr.f32.mxu0 0.0
    %5962 = vmatmul.mubr.f32.gmra.mxu0 %v5882
    %v5963 = vpop.f32.mrf.mxu0
    %v5964 = vadd.f32 0.0, %v5963
    %v5965 = vpop.f32.mrf.mxu0
    %5966 = vmatprep.mubr.f32.mxu0 0.0
    %5967 = vmatmul.mubr.f32.gmra.mxu0 %v5885
    %v5968 = vpop.f32.mrf.mxu0
    %v5969 = vadd.f32 0.0, %v5968
    %v5970 = vpop.f32.mrf.mxu0
    %5971 = vdwg.mxu0
    %v5972 = vld [vmem:[%s3 + $0x8] sm:$0xff]
    %v5973 = vld [vmem:[%s3 + $0x10] sm:$0xff]
    %v5974 = vld [vmem:[%s3 + $0x28] sm:$0xff]
    %v5975 = vld [vmem:[%s3 + $0x30] sm:$0xff]
    %v5976 = vld [vmem:[%s3 + $0x48] sm:$0xff]
    %v5977 = vld [vmem:[%s3 + $0x50] sm:$0xff]
    %v5978 = vld [vmem:[%s3 + $0x68] sm:$0xff]
    %v5979 = vld [vmem:[%s3 + $0x70] sm:$0xff]
    %v5980 = vld [vmem:[%s3 + $0x88] sm:$0xff]
    %v5981 = vld [vmem:[%s3 + $0x90] sm:$0xff]
    %v5982 = vld [vmem:[%s3 + $0xa8] sm:$0xff]
    %v5983 = vld [vmem:[%s3 + $0xb0] sm:$0xff]
    %v5984 = vld [vmem:[%s3 + $0xc8] sm:$0xff]
    %v5985 = vld [vmem:[%s3 + $0xd0] sm:$0xff]
    %v5986 = vld [vmem:[%s3 + $0xe8] sm:$0xff]
    %v5987 = vld [vmem:[%s3 + $0xf0] sm:$0xff]
    %v5988 = vld [vmem:[%s3 + $0x108] sm:$0xff]
    %v5989 = vld [vmem:[%s3 + $0x110] sm:$0xff]
    %v5990 = vld [vmem:[%s3 + $0x128] sm:$0xff]
    %v5991 = vld [vmem:[%s3 + $0x130] sm:$0xff]
    %v5992 = vld [vmem:[%s3 + $0x148] sm:$0xff]
    %v5993 = vld [vmem:[%s3 + $0x150] sm:$0xff]
    %v5994 = vld [vmem:[%s3 + $0x168] sm:$0xff]
    %v5995 = vld [vmem:[%s3 + $0x170] sm:$0xff]
    %v5996 = vld [vmem:[%s3 + $0x188] sm:$0xff]
    %v5997 = vld [vmem:[%s3 + $0x190] sm:$0xff]
    %v5998 = vld [vmem:[%s3 + $0x1a8] sm:$0xff]
    %v5999 = vld [vmem:[%s3 + $0x1b0] sm:$0xff]
    %v6000 = vld [vmem:[%s3 + $0x1c8] sm:$0xff]
    %v6001 = vld [vmem:[%s3 + $0x1d0] sm:$0xff]
    %v6002 = vld [vmem:[%s3 + $0x1e8] sm:$0xff]
    %v6003 = vld [vmem:[%s3 + $0x1f0] sm:$0xff]
    %v6004 = vld [vmem:[%s3 + $0x208] sm:$0xff]
    %v6005 = vld [vmem:[%s3 + $0x210] sm:$0xff]
    %v6006 = vld [vmem:[%s2340 + $0x8] sm:$0xff]
    %v6007 = vld [vmem:[%s2340 + $0x10] sm:$0xff]
    %v6008 = vld [vmem:[%s2340 + $0x28] sm:$0xff]
    %v6009 = vld [vmem:[%s2340 + $0x30] sm:$0xff]
    %v6010 = vld [vmem:[%s2340 + $0x48] sm:$0xff]
    %v6011 = vld [vmem:[%s2340 + $0x50] sm:$0xff]
    %v6012 = vld [vmem:[%s2340 + $0x68] sm:$0xff]
    %v6013 = vld [vmem:[%s2340 + $0x70] sm:$0xff]
    %v6014 = vld [vmem:[%s2340 + $0x88] sm:$0xff]
    %v6015 = vld [vmem:[%s2340 + $0x90] sm:$0xff]
    %v6016 = vld [vmem:[%s2340 + $0xa8] sm:$0xff]
    %v6017 = vld [vmem:[%s2340 + $0xb0] sm:$0xff]
    %v6018 = vld [vmem:[%s2340 + $0xc8] sm:$0xff]
    %v6019 = vld [vmem:[%s2340 + $0xd0] sm:$0xff]
    %v6020 = vld [vmem:[%s2340 + $0xe8] sm:$0xff]
    %v6021 = vld [vmem:[%s2340 + $0xf0] sm:$0xff]
    %v6022 = vld [vmem:[%s2340 + $0x108] sm:$0xff]
    %v6023 = vld [vmem:[%s2340 + $0x110] sm:$0xff]
    %v6024 = vld [vmem:[%s2340 + $0x128] sm:$0xff]
    %v6025 = vld [vmem:[%s2340 + $0x130] sm:$0xff]
    %v6026 = vld [vmem:[%s2340 + $0x148] sm:$0xff]
    %v6027 = vld [vmem:[%s2340 + $0x150] sm:$0xff]
    %v6028 = vld [vmem:[%s2340 + $0x168] sm:$0xff]
    %v6029 = vld [vmem:[%s2340 + $0x170] sm:$0xff]
    %v6030 = vld [vmem:[%s2340 + $0x188] sm:$0xff]
    %v6031 = vld [vmem:[%s2340 + $0x190] sm:$0xff]
    %v6032 = vld [vmem:[%s2340 + $0x1a8] sm:$0xff]
    %v6033 = vld [vmem:[%s2340 + $0x1b0] sm:$0xff]
    %v6034 = vld [vmem:[%s2340 + $0x1c8] sm:$0xff]
    %v6035 = vld [vmem:[%s2340 + $0x1d0] sm:$0xff]
    %v6036 = vld [vmem:[%s2340 + $0x1e8] sm:$0xff]
    %v6037 = vld [vmem:[%s2340 + $0x1f0] sm:$0xff]
    %v6038 = vld [vmem:[%s2340 + $0x208] sm:$0xff]
    %v6039 = vld [vmem:[%s2340 + $0x210] sm:$0xff]
    %6074 = vrot.lane.b32.xlu0 %v6006, 32
    %v6075 = vpop.permute.xlu0 %6074
    %6076 = vrot.lane.b32.xlu0 %v6007, 32
    %v6077 = vpop.permute.xlu0 %6076
    %6078 = vrot.lane.b32.xlu0 %v6008, 32
    %v6079 = vpop.permute.xlu0 %6078
    %6080 = vrot.lane.b32.xlu0 %v6009, 32
    %v6081 = vpop.permute.xlu0 %6080
    %6082 = vrot.lane.b32.xlu0 %v6010, 32
    %v6083 = vpop.permute.xlu0 %6082
    %6084 = vrot.lane.b32.xlu0 %v6011, 32
    %v6085 = vpop.permute.xlu0 %6084
    %6086 = vrot.lane.b32.xlu0 %v6012, 32
    %v6087 = vpop.permute.xlu0 %6086
    %6088 = vrot.lane.b32.xlu0 %v6013, 32
    %v6089 = vpop.permute.xlu0 %6088
    %6090 = vrot.lane.b32.xlu0 %v6014, 32
    %v6091 = vpop.permute.xlu0 %6090
    %6092 = vrot.lane.b32.xlu0 %v6015, 32
    %v6093 = vpop.permute.xlu0 %6092
    %6094 = vrot.lane.b32.xlu0 %v6016, 32
    %v6095 = vpop.permute.xlu0 %6094
    %6096 = vrot.lane.b32.xlu0 %v6017, 32
    %v6097 = vpop.permute.xlu0 %6096
    %6098 = vrot.lane.b32.xlu0 %v6018, 32
    %v6099 = vpop.permute.xlu0 %6098
    %6100 = vrot.lane.b32.xlu0 %v6019, 32
    %v6101 = vpop.permute.xlu0 %6100
    %6102 = vrot.lane.b32.xlu0 %v6020, 32
    %v6103 = vpop.permute.xlu0 %6102
    %6104 = vrot.lane.b32.xlu0 %v6021, 32
    %v6105 = vpop.permute.xlu0 %6104
    %6106 = vrot.lane.b32.xlu0 %v6022, 32
    %v6107 = vpop.permute.xlu0 %6106
    %6108 = vrot.lane.b32.xlu0 %v6023, 32
    %v6109 = vpop.permute.xlu0 %6108
    %6110 = vrot.lane.b32.xlu0 %v6024, 32
    %v6111 = vpop.permute.xlu0 %6110
    %6112 = vrot.lane.b32.xlu0 %v6025, 32
    %v6113 = vpop.permute.xlu0 %6112
    %6114 = vrot.lane.b32.xlu0 %v6026, 32
    %v6115 = vpop.permute.xlu0 %6114
    %6116 = vrot.lane.b32.xlu0 %v6027, 32
    %v6117 = vpop.permute.xlu0 %6116
    %6118 = vrot.lane.b32.xlu0 %v6028, 32
    %v6119 = vpop.permute.xlu0 %6118
    %6120 = vrot.lane.b32.xlu0 %v6029, 32
    %v6121 = vpop.permute.xlu0 %6120
    %6122 = vrot.lane.b32.xlu0 %v6030, 32
    %v6123 = vpop.permute.xlu0 %6122
    %6124 = vrot.lane.b32.xlu0 %v6031, 32
    %v6125 = vpop.permute.xlu0 %6124
    %6126 = vrot.lane.b32.xlu0 %v6032, 32
    %v6127 = vpop.permute.xlu0 %6126
    %6128 = vrot.lane.b32.xlu0 %v6033, 32
    %v6129 = vpop.permute.xlu0 %6128
    %6130 = vrot.lane.b32.xlu0 %v6034, 32
    %v6131 = vpop.permute.xlu0 %6130
    %6132 = vrot.lane.b32.xlu0 %v6035, 32
    %v6133 = vpop.permute.xlu0 %6132
    %6134 = vrot.lane.b32.xlu0 %v6036, 32
    %v6135 = vpop.permute.xlu0 %6134
    %6136 = vrot.lane.b32.xlu0 %v6037, 32
    %v6137 = vpop.permute.xlu0 %6136
    %6138 = vrot.lane.b32.xlu0 %v6038, 32
    %v6139 = vpop.permute.xlu0 %6138
    %6140 = vrot.lane.b32.xlu0 %v6039, 32
    %v6141 = vpop.permute.xlu0 %6140
    %vm6142 = vcmask 261120
    %v6143 = vsel %vm6142, %v6075, %v6077
    %v6144 = vsel %vm6142, %v6079, %v6081
    %v6145 = vsel %vm6142, %v6083, %v6085
    %v6146 = vsel %vm6142, %v6087, %v6089
    %v6147 = vsel %vm6142, %v6091, %v6093
    %v6148 = vsel %vm6142, %v6095, %v6097
    %v6149 = vsel %vm6142, %v6099, %v6101
    %v6150 = vsel %vm6142, %v6103, %v6105
    %v6151 = vsel %vm6142, %v6107, %v6109
    %v6152 = vsel %vm6142, %v6111, %v6113
    %v6153 = vsel %vm6142, %v6115, %v6117
    %v6154 = vsel %vm6142, %v6119, %v6121
    %v6155 = vsel %vm6142, %v6123, %v6125
    %v6156 = vsel %vm6142, %v6127, %v6129
    %v6157 = vsel %vm6142, %v6131, %v6133
    %v6158 = vsel %vm6142, %v6135, %v6137
    %v6159 = vsel %vm6142, %v6139, %v6141
    %6177 = vmatprep.subr.mxu0 0.0
    %6178 = vmatpush1.msra.mxu0 %v6158
    %6179 = vmatprep.subr.mxu0 0.0
    %6180 = vmatpush1.msra.mxu0 %v6157
    %6181 = vmatprep.subr.mxu0 0.0
    %6182 = vmatpush1.msra.mxu0 %v6156
    %6183 = vmatprep.subr.mxu0 0.0
    %6184 = vmatpush1.msra.mxu0 %v6155
    %6185 = vmatprep.subr.mxu0 0.0
    %6186 = vmatpush1.msra.mxu0 %v6154
    %6187 = vmatprep.subr.mxu0 0.0
    %6188 = vmatpush1.msra.mxu0 %v6153
    %6189 = vmatprep.subr.mxu0 0.0
    %6190 = vmatpush1.msra.mxu0 %v6152
    %6191 = vmatprep.subr.mxu0 0.0
    %6192 = vmatpush1.msra.mxu0 %v6151
    %6193 = vmatprep.subr.mxu0 0.0
    %6194 = vmatpush1.msra.mxu0 %v6150
    %6195 = vmatprep.subr.mxu0 0.0
    %6196 = vmatpush1.msra.mxu0 %v6149
    %6197 = vmatprep.subr.mxu0 0.0
    %6198 = vmatpush1.msra.mxu0 %v6148
    %6199 = vmatprep.subr.mxu0 0.0
    %6200 = vmatpush1.msra.mxu0 %v6147
    %6201 = vmatprep.subr.mxu0 0.0
    %6202 = vmatpush1.msra.mxu0 %v6146
    %6203 = vmatprep.subr.mxu0 0.0
    %6204 = vmatpush1.msra.mxu0 %v6145
    %6205 = vmatprep.subr.mxu0 0.0
    %6206 = vmatpush1.msra.mxu0 %v6144
    %6207 = vmatprep.subr.mxu0 0.0
    %6208 = vmatpush1.msra.mxu0 %v6143
    %6209 = vmatprep.subr.mxu0 0.0
    %6210 = vmatpush2.msra.mxu0 0.0
    %6211 = vmatprep.subr.mxu0 0.0
    %6212 = vmatpush2.msra.mxu0 0.0
    %6213 = vmatprep.subr.mxu0 0.0
    %6214 = vmatpush2.msra.mxu0 0.0
    %6215 = vmatprep.subr.mxu0 0.0
    %6216 = vmatpush2.msra.mxu0 0.0
    %6217 = vmatprep.subr.mxu0 0.0
    %6218 = vmatpush2.msra.mxu0 0.0
    %6219 = vmatprep.subr.mxu0 0.0
    %6220 = vmatpush2.msra.mxu0 0.0
    %6221 = vmatprep.subr.mxu0 0.0
    %6222 = vmatpush2.msra.mxu0 0.0
    %6223 = vmatprep.subr.mxu0 0.0
    %6224 = vmatpush2.msra.mxu0 0.0
    %6225 = vmatprep.subr.mxu0 0.0
    %6226 = vmatpush2.msra.mxu0 0.0
    %6227 = vmatprep.subr.mxu0 0.0
    %6228 = vmatpush2.msra.mxu0 0.0
    %6229 = vmatprep.subr.mxu0 0.0
    %6230 = vmatpush2.msra.mxu0 0.0
    %6231 = vmatprep.subr.mxu0 0.0
    %6232 = vmatpush2.msra.mxu0 0.0
    %6233 = vmatprep.subr.mxu0 0.0
    %6234 = vmatpush2.msra.mxu0 0.0
    %6235 = vmatprep.subr.mxu0 0.0
    %6236 = vmatpush2.msra.mxu0 0.0
    %6237 = vmatprep.subr.mxu0 0.0
    %6238 = vmatpush2.msra.mxu0 0.0
    %6239 = vmatprep.subr.mxu0 0.0
    %6240 = vmatpush2.msra.mxu0 %v6159
    %6241 = vmatprep.mubr.f32.mxu0 %v2419
    %6242 = vmatmul.mubr.f32.gmra.mxu0 %v2378
    %v6243 = vpop.f32.mrf.mxu0
    %v6244 = vadd.f32 0.0, %v6243
    %v6245 = vpop.f32.mrf.mxu0
    %6246 = vmatprep.mubr.f32.mxu0 %v2421
    %6247 = vmatmul.mubr.f32.gmra.mxu0 %v2383
    %v6248 = vpop.f32.mrf.mxu0
    %v6249 = vadd.f32 0.0, %v6248
    %v6250 = vpop.f32.mrf.mxu0
    %6251 = vmatprep.mubr.f32.mxu0 %v2423
    %6252 = vmatmul.mubr.f32.gmra.mxu0 %v2387
    %v6253 = vpop.f32.mrf.mxu0
    %v6254 = vadd.f32 0.0, %v6253
    %v6255 = vpop.f32.mrf.mxu0
    %6256 = vmatprep.mubr.f32.mxu0 %v2425
    %6257 = vmatmul.mubr.f32.gmra.mxu0 %v2391
    %v6258 = vpop.f32.mrf.mxu0
    %v6259 = vadd.f32 0.0, %v6258
    %v6260 = vpop.f32.mrf.mxu0
    %6261 = vmatprep.mubr.f32.mxu0 %v2427
    %6262 = vmatmul.mubr.f32.gmra.mxu0 %v2395
    %v6263 = vpop.f32.mrf.mxu0
    %v6264 = vadd.f32 0.0, %v6263
    %v6265 = vpop.f32.mrf.mxu0
    %6266 = vmatprep.mubr.f32.mxu0 %v2429
    %6267 = vmatmul.mubr.f32.gmra.mxu0 %v2399
    %v6268 = vpop.f32.mrf.mxu0
    %v6269 = vadd.f32 0.0, %v6268
    %v6270 = vpop.f32.mrf.mxu0
    %6271 = vmatprep.mubr.f32.mxu0 %v2431
    %6272 = vmatmul.mubr.f32.gmra.mxu0 %v2403
    %v6273 = vpop.f32.mrf.mxu0
    %v6274 = vadd.f32 0.0, %v6273
    %v6275 = vpop.f32.mrf.mxu0
    %6276 = vmatprep.mubr.f32.mxu0 %v2433
    %6277 = vmatmul.mubr.f32.gmra.mxu0 %v2407
    %v6278 = vpop.f32.mrf.mxu0
    %v6279 = vadd.f32 0.0, %v6278
    %v6280 = vpop.f32.mrf.mxu0
    %6281 = vmatprep.mubr.f32.mxu0 %v2435
    %6282 = vmatmul.mubr.f32.gmra.mxu0 %v2406
    %v6283 = vpop.f32.mrf.mxu0
    %v6284 = vadd.f32 0.0, %v6283
    %v6285 = vpop.f32.mrf.mxu0
    %6286 = vdwg.mxu0
    %6321 = vrot.lane.b32.xlu0 %v5972, 32
    %v6322 = vpop.permute.xlu0 %6321
    %6323 = vrot.lane.b32.xlu0 %v5973, 32
    %v6324 = vpop.permute.xlu0 %6323
    %6325 = vrot.lane.b32.xlu0 %v5974, 32
    %v6326 = vpop.permute.xlu0 %6325
    %6327 = vrot.lane.b32.xlu0 %v5975, 32
    %v6328 = vpop.permute.xlu0 %6327
    %6329 = vrot.lane.b32.xlu0 %v5976, 32
    %v6330 = vpop.permute.xlu0 %6329
    %6331 = vrot.lane.b32.xlu0 %v5977, 32
    %v6332 = vpop.permute.xlu0 %6331
    %6333 = vrot.lane.b32.xlu0 %v5978, 32
    %v6334 = vpop.permute.xlu0 %6333
    %6335 = vrot.lane.b32.xlu0 %v5979, 32
    %v6336 = vpop.permute.xlu0 %6335
    %6337 = vrot.lane.b32.xlu0 %v5980, 32
    %v6338 = vpop.permute.xlu0 %6337
    %6339 = vrot.lane.b32.xlu0 %v5981, 32
    %v6340 = vpop.permute.xlu0 %6339
    %6341 = vrot.lane.b32.xlu0 %v5982, 32
    %v6342 = vpop.permute.xlu0 %6341
    %6343 = vrot.lane.b32.xlu0 %v5983, 32
    %v6344 = vpop.permute.xlu0 %6343
    %6345 = vrot.lane.b32.xlu0 %v5984, 32
    %v6346 = vpop.permute.xlu0 %6345
    %6347 = vrot.lane.b32.xlu0 %v5985, 32
    %v6348 = vpop.permute.xlu0 %6347
    %6349 = vrot.lane.b32.xlu0 %v5986, 32
    %v6350 = vpop.permute.xlu0 %6349
    %6351 = vrot.lane.b32.xlu0 %v5987, 32
    %v6352 = vpop.permute.xlu0 %6351
    %6353 = vrot.lane.b32.xlu0 %v5988, 32
    %v6354 = vpop.permute.xlu0 %6353
    %6355 = vrot.lane.b32.xlu0 %v5989, 32
    %v6356 = vpop.permute.xlu0 %6355
    %6357 = vrot.lane.b32.xlu0 %v5990, 32
    %v6358 = vpop.permute.xlu0 %6357
    %6359 = vrot.lane.b32.xlu0 %v5991, 32
    %v6360 = vpop.permute.xlu0 %6359
    %6361 = vrot.lane.b32.xlu0 %v5992, 32
    %v6362 = vpop.permute.xlu0 %6361
    %6363 = vrot.lane.b32.xlu0 %v5993, 32
    %v6364 = vpop.permute.xlu0 %6363
    %6365 = vrot.lane.b32.xlu0 %v5994, 32
    %v6366 = vpop.permute.xlu0 %6365
    %6367 = vrot.lane.b32.xlu0 %v5995, 32
    %v6368 = vpop.permute.xlu0 %6367
    %6369 = vrot.lane.b32.xlu0 %v5996, 32
    %v6370 = vpop.permute.xlu0 %6369
    %6371 = vrot.lane.b32.xlu0 %v5997, 32
    %v6372 = vpop.permute.xlu0 %6371
    %6373 = vrot.lane.b32.xlu0 %v5998, 32
    %v6374 = vpop.permute.xlu0 %6373
    %6375 = vrot.lane.b32.xlu0 %v5999, 32
    %v6376 = vpop.permute.xlu0 %6375
    %6377 = vrot.lane.b32.xlu0 %v6000, 32
    %v6378 = vpop.permute.xlu0 %6377
    %6379 = vrot.lane.b32.xlu0 %v6001, 32
    %v6380 = vpop.permute.xlu0 %6379
    %6381 = vrot.lane.b32.xlu0 %v6002, 32
    %v6382 = vpop.permute.xlu0 %6381
    %6383 = vrot.lane.b32.xlu0 %v6003, 32
    %v6384 = vpop.permute.xlu0 %6383
    %6385 = vrot.lane.b32.xlu0 %v6004, 32
    %v6386 = vpop.permute.xlu0 %6385
    %6387 = vrot.lane.b32.xlu0 %v6005, 32
    %v6388 = vpop.permute.xlu0 %6387
    %v6389 = vsel %vm6142, %v6322, %v6324
    %v6390 = vsel %vm6142, %v6326, %v6328
    %v6391 = vsel %vm6142, %v6330, %v6332
    %v6392 = vsel %vm6142, %v6334, %v6336
    %v6393 = vsel %vm6142, %v6338, %v6340
    %v6394 = vsel %vm6142, %v6342, %v6344
    %v6395 = vsel %vm6142, %v6346, %v6348
    %v6396 = vsel %vm6142, %v6350, %v6352
    %v6397 = vsel %vm6142, %v6354, %v6356
    %v6398 = vsel %vm6142, %v6358, %v6360
    %v6399 = vsel %vm6142, %v6362, %v6364
    %v6400 = vsel %vm6142, %v6366, %v6368
    %v6401 = vsel %vm6142, %v6370, %v6372
    %v6402 = vsel %vm6142, %v6374, %v6376
    %v6403 = vsel %vm6142, %v6378, %v6380
    %v6404 = vsel %vm6142, %v6382, %v6384
    %v6405 = vsel %vm6142, %v6386, %v6388
    %6423 = vmatprep.subr.mxu0 0.0
    %6424 = vmatpush1.msra.mxu0 %v6404
    %6425 = vmatprep.subr.mxu0 0.0
    %6426 = vmatpush1.msra.mxu0 %v6403
    %6427 = vmatprep.subr.mxu0 0.0
    %6428 = vmatpush1.msra.mxu0 %v6402
    %6429 = vmatprep.subr.mxu0 0.0
    %6430 = vmatpush1.msra.mxu0 %v6401
    %6431 = vmatprep.subr.mxu0 0.0
    %6432 = vmatpush1.msra.mxu0 %v6400
    %6433 = vmatprep.subr.mxu0 0.0
    %6434 = vmatpush1.msra.mxu0 %v6399
    %6435 = vmatprep.subr.mxu0 0.0
    %6436 = vmatpush1.msra.mxu0 %v6398
    %6437 = vmatprep.subr.mxu0 0.0
    %6438 = vmatpush1.msra.mxu0 %v6397
    %6439 = vmatprep.subr.mxu0 0.0
    %6440 = vmatpush1.msra.mxu0 %v6396
    %6441 = vmatprep.subr.mxu0 0.0
    %6442 = vmatpush1.msra.mxu0 %v6395
    %6443 = vmatprep.subr.mxu0 0.0
    %6444 = vmatpush1.msra.mxu0 %v6394
    %6445 = vmatprep.subr.mxu0 0.0
    %6446 = vmatpush1.msra.mxu0 %v6393
    %6447 = vmatprep.subr.mxu0 0.0
    %6448 = vmatpush1.msra.mxu0 %v6392
    %6449 = vmatprep.subr.mxu0 0.0
    %6450 = vmatpush1.msra.mxu0 %v6391
    %6451 = vmatprep.subr.mxu0 0.0
    %6452 = vmatpush1.msra.mxu0 %v6390
    %6453 = vmatprep.subr.mxu0 0.0
    %6454 = vmatpush1.msra.mxu0 %v6389
    %6455 = vmatprep.subr.mxu0 0.0
    %6456 = vmatpush2.msra.mxu0 0.0
    %6457 = vmatprep.subr.mxu0 0.0
    %6458 = vmatpush2.msra.mxu0 0.0
    %6459 = vmatprep.subr.mxu0 0.0
    %6460 = vmatpush2.msra.mxu0 0.0
    %6461 = vmatprep.subr.mxu0 0.0
    %6462 = vmatpush2.msra.mxu0 0.0
    %6463 = vmatprep.subr.mxu0 0.0
    %6464 = vmatpush2.msra.mxu0 0.0
    %6465 = vmatprep.subr.mxu0 0.0
    %6466 = vmatpush2.msra.mxu0 0.0
    %6467 = vmatprep.subr.mxu0 0.0
    %6468 = vmatpush2.msra.mxu0 0.0
    %6469 = vmatprep.subr.mxu0 0.0
    %6470 = vmatpush2.msra.mxu0 0.0
    %6471 = vmatprep.subr.mxu0 0.0
    %6472 = vmatpush2.msra.mxu0 0.0
    %6473 = vmatprep.subr.mxu0 0.0
    %6474 = vmatpush2.msra.mxu0 0.0
    %6475 = vmatprep.subr.mxu0 0.0
    %6476 = vmatpush2.msra.mxu0 0.0
    %6477 = vmatprep.subr.mxu0 0.0
    %6478 = vmatpush2.msra.mxu0 0.0
    %6479 = vmatprep.subr.mxu0 0.0
    %6480 = vmatpush2.msra.mxu0 0.0
    %6481 = vmatprep.subr.mxu0 0.0
    %6482 = vmatpush2.msra.mxu0 0.0
    %6483 = vmatprep.subr.mxu0 0.0
    %6484 = vmatpush2.msra.mxu0 0.0
    %6485 = vmatprep.subr.mxu0 0.0
    %6486 = vmatpush2.msra.mxu0 %v6405
    %6487 = vmatprep.mubr.f32.mxu0 %v2548
    %6488 = vmatmul.mubr.f32.gmra.mxu0 %v2301
    %v6489 = vpop.f32.mrf.mxu0
    %v6490 = vadd.f32 %v6244, %v6489
    %v6491 = vpop.f32.mrf.mxu0
    %6492 = vmatprep.mubr.f32.mxu0 %v2550
    %6493 = vmatmul.mubr.f32.gmra.mxu0 %v2303
    %v6494 = vpop.f32.mrf.mxu0
    %v6495 = vadd.f32 %v6249, %v6494
    %v6496 = vpop.f32.mrf.mxu0
    %6497 = vmatprep.mubr.f32.mxu0 %v2552
    %6498 = vmatmul.mubr.f32.gmra.mxu0 %v2305
    %v6499 = vpop.f32.mrf.mxu0
    %v6500 = vadd.f32 %v6254, %v6499
    %v6501 = vpop.f32.mrf.mxu0
    %6502 = vmatprep.mubr.f32.mxu0 %v2554
    %6503 = vmatmul.mubr.f32.gmra.mxu0 %v2307
    %v6504 = vpop.f32.mrf.mxu0
    %v6505 = vadd.f32 %v6259, %v6504
    %v6506 = vpop.f32.mrf.mxu0
    %6507 = vmatprep.mubr.f32.mxu0 %v2556
    %6508 = vmatmul.mubr.f32.gmra.mxu0 %v2309
    %v6509 = vpop.f32.mrf.mxu0
    %v6510 = vadd.f32 %v6264, %v6509
    %v6511 = vpop.f32.mrf.mxu0
    %6512 = vmatprep.mubr.f32.mxu0 %v2558
    %6513 = vmatmul.mubr.f32.gmra.mxu0 %v2311
    %v6514 = vpop.f32.mrf.mxu0
    %v6515 = vadd.f32 %v6269, %v6514
    %v6516 = vpop.f32.mrf.mxu0
    %6517 = vmatprep.mubr.f32.mxu0 %v2560
    %6518 = vmatmul.mubr.f32.gmra.mxu0 %v2313
    %v6519 = vpop.f32.mrf.mxu0
    %v6520 = vadd.f32 %v6274, %v6519
    %v6521 = vpop.f32.mrf.mxu0
    %6522 = vmatprep.mubr.f32.mxu0 %v2562
    %6523 = vmatmul.mubr.f32.gmra.mxu0 %v2315
    %v6524 = vpop.f32.mrf.mxu0
    %v6525 = vadd.f32 %v6279, %v6524
    %v6526 = vpop.f32.mrf.mxu0
    %6527 = vmatprep.mubr.f32.mxu0 %v2565
    %6528 = vmatmul.mubr.f32.gmra.mxu0 %v2317
    %v6529 = vpop.f32.mrf.mxu0
    %v6530 = vadd.f32 %v6284, %v6529
    %v6531 = vpop.f32.mrf.mxu0
    %6532 = vdwg.mxu0
    %v6533 = vld [vmem:[%s2681 + $0x8] sm:$0xff]
    %v6534 = vld [vmem:[%s2681 + $0x10] sm:$0xff]
    %v6535 = vld [vmem:[%s2681 + $0x28] sm:$0xff]
    %v6536 = vld [vmem:[%s2681 + $0x30] sm:$0xff]
    %v6537 = vld [vmem:[%s2681 + $0x48] sm:$0xff]
    %v6538 = vld [vmem:[%s2681 + $0x50] sm:$0xff]
    %v6539 = vld [vmem:[%s2681 + $0x68] sm:$0xff]
    %v6540 = vld [vmem:[%s2681 + $0x70] sm:$0xff]
    %v6541 = vld [vmem:[%s2681 + $0x88] sm:$0xff]
    %v6542 = vld [vmem:[%s2681 + $0x90] sm:$0xff]
    %v6543 = vld [vmem:[%s2681 + $0xa8] sm:$0xff]
    %v6544 = vld [vmem:[%s2681 + $0xb0] sm:$0xff]
    %v6545 = vld [vmem:[%s2681 + $0xc8] sm:$0xff]
    %v6546 = vld [vmem:[%s2681 + $0xd0] sm:$0xff]
    %v6547 = vld [vmem:[%s2681 + $0xe8] sm:$0xff]
    %v6548 = vld [vmem:[%s2681 + $0xf0] sm:$0xff]
    %v6549 = vld [vmem:[%s2681 + $0x108] sm:$0xff]
    %v6550 = vld [vmem:[%s2681 + $0x110] sm:$0xff]
    %v6551 = vld [vmem:[%s2681 + $0x128] sm:$0xff]
    %v6552 = vld [vmem:[%s2681 + $0x130] sm:$0xff]
    %v6553 = vld [vmem:[%s2681 + $0x148] sm:$0xff]
    %v6554 = vld [vmem:[%s2681 + $0x150] sm:$0xff]
    %v6555 = vld [vmem:[%s2681 + $0x168] sm:$0xff]
    %v6556 = vld [vmem:[%s2681 + $0x170] sm:$0xff]
    %v6557 = vld [vmem:[%s2681 + $0x188] sm:$0xff]
    %v6558 = vld [vmem:[%s2681 + $0x190] sm:$0xff]
    %v6559 = vld [vmem:[%s2681 + $0x1a8] sm:$0xff]
    %v6560 = vld [vmem:[%s2681 + $0x1b0] sm:$0xff]
    %v6561 = vld [vmem:[%s2681 + $0x1c8] sm:$0xff]
    %v6562 = vld [vmem:[%s2681 + $0x1d0] sm:$0xff]
    %v6563 = vld [vmem:[%s2681 + $0x1e8] sm:$0xff]
    %v6564 = vld [vmem:[%s2681 + $0x1f0] sm:$0xff]
    %v6565 = vld [vmem:[%s2681 + $0x208] sm:$0xff]
    %v6566 = vld [vmem:[%s2681 + $0x210] sm:$0xff]
    %6601 = vrot.lane.b32.xlu0 %v6533, 32
    %v6602 = vpop.permute.xlu0 %6601
    %6603 = vrot.lane.b32.xlu0 %v6534, 32
    %v6604 = vpop.permute.xlu0 %6603
    %6605 = vrot.lane.b32.xlu0 %v6535, 32
    %v6606 = vpop.permute.xlu0 %6605
    %6607 = vrot.lane.b32.xlu0 %v6536, 32
    %v6608 = vpop.permute.xlu0 %6607
    %6609 = vrot.lane.b32.xlu0 %v6537, 32
    %v6610 = vpop.permute.xlu0 %6609
    %6611 = vrot.lane.b32.xlu0 %v6538, 32
    %v6612 = vpop.permute.xlu0 %6611
    %6613 = vrot.lane.b32.xlu0 %v6539, 32
    %v6614 = vpop.permute.xlu0 %6613
    %6615 = vrot.lane.b32.xlu0 %v6540, 32
    %v6616 = vpop.permute.xlu0 %6615
    %6617 = vrot.lane.b32.xlu0 %v6541, 32
    %v6618 = vpop.permute.xlu0 %6617
    %6619 = vrot.lane.b32.xlu0 %v6542, 32
    %v6620 = vpop.permute.xlu0 %6619
    %6621 = vrot.lane.b32.xlu0 %v6543, 32
    %v6622 = vpop.permute.xlu0 %6621
    %6623 = vrot.lane.b32.xlu0 %v6544, 32
    %v6624 = vpop.permute.xlu0 %6623
    %6625 = vrot.lane.b32.xlu0 %v6545, 32
    %v6626 = vpop.permute.xlu0 %6625
    %6627 = vrot.lane.b32.xlu0 %v6546, 32
    %v6628 = vpop.permute.xlu0 %6627
    %6629 = vrot.lane.b32.xlu0 %v6547, 32
    %v6630 = vpop.permute.xlu0 %6629
    %6631 = vrot.lane.b32.xlu0 %v6548, 32
    %v6632 = vpop.permute.xlu0 %6631
    %6633 = vrot.lane.b32.xlu0 %v6549, 32
    %v6634 = vpop.permute.xlu0 %6633
    %6635 = vrot.lane.b32.xlu0 %v6550, 32
    %v6636 = vpop.permute.xlu0 %6635
    %6637 = vrot.lane.b32.xlu0 %v6551, 32
    %v6638 = vpop.permute.xlu0 %6637
    %6639 = vrot.lane.b32.xlu0 %v6552, 32
    %v6640 = vpop.permute.xlu0 %6639
    %6641 = vrot.lane.b32.xlu0 %v6553, 32
    %v6642 = vpop.permute.xlu0 %6641
    %6643 = vrot.lane.b32.xlu0 %v6554, 32
    %v6644 = vpop.permute.xlu0 %6643
    %6645 = vrot.lane.b32.xlu0 %v6555, 32
    %v6646 = vpop.permute.xlu0 %6645
    %6647 = vrot.lane.b32.xlu0 %v6556, 32
    %v6648 = vpop.permute.xlu0 %6647
    %6649 = vrot.lane.b32.xlu0 %v6557, 32
    %v6650 = vpop.permute.xlu0 %6649
    %6651 = vrot.lane.b32.xlu0 %v6558, 32
    %v6652 = vpop.permute.xlu0 %6651
    %6653 = vrot.lane.b32.xlu0 %v6559, 32
    %v6654 = vpop.permute.xlu0 %6653
    %6655 = vrot.lane.b32.xlu0 %v6560, 32
    %v6656 = vpop.permute.xlu0 %6655
    %6657 = vrot.lane.b32.xlu0 %v6561, 32
    %v6658 = vpop.permute.xlu0 %6657
    %6659 = vrot.lane.b32.xlu0 %v6562, 32
    %v6660 = vpop.permute.xlu0 %6659
    %6661 = vrot.lane.b32.xlu0 %v6563, 32
    %v6662 = vpop.permute.xlu0 %6661
    %6663 = vrot.lane.b32.xlu0 %v6564, 32
    %v6664 = vpop.permute.xlu0 %6663
    %6665 = vrot.lane.b32.xlu0 %v6565, 32
    %v6666 = vpop.permute.xlu0 %6665
    %6667 = vrot.lane.b32.xlu0 %v6566, 32
    %v6668 = vpop.permute.xlu0 %6667
    %v6669 = vsel %vm6142, %v6602, %v6604
    %v6670 = vsel %vm6142, %v6606, %v6608
    %v6671 = vsel %vm6142, %v6610, %v6612
    %v6672 = vsel %vm6142, %v6614, %v6616
    %v6673 = vsel %vm6142, %v6618, %v6620
    %v6674 = vsel %vm6142, %v6622, %v6624
    %v6675 = vsel %vm6142, %v6626, %v6628
    %v6676 = vsel %vm6142, %v6630, %v6632
    %v6677 = vsel %vm6142, %v6634, %v6636
    %v6678 = vsel %vm6142, %v6638, %v6640
    %v6679 = vsel %vm6142, %v6642, %v6644
    %v6680 = vsel %vm6142, %v6646, %v6648
    %v6681 = vsel %vm6142, %v6650, %v6652
    %v6682 = vsel %vm6142, %v6654, %v6656
    %v6683 = vsel %vm6142, %v6658, %v6660
    %v6684 = vsel %vm6142, %v6662, %v6664
    %v6685 = vsel %vm6142, %v6666, %v6668
    %6703 = vmatprep.subr.mxu0 0.0
    %6704 = vmatpush1.msra.mxu0 %v6684
    %6705 = vmatprep.subr.mxu0 0.0
    %6706 = vmatpush1.msra.mxu0 %v6683
    %6707 = vmatprep.subr.mxu0 0.0
    %6708 = vmatpush1.msra.mxu0 %v6682
    %6709 = vmatprep.subr.mxu0 0.0
    %6710 = vmatpush1.msra.mxu0 %v6681
    %6711 = vmatprep.subr.mxu0 0.0
    %6712 = vmatpush1.msra.mxu0 %v6680
    %6713 = vmatprep.subr.mxu0 0.0
    %6714 = vmatpush1.msra.mxu0 %v6679
    %6715 = vmatprep.subr.mxu0 0.0
    %6716 = vmatpush1.msra.mxu0 %v6678
    %6717 = vmatprep.subr.mxu0 0.0
    %6718 = vmatpush1.msra.mxu0 %v6677
    %6719 = vmatprep.subr.mxu0 0.0
    %6720 = vmatpush1.msra.mxu0 %v6676
    %6721 = vmatprep.subr.mxu0 0.0
    %6722 = vmatpush1.msra.mxu0 %v6675
    %6723 = vmatprep.subr.mxu0 0.0
    %6724 = vmatpush1.msra.mxu0 %v6674
    %6725 = vmatprep.subr.mxu0 0.0
    %6726 = vmatpush1.msra.mxu0 %v6673
    %6727 = vmatprep.subr.mxu0 0.0
    %6728 = vmatpush1.msra.mxu0 %v6672
    %6729 = vmatprep.subr.mxu0 0.0
    %6730 = vmatpush1.msra.mxu0 %v6671
    %6731 = vmatprep.subr.mxu0 0.0
    %6732 = vmatpush1.msra.mxu0 %v6670
    %6733 = vmatprep.subr.mxu0 0.0
    %6734 = vmatpush1.msra.mxu0 %v6669
    %6735 = vmatprep.subr.mxu0 0.0
    %6736 = vmatpush2.msra.mxu0 0.0
    %6737 = vmatprep.subr.mxu0 0.0
    %6738 = vmatpush2.msra.mxu0 0.0
    %6739 = vmatprep.subr.mxu0 0.0
    %6740 = vmatpush2.msra.mxu0 0.0
    %6741 = vmatprep.subr.mxu0 0.0
    %6742 = vmatpush2.msra.mxu0 0.0
    %6743 = vmatprep.subr.mxu0 0.0
    %6744 = vmatpush2.msra.mxu0 0.0
    %6745 = vmatprep.subr.mxu0 0.0
    %6746 = vmatpush2.msra.mxu0 0.0
    %6747 = vmatprep.subr.mxu0 0.0
    %6748 = vmatpush2.msra.mxu0 0.0
    %6749 = vmatprep.subr.mxu0 0.0
    %6750 = vmatpush2.msra.mxu0 0.0
    %6751 = vmatprep.subr.mxu0 0.0
    %6752 = vmatpush2.msra.mxu0 0.0
    %6753 = vmatprep.subr.mxu0 0.0
    %6754 = vmatpush2.msra.mxu0 0.0
    %6755 = vmatprep.subr.mxu0 0.0
    %6756 = vmatpush2.msra.mxu0 0.0
    %6757 = vmatprep.subr.mxu0 0.0
    %6758 = vmatpush2.msra.mxu0 0.0
    %6759 = vmatprep.subr.mxu0 0.0
    %6760 = vmatpush2.msra.mxu0 0.0
    %6761 = vmatprep.subr.mxu0 0.0
    %6762 = vmatpush2.msra.mxu0 0.0
    %6763 = vmatprep.subr.mxu0 0.0
    %6764 = vmatpush2.msra.mxu0 0.0
    %6765 = vmatprep.subr.mxu0 0.0
    %6766 = vmatpush2.msra.mxu0 %v6685
    %6767 = vmatprep.mubr.f32.mxu0 %v2746
    %6768 = vmatmul.mubr.f32.gmra.mxu0 %v2705
    %v6769 = vpop.f32.mrf.mxu0
    %v6770 = vadd.f32 0.0, %v6769
    %v6771 = vpop.f32.mrf.mxu0
    %6772 = vmatprep.mubr.f32.mxu0 %v2748
    %6773 = vmatmul.mubr.f32.gmra.mxu0 %v2710
    %v6774 = vpop.f32.mrf.mxu0
    %v6775 = vadd.f32 0.0, %v6774
    %v6776 = vpop.f32.mrf.mxu0
    %6777 = vmatprep.mubr.f32.mxu0 %v2750
    %6778 = vmatmul.mubr.f32.gmra.mxu0 %v2714
    %v6779 = vpop.f32.mrf.mxu0
    %v6780 = vadd.f32 0.0, %v6779
    %v6781 = vpop.f32.mrf.mxu0
    %6782 = vmatprep.mubr.f32.mxu0 %v2752
    %6783 = vmatmul.mubr.f32.gmra.mxu0 %v2718
    %v6784 = vpop.f32.mrf.mxu0
    %v6785 = vadd.f32 0.0, %v6784
    %v6786 = vpop.f32.mrf.mxu0
    %6787 = vmatprep.mubr.f32.mxu0 %v2754
    %6788 = vmatmul.mubr.f32.gmra.mxu0 %v2722
    %v6789 = vpop.f32.mrf.mxu0
    %v6790 = vadd.f32 0.0, %v6789
    %v6791 = vpop.f32.mrf.mxu0
    %6792 = vmatprep.mubr.f32.mxu0 %v2756
    %6793 = vmatmul.mubr.f32.gmra.mxu0 %v2726
    %v6794 = vpop.f32.mrf.mxu0
    %v6795 = vadd.f32 0.0, %v6794
    %v6796 = vpop.f32.mrf.mxu0
    %6797 = vmatprep.mubr.f32.mxu0 %v2758
    %6798 = vmatmul.mubr.f32.gmra.mxu0 %v2730
    %v6799 = vpop.f32.mrf.mxu0
    %v6800 = vadd.f32 0.0, %v6799
    %v6801 = vpop.f32.mrf.mxu0
    %6802 = vmatprep.mubr.f32.mxu0 %v2760
    %6803 = vmatmul.mubr.f32.gmra.mxu0 %v2734
    %v6804 = vpop.f32.mrf.mxu0
    %v6805 = vadd.f32 0.0, %v6804
    %v6806 = vpop.f32.mrf.mxu0
    %6807 = vmatprep.mubr.f32.mxu0 %v2762
    %6808 = vmatmul.mubr.f32.gmra.mxu0 %v2733
    %v6809 = vpop.f32.mrf.mxu0
    %v6810 = vadd.f32 0.0, %v6809
    %v6811 = vpop.f32.mrf.mxu0
    %6812 = vdwg.mxu0
    %v6813 = vadd.f32 %v6490, %v6770
    %v6814 = vadd.f32 %v6495, %v6775
    %v6815 = vadd.f32 %v6500, %v6780
    %v6816 = vadd.f32 %v6505, %v6785
    %v6817 = vadd.f32 %v6510, %v6790
    %v6818 = vadd.f32 %v6515, %v6795
    %v6819 = vadd.f32 %v6520, %v6800
    %v6820 = vadd.f32 %v6525, %v6805
    %v6821 = vadd.f32 %v6530, %v6810
    %v6822 = vld [vmem:[%s2887 + $0x8] sm:$0xff]
    %v6823 = vld [vmem:[%s2887 + $0x10] sm:$0xff]
    %v6824 = vld [vmem:[%s2887 + $0x28] sm:$0xff]
    %v6825 = vld [vmem:[%s2887 + $0x30] sm:$0xff]
    %v6826 = vld [vmem:[%s2887 + $0x48] sm:$0xff]
    %v6827 = vld [vmem:[%s2887 + $0x50] sm:$0xff]
    %v6828 = vld [vmem:[%s2887 + $0x68] sm:$0xff]
    %v6829 = vld [vmem:[%s2887 + $0x70] sm:$0xff]
    %v6830 = vld [vmem:[%s2887 + $0x88] sm:$0xff]
    %v6831 = vld [vmem:[%s2887 + $0x90] sm:$0xff]
    %v6832 = vld [vmem:[%s2887 + $0xa8] sm:$0xff]
    %v6833 = vld [vmem:[%s2887 + $0xb0] sm:$0xff]
    %v6834 = vld [vmem:[%s2887 + $0xc8] sm:$0xff]
    %v6835 = vld [vmem:[%s2887 + $0xd0] sm:$0xff]
    %v6836 = vld [vmem:[%s2887 + $0xe8] sm:$0xff]
    %v6837 = vld [vmem:[%s2887 + $0xf0] sm:$0xff]
    %v6838 = vld [vmem:[%s2887 + $0x108] sm:$0xff]
    %v6839 = vld [vmem:[%s2887 + $0x110] sm:$0xff]
    %v6840 = vld [vmem:[%s2887 + $0x128] sm:$0xff]
    %v6841 = vld [vmem:[%s2887 + $0x130] sm:$0xff]
    %v6842 = vld [vmem:[%s2887 + $0x148] sm:$0xff]
    %v6843 = vld [vmem:[%s2887 + $0x150] sm:$0xff]
    %v6844 = vld [vmem:[%s2887 + $0x168] sm:$0xff]
    %v6845 = vld [vmem:[%s2887 + $0x170] sm:$0xff]
    %v6846 = vld [vmem:[%s2887 + $0x188] sm:$0xff]
    %v6847 = vld [vmem:[%s2887 + $0x190] sm:$0xff]
    %v6848 = vld [vmem:[%s2887 + $0x1a8] sm:$0xff]
    %v6849 = vld [vmem:[%s2887 + $0x1b0] sm:$0xff]
    %v6850 = vld [vmem:[%s2887 + $0x1c8] sm:$0xff]
    %v6851 = vld [vmem:[%s2887 + $0x1d0] sm:$0xff]
    %v6852 = vld [vmem:[%s2887 + $0x1e8] sm:$0xff]
    %v6853 = vld [vmem:[%s2887 + $0x1f0] sm:$0xff]
    %v6854 = vld [vmem:[%s2887 + $0x208] sm:$0xff]
    %v6855 = vld [vmem:[%s2887 + $0x210] sm:$0xff]
    %6890 = vrot.lane.b32.xlu0 %v6822, 32
    %v6891 = vpop.permute.xlu0 %6890
    %6892 = vrot.lane.b32.xlu0 %v6823, 32
    %v6893 = vpop.permute.xlu0 %6892
    %6894 = vrot.lane.b32.xlu0 %v6824, 32
    %v6895 = vpop.permute.xlu0 %6894
    %6896 = vrot.lane.b32.xlu0 %v6825, 32
    %v6897 = vpop.permute.xlu0 %6896
    %6898 = vrot.lane.b32.xlu0 %v6826, 32
    %v6899 = vpop.permute.xlu0 %6898
    %6900 = vrot.lane.b32.xlu0 %v6827, 32
    %v6901 = vpop.permute.xlu0 %6900
    %6902 = vrot.lane.b32.xlu0 %v6828, 32
    %v6903 = vpop.permute.xlu0 %6902
    %6904 = vrot.lane.b32.xlu0 %v6829, 32
    %v6905 = vpop.permute.xlu0 %6904
    %6906 = vrot.lane.b32.xlu0 %v6830, 32
    %v6907 = vpop.permute.xlu0 %6906
    %6908 = vrot.lane.b32.xlu0 %v6831, 32
    %v6909 = vpop.permute.xlu0 %6908
    %6910 = vrot.lane.b32.xlu0 %v6832, 32
    %v6911 = vpop.permute.xlu0 %6910
    %6912 = vrot.lane.b32.xlu0 %v6833, 32
    %v6913 = vpop.permute.xlu0 %6912
    %6914 = vrot.lane.b32.xlu0 %v6834, 32
    %v6915 = vpop.permute.xlu0 %6914
    %6916 = vrot.lane.b32.xlu0 %v6835, 32
    %v6917 = vpop.permute.xlu0 %6916
    %6918 = vrot.lane.b32.xlu0 %v6836, 32
    %v6919 = vpop.permute.xlu0 %6918
    %6920 = vrot.lane.b32.xlu0 %v6837, 32
    %v6921 = vpop.permute.xlu0 %6920
    %6922 = vrot.lane.b32.xlu0 %v6838, 32
    %v6923 = vpop.permute.xlu0 %6922
    %6924 = vrot.lane.b32.xlu0 %v6839, 32
    %v6925 = vpop.permute.xlu0 %6924
    %6926 = vrot.lane.b32.xlu0 %v6840, 32
    %v6927 = vpop.permute.xlu0 %6926
    %6928 = vrot.lane.b32.xlu0 %v6841, 32
    %v6929 = vpop.permute.xlu0 %6928
    %6930 = vrot.lane.b32.xlu0 %v6842, 32
    %v6931 = vpop.permute.xlu0 %6930
    %6932 = vrot.lane.b32.xlu0 %v6843, 32
    %v6933 = vpop.permute.xlu0 %6932
    %6934 = vrot.lane.b32.xlu0 %v6844, 32
    %v6935 = vpop.permute.xlu0 %6934
    %6936 = vrot.lane.b32.xlu0 %v6845, 32
    %v6937 = vpop.permute.xlu0 %6936
    %6938 = vrot.lane.b32.xlu0 %v6846, 32
    %v6939 = vpop.permute.xlu0 %6938
    %6940 = vrot.lane.b32.xlu0 %v6847, 32
    %v6941 = vpop.permute.xlu0 %6940
    %6942 = vrot.lane.b32.xlu0 %v6848, 32
    %v6943 = vpop.permute.xlu0 %6942
    %6944 = vrot.lane.b32.xlu0 %v6849, 32
    %v6945 = vpop.permute.xlu0 %6944
    %6946 = vrot.lane.b32.xlu0 %v6850, 32
    %v6947 = vpop.permute.xlu0 %6946
    %6948 = vrot.lane.b32.xlu0 %v6851, 32
    %v6949 = vpop.permute.xlu0 %6948
    %6950 = vrot.lane.b32.xlu0 %v6852, 32
    %v6951 = vpop.permute.xlu0 %6950
    %6952 = vrot.lane.b32.xlu0 %v6853, 32
    %v6953 = vpop.permute.xlu0 %6952
    %6954 = vrot.lane.b32.xlu0 %v6854, 32
    %v6955 = vpop.permute.xlu0 %6954
    %6956 = vrot.lane.b32.xlu0 %v6855, 32
    %v6957 = vpop.permute.xlu0 %6956
    %v6958 = vsel %vm6142, %v6891, %v6893
    %v6959 = vsel %vm6142, %v6895, %v6897
    %v6960 = vsel %vm6142, %v6899, %v6901
    %v6961 = vsel %vm6142, %v6903, %v6905
    %v6962 = vsel %vm6142, %v6907, %v6909
    %v6963 = vsel %vm6142, %v6911, %v6913
    %v6964 = vsel %vm6142, %v6915, %v6917
    %v6965 = vsel %vm6142, %v6919, %v6921
    %v6966 = vsel %vm6142, %v6923, %v6925
    %v6967 = vsel %vm6142, %v6927, %v6929
    %v6968 = vsel %vm6142, %v6931, %v6933
    %v6969 = vsel %vm6142, %v6935, %v6937
    %v6970 = vsel %vm6142, %v6939, %v6941
    %v6971 = vsel %vm6142, %v6943, %v6945
    %v6972 = vsel %vm6142, %v6947, %v6949
    %v6973 = vsel %vm6142, %v6951, %v6953
    %v6974 = vsel %vm6142, %v6955, %v6957
    %6992 = vmatprep.subr.mxu0 0.0
    %6993 = vmatpush1.msra.mxu0 %v6973
    %6994 = vmatprep.subr.mxu0 0.0
    %6995 = vmatpush1.msra.mxu0 %v6972
    %6996 = vmatprep.subr.mxu0 0.0
    %6997 = vmatpush1.msra.mxu0 %v6971
    %6998 = vmatprep.subr.mxu0 0.0
    %6999 = vmatpush1.msra.mxu0 %v6970
    %7000 = vmatprep.subr.mxu0 0.0
    %7001 = vmatpush1.msra.mxu0 %v6969
    %7002 = vmatprep.subr.mxu0 0.0
    %7003 = vmatpush1.msra.mxu0 %v6968
    %7004 = vmatprep.subr.mxu0 0.0
    %7005 = vmatpush1.msra.mxu0 %v6967
    %7006 = vmatprep.subr.mxu0 0.0
    %7007 = vmatpush1.msra.mxu0 %v6966
    %7008 = vmatprep.subr.mxu0 0.0
    %7009 = vmatpush1.msra.mxu0 %v6965
    %7010 = vmatprep.subr.mxu0 0.0
    %7011 = vmatpush1.msra.mxu0 %v6964
    %7012 = vmatprep.subr.mxu0 0.0
    %7013 = vmatpush1.msra.mxu0 %v6963
    %7014 = vmatprep.subr.mxu0 0.0
    %7015 = vmatpush1.msra.mxu0 %v6962
    %7016 = vmatprep.subr.mxu0 0.0
    %7017 = vmatpush1.msra.mxu0 %v6961
    %7018 = vmatprep.subr.mxu0 0.0
    %7019 = vmatpush1.msra.mxu0 %v6960
    %7020 = vmatprep.subr.mxu0 0.0
    %7021 = vmatpush1.msra.mxu0 %v6959
    %7022 = vmatprep.subr.mxu0 0.0
    %7023 = vmatpush1.msra.mxu0 %v6958
    %7024 = vmatprep.subr.mxu0 0.0
    %7025 = vmatpush2.msra.mxu0 0.0
    %7026 = vmatprep.subr.mxu0 0.0
    %7027 = vmatpush2.msra.mxu0 0.0
    %7028 = vmatprep.subr.mxu0 0.0
    %7029 = vmatpush2.msra.mxu0 0.0
    %7030 = vmatprep.subr.mxu0 0.0
    %7031 = vmatpush2.msra.mxu0 0.0
    %7032 = vmatprep.subr.mxu0 0.0
    %7033 = vmatpush2.msra.mxu0 0.0
    %7034 = vmatprep.subr.mxu0 0.0
    %7035 = vmatpush2.msra.mxu0 0.0
    %7036 = vmatprep.subr.mxu0 0.0
    %7037 = vmatpush2.msra.mxu0 0.0
    %7038 = vmatprep.subr.mxu0 0.0
    %7039 = vmatpush2.msra.mxu0 0.0
    %7040 = vmatprep.subr.mxu0 0.0
    %7041 = vmatpush2.msra.mxu0 0.0
    %7042 = vmatprep.subr.mxu0 0.0
    %7043 = vmatpush2.msra.mxu0 0.0
    %7044 = vmatprep.subr.mxu0 0.0
    %7045 = vmatpush2.msra.mxu0 0.0
    %7046 = vmatprep.subr.mxu0 0.0
    %7047 = vmatpush2.msra.mxu0 0.0
    %7048 = vmatprep.subr.mxu0 0.0
    %7049 = vmatpush2.msra.mxu0 0.0
    %7050 = vmatprep.subr.mxu0 0.0
    %7051 = vmatpush2.msra.mxu0 0.0
    %7052 = vmatprep.subr.mxu0 0.0
    %7053 = vmatpush2.msra.mxu0 0.0
    %7054 = vmatprep.subr.mxu0 0.0
    %7055 = vmatpush2.msra.mxu0 %v6974
    %7056 = vmatprep.mubr.f32.mxu0 %v2952
    %7057 = vmatmul.mubr.f32.gmra.mxu0 %v2911
    %v7058 = vpop.f32.mrf.mxu0
    %v7059 = vadd.f32 0.0, %v7058
    %v7060 = vpop.f32.mrf.mxu0
    %7061 = vmatprep.mubr.f32.mxu0 %v2954
    %7062 = vmatmul.mubr.f32.gmra.mxu0 %v2916
    %v7063 = vpop.f32.mrf.mxu0
    %v7064 = vadd.f32 0.0, %v7063
    %v7065 = vpop.f32.mrf.mxu0
    %7066 = vmatprep.mubr.f32.mxu0 %v2956
    %7067 = vmatmul.mubr.f32.gmra.mxu0 %v2920
    %v7068 = vpop.f32.mrf.mxu0
    %v7069 = vadd.f32 0.0, %v7068
    %v7070 = vpop.f32.mrf.mxu0
    %7071 = vmatprep.mubr.f32.mxu0 %v2958
    %7072 = vmatmul.mubr.f32.gmra.mxu0 %v2924
    %v7073 = vpop.f32.mrf.mxu0
    %v7074 = vadd.f32 0.0, %v7073
    %v7075 = vpop.f32.mrf.mxu0
    %7076 = vmatprep.mubr.f32.mxu0 %v2960
    %7077 = vmatmul.mubr.f32.gmra.mxu0 %v2928
    %v7078 = vpop.f32.mrf.mxu0
    %v7079 = vadd.f32 0.0, %v7078
    %v7080 = vpop.f32.mrf.mxu0
    %7081 = vmatprep.mubr.f32.mxu0 %v2962
    %7082 = vmatmul.mubr.f32.gmra.mxu0 %v2932
    %v7083 = vpop.f32.mrf.mxu0
    %v7084 = vadd.f32 0.0, %v7083
    %v7085 = vpop.f32.mrf.mxu0
    %7086 = vmatprep.mubr.f32.mxu0 %v2964
    %7087 = vmatmul.mubr.f32.gmra.mxu0 %v2936
    %v7088 = vpop.f32.mrf.mxu0
    %v7089 = vadd.f32 0.0, %v7088
    %v7090 = vpop.f32.mrf.mxu0
    %7091 = vmatprep.mubr.f32.mxu0 %v2966
    %7092 = vmatmul.mubr.f32.gmra.mxu0 %v2940
    %v7093 = vpop.f32.mrf.mxu0
    %v7094 = vadd.f32 0.0, %v7093
    %v7095 = vpop.f32.mrf.mxu0
    %7096 = vmatprep.mubr.f32.mxu0 %v2968
    %7097 = vmatmul.mubr.f32.gmra.mxu0 %v2939
    %v7098 = vpop.f32.mrf.mxu0
    %v7099 = vadd.f32 0.0, %v7098
    %v7100 = vpop.f32.mrf.mxu0
    %7101 = vdwg.mxu0
    %v7102 = vadd.f32 %v6813, %v7059
    %v7103 = vadd.f32 %v6814, %v7064
    %v7104 = vadd.f32 %v6815, %v7069
    %v7105 = vadd.f32 %v6816, %v7074
    %v7106 = vadd.f32 %v6817, %v7079
    %v7107 = vadd.f32 %v6818, %v7084
    %v7108 = vadd.f32 %v6819, %v7089
    %v7109 = vadd.f32 %v6820, %v7094
    %v7110 = vadd.f32 %v6821, %v7099
    %v7111 = vld [vmem:[%s3093 + $0x8] sm:$0xff]
    %v7112 = vld [vmem:[%s3093 + $0x10] sm:$0xff]
    %v7113 = vld [vmem:[%s3093 + $0x28] sm:$0xff]
    %v7114 = vld [vmem:[%s3093 + $0x30] sm:$0xff]
    %v7115 = vld [vmem:[%s3093 + $0x48] sm:$0xff]
    %v7116 = vld [vmem:[%s3093 + $0x50] sm:$0xff]
    %v7117 = vld [vmem:[%s3093 + $0x68] sm:$0xff]
    %v7118 = vld [vmem:[%s3093 + $0x70] sm:$0xff]
    %v7119 = vld [vmem:[%s3093 + $0x88] sm:$0xff]
    %v7120 = vld [vmem:[%s3093 + $0x90] sm:$0xff]
    %v7121 = vld [vmem:[%s3093 + $0xa8] sm:$0xff]
    %v7122 = vld [vmem:[%s3093 + $0xb0] sm:$0xff]
    %v7123 = vld [vmem:[%s3093 + $0xc8] sm:$0xff]
    %v7124 = vld [vmem:[%s3093 + $0xd0] sm:$0xff]
    %v7125 = vld [vmem:[%s3093 + $0xe8] sm:$0xff]
    %v7126 = vld [vmem:[%s3093 + $0xf0] sm:$0xff]
    %v7127 = vld [vmem:[%s3093 + $0x108] sm:$0xff]
    %v7128 = vld [vmem:[%s3093 + $0x110] sm:$0xff]
    %v7129 = vld [vmem:[%s3093 + $0x128] sm:$0xff]
    %v7130 = vld [vmem:[%s3093 + $0x130] sm:$0xff]
    %v7131 = vld [vmem:[%s3093 + $0x148] sm:$0xff]
    %v7132 = vld [vmem:[%s3093 + $0x150] sm:$0xff]
    %v7133 = vld [vmem:[%s3093 + $0x168] sm:$0xff]
    %v7134 = vld [vmem:[%s3093 + $0x170] sm:$0xff]
    %v7135 = vld [vmem:[%s3093 + $0x188] sm:$0xff]
    %v7136 = vld [vmem:[%s3093 + $0x190] sm:$0xff]
    %v7137 = vld [vmem:[%s3093 + $0x1a8] sm:$0xff]
    %v7138 = vld [vmem:[%s3093 + $0x1b0] sm:$0xff]
    %v7139 = vld [vmem:[%s3093 + $0x1c8] sm:$0xff]
    %v7140 = vld [vmem:[%s3093 + $0x1d0] sm:$0xff]
    %v7141 = vld [vmem:[%s3093 + $0x1e8] sm:$0xff]
    %v7142 = vld [vmem:[%s3093 + $0x1f0] sm:$0xff]
    %v7143 = vld [vmem:[%s3093 + $0x208] sm:$0xff]
    %v7144 = vld [vmem:[%s3093 + $0x210] sm:$0xff]
    %7179 = vrot.lane.b32.xlu0 %v7111, 32
    %v7180 = vpop.permute.xlu0 %7179
    %7181 = vrot.lane.b32.xlu0 %v7112, 32
    %v7182 = vpop.permute.xlu0 %7181
    %7183 = vrot.lane.b32.xlu0 %v7113, 32
    %v7184 = vpop.permute.xlu0 %7183
    %7185 = vrot.lane.b32.xlu0 %v7114, 32
    %v7186 = vpop.permute.xlu0 %7185
    %7187 = vrot.lane.b32.xlu0 %v7115, 32
    %v7188 = vpop.permute.xlu0 %7187
    %7189 = vrot.lane.b32.xlu0 %v7116, 32
    %v7190 = vpop.permute.xlu0 %7189
    %7191 = vrot.lane.b32.xlu0 %v7117, 32
    %v7192 = vpop.permute.xlu0 %7191
    %7193 = vrot.lane.b32.xlu0 %v7118, 32
    %v7194 = vpop.permute.xlu0 %7193
    %7195 = vrot.lane.b32.xlu0 %v7119, 32
    %v7196 = vpop.permute.xlu0 %7195
    %7197 = vrot.lane.b32.xlu0 %v7120, 32
    %v7198 = vpop.permute.xlu0 %7197
    %7199 = vrot.lane.b32.xlu0 %v7121, 32
    %v7200 = vpop.permute.xlu0 %7199
    %7201 = vrot.lane.b32.xlu0 %v7122, 32
    %v7202 = vpop.permute.xlu0 %7201
    %7203 = vrot.lane.b32.xlu0 %v7123, 32
    %v7204 = vpop.permute.xlu0 %7203
    %7205 = vrot.lane.b32.xlu0 %v7124, 32
    %v7206 = vpop.permute.xlu0 %7205
    %7207 = vrot.lane.b32.xlu0 %v7125, 32
    %v7208 = vpop.permute.xlu0 %7207
    %7209 = vrot.lane.b32.xlu0 %v7126, 32
    %v7210 = vpop.permute.xlu0 %7209
    %7211 = vrot.lane.b32.xlu0 %v7127, 32
    %v7212 = vpop.permute.xlu0 %7211
    %7213 = vrot.lane.b32.xlu0 %v7128, 32
    %v7214 = vpop.permute.xlu0 %7213
    %7215 = vrot.lane.b32.xlu0 %v7129, 32
    %v7216 = vpop.permute.xlu0 %7215
    %7217 = vrot.lane.b32.xlu0 %v7130, 32
    %v7218 = vpop.permute.xlu0 %7217
    %7219 = vrot.lane.b32.xlu0 %v7131, 32
    %v7220 = vpop.permute.xlu0 %7219
    %7221 = vrot.lane.b32.xlu0 %v7132, 32
    %v7222 = vpop.permute.xlu0 %7221
    %7223 = vrot.lane.b32.xlu0 %v7133, 32
    %v7224 = vpop.permute.xlu0 %7223
    %7225 = vrot.lane.b32.xlu0 %v7134, 32
    %v7226 = vpop.permute.xlu0 %7225
    %7227 = vrot.lane.b32.xlu0 %v7135, 32
    %v7228 = vpop.permute.xlu0 %7227
    %7229 = vrot.lane.b32.xlu0 %v7136, 32
    %v7230 = vpop.permute.xlu0 %7229
    %7231 = vrot.lane.b32.xlu0 %v7137, 32
    %v7232 = vpop.permute.xlu0 %7231
    %7233 = vrot.lane.b32.xlu0 %v7138, 32
    %v7234 = vpop.permute.xlu0 %7233
    %7235 = vrot.lane.b32.xlu0 %v7139, 32
    %v7236 = vpop.permute.xlu0 %7235
    %7237 = vrot.lane.b32.xlu0 %v7140, 32
    %v7238 = vpop.permute.xlu0 %7237
    %7239 = vrot.lane.b32.xlu0 %v7141, 32
    %v7240 = vpop.permute.xlu0 %7239
    %7241 = vrot.lane.b32.xlu0 %v7142, 32
    %v7242 = vpop.permute.xlu0 %7241
    %7243 = vrot.lane.b32.xlu0 %v7143, 32
    %v7244 = vpop.permute.xlu0 %7243
    %7245 = vrot.lane.b32.xlu0 %v7144, 32
    %v7246 = vpop.permute.xlu0 %7245
    %v7247 = vsel %vm6142, %v7180, %v7182
    %v7248 = vsel %vm6142, %v7184, %v7186
    %v7249 = vsel %vm6142, %v7188, %v7190
    %v7250 = vsel %vm6142, %v7192, %v7194
    %v7251 = vsel %vm6142, %v7196, %v7198
    %v7252 = vsel %vm6142, %v7200, %v7202
    %v7253 = vsel %vm6142, %v7204, %v7206
    %v7254 = vsel %vm6142, %v7208, %v7210
    %v7255 = vsel %vm6142, %v7212, %v7214
    %v7256 = vsel %vm6142, %v7216, %v7218
    %v7257 = vsel %vm6142, %v7220, %v7222
    %v7258 = vsel %vm6142, %v7224, %v7226
    %v7259 = vsel %vm6142, %v7228, %v7230
    %v7260 = vsel %vm6142, %v7232, %v7234
    %v7261 = vsel %vm6142, %v7236, %v7238
    %v7262 = vsel %vm6142, %v7240, %v7242
    %v7263 = vsel %vm6142, %v7244, %v7246
    %7281 = vmatprep.subr.mxu0 0.0
    %7282 = vmatpush1.msra.mxu0 %v7262
    %7283 = vmatprep.subr.mxu0 0.0
    %7284 = vmatpush1.msra.mxu0 %v7261
    %7285 = vmatprep.subr.mxu0 0.0
    %7286 = vmatpush1.msra.mxu0 %v7260
    %7287 = vmatprep.subr.mxu0 0.0
    %7288 = vmatpush1.msra.mxu0 %v7259
    %7289 = vmatprep.subr.mxu0 0.0
    %7290 = vmatpush1.msra.mxu0 %v7258
    %7291 = vmatprep.subr.mxu0 0.0
    %7292 = vmatpush1.msra.mxu0 %v7257
    %7293 = vmatprep.subr.mxu0 0.0
    %7294 = vmatpush1.msra.mxu0 %v7256
    %7295 = vmatprep.subr.mxu0 0.0
    %7296 = vmatpush1.msra.mxu0 %v7255
    %7297 = vmatprep.subr.mxu0 0.0
    %7298 = vmatpush1.msra.mxu0 %v7254
    %7299 = vmatprep.subr.mxu0 0.0
    %7300 = vmatpush1.msra.mxu0 %v7253
    %7301 = vmatprep.subr.mxu0 0.0
    %7302 = vmatpush1.msra.mxu0 %v7252
    %7303 = vmatprep.subr.mxu0 0.0
    %7304 = vmatpush1.msra.mxu0 %v7251
    %7305 = vmatprep.subr.mxu0 0.0
    %7306 = vmatpush1.msra.mxu0 %v7250
    %7307 = vmatprep.subr.mxu0 0.0
    %7308 = vmatpush1.msra.mxu0 %v7249
    %7309 = vmatprep.subr.mxu0 0.0
    %7310 = vmatpush1.msra.mxu0 %v7248
    %7311 = vmatprep.subr.mxu0 0.0
    %7312 = vmatpush1.msra.mxu0 %v7247
    %7313 = vmatprep.subr.mxu0 0.0
    %7314 = vmatpush2.msra.mxu0 0.0
    %7315 = vmatprep.subr.mxu0 0.0
    %7316 = vmatpush2.msra.mxu0 0.0
    %7317 = vmatprep.subr.mxu0 0.0
    %7318 = vmatpush2.msra.mxu0 0.0
    %7319 = vmatprep.subr.mxu0 0.0
    %7320 = vmatpush2.msra.mxu0 0.0
    %7321 = vmatprep.subr.mxu0 0.0
    %7322 = vmatpush2.msra.mxu0 0.0
    %7323 = vmatprep.subr.mxu0 0.0
    %7324 = vmatpush2.msra.mxu0 0.0
    %7325 = vmatprep.subr.mxu0 0.0
    %7326 = vmatpush2.msra.mxu0 0.0
    %7327 = vmatprep.subr.mxu0 0.0
    %7328 = vmatpush2.msra.mxu0 0.0
    %7329 = vmatprep.subr.mxu0 0.0
    %7330 = vmatpush2.msra.mxu0 0.0
    %7331 = vmatprep.subr.mxu0 0.0
    %7332 = vmatpush2.msra.mxu0 0.0
    %7333 = vmatprep.subr.mxu0 0.0
    %7334 = vmatpush2.msra.mxu0 0.0
    %7335 = vmatprep.subr.mxu0 0.0
    %7336 = vmatpush2.msra.mxu0 0.0
    %7337 = vmatprep.subr.mxu0 0.0
    %7338 = vmatpush2.msra.mxu0 0.0
    %7339 = vmatprep.subr.mxu0 0.0
    %7340 = vmatpush2.msra.mxu0 0.0
    %7341 = vmatprep.subr.mxu0 0.0
    %7342 = vmatpush2.msra.mxu0 0.0
    %7343 = vmatprep.subr.mxu0 0.0
    %7344 = vmatpush2.msra.mxu0 %v7263
    %7345 = vmatprep.mubr.f32.mxu0 %v3159
    %7346 = vmatmul.mubr.f32.gmra.mxu0 %v3118
    %v7347 = vpop.f32.mrf.mxu0
    %v7348 = vadd.f32 0.0, %v7347
    %v7349 = vpop.f32.mrf.mxu0
    %7350 = vmatprep.mubr.f32.mxu0 %v3161
    %7351 = vmatmul.mubr.f32.gmra.mxu0 %v3123
    %v7352 = vpop.f32.mrf.mxu0
    %v7353 = vadd.f32 0.0, %v7352
    %v7354 = vpop.f32.mrf.mxu0
    %7355 = vmatprep.mubr.f32.mxu0 %v3163
    %7356 = vmatmul.mubr.f32.gmra.mxu0 %v3127
    %v7357 = vpop.f32.mrf.mxu0
    %v7358 = vadd.f32 0.0, %v7357
    %v7359 = vpop.f32.mrf.mxu0
    %7360 = vmatprep.mubr.f32.mxu0 %v3165
    %7361 = vmatmul.mubr.f32.gmra.mxu0 %v3131
    %v7362 = vpop.f32.mrf.mxu0
    %v7363 = vadd.f32 0.0, %v7362
    %v7364 = vpop.f32.mrf.mxu0
    %7365 = vmatprep.mubr.f32.mxu0 %v3167
    %7366 = vmatmul.mubr.f32.gmra.mxu0 %v3135
    %v7367 = vpop.f32.mrf.mxu0
    %v7368 = vadd.f32 0.0, %v7367
    %v7369 = vpop.f32.mrf.mxu0
    %7370 = vmatprep.mubr.f32.mxu0 %v3169
    %7371 = vmatmul.mubr.f32.gmra.mxu0 %v3139
    %v7372 = vpop.f32.mrf.mxu0
    %v7373 = vadd.f32 0.0, %v7372
    %v7374 = vpop.f32.mrf.mxu0
    %7375 = vmatprep.mubr.f32.mxu0 %v3171
    %7376 = vmatmul.mubr.f32.gmra.mxu0 %v3143
    %v7377 = vpop.f32.mrf.mxu0
    %v7378 = vadd.f32 0.0, %v7377
    %v7379 = vpop.f32.mrf.mxu0
    %7380 = vmatprep.mubr.f32.mxu0 %v3173
    %7381 = vmatmul.mubr.f32.gmra.mxu0 %v3147
    %v7382 = vpop.f32.mrf.mxu0
    %v7383 = vadd.f32 0.0, %v7382
    %v7384 = vpop.f32.mrf.mxu0
    %7385 = vmatprep.mubr.f32.mxu0 %v3175
    %7386 = vmatmul.mubr.f32.gmra.mxu0 %v3146
    %v7387 = vpop.f32.mrf.mxu0
    %v7388 = vadd.f32 0.0, %v7387
    %v7389 = vpop.f32.mrf.mxu0
    %7390 = vdwg.mxu0
    %v7391 = vadd.f32 %v7102, %v7348
    %v7392 = vadd.f32 %v7103, %v7353
    %v7393 = vadd.f32 %v7104, %v7358
    %v7394 = vadd.f32 %v7105, %v7363
    %v7395 = vadd.f32 %v7106, %v7368
    %v7396 = vadd.f32 %v7107, %v7373
    %v7397 = vadd.f32 %v7108, %v7378
    %v7398 = vadd.f32 %v7109, %v7383
    %v7399 = vadd.f32 %v7110, %v7388
    %v7400 = vld [vmem:[%s3316 + $0x8] sm:$0xff]
    %v7401 = vld [vmem:[%s3316 + $0x10] sm:$0xff]
    %v7402 = vld [vmem:[%s3316 + $0x28] sm:$0xff]
    %v7403 = vld [vmem:[%s3316 + $0x30] sm:$0xff]
    %v7404 = vld [vmem:[%s3316 + $0x48] sm:$0xff]
    %v7405 = vld [vmem:[%s3316 + $0x50] sm:$0xff]
    %v7406 = vld [vmem:[%s3316 + $0x68] sm:$0xff]
    %v7407 = vld [vmem:[%s3316 + $0x70] sm:$0xff]
    %v7408 = vld [vmem:[%s3316 + $0x88] sm:$0xff]
    %v7409 = vld [vmem:[%s3316 + $0x90] sm:$0xff]
    %v7410 = vld [vmem:[%s3316 + $0xa8] sm:$0xff]
    %v7411 = vld [vmem:[%s3316 + $0xb0] sm:$0xff]
    %v7412 = vld [vmem:[%s3316 + $0xc8] sm:$0xff]
    %v7413 = vld [vmem:[%s3316 + $0xd0] sm:$0xff]
    %v7414 = vld [vmem:[%s3316 + $0xe8] sm:$0xff]
    %v7415 = vld [vmem:[%s3316 + $0xf0] sm:$0xff]
    %v7416 = vld [vmem:[%s3316 + $0x108] sm:$0xff]
    %v7417 = vld [vmem:[%s3316 + $0x110] sm:$0xff]
    %v7418 = vld [vmem:[%s3316 + $0x128] sm:$0xff]
    %v7419 = vld [vmem:[%s3316 + $0x130] sm:$0xff]
    %v7420 = vld [vmem:[%s3316 + $0x148] sm:$0xff]
    %v7421 = vld [vmem:[%s3316 + $0x150] sm:$0xff]
    %v7422 = vld [vmem:[%s3316 + $0x168] sm:$0xff]
    %v7423 = vld [vmem:[%s3316 + $0x170] sm:$0xff]
    %v7424 = vld [vmem:[%s3316 + $0x188] sm:$0xff]
    %v7425 = vld [vmem:[%s3316 + $0x190] sm:$0xff]
    %v7426 = vld [vmem:[%s3316 + $0x1a8] sm:$0xff]
    %v7427 = vld [vmem:[%s3316 + $0x1b0] sm:$0xff]
    %v7428 = vld [vmem:[%s3316 + $0x1c8] sm:$0xff]
    %v7429 = vld [vmem:[%s3316 + $0x1d0] sm:$0xff]
    %v7430 = vld [vmem:[%s3316 + $0x1e8] sm:$0xff]
    %v7431 = vld [vmem:[%s3316 + $0x1f0] sm:$0xff]
    %v7432 = vld [vmem:[%s3316 + $0x208] sm:$0xff]
    %v7433 = vld [vmem:[%s3316 + $0x210] sm:$0xff]
    %7468 = vrot.lane.b32.xlu0 %v7400, 32
    %v7469 = vpop.permute.xlu0 %7468
    %7470 = vrot.lane.b32.xlu0 %v7401, 32
    %v7471 = vpop.permute.xlu0 %7470
    %7472 = vrot.lane.b32.xlu0 %v7402, 32
    %v7473 = vpop.permute.xlu0 %7472
    %7474 = vrot.lane.b32.xlu0 %v7403, 32
    %v7475 = vpop.permute.xlu0 %7474
    %7476 = vrot.lane.b32.xlu0 %v7404, 32
    %v7477 = vpop.permute.xlu0 %7476
    %7478 = vrot.lane.b32.xlu0 %v7405, 32
    %v7479 = vpop.permute.xlu0 %7478
    %7480 = vrot.lane.b32.xlu0 %v7406, 32
    %v7481 = vpop.permute.xlu0 %7480
    %7482 = vrot.lane.b32.xlu0 %v7407, 32
    %v7483 = vpop.permute.xlu0 %7482
    %7484 = vrot.lane.b32.xlu0 %v7408, 32
    %v7485 = vpop.permute.xlu0 %7484
    %7486 = vrot.lane.b32.xlu0 %v7409, 32
    %v7487 = vpop.permute.xlu0 %7486
    %7488 = vrot.lane.b32.xlu0 %v7410, 32
    %v7489 = vpop.permute.xlu0 %7488
    %7490 = vrot.lane.b32.xlu0 %v7411, 32
    %v7491 = vpop.permute.xlu0 %7490
    %7492 = vrot.lane.b32.xlu0 %v7412, 32
    %v7493 = vpop.permute.xlu0 %7492
    %7494 = vrot.lane.b32.xlu0 %v7413, 32
    %v7495 = vpop.permute.xlu0 %7494
    %7496 = vrot.lane.b32.xlu0 %v7414, 32
    %v7497 = vpop.permute.xlu0 %7496
    %7498 = vrot.lane.b32.xlu0 %v7415, 32
    %v7499 = vpop.permute.xlu0 %7498
    %7500 = vrot.lane.b32.xlu0 %v7416, 32
    %v7501 = vpop.permute.xlu0 %7500
    %7502 = vrot.lane.b32.xlu0 %v7417, 32
    %v7503 = vpop.permute.xlu0 %7502
    %7504 = vrot.lane.b32.xlu0 %v7418, 32
    %v7505 = vpop.permute.xlu0 %7504
    %7506 = vrot.lane.b32.xlu0 %v7419, 32
    %v7507 = vpop.permute.xlu0 %7506
    %7508 = vrot.lane.b32.xlu0 %v7420, 32
    %v7509 = vpop.permute.xlu0 %7508
    %7510 = vrot.lane.b32.xlu0 %v7421, 32
    %v7511 = vpop.permute.xlu0 %7510
    %7512 = vrot.lane.b32.xlu0 %v7422, 32
    %v7513 = vpop.permute.xlu0 %7512
    %7514 = vrot.lane.b32.xlu0 %v7423, 32
    %v7515 = vpop.permute.xlu0 %7514
    %7516 = vrot.lane.b32.xlu0 %v7424, 32
    %v7517 = vpop.permute.xlu0 %7516
    %7518 = vrot.lane.b32.xlu0 %v7425, 32
    %v7519 = vpop.permute.xlu0 %7518
    %7520 = vrot.lane.b32.xlu0 %v7426, 32
    %v7521 = vpop.permute.xlu0 %7520
    %7522 = vrot.lane.b32.xlu0 %v7427, 32
    %v7523 = vpop.permute.xlu0 %7522
    %7524 = vrot.lane.b32.xlu0 %v7428, 32
    %v7525 = vpop.permute.xlu0 %7524
    %7526 = vrot.lane.b32.xlu0 %v7429, 32
    %v7527 = vpop.permute.xlu0 %7526
    %7528 = vrot.lane.b32.xlu0 %v7430, 32
    %v7529 = vpop.permute.xlu0 %7528
    %7530 = vrot.lane.b32.xlu0 %v7431, 32
    %v7531 = vpop.permute.xlu0 %7530
    %7532 = vrot.lane.b32.xlu0 %v7432, 32
    %v7533 = vpop.permute.xlu0 %7532
    %7534 = vrot.lane.b32.xlu0 %v7433, 32
    %v7535 = vpop.permute.xlu0 %7534
    %v7536 = vsel %vm6142, %v7469, %v7471
    %v7537 = vsel %vm6142, %v7473, %v7475
    %v7538 = vsel %vm6142, %v7477, %v7479
    %v7539 = vsel %vm6142, %v7481, %v7483
    %v7540 = vsel %vm6142, %v7485, %v7487
    %v7541 = vsel %vm6142, %v7489, %v7491
    %v7542 = vsel %vm6142, %v7493, %v7495
    %v7543 = vsel %vm6142, %v7497, %v7499
    %v7544 = vsel %vm6142, %v7501, %v7503
    %v7545 = vsel %vm6142, %v7505, %v7507
    %v7546 = vsel %vm6142, %v7509, %v7511
    %v7547 = vsel %vm6142, %v7513, %v7515
    %v7548 = vsel %vm6142, %v7517, %v7519
    %v7549 = vsel %vm6142, %v7521, %v7523
    %v7550 = vsel %vm6142, %v7525, %v7527
    %v7551 = vsel %vm6142, %v7529, %v7531
    %v7552 = vsel %vm6142, %v7533, %v7535
    %7570 = vmatprep.subr.mxu0 0.0
    %7571 = vmatpush1.msra.mxu0 %v7551
    %7572 = vmatprep.subr.mxu0 0.0
    %7573 = vmatpush1.msra.mxu0 %v7550
    %7574 = vmatprep.subr.mxu0 0.0
    %7575 = vmatpush1.msra.mxu0 %v7549
    %7576 = vmatprep.subr.mxu0 0.0
    %7577 = vmatpush1.msra.mxu0 %v7548
    %7578 = vmatprep.subr.mxu0 0.0
    %7579 = vmatpush1.msra.mxu0 %v7547
    %7580 = vmatprep.subr.mxu0 0.0
    %7581 = vmatpush1.msra.mxu0 %v7546
    %7582 = vmatprep.subr.mxu0 0.0
    %7583 = vmatpush1.msra.mxu0 %v7545
    %7584 = vmatprep.subr.mxu0 0.0
    %7585 = vmatpush1.msra.mxu0 %v7544
    %7586 = vmatprep.subr.mxu0 0.0
    %7587 = vmatpush1.msra.mxu0 %v7543
    %7588 = vmatprep.subr.mxu0 0.0
    %7589 = vmatpush1.msra.mxu0 %v7542
    %7590 = vmatprep.subr.mxu0 0.0
    %7591 = vmatpush1.msra.mxu0 %v7541
    %7592 = vmatprep.subr.mxu0 0.0
    %7593 = vmatpush1.msra.mxu0 %v7540
    %7594 = vmatprep.subr.mxu0 0.0
    %7595 = vmatpush1.msra.mxu0 %v7539
    %7596 = vmatprep.subr.mxu0 0.0
    %7597 = vmatpush1.msra.mxu0 %v7538
    %7598 = vmatprep.subr.mxu0 0.0
    %7599 = vmatpush1.msra.mxu0 %v7537
    %7600 = vmatprep.subr.mxu0 0.0
    %7601 = vmatpush1.msra.mxu0 %v7536
    %7602 = vmatprep.subr.mxu0 0.0
    %7603 = vmatpush2.msra.mxu0 0.0
    %7604 = vmatprep.subr.mxu0 0.0
    %7605 = vmatpush2.msra.mxu0 0.0
    %7606 = vmatprep.subr.mxu0 0.0
    %7607 = vmatpush2.msra.mxu0 0.0
    %7608 = vmatprep.subr.mxu0 0.0
    %7609 = vmatpush2.msra.mxu0 0.0
    %7610 = vmatprep.subr.mxu0 0.0
    %7611 = vmatpush2.msra.mxu0 0.0
    %7612 = vmatprep.subr.mxu0 0.0
    %7613 = vmatpush2.msra.mxu0 0.0
    %7614 = vmatprep.subr.mxu0 0.0
    %7615 = vmatpush2.msra.mxu0 0.0
    %7616 = vmatprep.subr.mxu0 0.0
    %7617 = vmatpush2.msra.mxu0 0.0
    %7618 = vmatprep.subr.mxu0 0.0
    %7619 = vmatpush2.msra.mxu0 0.0
    %7620 = vmatprep.subr.mxu0 0.0
    %7621 = vmatpush2.msra.mxu0 0.0
    %7622 = vmatprep.subr.mxu0 0.0
    %7623 = vmatpush2.msra.mxu0 0.0
    %7624 = vmatprep.subr.mxu0 0.0
    %7625 = vmatpush2.msra.mxu0 0.0
    %7626 = vmatprep.subr.mxu0 0.0
    %7627 = vmatpush2.msra.mxu0 0.0
    %7628 = vmatprep.subr.mxu0 0.0
    %7629 = vmatpush2.msra.mxu0 0.0
    %7630 = vmatprep.subr.mxu0 0.0
    %7631 = vmatpush2.msra.mxu0 0.0
    %7632 = vmatprep.subr.mxu0 0.0
    %7633 = vmatpush2.msra.mxu0 %v7552
    %7634 = vmatprep.mubr.f32.mxu0 %v3401
    %7635 = vmatmul.mubr.f32.gmra.mxu0 %v3356
    %v7636 = vpop.f32.mrf.mxu0
    %v7637 = vadd.f32 0.0, %v7636
    %v7638 = vpop.f32.mrf.mxu0
    %7639 = vmatprep.mubr.f32.mxu0 %v3403
    %7640 = vmatmul.mubr.f32.gmra.mxu0 %v3361
    %v7641 = vpop.f32.mrf.mxu0
    %v7642 = vadd.f32 0.0, %v7641
    %v7643 = vpop.f32.mrf.mxu0
    %7644 = vmatprep.mubr.f32.mxu0 %v3405
    %7645 = vmatmul.mubr.f32.gmra.mxu0 %v3365
    %v7646 = vpop.f32.mrf.mxu0
    %v7647 = vadd.f32 0.0, %v7646
    %v7648 = vpop.f32.mrf.mxu0
    %7649 = vmatprep.mubr.f32.mxu0 %v3407
    %7650 = vmatmul.mubr.f32.gmra.mxu0 %v3369
    %v7651 = vpop.f32.mrf.mxu0
    %v7652 = vadd.f32 0.0, %v7651
    %v7653 = vpop.f32.mrf.mxu0
    %7654 = vmatprep.mubr.f32.mxu0 %v3409
    %7655 = vmatmul.mubr.f32.gmra.mxu0 %v3373
    %v7656 = vpop.f32.mrf.mxu0
    %v7657 = vadd.f32 0.0, %v7656
    %v7658 = vpop.f32.mrf.mxu0
    %7659 = vmatprep.mubr.f32.mxu0 %v3411
    %7660 = vmatmul.mubr.f32.gmra.mxu0 %v3377
    %v7661 = vpop.f32.mrf.mxu0
    %v7662 = vadd.f32 0.0, %v7661
    %v7663 = vpop.f32.mrf.mxu0
    %7664 = vmatprep.mubr.f32.mxu0 %v3413
    %7665 = vmatmul.mubr.f32.gmra.mxu0 %v3381
    %v7666 = vpop.f32.mrf.mxu0
    %v7667 = vadd.f32 0.0, %v7666
    %v7668 = vpop.f32.mrf.mxu0
    %7669 = vmatprep.mubr.f32.mxu0 %v3415
    %7670 = vmatmul.mubr.f32.gmra.mxu0 %v3385
    %v7671 = vpop.f32.mrf.mxu0
    %v7672 = vadd.f32 0.0, %v7671
    %v7673 = vpop.f32.mrf.mxu0
    %7674 = vmatprep.mubr.f32.mxu0 %v3417
    %7675 = vmatmul.mubr.f32.gmra.mxu0 %v3389
    %v7676 = vpop.f32.mrf.mxu0
    %v7677 = vadd.f32 0.0, %v7676
    %v7678 = vpop.f32.mrf.mxu0
    %7679 = vdwg.mxu0
    %v7680 = vadd.f32 %v7391, %v7637
    %v7681 = vadd.f32 %v7392, %v7642
    %v7682 = vadd.f32 %v7393, %v7647
    %v7683 = vadd.f32 %v7394, %v7652
    %v7684 = vadd.f32 %v7395, %v7657
    %v7685 = vadd.f32 %v7396, %v7662
    %v7686 = vadd.f32 %v7397, %v7667
    %v7687 = vadd.f32 %v7398, %v7672
    %v7688 = vadd.f32 %v7399, %v7677
    %v7689 = vld [vmem:[%s3542 + $0x8] sm:$0xff]
    %v7690 = vld [vmem:[%s3542 + $0x10] sm:$0xff]
    %v7691 = vld [vmem:[%s3542 + $0x28] sm:$0xff]
    %v7692 = vld [vmem:[%s3542 + $0x30] sm:$0xff]
    %v7693 = vld [vmem:[%s3542 + $0x48] sm:$0xff]
    %v7694 = vld [vmem:[%s3542 + $0x50] sm:$0xff]
    %v7695 = vld [vmem:[%s3542 + $0x68] sm:$0xff]
    %v7696 = vld [vmem:[%s3542 + $0x70] sm:$0xff]
    %v7697 = vld [vmem:[%s3542 + $0x88] sm:$0xff]
    %v7698 = vld [vmem:[%s3542 + $0x90] sm:$0xff]
    %v7699 = vld [vmem:[%s3542 + $0xa8] sm:$0xff]
    %v7700 = vld [vmem:[%s3542 + $0xb0] sm:$0xff]
    %v7701 = vld [vmem:[%s3542 + $0xc8] sm:$0xff]
    %v7702 = vld [vmem:[%s3542 + $0xd0] sm:$0xff]
    %v7703 = vld [vmem:[%s3542 + $0xe8] sm:$0xff]
    %v7704 = vld [vmem:[%s3542 + $0xf0] sm:$0xff]
    %v7705 = vld [vmem:[%s3542 + $0x108] sm:$0xff]
    %v7706 = vld [vmem:[%s3542 + $0x110] sm:$0xff]
    %v7707 = vld [vmem:[%s3542 + $0x128] sm:$0xff]
    %v7708 = vld [vmem:[%s3542 + $0x130] sm:$0xff]
    %v7709 = vld [vmem:[%s3542 + $0x148] sm:$0xff]
    %v7710 = vld [vmem:[%s3542 + $0x150] sm:$0xff]
    %v7711 = vld [vmem:[%s3542 + $0x168] sm:$0xff]
    %v7712 = vld [vmem:[%s3542 + $0x170] sm:$0xff]
    %v7713 = vld [vmem:[%s3542 + $0x188] sm:$0xff]
    %v7714 = vld [vmem:[%s3542 + $0x190] sm:$0xff]
    %v7715 = vld [vmem:[%s3542 + $0x1a8] sm:$0xff]
    %v7716 = vld [vmem:[%s3542 + $0x1b0] sm:$0xff]
    %v7717 = vld [vmem:[%s3542 + $0x1c8] sm:$0xff]
    %v7718 = vld [vmem:[%s3542 + $0x1d0] sm:$0xff]
    %v7719 = vld [vmem:[%s3542 + $0x1e8] sm:$0xff]
    %v7720 = vld [vmem:[%s3542 + $0x1f0] sm:$0xff]
    %v7721 = vld [vmem:[%s3542 + $0x208] sm:$0xff]
    %v7722 = vld [vmem:[%s3542 + $0x210] sm:$0xff]
    %7757 = vrot.lane.b32.xlu0 %v7689, 32
    %v7758 = vpop.permute.xlu0 %7757
    %7759 = vrot.lane.b32.xlu0 %v7690, 32
    %v7760 = vpop.permute.xlu0 %7759
    %7761 = vrot.lane.b32.xlu0 %v7691, 32
    %v7762 = vpop.permute.xlu0 %7761
    %7763 = vrot.lane.b32.xlu0 %v7692, 32
    %v7764 = vpop.permute.xlu0 %7763
    %7765 = vrot.lane.b32.xlu0 %v7693, 32
    %v7766 = vpop.permute.xlu0 %7765
    %7767 = vrot.lane.b32.xlu0 %v7694, 32
    %v7768 = vpop.permute.xlu0 %7767
    %7769 = vrot.lane.b32.xlu0 %v7695, 32
    %v7770 = vpop.permute.xlu0 %7769
    %7771 = vrot.lane.b32.xlu0 %v7696, 32
    %v7772 = vpop.permute.xlu0 %7771
    %7773 = vrot.lane.b32.xlu0 %v7697, 32
    %v7774 = vpop.permute.xlu0 %7773
    %7775 = vrot.lane.b32.xlu0 %v7698, 32
    %v7776 = vpop.permute.xlu0 %7775
    %7777 = vrot.lane.b32.xlu0 %v7699, 32
    %v7778 = vpop.permute.xlu0 %7777
    %7779 = vrot.lane.b32.xlu0 %v7700, 32
    %v7780 = vpop.permute.xlu0 %7779
    %7781 = vrot.lane.b32.xlu0 %v7701, 32
    %v7782 = vpop.permute.xlu0 %7781
    %7783 = vrot.lane.b32.xlu0 %v7702, 32
    %v7784 = vpop.permute.xlu0 %7783
    %7785 = vrot.lane.b32.xlu0 %v7703, 32
    %v7786 = vpop.permute.xlu0 %7785
    %7787 = vrot.lane.b32.xlu0 %v7704, 32
    %v7788 = vpop.permute.xlu0 %7787
    %7789 = vrot.lane.b32.xlu0 %v7705, 32
    %v7790 = vpop.permute.xlu0 %7789
    %7791 = vrot.lane.b32.xlu0 %v7706, 32
    %v7792 = vpop.permute.xlu0 %7791
    %7793 = vrot.lane.b32.xlu0 %v7707, 32
    %v7794 = vpop.permute.xlu0 %7793
    %7795 = vrot.lane.b32.xlu0 %v7708, 32
    %v7796 = vpop.permute.xlu0 %7795
    %7797 = vrot.lane.b32.xlu0 %v7709, 32
    %v7798 = vpop.permute.xlu0 %7797
    %7799 = vrot.lane.b32.xlu0 %v7710, 32
    %v7800 = vpop.permute.xlu0 %7799
    %7801 = vrot.lane.b32.xlu0 %v7711, 32
    %v7802 = vpop.permute.xlu0 %7801
    %7803 = vrot.lane.b32.xlu0 %v7712, 32
    %v7804 = vpop.permute.xlu0 %7803
    %7805 = vrot.lane.b32.xlu0 %v7713, 32
    %v7806 = vpop.permute.xlu0 %7805
    %7807 = vrot.lane.b32.xlu0 %v7714, 32
    %v7808 = vpop.permute.xlu0 %7807
    %7809 = vrot.lane.b32.xlu0 %v7715, 32
    %v7810 = vpop.permute.xlu0 %7809
    %7811 = vrot.lane.b32.xlu0 %v7716, 32
    %v7812 = vpop.permute.xlu0 %7811
    %7813 = vrot.lane.b32.xlu0 %v7717, 32
    %v7814 = vpop.permute.xlu0 %7813
    %7815 = vrot.lane.b32.xlu0 %v7718, 32
    %v7816 = vpop.permute.xlu0 %7815
    %7817 = vrot.lane.b32.xlu0 %v7719, 32
    %v7818 = vpop.permute.xlu0 %7817
    %7819 = vrot.lane.b32.xlu0 %v7720, 32
    %v7820 = vpop.permute.xlu0 %7819
    %7821 = vrot.lane.b32.xlu0 %v7721, 32
    %v7822 = vpop.permute.xlu0 %7821
    %7823 = vrot.lane.b32.xlu0 %v7722, 32
    %v7824 = vpop.permute.xlu0 %7823
    %v7825 = vsel %vm6142, %v7758, %v7760
    %v7826 = vsel %vm6142, %v7762, %v7764
    %v7827 = vsel %vm6142, %v7766, %v7768
    %v7828 = vsel %vm6142, %v7770, %v7772
    %v7829 = vsel %vm6142, %v7774, %v7776
    %v7830 = vsel %vm6142, %v7778, %v7780
    %v7831 = vsel %vm6142, %v7782, %v7784
    %v7832 = vsel %vm6142, %v7786, %v7788
    %v7833 = vsel %vm6142, %v7790, %v7792
    %v7834 = vsel %vm6142, %v7794, %v7796
    %v7835 = vsel %vm6142, %v7798, %v7800
    %v7836 = vsel %vm6142, %v7802, %v7804
    %v7837 = vsel %vm6142, %v7806, %v7808
    %v7838 = vsel %vm6142, %v7810, %v7812
    %v7839 = vsel %vm6142, %v7814, %v7816
    %v7840 = vsel %vm6142, %v7818, %v7820
    %v7841 = vsel %vm6142, %v7822, %v7824
    %7859 = vmatprep.subr.mxu0 0.0
    %7860 = vmatpush1.msra.mxu0 %v7840
    %7861 = vmatprep.subr.mxu0 0.0
    %7862 = vmatpush1.msra.mxu0 %v7839
    %7863 = vmatprep.subr.mxu0 0.0
    %7864 = vmatpush1.msra.mxu0 %v7838
    %7865 = vmatprep.subr.mxu0 0.0
    %7866 = vmatpush1.msra.mxu0 %v7837
    %7867 = vmatprep.subr.mxu0 0.0
    %7868 = vmatpush1.msra.mxu0 %v7836
    %7869 = vmatprep.subr.mxu0 0.0
    %7870 = vmatpush1.msra.mxu0 %v7835
    %7871 = vmatprep.subr.mxu0 0.0
    %7872 = vmatpush1.msra.mxu0 %v7834
    %7873 = vmatprep.subr.mxu0 0.0
    %7874 = vmatpush1.msra.mxu0 %v7833
    %7875 = vmatprep.subr.mxu0 0.0
    %7876 = vmatpush1.msra.mxu0 %v7832
    %7877 = vmatprep.subr.mxu0 0.0
    %7878 = vmatpush1.msra.mxu0 %v7831
    %7879 = vmatprep.subr.mxu0 0.0
    %7880 = vmatpush1.msra.mxu0 %v7830
    %7881 = vmatprep.subr.mxu0 0.0
    %7882 = vmatpush1.msra.mxu0 %v7829
    %7883 = vmatprep.subr.mxu0 0.0
    %7884 = vmatpush1.msra.mxu0 %v7828
    %7885 = vmatprep.subr.mxu0 0.0
    %7886 = vmatpush1.msra.mxu0 %v7827
    %7887 = vmatprep.subr.mxu0 0.0
    %7888 = vmatpush1.msra.mxu0 %v7826
    %7889 = vmatprep.subr.mxu0 0.0
    %7890 = vmatpush1.msra.mxu0 %v7825
    %7891 = vmatprep.subr.mxu0 0.0
    %7892 = vmatpush2.msra.mxu0 0.0
    %7893 = vmatprep.subr.mxu0 0.0
    %7894 = vmatpush2.msra.mxu0 0.0
    %7895 = vmatprep.subr.mxu0 0.0
    %7896 = vmatpush2.msra.mxu0 0.0
    %7897 = vmatprep.subr.mxu0 0.0
    %7898 = vmatpush2.msra.mxu0 0.0
    %7899 = vmatprep.subr.mxu0 0.0
    %7900 = vmatpush2.msra.mxu0 0.0
    %7901 = vmatprep.subr.mxu0 0.0
    %7902 = vmatpush2.msra.mxu0 0.0
    %7903 = vmatprep.subr.mxu0 0.0
    %7904 = vmatpush2.msra.mxu0 0.0
    %7905 = vmatprep.subr.mxu0 0.0
    %7906 = vmatpush2.msra.mxu0 0.0
    %7907 = vmatprep.subr.mxu0 0.0
    %7908 = vmatpush2.msra.mxu0 0.0
    %7909 = vmatprep.subr.mxu0 0.0
    %7910 = vmatpush2.msra.mxu0 0.0
    %7911 = vmatprep.subr.mxu0 0.0
    %7912 = vmatpush2.msra.mxu0 0.0
    %7913 = vmatprep.subr.mxu0 0.0
    %7914 = vmatpush2.msra.mxu0 0.0
    %7915 = vmatprep.subr.mxu0 0.0
    %7916 = vmatpush2.msra.mxu0 0.0
    %7917 = vmatprep.subr.mxu0 0.0
    %7918 = vmatpush2.msra.mxu0 0.0
    %7919 = vmatprep.subr.mxu0 0.0
    %7920 = vmatpush2.msra.mxu0 0.0
    %7921 = vmatprep.subr.mxu0 0.0
    %7922 = vmatpush2.msra.mxu0 %v7841
    %7923 = vmatprep.mubr.f32.mxu0 %v3612
    %7924 = vmatmul.mubr.f32.gmra.mxu0 %v3567
    %v7925 = vpop.f32.mrf.mxu0
    %v7926 = vadd.f32 0.0, %v7925
    %v7927 = vpop.f32.mrf.mxu0
    %7928 = vmatprep.mubr.f32.mxu0 %v3614
    %7929 = vmatmul.mubr.f32.gmra.mxu0 %v3572
    %v7930 = vpop.f32.mrf.mxu0
    %v7931 = vadd.f32 0.0, %v7930
    %v7932 = vpop.f32.mrf.mxu0
    %7933 = vmatprep.mubr.f32.mxu0 %v3616
    %7934 = vmatmul.mubr.f32.gmra.mxu0 %v3576
    %v7935 = vpop.f32.mrf.mxu0
    %v7936 = vadd.f32 0.0, %v7935
    %v7937 = vpop.f32.mrf.mxu0
    %7938 = vmatprep.mubr.f32.mxu0 %v3618
    %7939 = vmatmul.mubr.f32.gmra.mxu0 %v3580
    %v7940 = vpop.f32.mrf.mxu0
    %v7941 = vadd.f32 0.0, %v7940
    %v7942 = vpop.f32.mrf.mxu0
    %7943 = vmatprep.mubr.f32.mxu0 %v3620
    %7944 = vmatmul.mubr.f32.gmra.mxu0 %v3584
    %v7945 = vpop.f32.mrf.mxu0
    %v7946 = vadd.f32 0.0, %v7945
    %v7947 = vpop.f32.mrf.mxu0
    %7948 = vmatprep.mubr.f32.mxu0 %v3622
    %7949 = vmatmul.mubr.f32.gmra.mxu0 %v3588
    %v7950 = vpop.f32.mrf.mxu0
    %v7951 = vadd.f32 0.0, %v7950
    %v7952 = vpop.f32.mrf.mxu0
    %7953 = vmatprep.mubr.f32.mxu0 %v3624
    %7954 = vmatmul.mubr.f32.gmra.mxu0 %v3592
    %v7955 = vpop.f32.mrf.mxu0
    %v7956 = vadd.f32 0.0, %v7955
    %v7957 = vpop.f32.mrf.mxu0
    %7958 = vmatprep.mubr.f32.mxu0 %v3626
    %7959 = vmatmul.mubr.f32.gmra.mxu0 %v3596
    %v7960 = vpop.f32.mrf.mxu0
    %v7961 = vadd.f32 0.0, %v7960
    %v7962 = vpop.f32.mrf.mxu0
    %7963 = vmatprep.mubr.f32.mxu0 %v3628
    %7964 = vmatmul.mubr.f32.gmra.mxu0 %v3600
    %v7965 = vpop.f32.mrf.mxu0
    %v7966 = vadd.f32 0.0, %v7965
    %v7967 = vpop.f32.mrf.mxu0
    %7968 = vdwg.mxu0
    %v7969 = vadd.f32 %v7680, %v7926
    %v7970 = vadd.f32 %v7681, %v7931
    %v7971 = vadd.f32 %v7682, %v7936
    %v7972 = vadd.f32 %v7683, %v7941
    %v7973 = vadd.f32 %v7684, %v7946
    %v7974 = vadd.f32 %v7685, %v7951
    %v7975 = vadd.f32 %v7686, %v7956
    %v7976 = vadd.f32 %v7687, %v7961
    %v7977 = vadd.f32 %v7688, %v7966
    %v7979 = vsel %vm3115, %v7977, 0
    %7981 = vmatprep.subr.mxu0 0.0
    %7982 = vmatpush1.msra.mxu0 0.0
    %7983 = vmatprep.subr.mxu0 0.0
    %7984 = vmatpush1.msra.mxu0 0.0
    %7985 = vmatprep.subr.mxu0 0.0
    %7986 = vmatpush1.msra.mxu0 0.0
    %7987 = vmatprep.subr.mxu0 0.0
    %7988 = vmatpush1.msra.mxu0 0.0
    %7989 = vmatprep.subr.mxu0 0.0
    %7990 = vmatpush1.msra.mxu0 0.0
    %7991 = vmatprep.subr.mxu0 0.0
    %7992 = vmatpush1.msra.mxu0 0.0
    %7993 = vmatprep.subr.mxu0 0.0
    %7994 = vmatpush1.msra.mxu0 0.0
    %7995 = vmatprep.subr.mxu0 0.0
    %7996 = vmatpush1.msra.mxu0 %v7979
    %7997 = vmatprep.subr.mxu0 0.0
    %7998 = vmatpush1.msra.mxu0 %v7976
    %7999 = vmatprep.subr.mxu0 0.0
    %8000 = vmatpush1.msra.mxu0 %v7975
    %8001 = vmatprep.subr.mxu0 0.0
    %8002 = vmatpush1.msra.mxu0 %v7974
    %8003 = vmatprep.subr.mxu0 0.0
    %8004 = vmatpush1.msra.mxu0 %v7973
    %8005 = vmatprep.subr.mxu0 0.0
    %8006 = vmatpush1.msra.mxu0 %v7972
    %8007 = vmatprep.subr.mxu0 0.0
    %8008 = vmatpush1.msra.mxu0 %v7971
    %8009 = vmatprep.subr.mxu0 0.0
    %8010 = vmatpush1.msra.mxu0 %v7970
    %8011 = vmatprep.subr.mxu0 0.0
    %8012 = vmatpush1.msra.mxu0 %v7969
    %8013 = vmatprep.subr.mxu0 0.0
    %8014 = vmatpush2.msra.mxu0 0.0
    %8015 = vmatprep.subr.mxu0 0.0
    %8016 = vmatpush2.msra.mxu0 0.0
    %8017 = vmatprep.subr.mxu0 0.0
    %8018 = vmatpush2.msra.mxu0 0.0
    %8019 = vmatprep.subr.mxu0 0.0
    %8020 = vmatpush2.msra.mxu0 0.0
    %8021 = vmatprep.subr.mxu0 0.0
    %8022 = vmatpush2.msra.mxu0 0.0
    %8023 = vmatprep.subr.mxu0 0.0
    %8024 = vmatpush2.msra.mxu0 0.0
    %8025 = vmatprep.subr.mxu0 0.0
    %8026 = vmatpush2.msra.mxu0 0.0
    %8027 = vmatprep.subr.mxu0 0.0
    %8028 = vmatpush2.msra.mxu0 0.0
    %8029 = vmatprep.subr.mxu0 0.0
    %8030 = vmatpush2.msra.mxu0 0.0
    %8031 = vmatprep.subr.mxu0 0.0
    %8032 = vmatpush2.msra.mxu0 0.0
    %8033 = vmatprep.subr.mxu0 0.0
    %8034 = vmatpush2.msra.mxu0 0.0
    %8035 = vmatprep.subr.mxu0 0.0
    %8036 = vmatpush2.msra.mxu0 0.0
    %8037 = vmatprep.subr.mxu0 0.0
    %8038 = vmatpush2.msra.mxu0 0.0
    %8039 = vmatprep.subr.mxu0 0.0
    %8040 = vmatpush2.msra.mxu0 0.0
    %8041 = vmatprep.subr.mxu0 0.0
    %8042 = vmatpush2.msra.mxu0 0.0
    %8043 = vmatprep.subr.mxu0 0.0
    %8044 = vmatpush2.msra.mxu0 0.0
    %8045 = vmatprep.mubr.f32.mxu0 0.0
    %8046 = vmatmul.mubr.f32.gmra.mxu0 %v5775
    %v8047 = vpop.f32.mrf.mxu0
    %v8048 = vadd.f32 0.0, %v8047
    %v8049 = vpop.f32.mrf.mxu0
    %8050 = vmatprep.mubr.f32.mxu0 0.0
    %8051 = vmatmul.mubr.f32.gmra.mxu0 %v5778
    %v8052 = vpop.f32.mrf.mxu0
    %v8053 = vadd.f32 0.0, %v8052
    %v8054 = vpop.f32.mrf.mxu0
    %8055 = vmatprep.mubr.f32.mxu0 0.0
    %8056 = vmatmul.mubr.f32.gmra.mxu0 %v5781
    %v8057 = vpop.f32.mrf.mxu0
    %v8058 = vadd.f32 0.0, %v8057
    %v8059 = vpop.f32.mrf.mxu0
    %8060 = vmatprep.mubr.f32.mxu0 0.0
    %8061 = vmatmul.mubr.f32.gmra.mxu0 %v5784
    %v8062 = vpop.f32.mrf.mxu0
    %v8063 = vadd.f32 0.0, %v8062
    %v8064 = vpop.f32.mrf.mxu0
    %8065 = vdwg.mxu0
    %v8067 = vsel %vm5874, %v8048, 0
    %v8070 = vsel %vm5874, %v8053, 0
    %v8073 = vsel %vm5874, %v8058, 0
    %v8076 = vsel %vm5874, %v8063, 0
    %8078 = vmatprep.subr.mxu0 0.0
    %8079 = vmatpush1.msra.mxu0 0.0
    %8080 = vmatprep.subr.mxu0 0.0
    %8081 = vmatpush1.msra.mxu0 0.0
    %8082 = vmatprep.subr.mxu0 0.0
    %8083 = vmatpush1.msra.mxu0 %v2293
    %8084 = vmatprep.subr.mxu0 0.0
    %8085 = vmatpush1.msra.mxu0 %v2292
    %8086 = vmatprep.subr.mxu0 0.0
    %8087 = vmatpush1.msra.mxu0 %v2291
    %8088 = vmatprep.subr.mxu0 0.0
    %8089 = vmatpush1.msra.mxu0 %v2290
    %8090 = vmatprep.subr.mxu0 0.0
    %8091 = vmatpush1.msra.mxu0 %v2289
    %8092 = vmatprep.subr.mxu0 0.0
    %8093 = vmatpush1.msra.mxu0 %v2288
    %8094 = vmatprep.subr.mxu0 0.0
    %8095 = vmatpush1.msra.mxu0 %v2287
    %8096 = vmatprep.subr.mxu0 0.0
    %8097 = vmatpush1.msra.mxu0 %v2286
    %8098 = vmatprep.subr.mxu0 0.0
    %8099 = vmatpush1.msra.mxu0 %v2285
    %8100 = vmatprep.subr.mxu0 0.0
    %8101 = vmatpush1.msra.mxu0 %v2284
    %8102 = vmatprep.subr.mxu0 0.0
    %8103 = vmatpush1.msra.mxu0 %v2283
    %8104 = vmatprep.subr.mxu0 0.0
    %8105 = vmatpush1.msra.mxu0 %v2282
    %8106 = vmatprep.subr.mxu0 0.0
    %8107 = vmatpush1.msra.mxu0 %v2281
    %8108 = vmatprep.subr.mxu0 0.0
    %8109 = vmatpush1.msra.mxu0 %v2280
    %8110 = vmatprep.subr.mxu0 0.0
    %8111 = vmatpush2.msra.mxu0 0.0
    %8112 = vmatprep.subr.mxu0 0.0
    %8113 = vmatpush2.msra.mxu0 0.0
    %8114 = vmatprep.subr.mxu0 0.0
    %8115 = vmatpush2.msra.mxu0 0.0
    %8116 = vmatprep.subr.mxu0 0.0
    %8117 = vmatpush2.msra.mxu0 0.0
    %8118 = vmatprep.subr.mxu0 0.0
    %8119 = vmatpush2.msra.mxu0 0.0
    %8120 = vmatprep.subr.mxu0 0.0
    %8121 = vmatpush2.msra.mxu0 0.0
    %8122 = vmatprep.subr.mxu0 0.0
    %8123 = vmatpush2.msra.mxu0 0.0
    %8124 = vmatprep.subr.mxu0 0.0
    %8125 = vmatpush2.msra.mxu0 0.0
    %8126 = vmatprep.subr.mxu0 0.0
    %8127 = vmatpush2.msra.mxu0 0.0
    %8128 = vmatprep.subr.mxu0 0.0
    %8129 = vmatpush2.msra.mxu0 0.0
    %8130 = vmatprep.subr.mxu0 0.0
    %8131 = vmatpush2.msra.mxu0 0.0
    %8132 = vmatprep.subr.mxu0 0.0
    %8133 = vmatpush2.msra.mxu0 0.0
    %8134 = vmatprep.subr.mxu0 0.0
    %8135 = vmatpush2.msra.mxu0 0.0
    %8136 = vmatprep.subr.mxu0 0.0
    %8137 = vmatpush2.msra.mxu0 0.0
    %8138 = vmatprep.subr.mxu0 0.0
    %8139 = vmatpush2.msra.mxu0 0.0
    %8140 = vmatprep.subr.mxu0 0.0
    %8141 = vmatpush2.msra.mxu0 0.0
    %8142 = vmatprep.mubr.f32.mxu0 0.0
    %8143 = vmatmul.mubr.f32.gmra.mxu0 %v8067
    %v8144 = vpop.f32.mrf.mxu0
    %v8145 = vadd.f32 0.0, %v8144
    %v8146 = vpop.f32.mrf.mxu0
    %8147 = vmatprep.mubr.f32.mxu0 0.0
    %8148 = vmatmul.mubr.f32.gmra.mxu0 %v8070
    %v8149 = vpop.f32.mrf.mxu0
    %v8150 = vadd.f32 0.0, %v8149
    %v8151 = vpop.f32.mrf.mxu0
    %8152 = vmatprep.mubr.f32.mxu0 0.0
    %8153 = vmatmul.mubr.f32.gmra.mxu0 %v8073
    %v8154 = vpop.f32.mrf.mxu0
    %v8155 = vadd.f32 0.0, %v8154
    %v8156 = vpop.f32.mrf.mxu0
    %8157 = vmatprep.mubr.f32.mxu0 0.0
    %8158 = vmatmul.mubr.f32.gmra.mxu0 %v8076
    %v8159 = vpop.f32.mrf.mxu0
    %v8160 = vadd.f32 0.0, %v8159
    %v8161 = vpop.f32.mrf.mxu0
    %8162 = vdwg.mxu0
    %v8163 = vmul.f32 %v8145, %v5954
    %v8164 = vmul.f32 %v8150, %v5959
    %v8165 = vmul.f32 %v8155, %v5964
    %v8166 = vmul.f32 %v8160, %v5969
    %v8167 = vadd.f32 %v8163, %v5954
    %v8168 = vadd.f32 %v8164, %v5959
    %v8169 = vadd.f32 %v8165, %v5964
    %v8170 = vadd.f32 %v8166, %v5969
    %vm8171 = vcmask 228352
    %v8173 = vsel %vm8171, %v2278, 0
    %v8176 = vsel %vm8171, %v2279, 0
    %v8179 = vsel %vm3115, %v8170, 0
    %8181 = vmatprep.subr.mxu0 0.0
    %8182 = vmatpush1.msra.mxu0 0.0
    %8183 = vmatprep.subr.mxu0 0.0
    %8184 = vmatpush1.msra.mxu0 0.0
    %8185 = vmatprep.subr.mxu0 0.0
    %8186 = vmatpush1.msra.mxu0 0.0
    %8187 = vmatprep.subr.mxu0 0.0
    %8188 = vmatpush1.msra.mxu0 0.0
    %8189 = vmatprep.subr.mxu0 0.0
    %8190 = vmatpush1.msra.mxu0 0.0
    %8191 = vmatprep.subr.mxu0 0.0
    %8192 = vmatpush1.msra.mxu0 0.0
    %8193 = vmatprep.subr.mxu0 0.0
    %8194 = vmatpush1.msra.mxu0 0.0
    %8195 = vmatprep.subr.mxu0 0.0
    %8196 = vmatpush1.msra.mxu0 0.0
    %8197 = vmatprep.subr.mxu0 0.0
    %8198 = vmatpush1.msra.mxu0 0.0
    %8199 = vmatprep.subr.mxu0 0.0
    %8200 = vmatpush1.msra.mxu0 0.0
    %8201 = vmatprep.subr.mxu0 0.0
    %8202 = vmatpush1.msra.mxu0 0.0
    %8203 = vmatprep.subr.mxu0 0.0
    %8204 = vmatpush1.msra.mxu0 0.0
    %8205 = vmatprep.subr.mxu0 0.0
    %8206 = vmatpush1.msra.mxu0 %v8179
    %8207 = vmatprep.subr.mxu0 0.0
    %8208 = vmatpush1.msra.mxu0 %v8169
    %8209 = vmatprep.subr.mxu0 0.0
    %8210 = vmatpush1.msra.mxu0 %v8168
    %8211 = vmatprep.subr.mxu0 0.0
    %8212 = vmatpush1.msra.mxu0 %v8167
    %8213 = vmatprep.subr.mxu0 0.0
    %8214 = vmatpush2.msra.mxu0 0.0
    %8215 = vmatprep.subr.mxu0 0.0
    %8216 = vmatpush2.msra.mxu0 0.0
    %8217 = vmatprep.subr.mxu0 0.0
    %8218 = vmatpush2.msra.mxu0 0.0
    %8219 = vmatprep.subr.mxu0 0.0
    %8220 = vmatpush2.msra.mxu0 0.0
    %8221 = vmatprep.subr.mxu0 0.0
    %8222 = vmatpush2.msra.mxu0 0.0
    %8223 = vmatprep.subr.mxu0 0.0
    %8224 = vmatpush2.msra.mxu0 0.0
    %8225 = vmatprep.subr.mxu0 0.0
    %8226 = vmatpush2.msra.mxu0 0.0
    %8227 = vmatprep.subr.mxu0 0.0
    %8228 = vmatpush2.msra.mxu0 0.0
    %8229 = vmatprep.subr.mxu0 0.0
    %8230 = vmatpush2.msra.mxu0 0.0
    %8231 = vmatprep.subr.mxu0 0.0
    %8232 = vmatpush2.msra.mxu0 0.0
    %8233 = vmatprep.subr.mxu0 0.0
    %8234 = vmatpush2.msra.mxu0 0.0
    %8235 = vmatprep.subr.mxu0 0.0
    %8236 = vmatpush2.msra.mxu0 0.0
    %8237 = vmatprep.subr.mxu0 0.0
    %8238 = vmatpush2.msra.mxu0 0.0
    %8239 = vmatprep.subr.mxu0 0.0
    %8240 = vmatpush2.msra.mxu0 0.0
    %8241 = vmatprep.subr.mxu0 0.0
    %8242 = vmatpush2.msra.mxu0 0.0
    %8243 = vmatprep.subr.mxu0 0.0
    %8244 = vmatpush2.msra.mxu0 0.0
    %8245 = vmatprep.mubr.f32.mxu0 0.0
    %8246 = vmatmul.mubr.f32.gmra.mxu0 %v8173
    %v8247 = vpop.f32.mrf.mxu0
    %v8248 = vadd.f32 0.0, %v8247
    %v8249 = vpop.f32.mrf.mxu0
    %8250 = vmatprep.mubr.f32.mxu0 0.0
    %8251 = vmatmul.mubr.f32.gmra.mxu0 %v8176
    %v8252 = vpop.f32.mrf.mxu0
    %v8253 = vadd.f32 0.0, %v8252
    %v8254 = vpop.f32.mrf.mxu0
    %8255 = vdwg.mxu0
    %vm8256 = vcmask 457728
    %v8258 = vsel %vm8256, %v8248, 0
    %v8261 = vsel %vm8256, %v8253, 0
    %8263 = vmatprep.subr.mxu0 0.0
    %8264 = vmatpush1.msra.mxu0 0.0
    %8265 = vmatprep.subr.mxu0 0.0
    %8266 = vmatpush1.msra.mxu0 0.0
    %8267 = vmatprep.subr.mxu0 0.0
    %8268 = vmatpush1.msra.mxu0 0.0
    %8269 = vmatprep.subr.mxu0 0.0
    %8270 = vmatpush1.msra.mxu0 0.0
    %8271 = vmatprep.subr.mxu0 0.0
    %8272 = vmatpush1.msra.mxu0 0.0
    %8273 = vmatprep.subr.mxu0 0.0
    %8274 = vmatpush1.msra.mxu0 0.0
    %8275 = vmatprep.subr.mxu0 0.0
    %8276 = vmatpush1.msra.mxu0 0.0
    %8277 = vmatprep.subr.mxu0 0.0
    %8278 = vmatpush1.msra.mxu0 0.0
    %8279 = vmatprep.subr.mxu0 0.0
    %8280 = vmatpush1.msra.mxu0 0.0
    %8281 = vmatprep.subr.mxu0 0.0
    %8282 = vmatpush1.msra.mxu0 %v2300
    %8283 = vmatprep.subr.mxu0 0.0
    %8284 = vmatpush1.msra.mxu0 %v2299
    %8285 = vmatprep.subr.mxu0 0.0
    %8286 = vmatpush1.msra.mxu0 %v2298
    %8287 = vmatprep.subr.mxu0 0.0
    %8288 = vmatpush1.msra.mxu0 %v2297
    %8289 = vmatprep.subr.mxu0 0.0
    %8290 = vmatpush1.msra.mxu0 %v2296
    %8291 = vmatprep.subr.mxu0 0.0
    %8292 = vmatpush1.msra.mxu0 %v2295
    %8293 = vmatprep.subr.mxu0 0.0
    %8294 = vmatpush1.msra.mxu0 %v2294
    %8295 = vmatprep.subr.mxu0 0.0
    %8296 = vmatpush2.msra.mxu0 0.0
    %8297 = vmatprep.subr.mxu0 0.0
    %8298 = vmatpush2.msra.mxu0 0.0
    %8299 = vmatprep.subr.mxu0 0.0
    %8300 = vmatpush2.msra.mxu0 0.0
    %8301 = vmatprep.subr.mxu0 0.0
    %8302 = vmatpush2.msra.mxu0 0.0
    %8303 = vmatprep.subr.mxu0 0.0
    %8304 = vmatpush2.msra.mxu0 0.0
    %8305 = vmatprep.subr.mxu0 0.0
    %8306 = vmatpush2.msra.mxu0 0.0
    %8307 = vmatprep.subr.mxu0 0.0
    %8308 = vmatpush2.msra.mxu0 0.0
    %8309 = vmatprep.subr.mxu0 0.0
    %8310 = vmatpush2.msra.mxu0 0.0
    %8311 = vmatprep.subr.mxu0 0.0
    %8312 = vmatpush2.msra.mxu0 0.0
    %8313 = vmatprep.subr.mxu0 0.0
    %8314 = vmatpush2.msra.mxu0 0.0
    %8315 = vmatprep.subr.mxu0 0.0
    %8316 = vmatpush2.msra.mxu0 0.0
    %8317 = vmatprep.subr.mxu0 0.0
    %8318 = vmatpush2.msra.mxu0 0.0
    %8319 = vmatprep.subr.mxu0 0.0
    %8320 = vmatpush2.msra.mxu0 0.0
    %8321 = vmatprep.subr.mxu0 0.0
    %8322 = vmatpush2.msra.mxu0 0.0
    %8323 = vmatprep.subr.mxu0 0.0
    %8324 = vmatpush2.msra.mxu0 0.0
    %8325 = vmatprep.subr.mxu0 0.0
    %8326 = vmatpush2.msra.mxu0 0.0
    %8327 = vmatprep.mubr.f32.mxu0 0.0
    %8328 = vmatmul.mubr.f32.gmra.mxu0 %v8258
    %v8329 = vpop.f32.mrf.mxu0
    %v8330 = vadd.f32 0.0, %v8329
    %v8331 = vpop.f32.mrf.mxu0
    %8332 = vmatprep.mubr.f32.mxu0 0.0
    %8333 = vmatmul.mubr.f32.gmra.mxu0 %v8261
    %v8334 = vpop.f32.mrf.mxu0
    %v8335 = vadd.f32 0.0, %v8334
    %v8336 = vpop.f32.mrf.mxu0
    %8337 = vdwg.mxu0
    %v8338 = vld [vmem:[%s3 + $0x10] sm:$0xff]
    %v8339 = vld [vmem:[%s3 + $0x18] sm:$0xff]
    %v8340 = vld [vmem:[%s3 + $0x30] sm:$0xff]
    %v8341 = vld [vmem:[%s3 + $0x38] sm:$0xff]
    %v8342 = vld [vmem:[%s3 + $0x50] sm:$0xff]
    %v8343 = vld [vmem:[%s3 + $0x58] sm:$0xff]
    %v8344 = vld [vmem:[%s3 + $0x70] sm:$0xff]
    %v8345 = vld [vmem:[%s3 + $0x78] sm:$0xff]
    %v8346 = vld [vmem:[%s3 + $0x90] sm:$0xff]
    %v8347 = vld [vmem:[%s3 + $0x98] sm:$0xff]
    %v8348 = vld [vmem:[%s3 + $0xb0] sm:$0xff]
    %v8349 = vld [vmem:[%s3 + $0xb8] sm:$0xff]
    %v8350 = vld [vmem:[%s3 + $0xd0] sm:$0xff]
    %v8351 = vld [vmem:[%s3 + $0xd8] sm:$0xff]
    %v8352 = vld [vmem:[%s3 + $0xf0] sm:$0xff]
    %v8353 = vld [vmem:[%s3 + $0xf8] sm:$0xff]
    %v8354 = vld [vmem:[%s3 + $0x110] sm:$0xff]
    %v8355 = vld [vmem:[%s3 + $0x118] sm:$0xff]
    %v8356 = vld [vmem:[%s3 + $0x130] sm:$0xff]
    %v8357 = vld [vmem:[%s3 + $0x138] sm:$0xff]
    %v8358 = vld [vmem:[%s3 + $0x150] sm:$0xff]
    %v8359 = vld [vmem:[%s3 + $0x158] sm:$0xff]
    %v8360 = vld [vmem:[%s3 + $0x170] sm:$0xff]
    %v8361 = vld [vmem:[%s3 + $0x178] sm:$0xff]
    %v8362 = vld [vmem:[%s3 + $0x190] sm:$0xff]
    %v8363 = vld [vmem:[%s3 + $0x198] sm:$0xff]
    %v8364 = vld [vmem:[%s3 + $0x1b0] sm:$0xff]
    %v8365 = vld [vmem:[%s3 + $0x1b8] sm:$0xff]
    %v8366 = vld [vmem:[%s3 + $0x1d0] sm:$0xff]
    %v8367 = vld [vmem:[%s3 + $0x1d8] sm:$0xff]
    %v8368 = vld [vmem:[%s3 + $0x1f0] sm:$0xff]
    %v8369 = vld [vmem:[%s3 + $0x1f8] sm:$0xff]
    %v8370 = vld [vmem:[%s3 + $0x210] sm:$0xff]
    %v8371 = vld [vmem:[%s3 + $0x218] sm:$0xff]
    %v8372 = vld [vmem:[%s2340 + $0x10] sm:$0xff]
    %v8373 = vld [vmem:[%s2340 + $0x18] sm:$0xff]
    %v8374 = vld [vmem:[%s2340 + $0x30] sm:$0xff]
    %v8375 = vld [vmem:[%s2340 + $0x38] sm:$0xff]
    %v8376 = vld [vmem:[%s2340 + $0x50] sm:$0xff]
    %v8377 = vld [vmem:[%s2340 + $0x58] sm:$0xff]
    %v8378 = vld [vmem:[%s2340 + $0x70] sm:$0xff]
    %v8379 = vld [vmem:[%s2340 + $0x78] sm:$0xff]
    %v8380 = vld [vmem:[%s2340 + $0x90] sm:$0xff]
    %v8381 = vld [vmem:[%s2340 + $0x98] sm:$0xff]
    %v8382 = vld [vmem:[%s2340 + $0xb0] sm:$0xff]
    %v8383 = vld [vmem:[%s2340 + $0xb8] sm:$0xff]
    %v8384 = vld [vmem:[%s2340 + $0xd0] sm:$0xff]
    %v8385 = vld [vmem:[%s2340 + $0xd8] sm:$0xff]
    %v8386 = vld [vmem:[%s2340 + $0xf0] sm:$0xff]
    %v8387 = vld [vmem:[%s2340 + $0xf8] sm:$0xff]
    %v8388 = vld [vmem:[%s2340 + $0x110] sm:$0xff]
    %v8389 = vld [vmem:[%s2340 + $0x118] sm:$0xff]
    %v8390 = vld [vmem:[%s2340 + $0x130] sm:$0xff]
    %v8391 = vld [vmem:[%s2340 + $0x138] sm:$0xff]
    %v8392 = vld [vmem:[%s2340 + $0x150] sm:$0xff]
    %v8393 = vld [vmem:[%s2340 + $0x158] sm:$0xff]
    %v8394 = vld [vmem:[%s2340 + $0x170] sm:$0xff]
    %v8395 = vld [vmem:[%s2340 + $0x178] sm:$0xff]
    %v8396 = vld [vmem:[%s2340 + $0x190] sm:$0xff]
    %v8397 = vld [vmem:[%s2340 + $0x198] sm:$0xff]
    %v8398 = vld [vmem:[%s2340 + $0x1b0] sm:$0xff]
    %v8399 = vld [vmem:[%s2340 + $0x1b8] sm:$0xff]
    %v8400 = vld [vmem:[%s2340 + $0x1d0] sm:$0xff]
    %v8401 = vld [vmem:[%s2340 + $0x1d8] sm:$0xff]
    %v8402 = vld [vmem:[%s2340 + $0x1f0] sm:$0xff]
    %v8403 = vld [vmem:[%s2340 + $0x1f8] sm:$0xff]
    %v8404 = vld [vmem:[%s2340 + $0x210] sm:$0xff]
    %v8405 = vld [vmem:[%s2340 + $0x218] sm:$0xff]
    %8440 = vrot.lane.b32.xlu0 %v8372, 48
    %v8441 = vpop.permute.xlu0 %8440
    %8442 = vrot.lane.b32.xlu0 %v8373, 48
    %v8443 = vpop.permute.xlu0 %8442
    %8444 = vrot.lane.b32.xlu0 %v8374, 48
    %v8445 = vpop.permute.xlu0 %8444
    %8446 = vrot.lane.b32.xlu0 %v8375, 48
    %v8447 = vpop.permute.xlu0 %8446
    %8448 = vrot.lane.b32.xlu0 %v8376, 48
    %v8449 = vpop.permute.xlu0 %8448
    %8450 = vrot.lane.b32.xlu0 %v8377, 48
    %v8451 = vpop.permute.xlu0 %8450
    %8452 = vrot.lane.b32.xlu0 %v8378, 48
    %v8453 = vpop.permute.xlu0 %8452
    %8454 = vrot.lane.b32.xlu0 %v8379, 48
    %v8455 = vpop.permute.xlu0 %8454
    %8456 = vrot.lane.b32.xlu0 %v8380, 48
    %v8457 = vpop.permute.xlu0 %8456
    %8458 = vrot.lane.b32.xlu0 %v8381, 48
    %v8459 = vpop.permute.xlu0 %8458
    %8460 = vrot.lane.b32.xlu0 %v8382, 48
    %v8461 = vpop.permute.xlu0 %8460
    %8462 = vrot.lane.b32.xlu0 %v8383, 48
    %v8463 = vpop.permute.xlu0 %8462
    %8464 = vrot.lane.b32.xlu0 %v8384, 48
    %v8465 = vpop.permute.xlu0 %8464
    %8466 = vrot.lane.b32.xlu0 %v8385, 48
    %v8467 = vpop.permute.xlu0 %8466
    %8468 = vrot.lane.b32.xlu0 %v8386, 48
    %v8469 = vpop.permute.xlu0 %8468
    %8470 = vrot.lane.b32.xlu0 %v8387, 48
    %v8471 = vpop.permute.xlu0 %8470
    %8472 = vrot.lane.b32.xlu0 %v8388, 48
    %v8473 = vpop.permute.xlu0 %8472
    %8474 = vrot.lane.b32.xlu0 %v8389, 48
    %v8475 = vpop.permute.xlu0 %8474
    %8476 = vrot.lane.b32.xlu0 %v8390, 48
    %v8477 = vpop.permute.xlu0 %8476
    %8478 = vrot.lane.b32.xlu0 %v8391, 48
    %v8479 = vpop.permute.xlu0 %8478
    %8480 = vrot.lane.b32.xlu0 %v8392, 48
    %v8481 = vpop.permute.xlu0 %8480
    %8482 = vrot.lane.b32.xlu0 %v8393, 48
    %v8483 = vpop.permute.xlu0 %8482
    %8484 = vrot.lane.b32.xlu0 %v8394, 48
    %v8485 = vpop.permute.xlu0 %8484
    %8486 = vrot.lane.b32.xlu0 %v8395, 48
    %v8487 = vpop.permute.xlu0 %8486
    %8488 = vrot.lane.b32.xlu0 %v8396, 48
    %v8489 = vpop.permute.xlu0 %8488
    %8490 = vrot.lane.b32.xlu0 %v8397, 48
    %v8491 = vpop.permute.xlu0 %8490
    %8492 = vrot.lane.b32.xlu0 %v8398, 48
    %v8493 = vpop.permute.xlu0 %8492
    %8494 = vrot.lane.b32.xlu0 %v8399, 48
    %v8495 = vpop.permute.xlu0 %8494
    %8496 = vrot.lane.b32.xlu0 %v8400, 48
    %v8497 = vpop.permute.xlu0 %8496
    %8498 = vrot.lane.b32.xlu0 %v8401, 48
    %v8499 = vpop.permute.xlu0 %8498
    %8500 = vrot.lane.b32.xlu0 %v8402, 48
    %v8501 = vpop.permute.xlu0 %8500
    %8502 = vrot.lane.b32.xlu0 %v8403, 48
    %v8503 = vpop.permute.xlu0 %8502
    %8504 = vrot.lane.b32.xlu0 %v8404, 48
    %v8505 = vpop.permute.xlu0 %8504
    %8506 = vrot.lane.b32.xlu0 %v8405, 48
    %v8507 = vpop.permute.xlu0 %8506
    %vm8508 = vcmask 392192
    %v8509 = vsel %vm8508, %v8441, %v8443
    %v8510 = vsel %vm8508, %v8445, %v8447
    %v8511 = vsel %vm8508, %v8449, %v8451
    %v8512 = vsel %vm8508, %v8453, %v8455
    %v8513 = vsel %vm8508, %v8457, %v8459
    %v8514 = vsel %vm8508, %v8461, %v8463
    %v8515 = vsel %vm8508, %v8465, %v8467
    %v8516 = vsel %vm8508, %v8469, %v8471
    %v8517 = vsel %vm8508, %v8473, %v8475
    %v8518 = vsel %vm8508, %v8477, %v8479
    %v8519 = vsel %vm8508, %v8481, %v8483
    %v8520 = vsel %vm8508, %v8485, %v8487
    %v8521 = vsel %vm8508, %v8489, %v8491
    %v8522 = vsel %vm8508, %v8493, %v8495
    %v8523 = vsel %vm8508, %v8497, %v8499
    %v8524 = vsel %vm8508, %v8501, %v8503
    %v8525 = vsel %vm8508, %v8505, %v8507
    %8543 = vmatprep.subr.mxu0 0.0
    %8544 = vmatpush1.msra.mxu0 %v8524
    %8545 = vmatprep.subr.mxu0 0.0
    %8546 = vmatpush1.msra.mxu0 %v8523
    %8547 = vmatprep.subr.mxu0 0.0
    %8548 = vmatpush1.msra.mxu0 %v8522
    %8549 = vmatprep.subr.mxu0 0.0
    %8550 = vmatpush1.msra.mxu0 %v8521
    %8551 = vmatprep.subr.mxu0 0.0
    %8552 = vmatpush1.msra.mxu0 %v8520
    %8553 = vmatprep.subr.mxu0 0.0
    %8554 = vmatpush1.msra.mxu0 %v8519
    %8555 = vmatprep.subr.mxu0 0.0
    %8556 = vmatpush1.msra.mxu0 %v8518
    %8557 = vmatprep.subr.mxu0 0.0
    %8558 = vmatpush1.msra.mxu0 %v8517
    %8559 = vmatprep.subr.mxu0 0.0
    %8560 = vmatpush1.msra.mxu0 %v8516
    %8561 = vmatprep.subr.mxu0 0.0
    %8562 = vmatpush1.msra.mxu0 %v8515
    %8563 = vmatprep.subr.mxu0 0.0
    %8564 = vmatpush1.msra.mxu0 %v8514
    %8565 = vmatprep.subr.mxu0 0.0
    %8566 = vmatpush1.msra.mxu0 %v8513
    %8567 = vmatprep.subr.mxu0 0.0
    %8568 = vmatpush1.msra.mxu0 %v8512
    %8569 = vmatprep.subr.mxu0 0.0
    %8570 = vmatpush1.msra.mxu0 %v8511
    %8571 = vmatprep.subr.mxu0 0.0
    %8572 = vmatpush1.msra.mxu0 %v8510
    %8573 = vmatprep.subr.mxu0 0.0
    %8574 = vmatpush1.msra.mxu0 %v8509
    %8575 = vmatprep.subr.mxu0 0.0
    %8576 = vmatpush2.msra.mxu0 0.0
    %8577 = vmatprep.subr.mxu0 0.0
    %8578 = vmatpush2.msra.mxu0 0.0
    %8579 = vmatprep.subr.mxu0 0.0
    %8580 = vmatpush2.msra.mxu0 0.0
    %8581 = vmatprep.subr.mxu0 0.0
    %8582 = vmatpush2.msra.mxu0 0.0
    %8583 = vmatprep.subr.mxu0 0.0
    %8584 = vmatpush2.msra.mxu0 0.0
    %8585 = vmatprep.subr.mxu0 0.0
    %8586 = vmatpush2.msra.mxu0 0.0
    %8587 = vmatprep.subr.mxu0 0.0
    %8588 = vmatpush2.msra.mxu0 0.0
    %8589 = vmatprep.subr.mxu0 0.0
    %8590 = vmatpush2.msra.mxu0 0.0
    %8591 = vmatprep.subr.mxu0 0.0
    %8592 = vmatpush2.msra.mxu0 0.0
    %8593 = vmatprep.subr.mxu0 0.0
    %8594 = vmatpush2.msra.mxu0 0.0
    %8595 = vmatprep.subr.mxu0 0.0
    %8596 = vmatpush2.msra.mxu0 0.0
    %8597 = vmatprep.subr.mxu0 0.0
    %8598 = vmatpush2.msra.mxu0 0.0
    %8599 = vmatprep.subr.mxu0 0.0
    %8600 = vmatpush2.msra.mxu0 0.0
    %8601 = vmatprep.subr.mxu0 0.0
    %8602 = vmatpush2.msra.mxu0 0.0
    %8603 = vmatprep.subr.mxu0 0.0
    %8604 = vmatpush2.msra.mxu0 0.0
    %8605 = vmatprep.subr.mxu0 0.0
    %8606 = vmatpush2.msra.mxu0 %v8525
    %8607 = vmatprep.mubr.f32.mxu0 %v2419
    %8608 = vmatmul.mubr.f32.gmra.mxu0 %v2378
    %v8609 = vpop.f32.mrf.mxu0
    %v8610 = vadd.f32 0.0, %v8609
    %v8611 = vpop.f32.mrf.mxu0
    %8612 = vmatprep.mubr.f32.mxu0 %v2421
    %8613 = vmatmul.mubr.f32.gmra.mxu0 %v2383
    %v8614 = vpop.f32.mrf.mxu0
    %v8615 = vadd.f32 0.0, %v8614
    %v8616 = vpop.f32.mrf.mxu0
    %8617 = vmatprep.mubr.f32.mxu0 %v2423
    %8618 = vmatmul.mubr.f32.gmra.mxu0 %v2387
    %v8619 = vpop.f32.mrf.mxu0
    %v8620 = vadd.f32 0.0, %v8619
    %v8621 = vpop.f32.mrf.mxu0
    %8622 = vmatprep.mubr.f32.mxu0 %v2425
    %8623 = vmatmul.mubr.f32.gmra.mxu0 %v2391
    %v8624 = vpop.f32.mrf.mxu0
    %v8625 = vadd.f32 0.0, %v8624
    %v8626 = vpop.f32.mrf.mxu0
    %8627 = vmatprep.mubr.f32.mxu0 %v2427
    %8628 = vmatmul.mubr.f32.gmra.mxu0 %v2395
    %v8629 = vpop.f32.mrf.mxu0
    %v8630 = vadd.f32 0.0, %v8629
    %v8631 = vpop.f32.mrf.mxu0
    %8632 = vmatprep.mubr.f32.mxu0 %v2429
    %8633 = vmatmul.mubr.f32.gmra.mxu0 %v2399
    %v8634 = vpop.f32.mrf.mxu0
    %v8635 = vadd.f32 0.0, %v8634
    %v8636 = vpop.f32.mrf.mxu0
    %8637 = vmatprep.mubr.f32.mxu0 %v2431
    %8638 = vmatmul.mubr.f32.gmra.mxu0 %v2403
    %v8639 = vpop.f32.mrf.mxu0
    %v8640 = vadd.f32 0.0, %v8639
    %v8641 = vpop.f32.mrf.mxu0
    %8642 = vmatprep.mubr.f32.mxu0 %v2433
    %8643 = vmatmul.mubr.f32.gmra.mxu0 %v2407
    %v8644 = vpop.f32.mrf.mxu0
    %v8645 = vadd.f32 0.0, %v8644
    %v8646 = vpop.f32.mrf.mxu0
    %8647 = vmatprep.mubr.f32.mxu0 %v2435
    %8648 = vmatmul.mubr.f32.gmra.mxu0 %v2406
    %v8649 = vpop.f32.mrf.mxu0
    %v8650 = vadd.f32 0.0, %v8649
    %v8651 = vpop.f32.mrf.mxu0
    %8652 = vdwg.mxu0
    %8687 = vrot.lane.b32.xlu0 %v8338, 48
    %v8688 = vpop.permute.xlu0 %8687
    %8689 = vrot.lane.b32.xlu0 %v8339, 48
    %v8690 = vpop.permute.xlu0 %8689
    %8691 = vrot.lane.b32.xlu0 %v8340, 48
    %v8692 = vpop.permute.xlu0 %8691
    %8693 = vrot.lane.b32.xlu0 %v8341, 48
    %v8694 = vpop.permute.xlu0 %8693
    %8695 = vrot.lane.b32.xlu0 %v8342, 48
    %v8696 = vpop.permute.xlu0 %8695
    %8697 = vrot.lane.b32.xlu0 %v8343, 48
    %v8698 = vpop.permute.xlu0 %8697
    %8699 = vrot.lane.b32.xlu0 %v8344, 48
    %v8700 = vpop.permute.xlu0 %8699
    %8701 = vrot.lane.b32.xlu0 %v8345, 48
    %v8702 = vpop.permute.xlu0 %8701
    %8703 = vrot.lane.b32.xlu0 %v8346, 48
    %v8704 = vpop.permute.xlu0 %8703
    %8705 = vrot.lane.b32.xlu0 %v8347, 48
    %v8706 = vpop.permute.xlu0 %8705
    %8707 = vrot.lane.b32.xlu0 %v8348, 48
    %v8708 = vpop.permute.xlu0 %8707
    %8709 = vrot.lane.b32.xlu0 %v8349, 48
    %v8710 = vpop.permute.xlu0 %8709
    %8711 = vrot.lane.b32.xlu0 %v8350, 48
    %v8712 = vpop.permute.xlu0 %8711
    %8713 = vrot.lane.b32.xlu0 %v8351, 48
    %v8714 = vpop.permute.xlu0 %8713
    %8715 = vrot.lane.b32.xlu0 %v8352, 48
    %v8716 = vpop.permute.xlu0 %8715
    %8717 = vrot.lane.b32.xlu0 %v8353, 48
    %v8718 = vpop.permute.xlu0 %8717
    %8719 = vrot.lane.b32.xlu0 %v8354, 48
    %v8720 = vpop.permute.xlu0 %8719
    %8721 = vrot.lane.b32.xlu0 %v8355, 48
    %v8722 = vpop.permute.xlu0 %8721
    %8723 = vrot.lane.b32.xlu0 %v8356, 48
    %v8724 = vpop.permute.xlu0 %8723
    %8725 = vrot.lane.b32.xlu0 %v8357, 48
    %v8726 = vpop.permute.xlu0 %8725
    %8727 = vrot.lane.b32.xlu0 %v8358, 48
    %v8728 = vpop.permute.xlu0 %8727
    %8729 = vrot.lane.b32.xlu0 %v8359, 48
    %v8730 = vpop.permute.xlu0 %8729
    %8731 = vrot.lane.b32.xlu0 %v8360, 48
    %v8732 = vpop.permute.xlu0 %8731
    %8733 = vrot.lane.b32.xlu0 %v8361, 48
    %v8734 = vpop.permute.xlu0 %8733
    %8735 = vrot.lane.b32.xlu0 %v8362, 48
    %v8736 = vpop.permute.xlu0 %8735
    %8737 = vrot.lane.b32.xlu0 %v8363, 48
    %v8738 = vpop.permute.xlu0 %8737
    %8739 = vrot.lane.b32.xlu0 %v8364, 48
    %v8740 = vpop.permute.xlu0 %8739
    %8741 = vrot.lane.b32.xlu0 %v8365, 48
    %v8742 = vpop.permute.xlu0 %8741
    %8743 = vrot.lane.b32.xlu0 %v8366, 48
    %v8744 = vpop.permute.xlu0 %8743
    %8745 = vrot.lane.b32.xlu0 %v8367, 48
    %v8746 = vpop.permute.xlu0 %8745
    %8747 = vrot.lane.b32.xlu0 %v8368, 48
    %v8748 = vpop.permute.xlu0 %8747
    %8749 = vrot.lane.b32.xlu0 %v8369, 48
    %v8750 = vpop.permute.xlu0 %8749
    %8751 = vrot.lane.b32.xlu0 %v8370, 48
    %v8752 = vpop.permute.xlu0 %8751
    %8753 = vrot.lane.b32.xlu0 %v8371, 48
    %v8754 = vpop.permute.xlu0 %8753
    %v8755 = vsel %vm8508, %v8688, %v8690
    %v8756 = vsel %vm8508, %v8692, %v8694
    %v8757 = vsel %vm8508, %v8696, %v8698
    %v8758 = vsel %vm8508, %v8700, %v8702
    %v8759 = vsel %vm8508, %v8704, %v8706
    %v8760 = vsel %vm8508, %v8708, %v8710
    %v8761 = vsel %vm8508, %v8712, %v8714
    %v8762 = vsel %vm8508, %v8716, %v8718
    %v8763 = vsel %vm8508, %v8720, %v8722
    %v8764 = vsel %vm8508, %v8724, %v8726
    %v8765 = vsel %vm8508, %v8728, %v8730
    %v8766 = vsel %vm8508, %v8732, %v8734
    %v8767 = vsel %vm8508, %v8736, %v8738
    %v8768 = vsel %vm8508, %v8740, %v8742
    %v8769 = vsel %vm8508, %v8744, %v8746
    %v8770 = vsel %vm8508, %v8748, %v8750
    %v8771 = vsel %vm8508, %v8752, %v8754
    %8789 = vmatprep.subr.mxu0 0.0
    %8790 = vmatpush1.msra.mxu0 %v8770
    %8791 = vmatprep.subr.mxu0 0.0
    %8792 = vmatpush1.msra.mxu0 %v8769
    %8793 = vmatprep.subr.mxu0 0.0
    %8794 = vmatpush1.msra.mxu0 %v8768
    %8795 = vmatprep.subr.mxu0 0.0
    %8796 = vmatpush1.msra.mxu0 %v8767
    %8797 = vmatprep.subr.mxu0 0.0
    %8798 = vmatpush1.msra.mxu0 %v8766
    %8799 = vmatprep.subr.mxu0 0.0
    %8800 = vmatpush1.msra.mxu0 %v8765
    %8801 = vmatprep.subr.mxu0 0.0
    %8802 = vmatpush1.msra.mxu0 %v8764
    %8803 = vmatprep.subr.mxu0 0.0
    %8804 = vmatpush1.msra.mxu0 %v8763
    %8805 = vmatprep.subr.mxu0 0.0
    %8806 = vmatpush1.msra.mxu0 %v8762
    %8807 = vmatprep.subr.mxu0 0.0
    %8808 = vmatpush1.msra.mxu0 %v8761
    %8809 = vmatprep.subr.mxu0 0.0
    %8810 = vmatpush1.msra.mxu0 %v8760
    %8811 = vmatprep.subr.mxu0 0.0
    %8812 = vmatpush1.msra.mxu0 %v8759
    %8813 = vmatprep.subr.mxu0 0.0
    %8814 = vmatpush1.msra.mxu0 %v8758
    %8815 = vmatprep.subr.mxu0 0.0
    %8816 = vmatpush1.msra.mxu0 %v8757
    %8817 = vmatprep.subr.mxu0 0.0
    %8818 = vmatpush1.msra.mxu0 %v8756
    %8819 = vmatprep.subr.mxu0 0.0
    %8820 = vmatpush1.msra.mxu0 %v8755
    %8821 = vmatprep.subr.mxu0 0.0
    %8822 = vmatpush2.msra.mxu0 0.0
    %8823 = vmatprep.subr.mxu0 0.0
    %8824 = vmatpush2.msra.mxu0 0.0
    %8825 = vmatprep.subr.mxu0 0.0
    %8826 = vmatpush2.msra.mxu0 0.0
    %8827 = vmatprep.subr.mxu0 0.0
    %8828 = vmatpush2.msra.mxu0 0.0
    %8829 = vmatprep.subr.mxu0 0.0
    %8830 = vmatpush2.msra.mxu0 0.0
    %8831 = vmatprep.subr.mxu0 0.0
    %8832 = vmatpush2.msra.mxu0 0.0
    %8833 = vmatprep.subr.mxu0 0.0
    %8834 = vmatpush2.msra.mxu0 0.0
    %8835 = vmatprep.subr.mxu0 0.0
    %8836 = vmatpush2.msra.mxu0 0.0
    %8837 = vmatprep.subr.mxu0 0.0
    %8838 = vmatpush2.msra.mxu0 0.0
    %8839 = vmatprep.subr.mxu0 0.0
    %8840 = vmatpush2.msra.mxu0 0.0
    %8841 = vmatprep.subr.mxu0 0.0
    %8842 = vmatpush2.msra.mxu0 0.0
    %8843 = vmatprep.subr.mxu0 0.0
    %8844 = vmatpush2.msra.mxu0 0.0
    %8845 = vmatprep.subr.mxu0 0.0
    %8846 = vmatpush2.msra.mxu0 0.0
    %8847 = vmatprep.subr.mxu0 0.0
    %8848 = vmatpush2.msra.mxu0 0.0
    %8849 = vmatprep.subr.mxu0 0.0
    %8850 = vmatpush2.msra.mxu0 0.0
    %8851 = vmatprep.subr.mxu0 0.0
    %8852 = vmatpush2.msra.mxu0 %v8771
    %8853 = vmatprep.mubr.f32.mxu0 %v2548
    %8854 = vmatmul.mubr.f32.gmra.mxu0 %v2301
    %v8855 = vpop.f32.mrf.mxu0
    %v8856 = vadd.f32 %v8610, %v8855
    %v8857 = vpop.f32.mrf.mxu0
    %8858 = vmatprep.mubr.f32.mxu0 %v2550
    %8859 = vmatmul.mubr.f32.gmra.mxu0 %v2303
    %v8860 = vpop.f32.mrf.mxu0
    %v8861 = vadd.f32 %v8615, %v8860
    %v8862 = vpop.f32.mrf.mxu0
    %8863 = vmatprep.mubr.f32.mxu0 %v2552
    %8864 = vmatmul.mubr.f32.gmra.mxu0 %v2305
    %v8865 = vpop.f32.mrf.mxu0
    %v8866 = vadd.f32 %v8620, %v8865
    %v8867 = vpop.f32.mrf.mxu0
    %8868 = vmatprep.mubr.f32.mxu0 %v2554
    %8869 = vmatmul.mubr.f32.gmra.mxu0 %v2307
    %v8870 = vpop.f32.mrf.mxu0
    %v8871 = vadd.f32 %v8625, %v8870
    %v8872 = vpop.f32.mrf.mxu0
    %8873 = vmatprep.mubr.f32.mxu0 %v2556
    %8874 = vmatmul.mubr.f32.gmra.mxu0 %v2309
    %v8875 = vpop.f32.mrf.mxu0
    %v8876 = vadd.f32 %v8630, %v8875
    %v8877 = vpop.f32.mrf.mxu0
    %8878 = vmatprep.mubr.f32.mxu0 %v2558
    %8879 = vmatmul.mubr.f32.gmra.mxu0 %v2311
    %v8880 = vpop.f32.mrf.mxu0
    %v8881 = vadd.f32 %v8635, %v8880
    %v8882 = vpop.f32.mrf.mxu0
    %8883 = vmatprep.mubr.f32.mxu0 %v2560
    %8884 = vmatmul.mubr.f32.gmra.mxu0 %v2313
    %v8885 = vpop.f32.mrf.mxu0
    %v8886 = vadd.f32 %v8640, %v8885
    %v8887 = vpop.f32.mrf.mxu0
    %8888 = vmatprep.mubr.f32.mxu0 %v2562
    %8889 = vmatmul.mubr.f32.gmra.mxu0 %v2315
    %v8890 = vpop.f32.mrf.mxu0
    %v8891 = vadd.f32 %v8645, %v8890
    %v8892 = vpop.f32.mrf.mxu0
    %8893 = vmatprep.mubr.f32.mxu0 %v2565
    %8894 = vmatmul.mubr.f32.gmra.mxu0 %v2317
    %v8895 = vpop.f32.mrf.mxu0
    %v8896 = vadd.f32 %v8650, %v8895
    %v8897 = vpop.f32.mrf.mxu0
    %8898 = vdwg.mxu0
    %v8899 = vld [vmem:[%s2681 + $0x10] sm:$0xff]
    %v8900 = vld [vmem:[%s2681 + $0x18] sm:$0xff]
    %v8901 = vld [vmem:[%s2681 + $0x30] sm:$0xff]
    %v8902 = vld [vmem:[%s2681 + $0x38] sm:$0xff]
    %v8903 = vld [vmem:[%s2681 + $0x50] sm:$0xff]
    %v8904 = vld [vmem:[%s2681 + $0x58] sm:$0xff]
    %v8905 = vld [vmem:[%s2681 + $0x70] sm:$0xff]
    %v8906 = vld [vmem:[%s2681 + $0x78] sm:$0xff]
    %v8907 = vld [vmem:[%s2681 + $0x90] sm:$0xff]
    %v8908 = vld [vmem:[%s2681 + $0x98] sm:$0xff]
    %v8909 = vld [vmem:[%s2681 + $0xb0] sm:$0xff]
    %v8910 = vld [vmem:[%s2681 + $0xb8] sm:$0xff]
    %v8911 = vld [vmem:[%s2681 + $0xd0] sm:$0xff]
    %v8912 = vld [vmem:[%s2681 + $0xd8] sm:$0xff]
    %v8913 = vld [vmem:[%s2681 + $0xf0] sm:$0xff]
    %v8914 = vld [vmem:[%s2681 + $0xf8] sm:$0xff]
    %v8915 = vld [vmem:[%s2681 + $0x110] sm:$0xff]
    %v8916 = vld [vmem:[%s2681 + $0x118] sm:$0xff]
    %v8917 = vld [vmem:[%s2681 + $0x130] sm:$0xff]
    %v8918 = vld [vmem:[%s2681 + $0x138] sm:$0xff]
    %v8919 = vld [vmem:[%s2681 + $0x150] sm:$0xff]
    %v8920 = vld [vmem:[%s2681 + $0x158] sm:$0xff]
    %v8921 = vld [vmem:[%s2681 + $0x170] sm:$0xff]
    %v8922 = vld [vmem:[%s2681 + $0x178] sm:$0xff]
    %v8923 = vld [vmem:[%s2681 + $0x190] sm:$0xff]
    %v8924 = vld [vmem:[%s2681 + $0x198] sm:$0xff]
    %v8925 = vld [vmem:[%s2681 + $0x1b0] sm:$0xff]
    %v8926 = vld [vmem:[%s2681 + $0x1b8] sm:$0xff]
    %v8927 = vld [vmem:[%s2681 + $0x1d0] sm:$0xff]
    %v8928 = vld [vmem:[%s2681 + $0x1d8] sm:$0xff]
    %v8929 = vld [vmem:[%s2681 + $0x1f0] sm:$0xff]
    %v8930 = vld [vmem:[%s2681 + $0x1f8] sm:$0xff]
    %v8931 = vld [vmem:[%s2681 + $0x210] sm:$0xff]
    %v8932 = vld [vmem:[%s2681 + $0x218] sm:$0xff]
    %8967 = vrot.lane.b32.xlu0 %v8899, 48
    %v8968 = vpop.permute.xlu0 %8967
    %8969 = vrot.lane.b32.xlu0 %v8900, 48
    %v8970 = vpop.permute.xlu0 %8969
    %8971 = vrot.lane.b32.xlu0 %v8901, 48
    %v8972 = vpop.permute.xlu0 %8971
    %8973 = vrot.lane.b32.xlu0 %v8902, 48
    %v8974 = vpop.permute.xlu0 %8973
    %8975 = vrot.lane.b32.xlu0 %v8903, 48
    %v8976 = vpop.permute.xlu0 %8975
    %8977 = vrot.lane.b32.xlu0 %v8904, 48
    %v8978 = vpop.permute.xlu0 %8977
    %8979 = vrot.lane.b32.xlu0 %v8905, 48
    %v8980 = vpop.permute.xlu0 %8979
    %8981 = vrot.lane.b32.xlu0 %v8906, 48
    %v8982 = vpop.permute.xlu0 %8981
    %8983 = vrot.lane.b32.xlu0 %v8907, 48
    %v8984 = vpop.permute.xlu0 %8983
    %8985 = vrot.lane.b32.xlu0 %v8908, 48
    %v8986 = vpop.permute.xlu0 %8985
    %8987 = vrot.lane.b32.xlu0 %v8909, 48
    %v8988 = vpop.permute.xlu0 %8987
    %8989 = vrot.lane.b32.xlu0 %v8910, 48
    %v8990 = vpop.permute.xlu0 %8989
    %8991 = vrot.lane.b32.xlu0 %v8911, 48
    %v8992 = vpop.permute.xlu0 %8991
    %8993 = vrot.lane.b32.xlu0 %v8912, 48
    %v8994 = vpop.permute.xlu0 %8993
    %8995 = vrot.lane.b32.xlu0 %v8913, 48
    %v8996 = vpop.permute.xlu0 %8995
    %8997 = vrot.lane.b32.xlu0 %v8914, 48
    %v8998 = vpop.permute.xlu0 %8997
    %8999 = vrot.lane.b32.xlu0 %v8915, 48
    %v9000 = vpop.permute.xlu0 %8999
    %9001 = vrot.lane.b32.xlu0 %v8916, 48
    %v9002 = vpop.permute.xlu0 %9001
    %9003 = vrot.lane.b32.xlu0 %v8917, 48
    %v9004 = vpop.permute.xlu0 %9003
    %9005 = vrot.lane.b32.xlu0 %v8918, 48
    %v9006 = vpop.permute.xlu0 %9005
    %9007 = vrot.lane.b32.xlu0 %v8919, 48
    %v9008 = vpop.permute.xlu0 %9007
    %9009 = vrot.lane.b32.xlu0 %v8920, 48
    %v9010 = vpop.permute.xlu0 %9009
    %9011 = vrot.lane.b32.xlu0 %v8921, 48
    %v9012 = vpop.permute.xlu0 %9011
    %9013 = vrot.lane.b32.xlu0 %v8922, 48
    %v9014 = vpop.permute.xlu0 %9013
    %9015 = vrot.lane.b32.xlu0 %v8923, 48
    %v9016 = vpop.permute.xlu0 %9015
    %9017 = vrot.lane.b32.xlu0 %v8924, 48
    %v9018 = vpop.permute.xlu0 %9017
    %9019 = vrot.lane.b32.xlu0 %v8925, 48
    %v9020 = vpop.permute.xlu0 %9019
    %9021 = vrot.lane.b32.xlu0 %v8926, 48
    %v9022 = vpop.permute.xlu0 %9021
    %9023 = vrot.lane.b32.xlu0 %v8927, 48
    %v9024 = vpop.permute.xlu0 %9023
    %9025 = vrot.lane.b32.xlu0 %v8928, 48
    %v9026 = vpop.permute.xlu0 %9025
    %9027 = vrot.lane.b32.xlu0 %v8929, 48
    %v9028 = vpop.permute.xlu0 %9027
    %9029 = vrot.lane.b32.xlu0 %v8930, 48
    %v9030 = vpop.permute.xlu0 %9029
    %9031 = vrot.lane.b32.xlu0 %v8931, 48
    %v9032 = vpop.permute.xlu0 %9031
    %9033 = vrot.lane.b32.xlu0 %v8932, 48
    %v9034 = vpop.permute.xlu0 %9033
    %v9035 = vsel %vm8508, %v8968, %v8970
    %v9036 = vsel %vm8508, %v8972, %v8974
    %v9037 = vsel %vm8508, %v8976, %v8978
    %v9038 = vsel %vm8508, %v8980, %v8982
    %v9039 = vsel %vm8508, %v8984, %v8986
    %v9040 = vsel %vm8508, %v8988, %v8990
    %v9041 = vsel %vm8508, %v8992, %v8994
    %v9042 = vsel %vm8508, %v8996, %v8998
    %v9043 = vsel %vm8508, %v9000, %v9002
    %v9044 = vsel %vm8508, %v9004, %v9006
    %v9045 = vsel %vm8508, %v9008, %v9010
    %v9046 = vsel %vm8508, %v9012, %v9014
    %v9047 = vsel %vm8508, %v9016, %v9018
    %v9048 = vsel %vm8508, %v9020, %v9022
    %v9049 = vsel %vm8508, %v9024, %v9026
    %v9050 = vsel %vm8508, %v9028, %v9030
    %v9051 = vsel %vm8508, %v9032, %v9034
    %9069 = vmatprep.subr.mxu0 0.0
    %9070 = vmatpush1.msra.mxu0 %v9050
    %9071 = vmatprep.subr.mxu0 0.0
    %9072 = vmatpush1.msra.mxu0 %v9049
    %9073 = vmatprep.subr.mxu0 0.0
    %9074 = vmatpush1.msra.mxu0 %v9048
    %9075 = vmatprep.subr.mxu0 0.0
    %9076 = vmatpush1.msra.mxu0 %v9047
    %9077 = vmatprep.subr.mxu0 0.0
    %9078 = vmatpush1.msra.mxu0 %v9046
    %9079 = vmatprep.subr.mxu0 0.0
    %9080 = vmatpush1.msra.mxu0 %v9045
    %9081 = vmatprep.subr.mxu0 0.0
    %9082 = vmatpush1.msra.mxu0 %v9044
    %9083 = vmatprep.subr.mxu0 0.0
    %9084 = vmatpush1.msra.mxu0 %v9043
    %9085 = vmatprep.subr.mxu0 0.0
    %9086 = vmatpush1.msra.mxu0 %v9042
    %9087 = vmatprep.subr.mxu0 0.0
    %9088 = vmatpush1.msra.mxu0 %v9041
    %9089 = vmatprep.subr.mxu0 0.0
    %9090 = vmatpush1.msra.mxu0 %v9040
    %9091 = vmatprep.subr.mxu0 0.0
    %9092 = vmatpush1.msra.mxu0 %v9039
    %9093 = vmatprep.subr.mxu0 0.0
    %9094 = vmatpush1.msra.mxu0 %v9038
    %9095 = vmatprep.subr.mxu0 0.0
    %9096 = vmatpush1.msra.mxu0 %v9037
    %9097 = vmatprep.subr.mxu0 0.0
    %9098 = vmatpush1.msra.mxu0 %v9036
    %9099 = vmatprep.subr.mxu0 0.0
    %9100 = vmatpush1.msra.mxu0 %v9035
    %9101 = vmatprep.subr.mxu0 0.0
    %9102 = vmatpush2.msra.mxu0 0.0
    %9103 = vmatprep.subr.mxu0 0.0
    %9104 = vmatpush2.msra.mxu0 0.0
    %9105 = vmatprep.subr.mxu0 0.0
    %9106 = vmatpush2.msra.mxu0 0.0
    %9107 = vmatprep.subr.mxu0 0.0
    %9108 = vmatpush2.msra.mxu0 0.0
    %9109 = vmatprep.subr.mxu0 0.0
    %9110 = vmatpush2.msra.mxu0 0.0
    %9111 = vmatprep.subr.mxu0 0.0
    %9112 = vmatpush2.msra.mxu0 0.0
    %9113 = vmatprep.subr.mxu0 0.0
    %9114 = vmatpush2.msra.mxu0 0.0
    %9115 = vmatprep.subr.mxu0 0.0
    %9116 = vmatpush2.msra.mxu0 0.0
    %9117 = vmatprep.subr.mxu0 0.0
    %9118 = vmatpush2.msra.mxu0 0.0
    %9119 = vmatprep.subr.mxu0 0.0
    %9120 = vmatpush2.msra.mxu0 0.0
    %9121 = vmatprep.subr.mxu0 0.0
    %9122 = vmatpush2.msra.mxu0 0.0
    %9123 = vmatprep.subr.mxu0 0.0
    %9124 = vmatpush2.msra.mxu0 0.0
    %9125 = vmatprep.subr.mxu0 0.0
    %9126 = vmatpush2.msra.mxu0 0.0
    %9127 = vmatprep.subr.mxu0 0.0
    %9128 = vmatpush2.msra.mxu0 0.0
    %9129 = vmatprep.subr.mxu0 0.0
    %9130 = vmatpush2.msra.mxu0 0.0
    %9131 = vmatprep.subr.mxu0 0.0
    %9132 = vmatpush2.msra.mxu0 %v9051
    %9133 = vmatprep.mubr.f32.mxu0 %v2746
    %9134 = vmatmul.mubr.f32.gmra.mxu0 %v2705
    %v9135 = vpop.f32.mrf.mxu0
    %v9136 = vadd.f32 0.0, %v9135
    %v9137 = vpop.f32.mrf.mxu0
    %9138 = vmatprep.mubr.f32.mxu0 %v2748
    %9139 = vmatmul.mubr.f32.gmra.mxu0 %v2710
    %v9140 = vpop.f32.mrf.mxu0
    %v9141 = vadd.f32 0.0, %v9140
    %v9142 = vpop.f32.mrf.mxu0
    %9143 = vmatprep.mubr.f32.mxu0 %v2750
    %9144 = vmatmul.mubr.f32.gmra.mxu0 %v2714
    %v9145 = vpop.f32.mrf.mxu0
    %v9146 = vadd.f32 0.0, %v9145
    %v9147 = vpop.f32.mrf.mxu0
    %9148 = vmatprep.mubr.f32.mxu0 %v2752
    %9149 = vmatmul.mubr.f32.gmra.mxu0 %v2718
    %v9150 = vpop.f32.mrf.mxu0
    %v9151 = vadd.f32 0.0, %v9150
    %v9152 = vpop.f32.mrf.mxu0
    %9153 = vmatprep.mubr.f32.mxu0 %v2754
    %9154 = vmatmul.mubr.f32.gmra.mxu0 %v2722
    %v9155 = vpop.f32.mrf.mxu0
    %v9156 = vadd.f32 0.0, %v9155
    %v9157 = vpop.f32.mrf.mxu0
    %9158 = vmatprep.mubr.f32.mxu0 %v2756
    %9159 = vmatmul.mubr.f32.gmra.mxu0 %v2726
    %v9160 = vpop.f32.mrf.mxu0
    %v9161 = vadd.f32 0.0, %v9160
    %v9162 = vpop.f32.mrf.mxu0
    %9163 = vmatprep.mubr.f32.mxu0 %v2758
    %9164 = vmatmul.mubr.f32.gmra.mxu0 %v2730
    %v9165 = vpop.f32.mrf.mxu0
    %v9166 = vadd.f32 0.0, %v9165
    %v9167 = vpop.f32.mrf.mxu0
    %9168 = vmatprep.mubr.f32.mxu0 %v2760
    %9169 = vmatmul.mubr.f32.gmra.mxu0 %v2734
    %v9170 = vpop.f32.mrf.mxu0
    %v9171 = vadd.f32 0.0, %v9170
    %v9172 = vpop.f32.mrf.mxu0
    %9173 = vmatprep.mubr.f32.mxu0 %v2762
    %9174 = vmatmul.mubr.f32.gmra.mxu0 %v2733
    %v9175 = vpop.f32.mrf.mxu0
    %v9176 = vadd.f32 0.0, %v9175
    %v9177 = vpop.f32.mrf.mxu0
    %9178 = vdwg.mxu0
    %v9179 = vadd.f32 %v8856, %v9136
    %v9180 = vadd.f32 %v8861, %v9141
    %v9181 = vadd.f32 %v8866, %v9146
    %v9182 = vadd.f32 %v8871, %v9151
    %v9183 = vadd.f32 %v8876, %v9156
    %v9184 = vadd.f32 %v8881, %v9161
    %v9185 = vadd.f32 %v8886, %v9166
    %v9186 = vadd.f32 %v8891, %v9171
    %v9187 = vadd.f32 %v8896, %v9176
    %v9188 = vld [vmem:[%s2887 + $0x10] sm:$0xff]
    %v9189 = vld [vmem:[%s2887 + $0x18] sm:$0xff]
    %v9190 = vld [vmem:[%s2887 + $0x30] sm:$0xff]
    %v9191 = vld [vmem:[%s2887 + $0x38] sm:$0xff]
    %v9192 = vld [vmem:[%s2887 + $0x50] sm:$0xff]
    %v9193 = vld [vmem:[%s2887 + $0x58] sm:$0xff]
    %v9194 = vld [vmem:[%s2887 + $0x70] sm:$0xff]
    %v9195 = vld [vmem:[%s2887 + $0x78] sm:$0xff]
    %v9196 = vld [vmem:[%s2887 + $0x90] sm:$0xff]
    %v9197 = vld [vmem:[%s2887 + $0x98] sm:$0xff]
    %v9198 = vld [vmem:[%s2887 + $0xb0] sm:$0xff]
    %v9199 = vld [vmem:[%s2887 + $0xb8] sm:$0xff]
    %v9200 = vld [vmem:[%s2887 + $0xd0] sm:$0xff]
    %v9201 = vld [vmem:[%s2887 + $0xd8] sm:$0xff]
    %v9202 = vld [vmem:[%s2887 + $0xf0] sm:$0xff]
    %v9203 = vld [vmem:[%s2887 + $0xf8] sm:$0xff]
    %v9204 = vld [vmem:[%s2887 + $0x110] sm:$0xff]
    %v9205 = vld [vmem:[%s2887 + $0x118] sm:$0xff]
    %v9206 = vld [vmem:[%s2887 + $0x130] sm:$0xff]
    %v9207 = vld [vmem:[%s2887 + $0x138] sm:$0xff]
    %v9208 = vld [vmem:[%s2887 + $0x150] sm:$0xff]
    %v9209 = vld [vmem:[%s2887 + $0x158] sm:$0xff]
    %v9210 = vld [vmem:[%s2887 + $0x170] sm:$0xff]
    %v9211 = vld [vmem:[%s2887 + $0x178] sm:$0xff]
    %v9212 = vld [vmem:[%s2887 + $0x190] sm:$0xff]
    %v9213 = vld [vmem:[%s2887 + $0x198] sm:$0xff]
    %v9214 = vld [vmem:[%s2887 + $0x1b0] sm:$0xff]
    %v9215 = vld [vmem:[%s2887 + $0x1b8] sm:$0xff]
    %v9216 = vld [vmem:[%s2887 + $0x1d0] sm:$0xff]
    %v9217 = vld [vmem:[%s2887 + $0x1d8] sm:$0xff]
    %v9218 = vld [vmem:[%s2887 + $0x1f0] sm:$0xff]
    %v9219 = vld [vmem:[%s2887 + $0x1f8] sm:$0xff]
    %v9220 = vld [vmem:[%s2887 + $0x210] sm:$0xff]
    %v9221 = vld [vmem:[%s2887 + $0x218] sm:$0xff]
    %9256 = vrot.lane.b32.xlu0 %v9188, 48
    %v9257 = vpop.permute.xlu0 %9256
    %9258 = vrot.lane.b32.xlu0 %v9189, 48
    %v9259 = vpop.permute.xlu0 %9258
    %9260 = vrot.lane.b32.xlu0 %v9190, 48
    %v9261 = vpop.permute.xlu0 %9260
    %9262 = vrot.lane.b32.xlu0 %v9191, 48
    %v9263 = vpop.permute.xlu0 %9262
    %9264 = vrot.lane.b32.xlu0 %v9192, 48
    %v9265 = vpop.permute.xlu0 %9264
    %9266 = vrot.lane.b32.xlu0 %v9193, 48
    %v9267 = vpop.permute.xlu0 %9266
    %9268 = vrot.lane.b32.xlu0 %v9194, 48
    %v9269 = vpop.permute.xlu0 %9268
    %9270 = vrot.lane.b32.xlu0 %v9195, 48
    %v9271 = vpop.permute.xlu0 %9270
    %9272 = vrot.lane.b32.xlu0 %v9196, 48
    %v9273 = vpop.permute.xlu0 %9272
    %9274 = vrot.lane.b32.xlu0 %v9197, 48
    %v9275 = vpop.permute.xlu0 %9274
    %9276 = vrot.lane.b32.xlu0 %v9198, 48
    %v9277 = vpop.permute.xlu0 %9276
    %9278 = vrot.lane.b32.xlu0 %v9199, 48
    %v9279 = vpop.permute.xlu0 %9278
    %9280 = vrot.lane.b32.xlu0 %v9200, 48
    %v9281 = vpop.permute.xlu0 %9280
    %9282 = vrot.lane.b32.xlu0 %v9201, 48
    %v9283 = vpop.permute.xlu0 %9282
    %9284 = vrot.lane.b32.xlu0 %v9202, 48
    %v9285 = vpop.permute.xlu0 %9284
    %9286 = vrot.lane.b32.xlu0 %v9203, 48
    %v9287 = vpop.permute.xlu0 %9286
    %9288 = vrot.lane.b32.xlu0 %v9204, 48
    %v9289 = vpop.permute.xlu0 %9288
    %9290 = vrot.lane.b32.xlu0 %v9205, 48
    %v9291 = vpop.permute.xlu0 %9290
    %9292 = vrot.lane.b32.xlu0 %v9206, 48
    %v9293 = vpop.permute.xlu0 %9292
    %9294 = vrot.lane.b32.xlu0 %v9207, 48
    %v9295 = vpop.permute.xlu0 %9294
    %9296 = vrot.lane.b32.xlu0 %v9208, 48
    %v9297 = vpop.permute.xlu0 %9296
    %9298 = vrot.lane.b32.xlu0 %v9209, 48
    %v9299 = vpop.permute.xlu0 %9298
    %9300 = vrot.lane.b32.xlu0 %v9210, 48
    %v9301 = vpop.permute.xlu0 %9300
    %9302 = vrot.lane.b32.xlu0 %v9211, 48
    %v9303 = vpop.permute.xlu0 %9302
    %9304 = vrot.lane.b32.xlu0 %v9212, 48
    %v9305 = vpop.permute.xlu0 %9304
    %9306 = vrot.lane.b32.xlu0 %v9213, 48
    %v9307 = vpop.permute.xlu0 %9306
    %9308 = vrot.lane.b32.xlu0 %v9214, 48
    %v9309 = vpop.permute.xlu0 %9308
    %9310 = vrot.lane.b32.xlu0 %v9215, 48
    %v9311 = vpop.permute.xlu0 %9310
    %9312 = vrot.lane.b32.xlu0 %v9216, 48
    %v9313 = vpop.permute.xlu0 %9312
    %9314 = vrot.lane.b32.xlu0 %v9217, 48
    %v9315 = vpop.permute.xlu0 %9314
    %9316 = vrot.lane.b32.xlu0 %v9218, 48
    %v9317 = vpop.permute.xlu0 %9316
    %9318 = vrot.lane.b32.xlu0 %v9219, 48
    %v9319 = vpop.permute.xlu0 %9318
    %9320 = vrot.lane.b32.xlu0 %v9220, 48
    %v9321 = vpop.permute.xlu0 %9320
    %9322 = vrot.lane.b32.xlu0 %v9221, 48
    %v9323 = vpop.permute.xlu0 %9322
    %v9324 = vsel %vm8508, %v9257, %v9259
    %v9325 = vsel %vm8508, %v9261, %v9263
    %v9326 = vsel %vm8508, %v9265, %v9267
    %v9327 = vsel %vm8508, %v9269, %v9271
    %v9328 = vsel %vm8508, %v9273, %v9275
    %v9329 = vsel %vm8508, %v9277, %v9279
    %v9330 = vsel %vm8508, %v9281, %v9283
    %v9331 = vsel %vm8508, %v9285, %v9287
    %v9332 = vsel %vm8508, %v9289, %v9291
    %v9333 = vsel %vm8508, %v9293, %v9295
    %v9334 = vsel %vm8508, %v9297, %v9299
    %v9335 = vsel %vm8508, %v9301, %v9303
    %v9336 = vsel %vm8508, %v9305, %v9307
    %v9337 = vsel %vm8508, %v9309, %v9311
    %v9338 = vsel %vm8508, %v9313, %v9315
    %v9339 = vsel %vm8508, %v9317, %v9319
    %v9340 = vsel %vm8508, %v9321, %v9323
    %9358 = vmatprep.subr.mxu0 0.0
    %9359 = vmatpush1.msra.mxu0 %v9339
    %9360 = vmatprep.subr.mxu0 0.0
    %9361 = vmatpush1.msra.mxu0 %v9338
    %9362 = vmatprep.subr.mxu0 0.0
    %9363 = vmatpush1.msra.mxu0 %v9337
    %9364 = vmatprep.subr.mxu0 0.0
    %9365 = vmatpush1.msra.mxu0 %v9336
    %9366 = vmatprep.subr.mxu0 0.0
    %9367 = vmatpush1.msra.mxu0 %v9335
    %9368 = vmatprep.subr.mxu0 0.0
    %9369 = vmatpush1.msra.mxu0 %v9334
    %9370 = vmatprep.subr.mxu0 0.0
    %9371 = vmatpush1.msra.mxu0 %v9333
    %9372 = vmatprep.subr.mxu0 0.0
    %9373 = vmatpush1.msra.mxu0 %v9332
    %9374 = vmatprep.subr.mxu0 0.0
    %9375 = vmatpush1.msra.mxu0 %v9331
    %9376 = vmatprep.subr.mxu0 0.0
    %9377 = vmatpush1.msra.mxu0 %v9330
    %9378 = vmatprep.subr.mxu0 0.0
    %9379 = vmatpush1.msra.mxu0 %v9329
    %9380 = vmatprep.subr.mxu0 0.0
    %9381 = vmatpush1.msra.mxu0 %v9328
    %9382 = vmatprep.subr.mxu0 0.0
    %9383 = vmatpush1.msra.mxu0 %v9327
    %9384 = vmatprep.subr.mxu0 0.0
    %9385 = vmatpush1.msra.mxu0 %v9326
    %9386 = vmatprep.subr.mxu0 0.0
    %9387 = vmatpush1.msra.mxu0 %v9325
    %9388 = vmatprep.subr.mxu0 0.0
    %9389 = vmatpush1.msra.mxu0 %v9324
    %9390 = vmatprep.subr.mxu0 0.0
    %9391 = vmatpush2.msra.mxu0 0.0
    %9392 = vmatprep.subr.mxu0 0.0
    %9393 = vmatpush2.msra.mxu0 0.0
    %9394 = vmatprep.subr.mxu0 0.0
    %9395 = vmatpush2.msra.mxu0 0.0
    %9396 = vmatprep.subr.mxu0 0.0
    %9397 = vmatpush2.msra.mxu0 0.0
    %9398 = vmatprep.subr.mxu0 0.0
    %9399 = vmatpush2.msra.mxu0 0.0
    %9400 = vmatprep.subr.mxu0 0.0
    %9401 = vmatpush2.msra.mxu0 0.0
    %9402 = vmatprep.subr.mxu0 0.0
    %9403 = vmatpush2.msra.mxu0 0.0
    %9404 = vmatprep.subr.mxu0 0.0
    %9405 = vmatpush2.msra.mxu0 0.0
    %9406 = vmatprep.subr.mxu0 0.0
    %9407 = vmatpush2.msra.mxu0 0.0
    %9408 = vmatprep.subr.mxu0 0.0
    %9409 = vmatpush2.msra.mxu0 0.0
    %9410 = vmatprep.subr.mxu0 0.0
    %9411 = vmatpush2.msra.mxu0 0.0
    %9412 = vmatprep.subr.mxu0 0.0
    %9413 = vmatpush2.msra.mxu0 0.0
    %9414 = vmatprep.subr.mxu0 0.0
    %9415 = vmatpush2.msra.mxu0 0.0
    %9416 = vmatprep.subr.mxu0 0.0
    %9417 = vmatpush2.msra.mxu0 0.0
    %9418 = vmatprep.subr.mxu0 0.0
    %9419 = vmatpush2.msra.mxu0 0.0
    %9420 = vmatprep.subr.mxu0 0.0
    %9421 = vmatpush2.msra.mxu0 %v9340
    %9422 = vmatprep.mubr.f32.mxu0 %v2952
    %9423 = vmatmul.mubr.f32.gmra.mxu0 %v2911
    %v9424 = vpop.f32.mrf.mxu0
    %v9425 = vadd.f32 0.0, %v9424
    %v9426 = vpop.f32.mrf.mxu0
    %9427 = vmatprep.mubr.f32.mxu0 %v2954
    %9428 = vmatmul.mubr.f32.gmra.mxu0 %v2916
    %v9429 = vpop.f32.mrf.mxu0
    %v9430 = vadd.f32 0.0, %v9429
    %v9431 = vpop.f32.mrf.mxu0
    %9432 = vmatprep.mubr.f32.mxu0 %v2956
    %9433 = vmatmul.mubr.f32.gmra.mxu0 %v2920
    %v9434 = vpop.f32.mrf.mxu0
    %v9435 = vadd.f32 0.0, %v9434
    %v9436 = vpop.f32.mrf.mxu0
    %9437 = vmatprep.mubr.f32.mxu0 %v2958
    %9438 = vmatmul.mubr.f32.gmra.mxu0 %v2924
    %v9439 = vpop.f32.mrf.mxu0
    %v9440 = vadd.f32 0.0, %v9439
    %v9441 = vpop.f32.mrf.mxu0
    %9442 = vmatprep.mubr.f32.mxu0 %v2960
    %9443 = vmatmul.mubr.f32.gmra.mxu0 %v2928
    %v9444 = vpop.f32.mrf.mxu0
    %v9445 = vadd.f32 0.0, %v9444
    %v9446 = vpop.f32.mrf.mxu0
    %9447 = vmatprep.mubr.f32.mxu0 %v2962
    %9448 = vmatmul.mubr.f32.gmra.mxu0 %v2932
    %v9449 = vpop.f32.mrf.mxu0
    %v9450 = vadd.f32 0.0, %v9449
    %v9451 = vpop.f32.mrf.mxu0
    %9452 = vmatprep.mubr.f32.mxu0 %v2964
    %9453 = vmatmul.mubr.f32.gmra.mxu0 %v2936
    %v9454 = vpop.f32.mrf.mxu0
    %v9455 = vadd.f32 0.0, %v9454
    %v9456 = vpop.f32.mrf.mxu0
    %9457 = vmatprep.mubr.f32.mxu0 %v2966
    %9458 = vmatmul.mubr.f32.gmra.mxu0 %v2940
    %v9459 = vpop.f32.mrf.mxu0
    %v9460 = vadd.f32 0.0, %v9459
    %v9461 = vpop.f32.mrf.mxu0
    %9462 = vmatprep.mubr.f32.mxu0 %v2968
    %9463 = vmatmul.mubr.f32.gmra.mxu0 %v2939
    %v9464 = vpop.f32.mrf.mxu0
    %v9465 = vadd.f32 0.0, %v9464
    %v9466 = vpop.f32.mrf.mxu0
    %9467 = vdwg.mxu0
    %v9468 = vadd.f32 %v9179, %v9425
    %v9469 = vadd.f32 %v9180, %v9430
    %v9470 = vadd.f32 %v9181, %v9435
    %v9471 = vadd.f32 %v9182, %v9440
    %v9472 = vadd.f32 %v9183, %v9445
    %v9473 = vadd.f32 %v9184, %v9450
    %v9474 = vadd.f32 %v9185, %v9455
    %v9475 = vadd.f32 %v9186, %v9460
    %v9476 = vadd.f32 %v9187, %v9465
    %v9477 = vld [vmem:[%s3093 + $0x10] sm:$0xff]
    %v9478 = vld [vmem:[%s3093 + $0x18] sm:$0xff]
    %v9479 = vld [vmem:[%s3093 + $0x30] sm:$0xff]
    %v9480 = vld [vmem:[%s3093 + $0x38] sm:$0xff]
    %v9481 = vld [vmem:[%s3093 + $0x50] sm:$0xff]
    %v9482 = vld [vmem:[%s3093 + $0x58] sm:$0xff]
    %v9483 = vld [vmem:[%s3093 + $0x70] sm:$0xff]
    %v9484 = vld [vmem:[%s3093 + $0x78] sm:$0xff]
    %v9485 = vld [vmem:[%s3093 + $0x90] sm:$0xff]
    %v9486 = vld [vmem:[%s3093 + $0x98] sm:$0xff]
    %v9487 = vld [vmem:[%s3093 + $0xb0] sm:$0xff]
    %v9488 = vld [vmem:[%s3093 + $0xb8] sm:$0xff]
    %v9489 = vld [vmem:[%s3093 + $0xd0] sm:$0xff]
    %v9490 = vld [vmem:[%s3093 + $0xd8] sm:$0xff]
    %v9491 = vld [vmem:[%s3093 + $0xf0] sm:$0xff]
    %v9492 = vld [vmem:[%s3093 + $0xf8] sm:$0xff]
    %v9493 = vld [vmem:[%s3093 + $0x110] sm:$0xff]
    %v9494 = vld [vmem:[%s3093 + $0x118] sm:$0xff]
    %v9495 = vld [vmem:[%s3093 + $0x130] sm:$0xff]
    %v9496 = vld [vmem:[%s3093 + $0x138] sm:$0xff]
    %v9497 = vld [vmem:[%s3093 + $0x150] sm:$0xff]
    %v9498 = vld [vmem:[%s3093 + $0x158] sm:$0xff]
    %v9499 = vld [vmem:[%s3093 + $0x170] sm:$0xff]
    %v9500 = vld [vmem:[%s3093 + $0x178] sm:$0xff]
    %v9501 = vld [vmem:[%s3093 + $0x190] sm:$0xff]
    %v9502 = vld [vmem:[%s3093 + $0x198] sm:$0xff]
    %v9503 = vld [vmem:[%s3093 + $0x1b0] sm:$0xff]
    %v9504 = vld [vmem:[%s3093 + $0x1b8] sm:$0xff]
    %v9505 = vld [vmem:[%s3093 + $0x1d0] sm:$0xff]
    %v9506 = vld [vmem:[%s3093 + $0x1d8] sm:$0xff]
    %v9507 = vld [vmem:[%s3093 + $0x1f0] sm:$0xff]
    %v9508 = vld [vmem:[%s3093 + $0x1f8] sm:$0xff]
    %v9509 = vld [vmem:[%s3093 + $0x210] sm:$0xff]
    %v9510 = vld [vmem:[%s3093 + $0x218] sm:$0xff]
    %9545 = vrot.lane.b32.xlu0 %v9477, 48
    %v9546 = vpop.permute.xlu0 %9545
    %9547 = vrot.lane.b32.xlu0 %v9478, 48
    %v9548 = vpop.permute.xlu0 %9547
    %9549 = vrot.lane.b32.xlu0 %v9479, 48
    %v9550 = vpop.permute.xlu0 %9549
    %9551 = vrot.lane.b32.xlu0 %v9480, 48
    %v9552 = vpop.permute.xlu0 %9551
    %9553 = vrot.lane.b32.xlu0 %v9481, 48
    %v9554 = vpop.permute.xlu0 %9553
    %9555 = vrot.lane.b32.xlu0 %v9482, 48
    %v9556 = vpop.permute.xlu0 %9555
    %9557 = vrot.lane.b32.xlu0 %v9483, 48
    %v9558 = vpop.permute.xlu0 %9557
    %9559 = vrot.lane.b32.xlu0 %v9484, 48
    %v9560 = vpop.permute.xlu0 %9559
    %9561 = vrot.lane.b32.xlu0 %v9485, 48
    %v9562 = vpop.permute.xlu0 %9561
    %9563 = vrot.lane.b32.xlu0 %v9486, 48
    %v9564 = vpop.permute.xlu0 %9563
    %9565 = vrot.lane.b32.xlu0 %v9487, 48
    %v9566 = vpop.permute.xlu0 %9565
    %9567 = vrot.lane.b32.xlu0 %v9488, 48
    %v9568 = vpop.permute.xlu0 %9567
    %9569 = vrot.lane.b32.xlu0 %v9489, 48
    %v9570 = vpop.permute.xlu0 %9569
    %9571 = vrot.lane.b32.xlu0 %v9490, 48
    %v9572 = vpop.permute.xlu0 %9571
    %9573 = vrot.lane.b32.xlu0 %v9491, 48
    %v9574 = vpop.permute.xlu0 %9573
    %9575 = vrot.lane.b32.xlu0 %v9492, 48
    %v9576 = vpop.permute.xlu0 %9575
    %9577 = vrot.lane.b32.xlu0 %v9493, 48
    %v9578 = vpop.permute.xlu0 %9577
    %9579 = vrot.lane.b32.xlu0 %v9494, 48
    %v9580 = vpop.permute.xlu0 %9579
    %9581 = vrot.lane.b32.xlu0 %v9495, 48
    %v9582 = vpop.permute.xlu0 %9581
    %9583 = vrot.lane.b32.xlu0 %v9496, 48
    %v9584 = vpop.permute.xlu0 %9583
    %9585 = vrot.lane.b32.xlu0 %v9497, 48
    %v9586 = vpop.permute.xlu0 %9585
    %9587 = vrot.lane.b32.xlu0 %v9498, 48
    %v9588 = vpop.permute.xlu0 %9587
    %9589 = vrot.lane.b32.xlu0 %v9499, 48
    %v9590 = vpop.permute.xlu0 %9589
    %9591 = vrot.lane.b32.xlu0 %v9500, 48
    %v9592 = vpop.permute.xlu0 %9591
    %9593 = vrot.lane.b32.xlu0 %v9501, 48
    %v9594 = vpop.permute.xlu0 %9593
    %9595 = vrot.lane.b32.xlu0 %v9502, 48
    %v9596 = vpop.permute.xlu0 %9595
    %9597 = vrot.lane.b32.xlu0 %v9503, 48
    %v9598 = vpop.permute.xlu0 %9597
    %9599 = vrot.lane.b32.xlu0 %v9504, 48
    %v9600 = vpop.permute.xlu0 %9599
    %9601 = vrot.lane.b32.xlu0 %v9505, 48
    %v9602 = vpop.permute.xlu0 %9601
    %9603 = vrot.lane.b32.xlu0 %v9506, 48
    %v9604 = vpop.permute.xlu0 %9603
    %9605 = vrot.lane.b32.xlu0 %v9507, 48
    %v9606 = vpop.permute.xlu0 %9605
    %9607 = vrot.lane.b32.xlu0 %v9508, 48
    %v9608 = vpop.permute.xlu0 %9607
    %9609 = vrot.lane.b32.xlu0 %v9509, 48
    %v9610 = vpop.permute.xlu0 %9609
    %9611 = vrot.lane.b32.xlu0 %v9510, 48
    %v9612 = vpop.permute.xlu0 %9611
    %v9613 = vsel %vm8508, %v9546, %v9548
    %v9614 = vsel %vm8508, %v9550, %v9552
    %v9615 = vsel %vm8508, %v9554, %v9556
    %v9616 = vsel %vm8508, %v9558, %v9560
    %v9617 = vsel %vm8508, %v9562, %v9564
    %v9618 = vsel %vm8508, %v9566, %v9568
    %v9619 = vsel %vm8508, %v9570, %v9572
    %v9620 = vsel %vm8508, %v9574, %v9576
    %v9621 = vsel %vm8508, %v9578, %v9580
    %v9622 = vsel %vm8508, %v9582, %v9584
    %v9623 = vsel %vm8508, %v9586, %v9588
    %v9624 = vsel %vm8508, %v9590, %v9592
    %v9625 = vsel %vm8508, %v9594, %v9596
    %v9626 = vsel %vm8508, %v9598, %v9600
    %v9627 = vsel %vm8508, %v9602, %v9604
    %v9628 = vsel %vm8508, %v9606, %v9608
    %v9629 = vsel %vm8508, %v9610, %v9612
    %9647 = vmatprep.subr.mxu0 0.0
    %9648 = vmatpush1.msra.mxu0 %v9628
    %9649 = vmatprep.subr.mxu0 0.0
    %9650 = vmatpush1.msra.mxu0 %v9627
    %9651 = vmatprep.subr.mxu0 0.0
    %9652 = vmatpush1.msra.mxu0 %v9626
    %9653 = vmatprep.subr.mxu0 0.0
    %9654 = vmatpush1.msra.mxu0 %v9625
    %9655 = vmatprep.subr.mxu0 0.0
    %9656 = vmatpush1.msra.mxu0 %v9624
    %9657 = vmatprep.subr.mxu0 0.0
    %9658 = vmatpush1.msra.mxu0 %v9623
    %9659 = vmatprep.subr.mxu0 0.0
    %9660 = vmatpush1.msra.mxu0 %v9622
    %9661 = vmatprep.subr.mxu0 0.0
    %9662 = vmatpush1.msra.mxu0 %v9621
    %9663 = vmatprep.subr.mxu0 0.0
    %9664 = vmatpush1.msra.mxu0 %v9620
    %9665 = vmatprep.subr.mxu0 0.0
    %9666 = vmatpush1.msra.mxu0 %v9619
    %9667 = vmatprep.subr.mxu0 0.0
    %9668 = vmatpush1.msra.mxu0 %v9618
    %9669 = vmatprep.subr.mxu0 0.0
    %9670 = vmatpush1.msra.mxu0 %v9617
    %9671 = vmatprep.subr.mxu0 0.0
    %9672 = vmatpush1.msra.mxu0 %v9616
    %9673 = vmatprep.subr.mxu0 0.0
    %9674 = vmatpush1.msra.mxu0 %v9615
    %9675 = vmatprep.subr.mxu0 0.0
    %9676 = vmatpush1.msra.mxu0 %v9614
    %9677 = vmatprep.subr.mxu0 0.0
    %9678 = vmatpush1.msra.mxu0 %v9613
    %9679 = vmatprep.subr.mxu0 0.0
    %9680 = vmatpush2.msra.mxu0 0.0
    %9681 = vmatprep.subr.mxu0 0.0
    %9682 = vmatpush2.msra.mxu0 0.0
    %9683 = vmatprep.subr.mxu0 0.0
    %9684 = vmatpush2.msra.mxu0 0.0
    %9685 = vmatprep.subr.mxu0 0.0
    %9686 = vmatpush2.msra.mxu0 0.0
    %9687 = vmatprep.subr.mxu0 0.0
    %9688 = vmatpush2.msra.mxu0 0.0
    %9689 = vmatprep.subr.mxu0 0.0
    %9690 = vmatpush2.msra.mxu0 0.0
    %9691 = vmatprep.subr.mxu0 0.0
    %9692 = vmatpush2.msra.mxu0 0.0
    %9693 = vmatprep.subr.mxu0 0.0
    %9694 = vmatpush2.msra.mxu0 0.0
    %9695 = vmatprep.subr.mxu0 0.0
    %9696 = vmatpush2.msra.mxu0 0.0
    %9697 = vmatprep.subr.mxu0 0.0
    %9698 = vmatpush2.msra.mxu0 0.0
    %9699 = vmatprep.subr.mxu0 0.0
    %9700 = vmatpush2.msra.mxu0 0.0
    %9701 = vmatprep.subr.mxu0 0.0
    %9702 = vmatpush2.msra.mxu0 0.0
    %9703 = vmatprep.subr.mxu0 0.0
    %9704 = vmatpush2.msra.mxu0 0.0
    %9705 = vmatprep.subr.mxu0 0.0
    %9706 = vmatpush2.msra.mxu0 0.0
    %9707 = vmatprep.subr.mxu0 0.0
    %9708 = vmatpush2.msra.mxu0 0.0
    %9709 = vmatprep.subr.mxu0 0.0
    %9710 = vmatpush2.msra.mxu0 %v9629
    %9711 = vmatprep.mubr.f32.mxu0 %v3159
    %9712 = vmatmul.mubr.f32.gmra.mxu0 %v3118
    %v9713 = vpop.f32.mrf.mxu0
    %v9714 = vadd.f32 0.0, %v9713
    %v9715 = vpop.f32.mrf.mxu0
    %9716 = vmatprep.mubr.f32.mxu0 %v3161
    %9717 = vmatmul.mubr.f32.gmra.mxu0 %v3123
    %v9718 = vpop.f32.mrf.mxu0
    %v9719 = vadd.f32 0.0, %v9718
    %v9720 = vpop.f32.mrf.mxu0
    %9721 = vmatprep.mubr.f32.mxu0 %v3163
    %9722 = vmatmul.mubr.f32.gmra.mxu0 %v3127
    %v9723 = vpop.f32.mrf.mxu0
    %v9724 = vadd.f32 0.0, %v9723
    %v9725 = vpop.f32.mrf.mxu0
    %9726 = vmatprep.mubr.f32.mxu0 %v3165
    %9727 = vmatmul.mubr.f32.gmra.mxu0 %v3131
    %v9728 = vpop.f32.mrf.mxu0
    %v9729 = vadd.f32 0.0, %v9728
    %v9730 = vpop.f32.mrf.mxu0
    %9731 = vmatprep.mubr.f32.mxu0 %v3167
    %9732 = vmatmul.mubr.f32.gmra.mxu0 %v3135
    %v9733 = vpop.f32.mrf.mxu0
    %v9734 = vadd.f32 0.0, %v9733
    %v9735 = vpop.f32.mrf.mxu0
    %9736 = vmatprep.mubr.f32.mxu0 %v3169
    %9737 = vmatmul.mubr.f32.gmra.mxu0 %v3139
    %v9738 = vpop.f32.mrf.mxu0
    %v9739 = vadd.f32 0.0, %v9738
    %v9740 = vpop.f32.mrf.mxu0
    %9741 = vmatprep.mubr.f32.mxu0 %v3171
    %9742 = vmatmul.mubr.f32.gmra.mxu0 %v3143
    %v9743 = vpop.f32.mrf.mxu0
    %v9744 = vadd.f32 0.0, %v9743
    %v9745 = vpop.f32.mrf.mxu0
    %9746 = vmatprep.mubr.f32.mxu0 %v3173
    %9747 = vmatmul.mubr.f32.gmra.mxu0 %v3147
    %v9748 = vpop.f32.mrf.mxu0
    %v9749 = vadd.f32 0.0, %v9748
    %v9750 = vpop.f32.mrf.mxu0
    %9751 = vmatprep.mubr.f32.mxu0 %v3175
    %9752 = vmatmul.mubr.f32.gmra.mxu0 %v3146
    %v9753 = vpop.f32.mrf.mxu0
    %v9754 = vadd.f32 0.0, %v9753
    %v9755 = vpop.f32.mrf.mxu0
    %9756 = vdwg.mxu0
    %v9757 = vadd.f32 %v9468, %v9714
    %v9758 = vadd.f32 %v9469, %v9719
    %v9759 = vadd.f32 %v9470, %v9724
    %v9760 = vadd.f32 %v9471, %v9729
    %v9761 = vadd.f32 %v9472, %v9734
    %v9762 = vadd.f32 %v9473, %v9739
    %v9763 = vadd.f32 %v9474, %v9744
    %v9764 = vadd.f32 %v9475, %v9749
    %v9765 = vadd.f32 %v9476, %v9754
    %v9766 = vld [vmem:[%s3316 + $0x10] sm:$0xff]
    %v9767 = vld [vmem:[%s3316 + $0x18] sm:$0xff]
    %v9768 = vld [vmem:[%s3316 + $0x30] sm:$0xff]
    %v9769 = vld [vmem:[%s3316 + $0x38] sm:$0xff]
    %v9770 = vld [vmem:[%s3316 + $0x50] sm:$0xff]
    %v9771 = vld [vmem:[%s3316 + $0x58] sm:$0xff]
    %v9772 = vld [vmem:[%s3316 + $0x70] sm:$0xff]
    %v9773 = vld [vmem:[%s3316 + $0x78] sm:$0xff]
    %v9774 = vld [vmem:[%s3316 + $0x90] sm:$0xff]
    %v9775 = vld [vmem:[%s3316 + $0x98] sm:$0xff]
    %v9776 = vld [vmem:[%s3316 + $0xb0] sm:$0xff]
    %v9777 = vld [vmem:[%s3316 + $0xb8] sm:$0xff]
    %v9778 = vld [vmem:[%s3316 + $0xd0] sm:$0xff]
    %v9779 = vld [vmem:[%s3316 + $0xd8] sm:$0xff]
    %v9780 = vld [vmem:[%s3316 + $0xf0] sm:$0xff]
    %v9781 = vld [vmem:[%s3316 + $0xf8] sm:$0xff]
    %v9782 = vld [vmem:[%s3316 + $0x110] sm:$0xff]
    %v9783 = vld [vmem:[%s3316 + $0x118] sm:$0xff]
    %v9784 = vld [vmem:[%s3316 + $0x130] sm:$0xff]
    %v9785 = vld [vmem:[%s3316 + $0x138] sm:$0xff]
    %v9786 = vld [vmem:[%s3316 + $0x150] sm:$0xff]
    %v9787 = vld [vmem:[%s3316 + $0x158] sm:$0xff]
    %v9788 = vld [vmem:[%s3316 + $0x170] sm:$0xff]
    %v9789 = vld [vmem:[%s3316 + $0x178] sm:$0xff]
    %v9790 = vld [vmem:[%s3316 + $0x190] sm:$0xff]
    %v9791 = vld [vmem:[%s3316 + $0x198] sm:$0xff]
    %v9792 = vld [vmem:[%s3316 + $0x1b0] sm:$0xff]
    %v9793 = vld [vmem:[%s3316 + $0x1b8] sm:$0xff]
    %v9794 = vld [vmem:[%s3316 + $0x1d0] sm:$0xff]
    %v9795 = vld [vmem:[%s3316 + $0x1d8] sm:$0xff]
    %v9796 = vld [vmem:[%s3316 + $0x1f0] sm:$0xff]
    %v9797 = vld [vmem:[%s3316 + $0x1f8] sm:$0xff]
    %v9798 = vld [vmem:[%s3316 + $0x210] sm:$0xff]
    %v9799 = vld [vmem:[%s3316 + $0x218] sm:$0xff]
    %9834 = vrot.lane.b32.xlu0 %v9766, 48
    %v9835 = vpop.permute.xlu0 %9834
    %9836 = vrot.lane.b32.xlu0 %v9767, 48
    %v9837 = vpop.permute.xlu0 %9836
    %9838 = vrot.lane.b32.xlu0 %v9768, 48
    %v9839 = vpop.permute.xlu0 %9838
    %9840 = vrot.lane.b32.xlu0 %v9769, 48
    %v9841 = vpop.permute.xlu0 %9840
    %9842 = vrot.lane.b32.xlu0 %v9770, 48
    %v9843 = vpop.permute.xlu0 %9842
    %9844 = vrot.lane.b32.xlu0 %v9771, 48
    %v9845 = vpop.permute.xlu0 %9844
    %9846 = vrot.lane.b32.xlu0 %v9772, 48
    %v9847 = vpop.permute.xlu0 %9846
    %9848 = vrot.lane.b32.xlu0 %v9773, 48
    %v9849 = vpop.permute.xlu0 %9848
    %9850 = vrot.lane.b32.xlu0 %v9774, 48
    %v9851 = vpop.permute.xlu0 %9850
    %9852 = vrot.lane.b32.xlu0 %v9775, 48
    %v9853 = vpop.permute.xlu0 %9852
    %9854 = vrot.lane.b32.xlu0 %v9776, 48
    %v9855 = vpop.permute.xlu0 %9854
    %9856 = vrot.lane.b32.xlu0 %v9777, 48
    %v9857 = vpop.permute.xlu0 %9856
    %9858 = vrot.lane.b32.xlu0 %v9778, 48
    %v9859 = vpop.permute.xlu0 %9858
    %9860 = vrot.lane.b32.xlu0 %v9779, 48
    %v9861 = vpop.permute.xlu0 %9860
    %9862 = vrot.lane.b32.xlu0 %v9780, 48
    %v9863 = vpop.permute.xlu0 %9862
    %9864 = vrot.lane.b32.xlu0 %v9781, 48
    %v9865 = vpop.permute.xlu0 %9864
    %9866 = vrot.lane.b32.xlu0 %v9782, 48
    %v9867 = vpop.permute.xlu0 %9866
    %9868 = vrot.lane.b32.xlu0 %v9783, 48
    %v9869 = vpop.permute.xlu0 %9868
    %9870 = vrot.lane.b32.xlu0 %v9784, 48
    %v9871 = vpop.permute.xlu0 %9870
    %9872 = vrot.lane.b32.xlu0 %v9785, 48
    %v9873 = vpop.permute.xlu0 %9872
    %9874 = vrot.lane.b32.xlu0 %v9786, 48
    %v9875 = vpop.permute.xlu0 %9874
    %9876 = vrot.lane.b32.xlu0 %v9787, 48
    %v9877 = vpop.permute.xlu0 %9876
    %9878 = vrot.lane.b32.xlu0 %v9788, 48
    %v9879 = vpop.permute.xlu0 %9878
    %9880 = vrot.lane.b32.xlu0 %v9789, 48
    %v9881 = vpop.permute.xlu0 %9880
    %9882 = vrot.lane.b32.xlu0 %v9790, 48
    %v9883 = vpop.permute.xlu0 %9882
    %9884 = vrot.lane.b32.xlu0 %v9791, 48
    %v9885 = vpop.permute.xlu0 %9884
    %9886 = vrot.lane.b32.xlu0 %v9792, 48
    %v9887 = vpop.permute.xlu0 %9886
    %9888 = vrot.lane.b32.xlu0 %v9793, 48
    %v9889 = vpop.permute.xlu0 %9888
    %9890 = vrot.lane.b32.xlu0 %v9794, 48
    %v9891 = vpop.permute.xlu0 %9890
    %9892 = vrot.lane.b32.xlu0 %v9795, 48
    %v9893 = vpop.permute.xlu0 %9892
    %9894 = vrot.lane.b32.xlu0 %v9796, 48
    %v9895 = vpop.permute.xlu0 %9894
    %9896 = vrot.lane.b32.xlu0 %v9797, 48
    %v9897 = vpop.permute.xlu0 %9896
    %9898 = vrot.lane.b32.xlu0 %v9798, 48
    %v9899 = vpop.permute.xlu0 %9898
    %9900 = vrot.lane.b32.xlu0 %v9799, 48
    %v9901 = vpop.permute.xlu0 %9900
    %v9902 = vsel %vm8508, %v9835, %v9837
    %v9903 = vsel %vm8508, %v9839, %v9841
    %v9904 = vsel %vm8508, %v9843, %v9845
    %v9905 = vsel %vm8508, %v9847, %v9849
    %v9906 = vsel %vm8508, %v9851, %v9853
    %v9907 = vsel %vm8508, %v9855, %v9857
    %v9908 = vsel %vm8508, %v9859, %v9861
    %v9909 = vsel %vm8508, %v9863, %v9865
    %v9910 = vsel %vm8508, %v9867, %v9869
    %v9911 = vsel %vm8508, %v9871, %v9873
    %v9912 = vsel %vm8508, %v9875, %v9877
    %v9913 = vsel %vm8508, %v9879, %v9881
    %v9914 = vsel %vm8508, %v9883, %v9885
    %v9915 = vsel %vm8508, %v9887, %v9889
    %v9916 = vsel %vm8508, %v9891, %v9893
    %v9917 = vsel %vm8508, %v9895, %v9897
    %v9918 = vsel %vm8508, %v9899, %v9901
    %9936 = vmatprep.subr.mxu0 0.0
    %9937 = vmatpush1.msra.mxu0 %v9917
    %9938 = vmatprep.subr.mxu0 0.0
    %9939 = vmatpush1.msra.mxu0 %v9916
    %9940 = vmatprep.subr.mxu0 0.0
    %9941 = vmatpush1.msra.mxu0 %v9915
    %9942 = vmatprep.subr.mxu0 0.0
    %9943 = vmatpush1.msra.mxu0 %v9914
    %9944 = vmatprep.subr.mxu0 0.0
    %9945 = vmatpush1.msra.mxu0 %v9913
    %9946 = vmatprep.subr.mxu0 0.0
    %9947 = vmatpush1.msra.mxu0 %v9912
    %9948 = vmatprep.subr.mxu0 0.0
    %9949 = vmatpush1.msra.mxu0 %v9911
    %9950 = vmatprep.subr.mxu0 0.0
    %9951 = vmatpush1.msra.mxu0 %v9910
    %9952 = vmatprep.subr.mxu0 0.0
    %9953 = vmatpush1.msra.mxu0 %v9909
    %9954 = vmatprep.subr.mxu0 0.0
    %9955 = vmatpush1.msra.mxu0 %v9908
    %9956 = vmatprep.subr.mxu0 0.0
    %9957 = vmatpush1.msra.mxu0 %v9907
    %9958 = vmatprep.subr.mxu0 0.0
    %9959 = vmatpush1.msra.mxu0 %v9906
    %9960 = vmatprep.subr.mxu0 0.0
    %9961 = vmatpush1.msra.mxu0 %v9905
    %9962 = vmatprep.subr.mxu0 0.0
    %9963 = vmatpush1.msra.mxu0 %v9904
    %9964 = vmatprep.subr.mxu0 0.0
    %9965 = vmatpush1.msra.mxu0 %v9903
    %9966 = vmatprep.subr.mxu0 0.0
    %9967 = vmatpush1.msra.mxu0 %v9902
    %9968 = vmatprep.subr.mxu0 0.0
    %9969 = vmatpush2.msra.mxu0 0.0
    %9970 = vmatprep.subr.mxu0 0.0
    %9971 = vmatpush2.msra.mxu0 0.0
    %9972 = vmatprep.subr.mxu0 0.0
    %9973 = vmatpush2.msra.mxu0 0.0
    %9974 = vmatprep.subr.mxu0 0.0
    %9975 = vmatpush2.msra.mxu0 0.0
    %9976 = vmatprep.subr.mxu0 0.0
    %9977 = vmatpush2.msra.mxu0 0.0
    %9978 = vmatprep.subr.mxu0 0.0
    %9979 = vmatpush2.msra.mxu0 0.0
    %9980 = vmatprep.subr.mxu0 0.0
    %9981 = vmatpush2.msra.mxu0 0.0
    %9982 = vmatprep.subr.mxu0 0.0
    %9983 = vmatpush2.msra.mxu0 0.0
    %9984 = vmatprep.subr.mxu0 0.0
    %9985 = vmatpush2.msra.mxu0 0.0
    %9986 = vmatprep.subr.mxu0 0.0
    %9987 = vmatpush2.msra.mxu0 0.0
    %9988 = vmatprep.subr.mxu0 0.0
    %9989 = vmatpush2.msra.mxu0 0.0
    %9990 = vmatprep.subr.mxu0 0.0
    %9991 = vmatpush2.msra.mxu0 0.0
    %9992 = vmatprep.subr.mxu0 0.0
    %9993 = vmatpush2.msra.mxu0 0.0
    %9994 = vmatprep.subr.mxu0 0.0
    %9995 = vmatpush2.msra.mxu0 0.0
    %9996 = vmatprep.subr.mxu0 0.0
    %9997 = vmatpush2.msra.mxu0 0.0
    %9998 = vmatprep.subr.mxu0 0.0
    %9999 = vmatpush2.msra.mxu0 %v9918
    %10000 = vmatprep.mubr.f32.mxu0 %v3401
    %10001 = vmatmul.mubr.f32.gmra.mxu0 %v3356
    %v10002 = vpop.f32.mrf.mxu0
    %v10003 = vadd.f32 0.0, %v10002
    %v10004 = vpop.f32.mrf.mxu0
    %10005 = vmatprep.mubr.f32.mxu0 %v3403
    %10006 = vmatmul.mubr.f32.gmra.mxu0 %v3361
    %v10007 = vpop.f32.mrf.mxu0
    %v10008 = vadd.f32 0.0, %v10007
    %v10009 = vpop.f32.mrf.mxu0
    %10010 = vmatprep.mubr.f32.mxu0 %v3405
    %10011 = vmatmul.mubr.f32.gmra.mxu0 %v3365
    %v10012 = vpop.f32.mrf.mxu0
    %v10013 = vadd.f32 0.0, %v10012
    %v10014 = vpop.f32.mrf.mxu0
    %10015 = vmatprep.mubr.f32.mxu0 %v3407
    %10016 = vmatmul.mubr.f32.gmra.mxu0 %v3369
    %v10017 = vpop.f32.mrf.mxu0
    %v10018 = vadd.f32 0.0, %v10017
    %v10019 = vpop.f32.mrf.mxu0
    %10020 = vmatprep.mubr.f32.mxu0 %v3409
    %10021 = vmatmul.mubr.f32.gmra.mxu0 %v3373
    %v10022 = vpop.f32.mrf.mxu0
    %v10023 = vadd.f32 0.0, %v10022
    %v10024 = vpop.f32.mrf.mxu0
    %10025 = vmatprep.mubr.f32.mxu0 %v3411
    %10026 = vmatmul.mubr.f32.gmra.mxu0 %v3377
    %v10027 = vpop.f32.mrf.mxu0
    %v10028 = vadd.f32 0.0, %v10027
    %v10029 = vpop.f32.mrf.mxu0
    %10030 = vmatprep.mubr.f32.mxu0 %v3413
    %10031 = vmatmul.mubr.f32.gmra.mxu0 %v3381
    %v10032 = vpop.f32.mrf.mxu0
    %v10033 = vadd.f32 0.0, %v10032
    %v10034 = vpop.f32.mrf.mxu0
    %10035 = vmatprep.mubr.f32.mxu0 %v3415
    %10036 = vmatmul.mubr.f32.gmra.mxu0 %v3385
    %v10037 = vpop.f32.mrf.mxu0
    %v10038 = vadd.f32 0.0, %v10037
    %v10039 = vpop.f32.mrf.mxu0
    %10040 = vmatprep.mubr.f32.mxu0 %v3417
    %10041 = vmatmul.mubr.f32.gmra.mxu0 %v3389
    %v10042 = vpop.f32.mrf.mxu0
    %v10043 = vadd.f32 0.0, %v10042
    %v10044 = vpop.f32.mrf.mxu0
    %10045 = vdwg.mxu0
    %v10046 = vadd.f32 %v9757, %v10003
    %v10047 = vadd.f32 %v9758, %v10008
    %v10048 = vadd.f32 %v9759, %v10013
    %v10049 = vadd.f32 %v9760, %v10018
    %v10050 = vadd.f32 %v9761, %v10023
    %v10051 = vadd.f32 %v9762, %v10028
    %v10052 = vadd.f32 %v9763, %v10033
    %v10053 = vadd.f32 %v9764, %v10038
    %v10054 = vadd.f32 %v9765, %v10043
    %v10055 = vld [vmem:[%s3542 + $0x10] sm:$0xff]
    %v10056 = vld [vmem:[%s3542 + $0x18] sm:$0xff]
    %v10057 = vld [vmem:[%s3542 + $0x30] sm:$0xff]
    %v10058 = vld [vmem:[%s3542 + $0x38] sm:$0xff]
    %v10059 = vld [vmem:[%s3542 + $0x50] sm:$0xff]
    %v10060 = vld [vmem:[%s3542 + $0x58] sm:$0xff]
    %v10061 = vld [vmem:[%s3542 + $0x70] sm:$0xff]
    %v10062 = vld [vmem:[%s3542 + $0x78] sm:$0xff]
    %v10063 = vld [vmem:[%s3542 + $0x90] sm:$0xff]
    %v10064 = vld [vmem:[%s3542 + $0x98] sm:$0xff]
    %v10065 = vld [vmem:[%s3542 + $0xb0] sm:$0xff]
    %v10066 = vld [vmem:[%s3542 + $0xb8] sm:$0xff]
    %v10067 = vld [vmem:[%s3542 + $0xd0] sm:$0xff]
    %v10068 = vld [vmem:[%s3542 + $0xd8] sm:$0xff]
    %v10069 = vld [vmem:[%s3542 + $0xf0] sm:$0xff]
    %v10070 = vld [vmem:[%s3542 + $0xf8] sm:$0xff]
    %v10071 = vld [vmem:[%s3542 + $0x110] sm:$0xff]
    %v10072 = vld [vmem:[%s3542 + $0x118] sm:$0xff]
    %v10073 = vld [vmem:[%s3542 + $0x130] sm:$0xff]
    %v10074 = vld [vmem:[%s3542 + $0x138] sm:$0xff]
    %v10075 = vld [vmem:[%s3542 + $0x150] sm:$0xff]
    %v10076 = vld [vmem:[%s3542 + $0x158] sm:$0xff]
    %v10077 = vld [vmem:[%s3542 + $0x170] sm:$0xff]
    %v10078 = vld [vmem:[%s3542 + $0x178] sm:$0xff]
    %v10079 = vld [vmem:[%s3542 + $0x190] sm:$0xff]
    %v10080 = vld [vmem:[%s3542 + $0x198] sm:$0xff]
    %v10081 = vld [vmem:[%s3542 + $0x1b0] sm:$0xff]
    %v10082 = vld [vmem:[%s3542 + $0x1b8] sm:$0xff]
    %v10083 = vld [vmem:[%s3542 + $0x1d0] sm:$0xff]
    %v10084 = vld [vmem:[%s3542 + $0x1d8] sm:$0xff]
    %v10085 = vld [vmem:[%s3542 + $0x1f0] sm:$0xff]
    %v10086 = vld [vmem:[%s3542 + $0x1f8] sm:$0xff]
    %v10087 = vld [vmem:[%s3542 + $0x210] sm:$0xff]
    %v10088 = vld [vmem:[%s3542 + $0x218] sm:$0xff]
    %10123 = vrot.lane.b32.xlu0 %v10055, 48
    %v10124 = vpop.permute.xlu0 %10123
    %10125 = vrot.lane.b32.xlu0 %v10056, 48
    %v10126 = vpop.permute.xlu0 %10125
    %10127 = vrot.lane.b32.xlu0 %v10057, 48
    %v10128 = vpop.permute.xlu0 %10127
    %10129 = vrot.lane.b32.xlu0 %v10058, 48
    %v10130 = vpop.permute.xlu0 %10129
    %10131 = vrot.lane.b32.xlu0 %v10059, 48
    %v10132 = vpop.permute.xlu0 %10131
    %10133 = vrot.lane.b32.xlu0 %v10060, 48
    %v10134 = vpop.permute.xlu0 %10133
    %10135 = vrot.lane.b32.xlu0 %v10061, 48
    %v10136 = vpop.permute.xlu0 %10135
    %10137 = vrot.lane.b32.xlu0 %v10062, 48
    %v10138 = vpop.permute.xlu0 %10137
    %10139 = vrot.lane.b32.xlu0 %v10063, 48
    %v10140 = vpop.permute.xlu0 %10139
    %10141 = vrot.lane.b32.xlu0 %v10064, 48
    %v10142 = vpop.permute.xlu0 %10141
    %10143 = vrot.lane.b32.xlu0 %v10065, 48
    %v10144 = vpop.permute.xlu0 %10143
    %10145 = vrot.lane.b32.xlu0 %v10066, 48
    %v10146 = vpop.permute.xlu0 %10145
    %10147 = vrot.lane.b32.xlu0 %v10067, 48
    %v10148 = vpop.permute.xlu0 %10147
    %10149 = vrot.lane.b32.xlu0 %v10068, 48
    %v10150 = vpop.permute.xlu0 %10149
    %10151 = vrot.lane.b32.xlu0 %v10069, 48
    %v10152 = vpop.permute.xlu0 %10151
    %10153 = vrot.lane.b32.xlu0 %v10070, 48
    %v10154 = vpop.permute.xlu0 %10153
    %10155 = vrot.lane.b32.xlu0 %v10071, 48
    %v10156 = vpop.permute.xlu0 %10155
    %10157 = vrot.lane.b32.xlu0 %v10072, 48
    %v10158 = vpop.permute.xlu0 %10157
    %10159 = vrot.lane.b32.xlu0 %v10073, 48
    %v10160 = vpop.permute.xlu0 %10159
    %10161 = vrot.lane.b32.xlu0 %v10074, 48
    %v10162 = vpop.permute.xlu0 %10161
    %10163 = vrot.lane.b32.xlu0 %v10075, 48
    %v10164 = vpop.permute.xlu0 %10163
    %10165 = vrot.lane.b32.xlu0 %v10076, 48
    %v10166 = vpop.permute.xlu0 %10165
    %10167 = vrot.lane.b32.xlu0 %v10077, 48
    %v10168 = vpop.permute.xlu0 %10167
    %10169 = vrot.lane.b32.xlu0 %v10078, 48
    %v10170 = vpop.permute.xlu0 %10169
    %10171 = vrot.lane.b32.xlu0 %v10079, 48
    %v10172 = vpop.permute.xlu0 %10171
    %10173 = vrot.lane.b32.xlu0 %v10080, 48
    %v10174 = vpop.permute.xlu0 %10173
    %10175 = vrot.lane.b32.xlu0 %v10081, 48
    %v10176 = vpop.permute.xlu0 %10175
    %10177 = vrot.lane.b32.xlu0 %v10082, 48
    %v10178 = vpop.permute.xlu0 %10177
    %10179 = vrot.lane.b32.xlu0 %v10083, 48
    %v10180 = vpop.permute.xlu0 %10179
    %10181 = vrot.lane.b32.xlu0 %v10084, 48
    %v10182 = vpop.permute.xlu0 %10181
    %10183 = vrot.lane.b32.xlu0 %v10085, 48
    %v10184 = vpop.permute.xlu0 %10183
    %10185 = vrot.lane.b32.xlu0 %v10086, 48
    %v10186 = vpop.permute.xlu0 %10185
    %10187 = vrot.lane.b32.xlu0 %v10087, 48
    %v10188 = vpop.permute.xlu0 %10187
    %10189 = vrot.lane.b32.xlu0 %v10088, 48
    %v10190 = vpop.permute.xlu0 %10189
    %v10191 = vsel %vm8508, %v10124, %v10126
    %v10192 = vsel %vm8508, %v10128, %v10130
    %v10193 = vsel %vm8508, %v10132, %v10134
    %v10194 = vsel %vm8508, %v10136, %v10138
    %v10195 = vsel %vm8508, %v10140, %v10142
    %v10196 = vsel %vm8508, %v10144, %v10146
    %v10197 = vsel %vm8508, %v10148, %v10150
    %v10198 = vsel %vm8508, %v10152, %v10154
    %v10199 = vsel %vm8508, %v10156, %v10158
    %v10200 = vsel %vm8508, %v10160, %v10162
    %v10201 = vsel %vm8508, %v10164, %v10166
    %v10202 = vsel %vm8508, %v10168, %v10170
    %v10203 = vsel %vm8508, %v10172, %v10174
    %v10204 = vsel %vm8508, %v10176, %v10178
    %v10205 = vsel %vm8508, %v10180, %v10182
    %v10206 = vsel %vm8508, %v10184, %v10186
    %v10207 = vsel %vm8508, %v10188, %v10190
    %10225 = vmatprep.subr.mxu0 0.0
    %10226 = vmatpush1.msra.mxu0 %v10206
    %10227 = vmatprep.subr.mxu0 0.0
    %10228 = vmatpush1.msra.mxu0 %v10205
    %10229 = vmatprep.subr.mxu0 0.0
    %10230 = vmatpush1.msra.mxu0 %v10204
    %10231 = vmatprep.subr.mxu0 0.0
    %10232 = vmatpush1.msra.mxu0 %v10203
    %10233 = vmatprep.subr.mxu0 0.0
    %10234 = vmatpush1.msra.mxu0 %v10202
    %10235 = vmatprep.subr.mxu0 0.0
    %10236 = vmatpush1.msra.mxu0 %v10201
    %10237 = vmatprep.subr.mxu0 0.0
    %10238 = vmatpush1.msra.mxu0 %v10200
    %10239 = vmatprep.subr.mxu0 0.0
    %10240 = vmatpush1.msra.mxu0 %v10199
    %10241 = vmatprep.subr.mxu0 0.0
    %10242 = vmatpush1.msra.mxu0 %v10198
    %10243 = vmatprep.subr.mxu0 0.0
    %10244 = vmatpush1.msra.mxu0 %v10197
    %10245 = vmatprep.subr.mxu0 0.0
    %10246 = vmatpush1.msra.mxu0 %v10196
    %10247 = vmatprep.subr.mxu0 0.0
    %10248 = vmatpush1.msra.mxu0 %v10195
    %10249 = vmatprep.subr.mxu0 0.0
    %10250 = vmatpush1.msra.mxu0 %v10194
    %10251 = vmatprep.subr.mxu0 0.0
    %10252 = vmatpush1.msra.mxu0 %v10193
    %10253 = vmatprep.subr.mxu0 0.0
    %10254 = vmatpush1.msra.mxu0 %v10192
    %10255 = vmatprep.subr.mxu0 0.0
    %10256 = vmatpush1.msra.mxu0 %v10191
    %10257 = vmatprep.subr.mxu0 0.0
    %10258 = vmatpush2.msra.mxu0 0.0
    %10259 = vmatprep.subr.mxu0 0.0
    %10260 = vmatpush2.msra.mxu0 0.0
    %10261 = vmatprep.subr.mxu0 0.0
    %10262 = vmatpush2.msra.mxu0 0.0
    %10263 = vmatprep.subr.mxu0 0.0
    %10264 = vmatpush2.msra.mxu0 0.0
    %10265 = vmatprep.subr.mxu0 0.0
    %10266 = vmatpush2.msra.mxu0 0.0
    %10267 = vmatprep.subr.mxu0 0.0
    %10268 = vmatpush2.msra.mxu0 0.0
    %10269 = vmatprep.subr.mxu0 0.0
    %10270 = vmatpush2.msra.mxu0 0.0
    %10271 = vmatprep.subr.mxu0 0.0
    %10272 = vmatpush2.msra.mxu0 0.0
    %10273 = vmatprep.subr.mxu0 0.0
    %10274 = vmatpush2.msra.mxu0 0.0
    %10275 = vmatprep.subr.mxu0 0.0
    %10276 = vmatpush2.msra.mxu0 0.0
    %10277 = vmatprep.subr.mxu0 0.0
    %10278 = vmatpush2.msra.mxu0 0.0
    %10279 = vmatprep.subr.mxu0 0.0
    %10280 = vmatpush2.msra.mxu0 0.0
    %10281 = vmatprep.subr.mxu0 0.0
    %10282 = vmatpush2.msra.mxu0 0.0
    %10283 = vmatprep.subr.mxu0 0.0
    %10284 = vmatpush2.msra.mxu0 0.0
    %10285 = vmatprep.subr.mxu0 0.0
    %10286 = vmatpush2.msra.mxu0 0.0
    %10287 = vmatprep.subr.mxu0 0.0
    %10288 = vmatpush2.msra.mxu0 %v10207
    %10289 = vmatprep.mubr.f32.mxu0 %v3612
    %10290 = vmatmul.mubr.f32.gmra.mxu0 %v3567
    %v10291 = vpop.f32.mrf.mxu0
    %v10292 = vadd.f32 0.0, %v10291
    %v10293 = vpop.f32.mrf.mxu0
    %10294 = vmatprep.mubr.f32.mxu0 %v3614
    %10295 = vmatmul.mubr.f32.gmra.mxu0 %v3572
    %v10296 = vpop.f32.mrf.mxu0
    %v10297 = vadd.f32 0.0, %v10296
    %v10298 = vpop.f32.mrf.mxu0
    %10299 = vmatprep.mubr.f32.mxu0 %v3616
    %10300 = vmatmul.mubr.f32.gmra.mxu0 %v3576
    %v10301 = vpop.f32.mrf.mxu0
    %v10302 = vadd.f32 0.0, %v10301
    %v10303 = vpop.f32.mrf.mxu0
    %10304 = vmatprep.mubr.f32.mxu0 %v3618
    %10305 = vmatmul.mubr.f32.gmra.mxu0 %v3580
    %v10306 = vpop.f32.mrf.mxu0
    %v10307 = vadd.f32 0.0, %v10306
    %v10308 = vpop.f32.mrf.mxu0
    %10309 = vmatprep.mubr.f32.mxu0 %v3620
    %10310 = vmatmul.mubr.f32.gmra.mxu0 %v3584
    %v10311 = vpop.f32.mrf.mxu0
    %v10312 = vadd.f32 0.0, %v10311
    %v10313 = vpop.f32.mrf.mxu0
    %10314 = vmatprep.mubr.f32.mxu0 %v3622
    %10315 = vmatmul.mubr.f32.gmra.mxu0 %v3588
    %v10316 = vpop.f32.mrf.mxu0
    %v10317 = vadd.f32 0.0, %v10316
    %v10318 = vpop.f32.mrf.mxu0
    %10319 = vmatprep.mubr.f32.mxu0 %v3624
    %10320 = vmatmul.mubr.f32.gmra.mxu0 %v3592
    %v10321 = vpop.f32.mrf.mxu0
    %v10322 = vadd.f32 0.0, %v10321
    %v10323 = vpop.f32.mrf.mxu0
    %10324 = vmatprep.mubr.f32.mxu0 %v3626
    %10325 = vmatmul.mubr.f32.gmra.mxu0 %v3596
    %v10326 = vpop.f32.mrf.mxu0
    %v10327 = vadd.f32 0.0, %v10326
    %v10328 = vpop.f32.mrf.mxu0
    %10329 = vmatprep.mubr.f32.mxu0 %v3628
    %10330 = vmatmul.mubr.f32.gmra.mxu0 %v3600
    %v10331 = vpop.f32.mrf.mxu0
    %v10332 = vadd.f32 0.0, %v10331
    %v10333 = vpop.f32.mrf.mxu0
    %10334 = vdwg.mxu0
    %v10335 = vadd.f32 %v10046, %v10292
    %v10336 = vadd.f32 %v10047, %v10297
    %v10337 = vadd.f32 %v10048, %v10302
    %v10338 = vadd.f32 %v10049, %v10307
    %v10339 = vadd.f32 %v10050, %v10312
    %v10340 = vadd.f32 %v10051, %v10317
    %v10341 = vadd.f32 %v10052, %v10322
    %v10342 = vadd.f32 %v10053, %v10327
    %v10343 = vadd.f32 %v10054, %v10332
    %v10345 = vsel %vm3115, %v10343, 0
    %10347 = vmatprep.subr.mxu0 0.0
    %10348 = vmatpush1.msra.mxu0 0.0
    %10349 = vmatprep.subr.mxu0 0.0
    %10350 = vmatpush1.msra.mxu0 0.0
    %10351 = vmatprep.subr.mxu0 0.0
    %10352 = vmatpush1.msra.mxu0 0.0
    %10353 = vmatprep.subr.mxu0 0.0
    %10354 = vmatpush1.msra.mxu0 0.0
    %10355 = vmatprep.subr.mxu0 0.0
    %10356 = vmatpush1.msra.mxu0 0.0
    %10357 = vmatprep.subr.mxu0 0.0
    %10358 = vmatpush1.msra.mxu0 0.0
    %10359 = vmatprep.subr.mxu0 0.0
    %10360 = vmatpush1.msra.mxu0 0.0
    %10361 = vmatprep.subr.mxu0 0.0
    %10362 = vmatpush1.msra.mxu0 %v10345
    %10363 = vmatprep.subr.mxu0 0.0
    %10364 = vmatpush1.msra.mxu0 %v10342
    %10365 = vmatprep.subr.mxu0 0.0
    %10366 = vmatpush1.msra.mxu0 %v10341
    %10367 = vmatprep.subr.mxu0 0.0
    %10368 = vmatpush1.msra.mxu0 %v10340
    %10369 = vmatprep.subr.mxu0 0.0
    %10370 = vmatpush1.msra.mxu0 %v10339
    %10371 = vmatprep.subr.mxu0 0.0
    %10372 = vmatpush1.msra.mxu0 %v10338
    %10373 = vmatprep.subr.mxu0 0.0
    %10374 = vmatpush1.msra.mxu0 %v10337
    %10375 = vmatprep.subr.mxu0 0.0
    %10376 = vmatpush1.msra.mxu0 %v10336
    %10377 = vmatprep.subr.mxu0 0.0
    %10378 = vmatpush1.msra.mxu0 %v10335
    %10379 = vmatprep.subr.mxu0 0.0
    %10380 = vmatpush2.msra.mxu0 0.0
    %10381 = vmatprep.subr.mxu0 0.0
    %10382 = vmatpush2.msra.mxu0 0.0
    %10383 = vmatprep.subr.mxu0 0.0
    %10384 = vmatpush2.msra.mxu0 0.0
    %10385 = vmatprep.subr.mxu0 0.0
    %10386 = vmatpush2.msra.mxu0 0.0
    %10387 = vmatprep.subr.mxu0 0.0
    %10388 = vmatpush2.msra.mxu0 0.0
    %10389 = vmatprep.subr.mxu0 0.0
    %10390 = vmatpush2.msra.mxu0 0.0
    %10391 = vmatprep.subr.mxu0 0.0
    %10392 = vmatpush2.msra.mxu0 0.0
    %10393 = vmatprep.subr.mxu0 0.0
    %10394 = vmatpush2.msra.mxu0 0.0
    %10395 = vmatprep.subr.mxu0 0.0
    %10396 = vmatpush2.msra.mxu0 0.0
    %10397 = vmatprep.subr.mxu0 0.0
    %10398 = vmatpush2.msra.mxu0 0.0
    %10399 = vmatprep.subr.mxu0 0.0
    %10400 = vmatpush2.msra.mxu0 0.0
    %10401 = vmatprep.subr.mxu0 0.0
    %10402 = vmatpush2.msra.mxu0 0.0
    %10403 = vmatprep.subr.mxu0 0.0
    %10404 = vmatpush2.msra.mxu0 0.0
    %10405 = vmatprep.subr.mxu0 0.0
    %10406 = vmatpush2.msra.mxu0 0.0
    %10407 = vmatprep.subr.mxu0 0.0
    %10408 = vmatpush2.msra.mxu0 0.0
    %10409 = vmatprep.subr.mxu0 0.0
    %10410 = vmatpush2.msra.mxu0 0.0
    %10411 = vmatprep.mubr.f32.mxu0 0.0
    %10412 = vmatmul.mubr.f32.gmra.mxu0 %v5775
    %v10413 = vpop.f32.mrf.mxu0
    %v10414 = vadd.f32 0.0, %v10413
    %v10415 = vpop.f32.mrf.mxu0
    %10416 = vmatprep.mubr.f32.mxu0 0.0
    %10417 = vmatmul.mubr.f32.gmra.mxu0 %v5778
    %v10418 = vpop.f32.mrf.mxu0
    %v10419 = vadd.f32 0.0, %v10418
    %v10420 = vpop.f32.mrf.mxu0
    %10421 = vmatprep.mubr.f32.mxu0 0.0
    %10422 = vmatmul.mubr.f32.gmra.mxu0 %v5781
    %v10423 = vpop.f32.mrf.mxu0
    %v10424 = vadd.f32 0.0, %v10423
    %v10425 = vpop.f32.mrf.mxu0
    %10426 = vmatprep.mubr.f32.mxu0 0.0
    %10427 = vmatmul.mubr.f32.gmra.mxu0 %v5784
    %v10428 = vpop.f32.mrf.mxu0
    %v10429 = vadd.f32 0.0, %v10428
    %v10430 = vpop.f32.mrf.mxu0
    %10431 = vdwg.mxu0
    %v10433 = vsel %vm5874, %v10414, 0
    %v10436 = vsel %vm5874, %v10419, 0
    %v10439 = vsel %vm5874, %v10424, 0
    %v10442 = vsel %vm5874, %v10429, 0
    %10444 = vmatprep.subr.mxu0 0.0
    %10445 = vmatpush1.msra.mxu0 0.0
    %10446 = vmatprep.subr.mxu0 0.0
    %10447 = vmatpush1.msra.mxu0 0.0
    %10448 = vmatprep.subr.mxu0 0.0
    %10449 = vmatpush1.msra.mxu0 %v2293
    %10450 = vmatprep.subr.mxu0 0.0
    %10451 = vmatpush1.msra.mxu0 %v2292
    %10452 = vmatprep.subr.mxu0 0.0
    %10453 = vmatpush1.msra.mxu0 %v2291
    %10454 = vmatprep.subr.mxu0 0.0
    %10455 = vmatpush1.msra.mxu0 %v2290
    %10456 = vmatprep.subr.mxu0 0.0
    %10457 = vmatpush1.msra.mxu0 %v2289
    %10458 = vmatprep.subr.mxu0 0.0
    %10459 = vmatpush1.msra.mxu0 %v2288
    %10460 = vmatprep.subr.mxu0 0.0
    %10461 = vmatpush1.msra.mxu0 %v2287
    %10462 = vmatprep.subr.mxu0 0.0
    %10463 = vmatpush1.msra.mxu0 %v2286
    %10464 = vmatprep.subr.mxu0 0.0
    %10465 = vmatpush1.msra.mxu0 %v2285
    %10466 = vmatprep.subr.mxu0 0.0
    %10467 = vmatpush1.msra.mxu0 %v2284
    %10468 = vmatprep.subr.mxu0 0.0
    %10469 = vmatpush1.msra.mxu0 %v2283
    %10470 = vmatprep.subr.mxu0 0.0
    %10471 = vmatpush1.msra.mxu0 %v2282
    %10472 = vmatprep.subr.mxu0 0.0
    %10473 = vmatpush1.msra.mxu0 %v2281
    %10474 = vmatprep.subr.mxu0 0.0
    %10475 = vmatpush1.msra.mxu0 %v2280
    %10476 = vmatprep.subr.mxu0 0.0
    %10477 = vmatpush2.msra.mxu0 0.0
    %10478 = vmatprep.subr.mxu0 0.0
    %10479 = vmatpush2.msra.mxu0 0.0
    %10480 = vmatprep.subr.mxu0 0.0
    %10481 = vmatpush2.msra.mxu0 0.0
    %10482 = vmatprep.subr.mxu0 0.0
    %10483 = vmatpush2.msra.mxu0 0.0
    %10484 = vmatprep.subr.mxu0 0.0
    %10485 = vmatpush2.msra.mxu0 0.0
    %10486 = vmatprep.subr.mxu0 0.0
    %10487 = vmatpush2.msra.mxu0 0.0
    %10488 = vmatprep.subr.mxu0 0.0
    %10489 = vmatpush2.msra.mxu0 0.0
    %10490 = vmatprep.subr.mxu0 0.0
    %10491 = vmatpush2.msra.mxu0 0.0
    %10492 = vmatprep.subr.mxu0 0.0
    %10493 = vmatpush2.msra.mxu0 0.0
    %10494 = vmatprep.subr.mxu0 0.0
    %10495 = vmatpush2.msra.mxu0 0.0
    %10496 = vmatprep.subr.mxu0 0.0
    %10497 = vmatpush2.msra.mxu0 0.0
    %10498 = vmatprep.subr.mxu0 0.0
    %10499 = vmatpush2.msra.mxu0 0.0
    %10500 = vmatprep.subr.mxu0 0.0
    %10501 = vmatpush2.msra.mxu0 0.0
    %10502 = vmatprep.subr.mxu0 0.0
    %10503 = vmatpush2.msra.mxu0 0.0
    %10504 = vmatprep.subr.mxu0 0.0
    %10505 = vmatpush2.msra.mxu0 0.0
    %10506 = vmatprep.subr.mxu0 0.0
    %10507 = vmatpush2.msra.mxu0 0.0
    %10508 = vmatprep.mubr.f32.mxu0 0.0
    %10509 = vmatmul.mubr.f32.gmra.mxu0 %v10433
    %v10510 = vpop.f32.mrf.mxu0
    %v10511 = vadd.f32 0.0, %v10510
    %v10512 = vpop.f32.mrf.mxu0
    %10513 = vmatprep.mubr.f32.mxu0 0.0
    %10514 = vmatmul.mubr.f32.gmra.mxu0 %v10436
    %v10515 = vpop.f32.mrf.mxu0
    %v10516 = vadd.f32 0.0, %v10515
    %v10517 = vpop.f32.mrf.mxu0
    %10518 = vmatprep.mubr.f32.mxu0 0.0
    %10519 = vmatmul.mubr.f32.gmra.mxu0 %v10439
    %v10520 = vpop.f32.mrf.mxu0
    %v10521 = vadd.f32 0.0, %v10520
    %v10522 = vpop.f32.mrf.mxu0
    %10523 = vmatprep.mubr.f32.mxu0 0.0
    %10524 = vmatmul.mubr.f32.gmra.mxu0 %v10442
    %v10525 = vpop.f32.mrf.mxu0
    %v10526 = vadd.f32 0.0, %v10525
    %v10527 = vpop.f32.mrf.mxu0
    %10528 = vdwg.mxu0
    %v10530 = vsel %vm3115, %v10526, 0
    %10532 = vmatprep.subr.mxu0 0.0
    %10533 = vmatpush1.msra.mxu0 0.0
    %10534 = vmatprep.subr.mxu0 0.0
    %10535 = vmatpush1.msra.mxu0 0.0
    %10536 = vmatprep.subr.mxu0 0.0
    %10537 = vmatpush1.msra.mxu0 0.0
    %10538 = vmatprep.subr.mxu0 0.0
    %10539 = vmatpush1.msra.mxu0 0.0
    %10540 = vmatprep.subr.mxu0 0.0
    %10541 = vmatpush1.msra.mxu0 0.0
    %10542 = vmatprep.subr.mxu0 0.0
    %10543 = vmatpush1.msra.mxu0 0.0
    %10544 = vmatprep.subr.mxu0 0.0
    %10545 = vmatpush1.msra.mxu0 0.0
    %10546 = vmatprep.subr.mxu0 0.0
    %10547 = vmatpush1.msra.mxu0 0.0
    %10548 = vmatprep.subr.mxu0 0.0
    %10549 = vmatpush1.msra.mxu0 0.0
    %10550 = vmatprep.subr.mxu0 0.0
    %10551 = vmatpush1.msra.mxu0 0.0
    %10552 = vmatprep.subr.mxu0 0.0
    %10553 = vmatpush1.msra.mxu0 0.0
    %10554 = vmatprep.subr.mxu0 0.0
    %10555 = vmatpush1.msra.mxu0 0.0
    %10556 = vmatprep.subr.mxu0 0.0
    %10557 = vmatpush1.msra.mxu0 %v10530
    %10558 = vmatprep.subr.mxu0 0.0
    %10559 = vmatpush1.msra.mxu0 %v10521
    %10560 = vmatprep.subr.mxu0 0.0
    %10561 = vmatpush1.msra.mxu0 %v10516
    %10562 = vmatprep.subr.mxu0 0.0
    %10563 = vmatpush1.msra.mxu0 %v10511
    %10564 = vmatprep.subr.mxu0 0.0
    %10565 = vmatpush2.msra.mxu0 0.0
    %10566 = vmatprep.subr.mxu0 0.0
    %10567 = vmatpush2.msra.mxu0 0.0
    %10568 = vmatprep.subr.mxu0 0.0
    %10569 = vmatpush2.msra.mxu0 0.0
    %10570 = vmatprep.subr.mxu0 0.0
    %10571 = vmatpush2.msra.mxu0 0.0
    %10572 = vmatprep.subr.mxu0 0.0
    %10573 = vmatpush2.msra.mxu0 0.0
    %10574 = vmatprep.subr.mxu0 0.0
    %10575 = vmatpush2.msra.mxu0 0.0
    %10576 = vmatprep.subr.mxu0 0.0
    %10577 = vmatpush2.msra.mxu0 0.0
    %10578 = vmatprep.subr.mxu0 0.0
    %10579 = vmatpush2.msra.mxu0 0.0
    %10580 = vmatprep.subr.mxu0 0.0
    %10581 = vmatpush2.msra.mxu0 0.0
    %10582 = vmatprep.subr.mxu0 0.0
    %10583 = vmatpush2.msra.mxu0 0.0
    %10584 = vmatprep.subr.mxu0 0.0
    %10585 = vmatpush2.msra.mxu0 0.0
    %10586 = vmatprep.subr.mxu0 0.0
    %10587 = vmatpush2.msra.mxu0 0.0
    %10588 = vmatprep.subr.mxu0 0.0
    %10589 = vmatpush2.msra.mxu0 0.0
    %10590 = vmatprep.subr.mxu0 0.0
    %10591 = vmatpush2.msra.mxu0 0.0
    %10592 = vmatprep.subr.mxu0 0.0
    %10593 = vmatpush2.msra.mxu0 0.0
    %10594 = vmatprep.subr.mxu0 0.0
    %10595 = vmatpush2.msra.mxu0 0.0
    %10596 = vmatprep.mubr.f32.mxu0 0.0
    %10597 = vmatmul.mubr.f32.gmra.mxu0 %v8173
    %v10598 = vpop.f32.mrf.mxu0
    %v10599 = vadd.f32 0.0, %v10598
    %v10600 = vpop.f32.mrf.mxu0
    %10601 = vmatprep.mubr.f32.mxu0 0.0
    %10602 = vmatmul.mubr.f32.gmra.mxu0 %v8176
    %v10603 = vpop.f32.mrf.mxu0
    %v10604 = vadd.f32 0.0, %v10603
    %v10605 = vpop.f32.mrf.mxu0
    %10606 = vdwg.mxu0
    %v10608 = vsel %vm8256, %v10599, 0
    %v10611 = vsel %vm8256, %v10604, 0
    %10613 = vmatprep.subr.mxu0 0.0
    %10614 = vmatpush1.msra.mxu0 0.0
    %10615 = vmatprep.subr.mxu0 0.0
    %10616 = vmatpush1.msra.mxu0 0.0
    %10617 = vmatprep.subr.mxu0 0.0
    %10618 = vmatpush1.msra.mxu0 0.0
    %10619 = vmatprep.subr.mxu0 0.0
    %10620 = vmatpush1.msra.mxu0 0.0
    %10621 = vmatprep.subr.mxu0 0.0
    %10622 = vmatpush1.msra.mxu0 0.0
    %10623 = vmatprep.subr.mxu0 0.0
    %10624 = vmatpush1.msra.mxu0 0.0
    %10625 = vmatprep.subr.mxu0 0.0
    %10626 = vmatpush1.msra.mxu0 0.0
    %10627 = vmatprep.subr.mxu0 0.0
    %10628 = vmatpush1.msra.mxu0 0.0
    %10629 = vmatprep.subr.mxu0 0.0
    %10630 = vmatpush1.msra.mxu0 0.0
    %10631 = vmatprep.subr.mxu0 0.0
    %10632 = vmatpush1.msra.mxu0 %v2300
    %10633 = vmatprep.subr.mxu0 0.0
    %10634 = vmatpush1.msra.mxu0 %v2299
    %10635 = vmatprep.subr.mxu0 0.0
    %10636 = vmatpush1.msra.mxu0 %v2298
    %10637 = vmatprep.subr.mxu0 0.0
    %10638 = vmatpush1.msra.mxu0 %v2297
    %10639 = vmatprep.subr.mxu0 0.0
    %10640 = vmatpush1.msra.mxu0 %v2296
    %10641 = vmatprep.subr.mxu0 0.0
    %10642 = vmatpush1.msra.mxu0 %v2295
    %10643 = vmatprep.subr.mxu0 0.0
    %10644 = vmatpush1.msra.mxu0 %v2294
    %10645 = vmatprep.subr.mxu0 0.0
    %10646 = vmatpush2.msra.mxu0 0.0
    %10647 = vmatprep.subr.mxu0 0.0
    %10648 = vmatpush2.msra.mxu0 0.0
    %10649 = vmatprep.subr.mxu0 0.0
    %10650 = vmatpush2.msra.mxu0 0.0
    %10651 = vmatprep.subr.mxu0 0.0
    %10652 = vmatpush2.msra.mxu0 0.0
    %10653 = vmatprep.subr.mxu0 0.0
    %10654 = vmatpush2.msra.mxu0 0.0
    %10655 = vmatprep.subr.mxu0 0.0
    %10656 = vmatpush2.msra.mxu0 0.0
    %10657 = vmatprep.subr.mxu0 0.0
    %10658 = vmatpush2.msra.mxu0 0.0
    %10659 = vmatprep.subr.mxu0 0.0
    %10660 = vmatpush2.msra.mxu0 0.0
    %10661 = vmatprep.subr.mxu0 0.0
    %10662 = vmatpush2.msra.mxu0 0.0
    %10663 = vmatprep.subr.mxu0 0.0
    %10664 = vmatpush2.msra.mxu0 0.0
    %10665 = vmatprep.subr.mxu0 0.0
    %10666 = vmatpush2.msra.mxu0 0.0
    %10667 = vmatprep.subr.mxu0 0.0
    %10668 = vmatpush2.msra.mxu0 0.0
    %10669 = vmatprep.subr.mxu0 0.0
    %10670 = vmatpush2.msra.mxu0 0.0
    %10671 = vmatprep.subr.mxu0 0.0
    %10672 = vmatpush2.msra.mxu0 0.0
    %10673 = vmatprep.subr.mxu0 0.0
    %10674 = vmatpush2.msra.mxu0 0.0
    %10675 = vmatprep.subr.mxu0 0.0
    %10676 = vmatpush2.msra.mxu0 0.0
    %10677 = vmatprep.mubr.f32.mxu0 0.0
    %10678 = vmatmul.mubr.f32.gmra.mxu0 %v10608
    %v10679 = vpop.f32.mrf.mxu0
    %v10680 = vadd.f32 0.0, %v10679
    %v10681 = vpop.f32.mrf.mxu0
    %10682 = vmatprep.mubr.f32.mxu0 0.0
    %10683 = vmatmul.mubr.f32.gmra.mxu0 %v10611
    %v10684 = vpop.f32.mrf.mxu0
    %v10685 = vadd.f32 0.0, %v10684
    %v10686 = vpop.f32.mrf.mxu0
    %10687 = vdwg.mxu0
    %v10688 = vmul.f32 %v10680, %v8330
    %v10689 = vmul.f32 %v10685, %v8335
    %v10690 = vadd.f32 %v10688, %v8330
    %v10691 = vadd.f32 %v10689, %v8335
    %10692 = vst.msk [vmem:[%s8] sm:$0xff] %vm8171, %v10690
    %10693 = vst.msk [vmem:[%s8 + $0x8] sm:$0xff] %vm8171, %v10691
    // Predicated region
    $region42: #{ccp_forward.2} parent=1 // pred_check
      _
    $region43: #{ccp_forward.2} parent=1 // pred_check_branch
      %10695 = sbr.rel (0) target = $region45
    $region44: #{ccp_forward.2} parent=1 // pred_region
      _
    $region45: #{ccp_forward.2} parent=1 // pred_fallthru
      _
    // Predicated region
    $region46: #{ccp_forward.2} parent=1 // pred_check
      _
    $region47: #{ccp_forward.2} parent=1 // pred_check_branch
      %10697 = sbr.rel (0) target = $region49
    $region48: #{ccp_forward.2} parent=1 // pred_region
      _
    $region49: #{ccp_forward.2} parent=1 // pred_fallthru
      _
    %10698 = vsyncpa [#allocation4], 1
    %10699 = vsyncpa [#allocation6], 1

</llo_original>
